<compile_context>
chip_gen: v7x
topology: tpu7x:2x2x1
jax: 0.10.0
libtpu: 0.0.40
codegen_flags: <defaults>
</compile_context>

<pallas_src>
import jax
import jax.numpy as jnp
from jax import lax
from jax.experimental import pallas as pl
from jax.experimental.pallas import tpu as pltpu

H, W = 16, 16        # input spatial size
HO, WO = 8, 8        # spatial size after MaxPool2d(2)
C_IN, C_MID, C_OUT = 4, 8, 16


# ----------------------------------------------------------------------------
# Fused kernel
# ----------------------------------------------------------------------------
def _conv3x3_relu(pad_ref, w_ref, b_ref, hc, wc):
    """3x3 'same' conv + bias + ReLU, reading from a zero-bordered scratch.

    pad_ref : (hc+2, wc+2, cin) VMEM scratch, border already zero
    w_ref   : (3, 3, cin, cout) HWIO weights
    b_ref   : (1, cout)
    returns : (hc*wc, cout) f32 value, rows ordered as h*wc + w
    """
    cin = w_ref.shape[2]
    cout = w_ref.shape[3]
    acc = jnp.zeros((hc * wc, cout), jnp.float32)
    # 3x3 conv as 9 shifted-window matmuls on the MXU, f32 accumulation.
    for dy in range(3):
        for dx in range(3):
            patch = pad_ref[dy:dy + hc, dx:dx + wc, :].reshape(hc * wc, cin)
            acc = acc + jnp.dot(patch, w_ref[dy, dx],
                                preferred_element_type=jnp.float32)
    # Fused bias + ReLU epilogue (review item: no standalone ReLU pass).
    return jnp.maximum(acc + b_ref[0], 0.0)


def _fused_features_kernel(x_ref, w0_ref, b0_ref, w1_ref, b1_ref,
                           w2_ref, b2_ref,
                           f1_ref, f2_ref, f3_ref,
                           pad_in, pad_mid, pad_pool, pool_buf):
    # Zero the padded scratch buffers once per grid step: their 1-px halo is
    # the conv 'padding=1'; interiors are fully overwritten below.
    pad_in[...] = jnp.zeros_like(pad_in)
    pad_mid[...] = jnp.zeros_like(pad_mid)
    pad_pool[...] = jnp.zeros_like(pad_pool)

    # layers 0+1: Conv2d(4, 8) + ReLU  -> tap f1
    pad_in[1:H + 1, 1:W + 1, :] = x_ref[0]
    a1 = _conv3x3_relu(pad_in, w0_ref, b0_ref, H, W)          # (256, 8)
    f1_ref[0] = a1.reshape(H, W, C_MID).astype(f1_ref.dtype)

    # layers 2+3: Conv2d(8, 8) + ReLU  (stays in VMEM)
    pad_mid[1:H + 1, 1:W + 1, :] = a1.reshape(H, W, C_MID)
    a2 = _conv3x3_relu(pad_mid, w1_ref, b1_ref, H, W)         # (256, 8)

    # layer 4: MaxPool2d(2) -> tap f2
    # Rows of a2 are h*W + w, so row parity == w parity: a strided sublane
    # read pairs the two columns of each 2x2 window; the row pair (h even/odd)
    # is then an outer-dim max after a leading-dim reshape.
    pool_buf[...] = a2
    wmax = jnp.maximum(pool_buf[pl.ds(0, (H * W) // 2, stride=2), :],
                       pool_buf[pl.ds(1, (H * W) // 2, stride=2), :])  # (128, 8)
    x4 = wmax.reshape(HO, 2, WO, C_MID)                        # (hi, h&1, wo, c)
    pooled = jnp.maximum(x4[:, 0], x4[:, 1])                   # (8, 8, 8)
    f2_ref[0] = pooled.astype(f2_ref.dtype)

    # layers 5+6: Conv2d(8, 16) + ReLU -> tap f3
    pad_pool[1:HO + 1, 1:WO + 1, :] = pooled
    a3 = _conv3x3_relu(pad_pool, w2_ref, b2_ref, HO, WO)       # (64, 16)
    f3_ref[0] = a3.reshape(HO, WO, C_OUT).astype(f3_ref.dtype)


# ----------------------------------------------------------------------------
# Backbone parameters ("cnn_model.features") and Modified_CNN forward
# ----------------------------------------------------------------------------
_EXPECTED_DEFS = [("conv", 4, 8), ("relu",), ("conv", 8, 8), ("relu",),
                  ("maxpool",), ("conv", 8, 16), ("relu",)]
_EXPECTED_TAPS = [1, 4, 6]


def make_features_params(key):
    defs = list(_EXPECTED_DEFS)
    params = []
    for d in defs:
        if d[0] == "conv":
            cin, cout = d[1], d[2]
            key, k1, k2 = jax.random.split(key, 3)
            bound = 1.0 / (cin * 9) ** 0.5  # PyTorch Conv2d default init bound
            w = jax.random.uniform(k1, (3, 3, cin, cout), jnp.float32,
                                   -bound, bound)
            b = jax.random.uniform(k2, (cout,), jnp.float32, -bound, bound)
            params.append((w, b))
        else:
            params.append(None)
    return defs, params


def modified_cnn_forward(x_nchw, defs, params, layer_idx_ls):
    """Equivalent of Modified_CNN.forward for the in-script backbone:
    runs the whole layer stack in ONE fused Pallas kernel and returns the
    activations after each index in layer_idx_ls (FeatureReturner taps),
    as NCHW tensors."""
    assert list(defs) == _EXPECTED_DEFS and list(layer_idx_ls) == _EXPECTED_TAPS, \
        "fused kernel is specialized to the in-script backbone / tap points"
    N = x_nchw.shape[0]
    x = jnp.transpose(x_nchw, (0, 2, 3, 1))   # NCHW -> NHWC (module boundary)
    (w0, b0), (w1, b1), (w2, b2) = params[0], params[2], params[5]

    out_shape = (
        jax.ShapeDtypeStruct((N, H, W, C_MID), x.dtype),     # after layer 1
        jax.ShapeDtypeStruct((N, HO, WO, C_MID), x.dtype),   # after layer 4
        jax.ShapeDtypeStruct((N, HO, WO, C_OUT), x.dtype),   # after layer 6
    )
    f1, f2, f3 = pl.pallas_call(
        _fused_features_kernel,
        out_shape=out_shape,
        grid=(N,),
        in_specs=[
            pl.BlockSpec((1, H, W, C_IN), lambda n: (n, 0, 0, 0)),
            pl.BlockSpec((3, 3, C_IN, C_MID), lambda n: (0, 0, 0, 0)),
            pl.BlockSpec((1, C_MID), lambda n: (0, 0)),
            pl.BlockSpec((3, 3, C_MID, C_MID), lambda n: (0, 0, 0, 0)),
            pl.BlockSpec((1, C_MID), lambda n: (0, 0)),
            pl.BlockSpec((3, 3, C_MID, C_OUT), lambda n: (0, 0, 0, 0)),
            pl.BlockSpec((1, C_OUT), lambda n: (0, 0)),
        ],
        out_specs=[
            pl.BlockSpec((1, H, W, C_MID), lambda n: (n, 0, 0, 0)),
            pl.BlockSpec((1, HO, WO, C_MID), lambda n: (n, 0, 0, 0)),
            pl.BlockSpec((1, HO, WO, C_OUT), lambda n: (n, 0, 0, 0)),
        ],
        scratch_shapes=[
            pltpu.VMEM((H + 2, W + 2, C_IN), jnp.float32),    # conv0 halo buf
            pltpu.VMEM((H + 2, W + 2, C_MID), jnp.float32),   # conv1 halo buf
            pltpu.VMEM((HO + 2, WO + 2, C_MID), jnp.float32), # conv2 halo buf
            pltpu.VMEM((H * W, C_MID), jnp.float32),          # pool staging
        ],
        compiler_params=pltpu.CompilerParams(
            dimension_semantics=("parallel",)),
    )(x, w0, b0.reshape(1, -1), w1, b1.reshape(1, -1), w2, b2.reshape(1, -1))

    # Back to PyTorch NCHW convention, in tap order [1, 4, 6].
    return [jnp.transpose(f, (0, 3, 1, 2)) for f in (f1, f2, f3)]


# ----------------------------------------------------------------------------
# Pure-JAX reference (correctness check only)
# ----------------------------------------------------------------------------
def _reference_forward(x_nchw, defs, params, layer_idx_ls):
    x = jnp.transpose(x_nchw, (0, 2, 3, 1))
    feats = []
    for i, d in enumerate(defs):
        if d[0] == "conv":
            w, b = params[i]
            x = lax.conv_general_dilated(
                x, w, window_strides=(1, 1), padding="SAME",
                dimension_numbers=("NHWC", "HWIO", "NHWC")) + b
        elif d[0] == "relu":
            x = jnp.maximum(x, 0.0)
        else:
            x = lax.reduce_window(x, -jnp.inf, lax.max,
                                  (1, 2, 2, 1), (1, 2, 2, 1), "VALID")
        if i in set(layer_idx_ls):
            feats.append(jnp.transpose(x, (0, 3, 1, 2)))
    return feats


if __name__ == "__main__":
    key = jax.random.PRNGKey(0)
    kx, kp = jax.random.split(key)
    x = jax.random.normal(kx, (2, 4, 16, 16), jnp.float32)  # NCHW input

    defs, params = make_features_params(kp)
    layer_idx_ls = [1, 4, 6]   # tap points, like Modified_CNN(cnn_model, [1,4,6])

    feats = modified_cnn_forward(x, defs, params, layer_idx_ls)
    feats = [jax.block_until_ready(f) for f in feats]

    ref = _reference_forward(x, defs, params, layer_idx_ls)
    for got, want in zip(feats, ref):
        assert got.shape == want.shape, (got.shape, want.shape)
        assert jnp.max(jnp.abs(got - want)) < 1e-4

    print("KERNEL_OK")
</pallas_src>

<mosaic_0001>
module attributes {stable_mosaic.version = 11 : i64} {
  func.func @_fused_features_kernel(%arg0: i32, %arg1: memref<1x16x16x4xf32, #tpu.memory_space<vmem>>, %arg2: memref<3x3x4x8xf32, #tpu.memory_space<vmem>>, %arg3: memref<1x8xf32, #tpu.memory_space<vmem>>, %arg4: memref<3x3x8x8xf32, #tpu.memory_space<vmem>>, %arg5: memref<1x8xf32, #tpu.memory_space<vmem>>, %arg6: memref<3x3x8x16xf32, #tpu.memory_space<vmem>>, %arg7: memref<1x16xf32, #tpu.memory_space<vmem>>, %arg8: memref<1x16x16x8xf32, #tpu.memory_space<vmem>>, %arg9: memref<1x8x8x8xf32, #tpu.memory_space<vmem>>, %arg10: memref<1x8x8x16xf32, #tpu.memory_space<vmem>>, %arg11: memref<18x18x4xf32, #tpu.memory_space<vmem>>, %arg12: memref<18x18x8xf32, #tpu.memory_space<vmem>>, %arg13: memref<10x10x8xf32, #tpu.memory_space<vmem>>, %arg14: memref<256x8xf32, #tpu.memory_space<vmem>>) attributes {dimension_semantics = [#tpu.dimension_semantics<parallel>], iteration_bounds = array<i64: 2>, scalar_prefetch = 0 : i64, scratch_operands = 4 : i64, tpu.core_type = #tpu.core_type<tc>, window_params = [{transform_indices = @transform_0, window_bounds = array<i64: 1, 16, 16, 4>}, {pipeline_mode = #tpu.pipeline_mode<synchronous>, transform_indices = @transform_1, window_bounds = array<i64: 3, 3, 4, 8>}, {pipeline_mode = #tpu.pipeline_mode<synchronous>, transform_indices = @transform_2, window_bounds = array<i64: 1, 8>}, {pipeline_mode = #tpu.pipeline_mode<synchronous>, transform_indices = @transform_3, window_bounds = array<i64: 3, 3, 8, 8>}, {pipeline_mode = #tpu.pipeline_mode<synchronous>, transform_indices = @transform_4, window_bounds = array<i64: 1, 8>}, {pipeline_mode = #tpu.pipeline_mode<synchronous>, transform_indices = @transform_5, window_bounds = array<i64: 3, 3, 8, 16>}, {pipeline_mode = #tpu.pipeline_mode<synchronous>, transform_indices = @transform_6, window_bounds = array<i64: 1, 16>}, {transform_indices = @transform_7, window_bounds = array<i64: 1, 16, 16, 8>}, {transform_indices = @transform_8, window_bounds = array<i64: 1, 8, 8, 8>}, {transform_indices = @transform_9, window_bounds = array<i64: 1, 8, 8, 16>}]} {
    %cst = arith.constant 0.000000e+00 : f32
    %0 = vector.broadcast %cst : f32 to vector<18x18x4xf32>
    %c0 = arith.constant 0 : index
    %c0_0 = arith.constant 0 : index
    %c0_1 = arith.constant 0 : index
    %1 = vector.load %arg11[%c0, %c0_0, %c0_1] : memref<18x18x4xf32, #tpu.memory_space<vmem>>, vector<18x18x4xf32>
    tpu.vector_store %arg11[%c0, %c0_0, %c0_1], %0 {strides = array<i32>} : memref<18x18x4xf32, #tpu.memory_space<vmem>>, vector<18x18x4xf32>,
    %cst_2 = arith.constant 0.000000e+00 : f32
    %2 = vector.broadcast %cst_2 : f32 to vector<18x18x8xf32>
    %c0_3 = arith.constant 0 : index
    %c0_4 = arith.constant 0 : index
    %c0_5 = arith.constant 0 : index
    %3 = vector.load %arg12[%c0_3, %c0_4, %c0_5] : memref<18x18x8xf32, #tpu.memory_space<vmem>>, vector<18x18x8xf32>
    tpu.vector_store %arg12[%c0_3, %c0_4, %c0_5], %2 {strides = array<i32>} : memref<18x18x8xf32, #tpu.memory_space<vmem>>, vector<18x18x8xf32>,
    %cst_6 = arith.constant 0.000000e+00 : f32
    %4 = vector.broadcast %cst_6 : f32 to vector<10x10x8xf32>
    %c0_7 = arith.constant 0 : index
    %c0_8 = arith.constant 0 : index
    %c0_9 = arith.constant 0 : index
    %5 = vector.load %arg13[%c0_7, %c0_8, %c0_9] : memref<10x10x8xf32, #tpu.memory_space<vmem>>, vector<10x10x8xf32>
    tpu.vector_store %arg13[%c0_7, %c0_8, %c0_9], %4 {strides = array<i32>} : memref<10x10x8xf32, #tpu.memory_space<vmem>>, vector<10x10x8xf32>,
    %c0_10 = arith.constant 0 : index
    %c0_11 = arith.constant 0 : index
    %c0_12 = arith.constant 0 : index
    %c0_13 = arith.constant 0 : index
    %6 = vector.load %arg1[%c0_10, %c0_11, %c0_12, %c0_13] : memref<1x16x16x4xf32, #tpu.memory_space<vmem>>, vector<1x16x16x4xf32>
    %7 = vector.shape_cast %6 : vector<1x16x16x4xf32> to vector<16x16x4xf32>
    %c1 = arith.constant 1 : index
    %c1_14 = arith.constant 1 : index
    %c0_15 = arith.constant 0 : index
    %8 = vector.load %arg11[%c1, %c1_14, %c0_15] : memref<18x18x4xf32, #tpu.memory_space<vmem>>, vector<16x16x4xf32>
    tpu.vector_store %arg11[%c1, %c1_14, %c0_15], %7 {strides = array<i32>} : memref<18x18x4xf32, #tpu.memory_space<vmem>>, vector<16x16x4xf32>,
    %cst_16 = arith.constant 0.000000e+00 : f32
    %9 = vector.broadcast %cst_16 : f32 to vector<256x8xf32>
    %c0_17 = arith.constant 0 : index
    %c0_18 = arith.constant 0 : index
    %c0_19 = arith.constant 0 : index
    %10 = vector.load %arg11[%c0_17, %c0_18, %c0_19] : memref<18x18x4xf32, #tpu.memory_space<vmem>>, vector<16x16x4xf32>
    %11 = vector.shape_cast %10 : vector<16x16x4xf32> to vector<256x4xf32>
    %c0_20 = arith.constant 0 : index
    %c0_21 = arith.constant 0 : index
    %c0_22 = arith.constant 0 : index
    %c0_23 = arith.constant 0 : index
    %12 = vector.load %arg2[%c0_20, %c0_21, %c0_22, %c0_23] : memref<3x3x4x8xf32, #tpu.memory_space<vmem>>, vector<1x1x4x8xf32>
    %13 = vector.shape_cast %12 : vector<1x1x4x8xf32> to vector<4x8xf32>
    %cst_24 = arith.constant dense<0.000000e+00> : vector<256x8xf32>
    %14 = tpu.matmul %11, %13, %cst_24 {dimension_numbers = #tpu.dot_dimension_numbers<[1], [0], [0], [1], [0, 0, 1, 1], [], []>} : vector<256x4xf32>, vector<4x8xf32>, vector<256x8xf32> -> vector<256x8xf32>
    %15 = arith.addf %9, %14 : vector<256x8xf32>
    %c0_25 = arith.constant 0 : index
    %c1_26 = arith.constant 1 : index
    %c0_27 = arith.constant 0 : index
    %16 = vector.load %arg11[%c0_25, %c1_26, %c0_27] : memref<18x18x4xf32, #tpu.memory_space<vmem>>, vector<16x16x4xf32>
    %17 = vector.shape_cast %16 : vector<16x16x4xf32> to vector<256x4xf32>
    %c0_28 = arith.constant 0 : index
    %c1_29 = arith.constant 1 : index
    %c0_30 = arith.constant 0 : index
    %c0_31 = arith.constant 0 : index
    %18 = vector.load %arg2[%c0_28, %c1_29, %c0_30, %c0_31] : memref<3x3x4x8xf32, #tpu.memory_space<vmem>>, vector<1x1x4x8xf32>
    %19 = vector.shape_cast %18 : vector<1x1x4x8xf32> to vector<4x8xf32>
    %cst_32 = arith.constant dense<0.000000e+00> : vector<256x8xf32>
    %20 = tpu.matmul %17, %19, %cst_32 {dimension_numbers = #tpu.dot_dimension_numbers<[1], [0], [0], [1], [0, 0, 1, 1], [], []>} : vector<256x4xf32>, vector<4x8xf32>, vector<256x8xf32> -> vector<256x8xf32>
    %21 = arith.addf %15, %20 : vector<256x8xf32>
    %c0_33 = arith.constant 0 : index
    %c2 = arith.constant 2 : index
    %c0_34 = arith.constant 0 : index
    %22 = vector.load %arg11[%c0_33, %c2, %c0_34] : memref<18x18x4xf32, #tpu.memory_space<vmem>>, vector<16x16x4xf32>
    %23 = vector.shape_cast %22 : vector<16x16x4xf32> to vector<256x4xf32>
    %c0_35 = arith.constant 0 : index
    %c2_36 = arith.constant 2 : index
    %c0_37 = arith.constant 0 : index
    %c0_38 = arith.constant 0 : index
    %24 = vector.load %arg2[%c0_35, %c2_36, %c0_37, %c0_38] : memref<3x3x4x8xf32, #tpu.memory_space<vmem>>, vector<1x1x4x8xf32>
    %25 = vector.shape_cast %24 : vector<1x1x4x8xf32> to vector<4x8xf32>
    %cst_39 = arith.constant dense<0.000000e+00> : vector<256x8xf32>
    %26 = tpu.matmul %23, %25, %cst_39 {dimension_numbers = #tpu.dot_dimension_numbers<[1], [0], [0], [1], [0, 0, 1, 1], [], []>} : vector<256x4xf32>, vector<4x8xf32>, vector<256x8xf32> -> vector<256x8xf32>
    %27 = arith.addf %21, %26 : vector<256x8xf32>
    %c1_40 = arith.constant 1 : index
    %c0_41 = arith.constant 0 : index
    %c0_42 = arith.constant 0 : index
    %28 = vector.load %arg11[%c1_40, %c0_41, %c0_42] : memref<18x18x4xf32, #tpu.memory_space<vmem>>, vector<16x16x4xf32>
    %29 = vector.shape_cast %28 : vector<16x16x4xf32> to vector<256x4xf32>
    %c1_43 = arith.constant 1 : index
    %c0_44 = arith.constant 0 : index
    %c0_45 = arith.constant 0 : index
    %c0_46 = arith.constant 0 : index
    %30 = vector.load %arg2[%c1_43, %c0_44, %c0_45, %c0_46] : memref<3x3x4x8xf32, #tpu.memory_space<vmem>>, vector<1x1x4x8xf32>
    %31 = vector.shape_cast %30 : vector<1x1x4x8xf32> to vector<4x8xf32>
    %cst_47 = arith.constant dense<0.000000e+00> : vector<256x8xf32>
    %32 = tpu.matmul %29, %31, %cst_47 {dimension_numbers = #tpu.dot_dimension_numbers<[1], [0], [0], [1], [0, 0, 1, 1], [], []>} : vector<256x4xf32>, vector<4x8xf32>, vector<256x8xf32> -> vector<256x8xf32>
    %33 = arith.addf %27, %32 : vector<256x8xf32>
    %c1_48 = arith.constant 1 : index
    %c1_49 = arith.constant 1 : index
    %c0_50 = arith.constant 0 : index
    %34 = vector.load %arg11[%c1_48, %c1_49, %c0_50] : memref<18x18x4xf32, #tpu.memory_space<vmem>>, vector<16x16x4xf32>
    %35 = vector.shape_cast %34 : vector<16x16x4xf32> to vector<256x4xf32>
    %c1_51 = arith.constant 1 : index
    %c1_52 = arith.constant 1 : index
    %c0_53 = arith.constant 0 : index
    %c0_54 = arith.constant 0 : index
    %36 = vector.load %arg2[%c1_51, %c1_52, %c0_53, %c0_54] : memref<3x3x4x8xf32, #tpu.memory_space<vmem>>, vector<1x1x4x8xf32>
    %37 = vector.shape_cast %36 : vector<1x1x4x8xf32> to vector<4x8xf32>
    %cst_55 = arith.constant dense<0.000000e+00> : vector<256x8xf32>
    %38 = tpu.matmul %35, %37, %cst_55 {dimension_numbers = #tpu.dot_dimension_numbers<[1], [0], [0], [1], [0, 0, 1, 1], [], []>} : vector<256x4xf32>, vector<4x8xf32>, vector<256x8xf32> -> vector<256x8xf32>
    %39 = arith.addf %33, %38 : vector<256x8xf32>
    %c1_56 = arith.constant 1 : index
    %c2_57 = arith.constant 2 : index
    %c0_58 = arith.constant 0 : index
    %40 = vector.load %arg11[%c1_56, %c2_57, %c0_58] : memref<18x18x4xf32, #tpu.memory_space<vmem>>, vector<16x16x4xf32>
    %41 = vector.shape_cast %40 : vector<16x16x4xf32> to vector<256x4xf32>
    %c1_59 = arith.constant 1 : index
    %c2_60 = arith.constant 2 : index
    %c0_61 = arith.constant 0 : index
    %c0_62 = arith.constant 0 : index
    %42 = vector.load %arg2[%c1_59, %c2_60, %c0_61, %c0_62] : memref<3x3x4x8xf32, #tpu.memory_space<vmem>>, vector<1x1x4x8xf32>
    %43 = vector.shape_cast %42 : vector<1x1x4x8xf32> to vector<4x8xf32>
    %cst_63 = arith.constant dense<0.000000e+00> : vector<256x8xf32>
    %44 = tpu.matmul %41, %43, %cst_63 {dimension_numbers = #tpu.dot_dimension_numbers<[1], [0], [0], [1], [0, 0, 1, 1], [], []>} : vector<256x4xf32>, vector<4x8xf32>, vector<256x8xf32> -> vector<256x8xf32>
    %45 = arith.addf %39, %44 : vector<256x8xf32>
    %c2_64 = arith.constant 2 : index
    %c0_65 = arith.constant 0 : index
    %c0_66 = arith.constant 0 : index
    %46 = vector.load %arg11[%c2_64, %c0_65, %c0_66] : memref<18x18x4xf32, #tpu.memory_space<vmem>>, vector<16x16x4xf32>
    %47 = vector.shape_cast %46 : vector<16x16x4xf32> to vector<256x4xf32>
    %c2_67 = arith.constant 2 : index
    %c0_68 = arith.constant 0 : index
    %c0_69 = arith.constant 0 : index
    %c0_70 = arith.constant 0 : index
    %48 = vector.load %arg2[%c2_67, %c0_68, %c0_69, %c0_70] : memref<3x3x4x8xf32, #tpu.memory_space<vmem>>, vector<1x1x4x8xf32>
    %49 = vector.shape_cast %48 : vector<1x1x4x8xf32> to vector<4x8xf32>
    %cst_71 = arith.constant dense<0.000000e+00> : vector<256x8xf32>
    %50 = tpu.matmul %47, %49, %cst_71 {dimension_numbers = #tpu.dot_dimension_numbers<[1], [0], [0], [1], [0, 0, 1, 1], [], []>} : vector<256x4xf32>, vector<4x8xf32>, vector<256x8xf32> -> vector<256x8xf32>
    %51 = arith.addf %45, %50 : vector<256x8xf32>
    %c2_72 = arith.constant 2 : index
    %c1_73 = arith.constant 1 : index
    %c0_74 = arith.constant 0 : index
    %52 = vector.load %arg11[%c2_72, %c1_73, %c0_74] : memref<18x18x4xf32, #tpu.memory_space<vmem>>, vector<16x16x4xf32>
    %53 = vector.shape_cast %52 : vector<16x16x4xf32> to vector<256x4xf32>
    %c2_75 = arith.constant 2 : index
    %c1_76 = arith.constant 1 : index
    %c0_77 = arith.constant 0 : index
    %c0_78 = arith.constant 0 : index
    %54 = vector.load %arg2[%c2_75, %c1_76, %c0_77, %c0_78] : memref<3x3x4x8xf32, #tpu.memory_space<vmem>>, vector<1x1x4x8xf32>
    %55 = vector.shape_cast %54 : vector<1x1x4x8xf32> to vector<4x8xf32>
    %cst_79 = arith.constant dense<0.000000e+00> : vector<256x8xf32>
    %56 = tpu.matmul %53, %55, %cst_79 {dimension_numbers = #tpu.dot_dimension_numbers<[1], [0], [0], [1], [0, 0, 1, 1], [], []>} : vector<256x4xf32>, vector<4x8xf32>, vector<256x8xf32> -> vector<256x8xf32>
    %57 = arith.addf %51, %56 : vector<256x8xf32>
    %c2_80 = arith.constant 2 : index
    %c2_81 = arith.constant 2 : index
    %c0_82 = arith.constant 0 : index
    %58 = vector.load %arg11[%c2_80, %c2_81, %c0_82] : memref<18x18x4xf32, #tpu.memory_space<vmem>>, vector<16x16x4xf32>
    %59 = vector.shape_cast %58 : vector<16x16x4xf32> to vector<256x4xf32>
    %c2_83 = arith.constant 2 : index
    %c2_84 = arith.constant 2 : index
    %c0_85 = arith.constant 0 : index
    %c0_86 = arith.constant 0 : index
    %60 = vector.load %arg2[%c2_83, %c2_84, %c0_85, %c0_86] : memref<3x3x4x8xf32, #tpu.memory_space<vmem>>, vector<1x1x4x8xf32>
    %61 = vector.shape_cast %60 : vector<1x1x4x8xf32> to vector<4x8xf32>
    %cst_87 = arith.constant dense<0.000000e+00> : vector<256x8xf32>
    %62 = tpu.matmul %59, %61, %cst_87 {dimension_numbers = #tpu.dot_dimension_numbers<[1], [0], [0], [1], [0, 0, 1, 1], [], []>} : vector<256x4xf32>, vector<4x8xf32>, vector<256x8xf32> -> vector<256x8xf32>
    %63 = arith.addf %57, %62 : vector<256x8xf32>
    %c0_88 = arith.constant 0 : index
    %c0_89 = arith.constant 0 : index
    %64 = vector.load %arg3[%c0_88, %c0_89] : memref<1x8xf32, #tpu.memory_space<vmem>>, vector<1x8xf32>
    %65 = vector.shape_cast %64 : vector<1x8xf32> to vector<8xf32>
    %66 = vector.shape_cast %65 : vector<8xf32> to vector<1x8xf32>
    %67 = vector.broadcast %66 : vector<1x8xf32> to vector<256x8xf32>
    %68 = arith.addf %63, %67 : vector<256x8xf32>
    %cst_90 = arith.constant 0.000000e+00 : f32
    %69 = vector.broadcast %cst_90 : f32 to vector<256x8xf32>
    %70 = arith.maximumf %68, %69 : vector<256x8xf32>
    %71 = vector.shape_cast %70 : vector<256x8xf32> to vector<16x16x8xf32>
    %c0_91 = arith.constant 0 : index
    %c0_92 = arith.constant 0 : index
    %c0_93 = arith.constant 0 : index
    %c0_94 = arith.constant 0 : index
    %72 = vector.load %arg8[%c0_91, %c0_92, %c0_93, %c0_94] : memref<1x16x16x8xf32, #tpu.memory_space<vmem>>, vector<1x16x16x8xf32>
    %73 = vector.shape_cast %72 : vector<1x16x16x8xf32> to vector<16x16x8xf32>
    %74 = vector.shape_cast %71 : vector<16x16x8xf32> to vector<1x16x16x8xf32>
    tpu.vector_store %arg8[%c0_91, %c0_92, %c0_93, %c0_94], %74 {strides = array<i32>} : memref<1x16x16x8xf32, #tpu.memory_space<vmem>>, vector<1x16x16x8xf32>,
    %75 = vector.shape_cast %70 : vector<256x8xf32> to vector<16x16x8xf32>
    %c1_95 = arith.constant 1 : index
    %c1_96 = arith.constant 1 : index
    %c0_97 = arith.constant 0 : index
    %76 = vector.load %arg12[%c1_95, %c1_96, %c0_97] : memref<18x18x8xf32, #tpu.memory_space<vmem>>, vector<16x16x8xf32>
    tpu.vector_store %arg12[%c1_95, %c1_96, %c0_97], %75 {strides = array<i32>} : memref<18x18x8xf32, #tpu.memory_space<vmem>>, vector<16x16x8xf32>,
    %cst_98 = arith.constant 0.000000e+00 : f32
    %77 = vector.broadcast %cst_98 : f32 to vector<256x8xf32>
    %c0_99 = arith.constant 0 : index
    %c0_100 = arith.constant 0 : index
    %c0_101 = arith.constant 0 : index
    %78 = vector.load %arg12[%c0_99, %c0_100, %c0_101] : memref<18x18x8xf32, #tpu.memory_space<vmem>>, vector<16x16x8xf32>
    %79 = vector.shape_cast %78 : vector<16x16x8xf32> to vector<256x8xf32>
    %c0_102 = arith.constant 0 : index
    %c0_103 = arith.constant 0 : index
    %c0_104 = arith.constant 0 : index
    %c0_105 = arith.constant 0 : index
    %80 = vector.load %arg4[%c0_102, %c0_103, %c0_104, %c0_105] : memref<3x3x8x8xf32, #tpu.memory_space<vmem>>, vector<1x1x8x8xf32>
    %81 = vector.shape_cast %80 : vector<1x1x8x8xf32> to vector<8x8xf32>
    %cst_106 = arith.constant dense<0.000000e+00> : vector<256x8xf32>
    %82 = tpu.matmul %79, %81, %cst_106 {dimension_numbers = #tpu.dot_dimension_numbers<[1], [0], [0], [1], [0, 0, 1, 1], [], []>} : vector<256x8xf32>, vector<8x8xf32>, vector<256x8xf32> -> vector<256x8xf32>
    %83 = arith.addf %77, %82 : vector<256x8xf32>
    %c0_107 = arith.constant 0 : index
    %c1_108 = arith.constant 1 : index
    %c0_109 = arith.constant 0 : index
    %84 = vector.load %arg12[%c0_107, %c1_108, %c0_109] : memref<18x18x8xf32, #tpu.memory_space<vmem>>, vector<16x16x8xf32>
    %85 = vector.shape_cast %84 : vector<16x16x8xf32> to vector<256x8xf32>
    %c0_110 = arith.constant 0 : index
    %c1_111 = arith.constant 1 : index
    %c0_112 = arith.constant 0 : index
    %c0_113 = arith.constant 0 : index
    %86 = vector.load %arg4[%c0_110, %c1_111, %c0_112, %c0_113] : memref<3x3x8x8xf32, #tpu.memory_space<vmem>>, vector<1x1x8x8xf32>
    %87 = vector.shape_cast %86 : vector<1x1x8x8xf32> to vector<8x8xf32>
    %cst_114 = arith.constant dense<0.000000e+00> : vector<256x8xf32>
    %88 = tpu.matmul %85, %87, %cst_114 {dimension_numbers = #tpu.dot_dimension_numbers<[1], [0], [0], [1], [0, 0, 1, 1], [], []>} : vector<256x8xf32>, vector<8x8xf32>, vector<256x8xf32> -> vector<256x8xf32>
    %89 = arith.addf %83, %88 : vector<256x8xf32>
    %c0_115 = arith.constant 0 : index
    %c2_116 = arith.constant 2 : index
    %c0_117 = arith.constant 0 : index
    %90 = vector.load %arg12[%c0_115, %c2_116, %c0_117] : memref<18x18x8xf32, #tpu.memory_space<vmem>>, vector<16x16x8xf32>
    %91 = vector.shape_cast %90 : vector<16x16x8xf32> to vector<256x8xf32>
    %c0_118 = arith.constant 0 : index
    %c2_119 = arith.constant 2 : index
    %c0_120 = arith.constant 0 : index
    %c0_121 = arith.constant 0 : index
    %92 = vector.load %arg4[%c0_118, %c2_119, %c0_120, %c0_121] : memref<3x3x8x8xf32, #tpu.memory_space<vmem>>, vector<1x1x8x8xf32>
    %93 = vector.shape_cast %92 : vector<1x1x8x8xf32> to vector<8x8xf32>
    %cst_122 = arith.constant dense<0.000000e+00> : vector<256x8xf32>
    %94 = tpu.matmul %91, %93, %cst_122 {dimension_numbers = #tpu.dot_dimension_numbers<[1], [0], [0], [1], [0, 0, 1, 1], [], []>} : vector<256x8xf32>, vector<8x8xf32>, vector<256x8xf32> -> vector<256x8xf32>
    %95 = arith.addf %89, %94 : vector<256x8xf32>
    %c1_123 = arith.constant 1 : index
    %c0_124 = arith.constant 0 : index
    %c0_125 = arith.constant 0 : index
    %96 = vector.load %arg12[%c1_123, %c0_124, %c0_125] : memref<18x18x8xf32, #tpu.memory_space<vmem>>, vector<16x16x8xf32>
    %97 = vector.shape_cast %96 : vector<16x16x8xf32> to vector<256x8xf32>
    %c1_126 = arith.constant 1 : index
    %c0_127 = arith.constant 0 : index
    %c0_128 = arith.constant 0 : index
    %c0_129 = arith.constant 0 : index
    %98 = vector.load %arg4[%c1_126, %c0_127, %c0_128, %c0_129] : memref<3x3x8x8xf32, #tpu.memory_space<vmem>>, vector<1x1x8x8xf32>
    %99 = vector.shape_cast %98 : vector<1x1x8x8xf32> to vector<8x8xf32>
    %cst_130 = arith.constant dense<0.000000e+00> : vector<256x8xf32>
    %100 = tpu.matmul %97, %99, %cst_130 {dimension_numbers = #tpu.dot_dimension_numbers<[1], [0], [0], [1], [0, 0, 1, 1], [], []>} : vector<256x8xf32>, vector<8x8xf32>, vector<256x8xf32> -> vector<256x8xf32>
    %101 = arith.addf %95, %100 : vector<256x8xf32>
    %c1_131 = arith.constant 1 : index
    %c1_132 = arith.constant 1 : index
    %c0_133 = arith.constant 0 : index
    %102 = vector.load %arg12[%c1_131, %c1_132, %c0_133] : memref<18x18x8xf32, #tpu.memory_space<vmem>>, vector<16x16x8xf32>
    %103 = vector.shape_cast %102 : vector<16x16x8xf32> to vector<256x8xf32>
    %c1_134 = arith.constant 1 : index
    %c1_135 = arith.constant 1 : index
    %c0_136 = arith.constant 0 : index
    %c0_137 = arith.constant 0 : index
    %104 = vector.load %arg4[%c1_134, %c1_135, %c0_136, %c0_137] : memref<3x3x8x8xf32, #tpu.memory_space<vmem>>, vector<1x1x8x8xf32>
    %105 = vector.shape_cast %104 : vector<1x1x8x8xf32> to vector<8x8xf32>
    %cst_138 = arith.constant dense<0.000000e+00> : vector<256x8xf32>
    %106 = tpu.matmul %103, %105, %cst_138 {dimension_numbers = #tpu.dot_dimension_numbers<[1], [0], [0], [1], [0, 0, 1, 1], [], []>} : vector<256x8xf32>, vector<8x8xf32>, vector<256x8xf32> -> vector<256x8xf32>
    %107 = arith.addf %101, %106 : vector<256x8xf32>
    %c1_139 = arith.constant 1 : index
    %c2_140 = arith.constant 2 : index
    %c0_141 = arith.constant 0 : index
    %108 = vector.load %arg12[%c1_139, %c2_140, %c0_141] : memref<18x18x8xf32, #tpu.memory_space<vmem>>, vector<16x16x8xf32>
    %109 = vector.shape_cast %108 : vector<16x16x8xf32> to vector<256x8xf32>
    %c1_142 = arith.constant 1 : index
    %c2_143 = arith.constant 2 : index
    %c0_144 = arith.constant 0 : index
    %c0_145 = arith.constant 0 : index
    %110 = vector.load %arg4[%c1_142, %c2_143, %c0_144, %c0_145] : memref<3x3x8x8xf32, #tpu.memory_space<vmem>>, vector<1x1x8x8xf32>
    %111 = vector.shape_cast %110 : vector<1x1x8x8xf32> to vector<8x8xf32>
    %cst_146 = arith.constant dense<0.000000e+00> : vector<256x8xf32>
    %112 = tpu.matmul %109, %111, %cst_146 {dimension_numbers = #tpu.dot_dimension_numbers<[1], [0], [0], [1], [0, 0, 1, 1], [], []>} : vector<256x8xf32>, vector<8x8xf32>, vector<256x8xf32> -> vector<256x8xf32>
    %113 = arith.addf %107, %112 : vector<256x8xf32>
    %c2_147 = arith.constant 2 : index
    %c0_148 = arith.constant 0 : index
    %c0_149 = arith.constant 0 : index
    %114 = vector.load %arg12[%c2_147, %c0_148, %c0_149] : memref<18x18x8xf32, #tpu.memory_space<vmem>>, vector<16x16x8xf32>
    %115 = vector.shape_cast %114 : vector<16x16x8xf32> to vector<256x8xf32>
    %c2_150 = arith.constant 2 : index
    %c0_151 = arith.constant 0 : index
    %c0_152 = arith.constant 0 : index
    %c0_153 = arith.constant 0 : index
    %116 = vector.load %arg4[%c2_150, %c0_151, %c0_152, %c0_153] : memref<3x3x8x8xf32, #tpu.memory_space<vmem>>, vector<1x1x8x8xf32>
    %117 = vector.shape_cast %116 : vector<1x1x8x8xf32> to vector<8x8xf32>
    %cst_154 = arith.constant dense<0.000000e+00> : vector<256x8xf32>
    %118 = tpu.matmul %115, %117, %cst_154 {dimension_numbers = #tpu.dot_dimension_numbers<[1], [0], [0], [1], [0, 0, 1, 1], [], []>} : vector<256x8xf32>, vector<8x8xf32>, vector<256x8xf32> -> vector<256x8xf32>
    %119 = arith.addf %113, %118 : vector<256x8xf32>
    %c2_155 = arith.constant 2 : index
    %c1_156 = arith.constant 1 : index
    %c0_157 = arith.constant 0 : index
    %120 = vector.load %arg12[%c2_155, %c1_156, %c0_157] : memref<18x18x8xf32, #tpu.memory_space<vmem>>, vector<16x16x8xf32>
    %121 = vector.shape_cast %120 : vector<16x16x8xf32> to vector<256x8xf32>
    %c2_158 = arith.constant 2 : index
    %c1_159 = arith.constant 1 : index
    %c0_160 = arith.constant 0 : index
    %c0_161 = arith.constant 0 : index
    %122 = vector.load %arg4[%c2_158, %c1_159, %c0_160, %c0_161] : memref<3x3x8x8xf32, #tpu.memory_space<vmem>>, vector<1x1x8x8xf32>
    %123 = vector.shape_cast %122 : vector<1x1x8x8xf32> to vector<8x8xf32>
    %cst_162 = arith.constant dense<0.000000e+00> : vector<256x8xf32>
    %124 = tpu.matmul %121, %123, %cst_162 {dimension_numbers = #tpu.dot_dimension_numbers<[1], [0], [0], [1], [0, 0, 1, 1], [], []>} : vector<256x8xf32>, vector<8x8xf32>, vector<256x8xf32> -> vector<256x8xf32>
    %125 = arith.addf %119, %124 : vector<256x8xf32>
    %c2_163 = arith.constant 2 : index
    %c2_164 = arith.constant 2 : index
    %c0_165 = arith.constant 0 : index
    %126 = vector.load %arg12[%c2_163, %c2_164, %c0_165] : memref<18x18x8xf32, #tpu.memory_space<vmem>>, vector<16x16x8xf32>
    %127 = vector.shape_cast %126 : vector<16x16x8xf32> to vector<256x8xf32>
    %c2_166 = arith.constant 2 : index
    %c2_167 = arith.constant 2 : index
    %c0_168 = arith.constant 0 : index
    %c0_169 = arith.constant 0 : index
    %128 = vector.load %arg4[%c2_166, %c2_167, %c0_168, %c0_169] : memref<3x3x8x8xf32, #tpu.memory_space<vmem>>, vector<1x1x8x8xf32>
    %129 = vector.shape_cast %128 : vector<1x1x8x8xf32> to vector<8x8xf32>
    %cst_170 = arith.constant dense<0.000000e+00> : vector<256x8xf32>
    %130 = tpu.matmul %127, %129, %cst_170 {dimension_numbers = #tpu.dot_dimension_numbers<[1], [0], [0], [1], [0, 0, 1, 1], [], []>} : vector<256x8xf32>, vector<8x8xf32>, vector<256x8xf32> -> vector<256x8xf32>
    %131 = arith.addf %125, %130 : vector<256x8xf32>
    %c0_171 = arith.constant 0 : index
    %c0_172 = arith.constant 0 : index
    %132 = vector.load %arg5[%c0_171, %c0_172] : memref<1x8xf32, #tpu.memory_space<vmem>>, vector<1x8xf32>
    %133 = vector.shape_cast %132 : vector<1x8xf32> to vector<8xf32>
    %134 = vector.shape_cast %133 : vector<8xf32> to vector<1x8xf32>
    %135 = vector.broadcast %134 : vector<1x8xf32> to vector<256x8xf32>
    %136 = arith.addf %131, %135 : vector<256x8xf32>
    %cst_173 = arith.constant 0.000000e+00 : f32
    %137 = vector.broadcast %cst_173 : f32 to vector<256x8xf32>
    %138 = arith.maximumf %136, %137 : vector<256x8xf32>
    %c0_174 = arith.constant 0 : index
    %c0_175 = arith.constant 0 : index
    %139 = vector.load %arg14[%c0_174, %c0_175] : memref<256x8xf32, #tpu.memory_space<vmem>>, vector<256x8xf32>
    tpu.vector_store %arg14[%c0_174, %c0_175], %138 {strides = array<i32>} : memref<256x8xf32, #tpu.memory_space<vmem>>, vector<256x8xf32>,
    %c0_176 = arith.constant 0 : index
    %c0_177 = arith.constant 0 : index
    %140 = tpu.strided_load %arg14[%c0_176, %c0_177] {strides = array<i32: 2, 1>} : memref<256x8xf32, #tpu.memory_space<vmem>>, vector<128x8xf32>
    %c1_178 = arith.constant 1 : index
    %c0_179 = arith.constant 0 : index
    %141 = tpu.strided_load %arg14[%c1_178, %c0_179] {strides = array<i32: 2, 1>} : memref<256x8xf32, #tpu.memory_space<vmem>>, vector<128x8xf32>
    %142 = arith.maximumf %140, %141 : vector<128x8xf32>
    %143 = vector.shape_cast %142 : vector<128x8xf32> to vector<8x2x8x8xf32>
    %144 = vector.extract_strided_slice %143 {offsets = [0, 0, 0, 0], sizes = [8, 1, 8, 8], strides = [1, 1, 1, 1]} : vector<8x2x8x8xf32> to vector<8x1x8x8xf32>
    %145 = vector.shape_cast %144 : vector<8x1x8x8xf32> to vector<8x8x8xf32>
    %146 = vector.extract_strided_slice %143 {offsets = [0, 1, 0, 0], sizes = [8, 1, 8, 8], strides = [1, 1, 1, 1]} : vector<8x2x8x8xf32> to vector<8x1x8x8xf32>
    %147 = vector.shape_cast %146 : vector<8x1x8x8xf32> to vector<8x8x8xf32>
    %148 = arith.maximumf %145, %147 : vector<8x8x8xf32>
    %c0_180 = arith.constant 0 : index
    %c0_181 = arith.constant 0 : index
    %c0_182 = arith.constant 0 : index
    %c0_183 = arith.constant 0 : index
    %149 = vector.load %arg9[%c0_180, %c0_181, %c0_182, %c0_183] : memref<1x8x8x8xf32, #tpu.memory_space<vmem>>, vector<1x8x8x8xf32>
    %150 = vector.shape_cast %149 : vector<1x8x8x8xf32> to vector<8x8x8xf32>
    %151 = vector.shape_cast %148 : vector<8x8x8xf32> to vector<1x8x8x8xf32>
    tpu.vector_store %arg9[%c0_180, %c0_181, %c0_182, %c0_183], %151 {strides = array<i32>} : memref<1x8x8x8xf32, #tpu.memory_space<vmem>>, vector<1x8x8x8xf32>,
    %c1_184 = arith.constant 1 : index
    %c1_185 = arith.constant 1 : index
    %c0_186 = arith.constant 0 : index
    %152 = vector.load %arg13[%c1_184, %c1_185, %c0_186] : memref<10x10x8xf32, #tpu.memory_space<vmem>>, vector<8x8x8xf32>
    tpu.vector_store %arg13[%c1_184, %c1_185, %c0_186], %148 {strides = array<i32>} : memref<10x10x8xf32, #tpu.memory_space<vmem>>, vector<8x8x8xf32>,
    %cst_187 = arith.constant 0.000000e+00 : f32
    %153 = vector.broadcast %cst_187 : f32 to vector<64x16xf32>
    %c0_188 = arith.constant 0 : index
    %c0_189 = arith.constant 0 : index
    %c0_190 = arith.constant 0 : index
    %154 = vector.load %arg13[%c0_188, %c0_189, %c0_190] : memref<10x10x8xf32, #tpu.memory_space<vmem>>, vector<8x8x8xf32>
    %155 = vector.shape_cast %154 : vector<8x8x8xf32> to vector<64x8xf32>
    %c0_191 = arith.constant 0 : index
    %c0_192 = arith.constant 0 : index
    %c0_193 = arith.constant 0 : index
    %c0_194 = arith.constant 0 : index
    %156 = vector.load %arg6[%c0_191, %c0_192, %c0_193, %c0_194] : memref<3x3x8x16xf32, #tpu.memory_space<vmem>>, vector<1x1x8x16xf32>
    %157 = vector.shape_cast %156 : vector<1x1x8x16xf32> to vector<8x16xf32>
    %cst_195 = arith.constant dense<0.000000e+00> : vector<64x16xf32>
    %158 = tpu.matmul %155, %157, %cst_195 {dimension_numbers = #tpu.dot_dimension_numbers<[1], [0], [0], [1], [0, 0, 1, 1], [], []>} : vector<64x8xf32>, vector<8x16xf32>, vector<64x16xf32> -> vector<64x16xf32>
    %159 = arith.addf %153, %158 : vector<64x16xf32>
    %c0_196 = arith.constant 0 : index
    %c1_197 = arith.constant 1 : index
    %c0_198 = arith.constant 0 : index
    %160 = vector.load %arg13[%c0_196, %c1_197, %c0_198] : memref<10x10x8xf32, #tpu.memory_space<vmem>>, vector<8x8x8xf32>
    %161 = vector.shape_cast %160 : vector<8x8x8xf32> to vector<64x8xf32>
    %c0_199 = arith.constant 0 : index
    %c1_200 = arith.constant 1 : index
    %c0_201 = arith.constant 0 : index
    %c0_202 = arith.constant 0 : index
    %162 = vector.load %arg6[%c0_199, %c1_200, %c0_201, %c0_202] : memref<3x3x8x16xf32, #tpu.memory_space<vmem>>, vector<1x1x8x16xf32>
    %163 = vector.shape_cast %162 : vector<1x1x8x16xf32> to vector<8x16xf32>
    %cst_203 = arith.constant dense<0.000000e+00> : vector<64x16xf32>
    %164 = tpu.matmul %161, %163, %cst_203 {dimension_numbers = #tpu.dot_dimension_numbers<[1], [0], [0], [1], [0, 0, 1, 1], [], []>} : vector<64x8xf32>, vector<8x16xf32>, vector<64x16xf32> -> vector<64x16xf32>
    %165 = arith.addf %159, %164 : vector<64x16xf32>
    %c0_204 = arith.constant 0 : index
    %c2_205 = arith.constant 2 : index
    %c0_206 = arith.constant 0 : index
    %166 = vector.load %arg13[%c0_204, %c2_205, %c0_206] : memref<10x10x8xf32, #tpu.memory_space<vmem>>, vector<8x8x8xf32>
    %167 = vector.shape_cast %166 : vector<8x8x8xf32> to vector<64x8xf32>
    %c0_207 = arith.constant 0 : index
    %c2_208 = arith.constant 2 : index
    %c0_209 = arith.constant 0 : index
    %c0_210 = arith.constant 0 : index
    %168 = vector.load %arg6[%c0_207, %c2_208, %c0_209, %c0_210] : memref<3x3x8x16xf32, #tpu.memory_space<vmem>>, vector<1x1x8x16xf32>
    %169 = vector.shape_cast %168 : vector<1x1x8x16xf32> to vector<8x16xf32>
    %cst_211 = arith.constant dense<0.000000e+00> : vector<64x16xf32>
    %170 = tpu.matmul %167, %169, %cst_211 {dimension_numbers = #tpu.dot_dimension_numbers<[1], [0], [0], [1], [0, 0, 1, 1], [], []>} : vector<64x8xf32>, vector<8x16xf32>, vector<64x16xf32> -> vector<64x16xf32>
    %171 = arith.addf %165, %170 : vector<64x16xf32>
    %c1_212 = arith.constant 1 : index
    %c0_213 = arith.constant 0 : index
    %c0_214 = arith.constant 0 : index
    %172 = vector.load %arg13[%c1_212, %c0_213, %c0_214] : memref<10x10x8xf32, #tpu.memory_space<vmem>>, vector<8x8x8xf32>
    %173 = vector.shape_cast %172 : vector<8x8x8xf32> to vector<64x8xf32>
    %c1_215 = arith.constant 1 : index
    %c0_216 = arith.constant 0 : index
    %c0_217 = arith.constant 0 : index
    %c0_218 = arith.constant 0 : index
    %174 = vector.load %arg6[%c1_215, %c0_216, %c0_217, %c0_218] : memref<3x3x8x16xf32, #tpu.memory_space<vmem>>, vector<1x1x8x16xf32>
    %175 = vector.shape_cast %174 : vector<1x1x8x16xf32> to vector<8x16xf32>
    %cst_219 = arith.constant dense<0.000000e+00> : vector<64x16xf32>
    %176 = tpu.matmul %173, %175, %cst_219 {dimension_numbers = #tpu.dot_dimension_numbers<[1], [0], [0], [1], [0, 0, 1, 1], [], []>} : vector<64x8xf32>, vector<8x16xf32>, vector<64x16xf32> -> vector<64x16xf32>
    %177 = arith.addf %171, %176 : vector<64x16xf32>
    %c1_220 = arith.constant 1 : index
    %c1_221 = arith.constant 1 : index
    %c0_222 = arith.constant 0 : index
    %178 = vector.load %arg13[%c1_220, %c1_221, %c0_222] : memref<10x10x8xf32, #tpu.memory_space<vmem>>, vector<8x8x8xf32>
    %179 = vector.shape_cast %178 : vector<8x8x8xf32> to vector<64x8xf32>
    %c1_223 = arith.constant 1 : index
    %c1_224 = arith.constant 1 : index
    %c0_225 = arith.constant 0 : index
    %c0_226 = arith.constant 0 : index
    %180 = vector.load %arg6[%c1_223, %c1_224, %c0_225, %c0_226] : memref<3x3x8x16xf32, #tpu.memory_space<vmem>>, vector<1x1x8x16xf32>
    %181 = vector.shape_cast %180 : vector<1x1x8x16xf32> to vector<8x16xf32>
    %cst_227 = arith.constant dense<0.000000e+00> : vector<64x16xf32>
    %182 = tpu.matmul %179, %181, %cst_227 {dimension_numbers = #tpu.dot_dimension_numbers<[1], [0], [0], [1], [0, 0, 1, 1], [], []>} : vector<64x8xf32>, vector<8x16xf32>, vector<64x16xf32> -> vector<64x16xf32>
    %183 = arith.addf %177, %182 : vector<64x16xf32>
    %c1_228 = arith.constant 1 : index
    %c2_229 = arith.constant 2 : index
    %c0_230 = arith.constant 0 : index
    %184 = vector.load %arg13[%c1_228, %c2_229, %c0_230] : memref<10x10x8xf32, #tpu.memory_space<vmem>>, vector<8x8x8xf32>
    %185 = vector.shape_cast %184 : vector<8x8x8xf32> to vector<64x8xf32>
    %c1_231 = arith.constant 1 : index
    %c2_232 = arith.constant 2 : index
    %c0_233 = arith.constant 0 : index
    %c0_234 = arith.constant 0 : index
    %186 = vector.load %arg6[%c1_231, %c2_232, %c0_233, %c0_234] : memref<3x3x8x16xf32, #tpu.memory_space<vmem>>, vector<1x1x8x16xf32>
    %187 = vector.shape_cast %186 : vector<1x1x8x16xf32> to vector<8x16xf32>
    %cst_235 = arith.constant dense<0.000000e+00> : vector<64x16xf32>
    %188 = tpu.matmul %185, %187, %cst_235 {dimension_numbers = #tpu.dot_dimension_numbers<[1], [0], [0], [1], [0, 0, 1, 1], [], []>} : vector<64x8xf32>, vector<8x16xf32>, vector<64x16xf32> -> vector<64x16xf32>
    %189 = arith.addf %183, %188 : vector<64x16xf32>
    %c2_236 = arith.constant 2 : index
    %c0_237 = arith.constant 0 : index
    %c0_238 = arith.constant 0 : index
    %190 = vector.load %arg13[%c2_236, %c0_237, %c0_238] : memref<10x10x8xf32, #tpu.memory_space<vmem>>, vector<8x8x8xf32>
    %191 = vector.shape_cast %190 : vector<8x8x8xf32> to vector<64x8xf32>
    %c2_239 = arith.constant 2 : index
    %c0_240 = arith.constant 0 : index
    %c0_241 = arith.constant 0 : index
    %c0_242 = arith.constant 0 : index
    %192 = vector.load %arg6[%c2_239, %c0_240, %c0_241, %c0_242] : memref<3x3x8x16xf32, #tpu.memory_space<vmem>>, vector<1x1x8x16xf32>
    %193 = vector.shape_cast %192 : vector<1x1x8x16xf32> to vector<8x16xf32>
    %cst_243 = arith.constant dense<0.000000e+00> : vector<64x16xf32>
    %194 = tpu.matmul %191, %193, %cst_243 {dimension_numbers = #tpu.dot_dimension_numbers<[1], [0], [0], [1], [0, 0, 1, 1], [], []>} : vector<64x8xf32>, vector<8x16xf32>, vector<64x16xf32> -> vector<64x16xf32>
    %195 = arith.addf %189, %194 : vector<64x16xf32>
    %c2_244 = arith.constant 2 : index
    %c1_245 = arith.constant 1 : index
    %c0_246 = arith.constant 0 : index
    %196 = vector.load %arg13[%c2_244, %c1_245, %c0_246] : memref<10x10x8xf32, #tpu.memory_space<vmem>>, vector<8x8x8xf32>
    %197 = vector.shape_cast %196 : vector<8x8x8xf32> to vector<64x8xf32>
    %c2_247 = arith.constant 2 : index
    %c1_248 = arith.constant 1 : index
    %c0_249 = arith.constant 0 : index
    %c0_250 = arith.constant 0 : index
    %198 = vector.load %arg6[%c2_247, %c1_248, %c0_249, %c0_250] : memref<3x3x8x16xf32, #tpu.memory_space<vmem>>, vector<1x1x8x16xf32>
    %199 = vector.shape_cast %198 : vector<1x1x8x16xf32> to vector<8x16xf32>
    %cst_251 = arith.constant dense<0.000000e+00> : vector<64x16xf32>
    %200 = tpu.matmul %197, %199, %cst_251 {dimension_numbers = #tpu.dot_dimension_numbers<[1], [0], [0], [1], [0, 0, 1, 1], [], []>} : vector<64x8xf32>, vector<8x16xf32>, vector<64x16xf32> -> vector<64x16xf32>
    %201 = arith.addf %195, %200 : vector<64x16xf32>
    %c2_252 = arith.constant 2 : index
    %c2_253 = arith.constant 2 : index
    %c0_254 = arith.constant 0 : index
    %202 = vector.load %arg13[%c2_252, %c2_253, %c0_254] : memref<10x10x8xf32, #tpu.memory_space<vmem>>, vector<8x8x8xf32>
    %203 = vector.shape_cast %202 : vector<8x8x8xf32> to vector<64x8xf32>
    %c2_255 = arith.constant 2 : index
    %c2_256 = arith.constant 2 : index
    %c0_257 = arith.constant 0 : index
    %c0_258 = arith.constant 0 : index
    %204 = vector.load %arg6[%c2_255, %c2_256, %c0_257, %c0_258] : memref<3x3x8x16xf32, #tpu.memory_space<vmem>>, vector<1x1x8x16xf32>
    %205 = vector.shape_cast %204 : vector<1x1x8x16xf32> to vector<8x16xf32>
    %cst_259 = arith.constant dense<0.000000e+00> : vector<64x16xf32>
    %206 = tpu.matmul %203, %205, %cst_259 {dimension_numbers = #tpu.dot_dimension_numbers<[1], [0], [0], [1], [0, 0, 1, 1], [], []>} : vector<64x8xf32>, vector<8x16xf32>, vector<64x16xf32> -> vector<64x16xf32>
    %207 = arith.addf %201, %206 : vector<64x16xf32>
    %c0_260 = arith.constant 0 : index
    %c0_261 = arith.constant 0 : index
    %208 = vector.load %arg7[%c0_260, %c0_261] : memref<1x16xf32, #tpu.memory_space<vmem>>, vector<1x16xf32>
    %209 = vector.shape_cast %208 : vector<1x16xf32> to vector<16xf32>
    %210 = vector.shape_cast %209 : vector<16xf32> to vector<1x16xf32>
    %211 = vector.broadcast %210 : vector<1x16xf32> to vector<64x16xf32>
    %212 = arith.addf %207, %211 : vector<64x16xf32>
    %cst_262 = arith.constant 0.000000e+00 : f32
    %213 = vector.broadcast %cst_262 : f32 to vector<64x16xf32>
    %214 = arith.maximumf %212, %213 : vector<64x16xf32>
    %215 = vector.shape_cast %214 : vector<64x16xf32> to vector<8x8x16xf32>
    %c0_263 = arith.constant 0 : index
    %c0_264 = arith.constant 0 : index
    %c0_265 = arith.constant 0 : index
    %c0_266 = arith.constant 0 : index
    %216 = vector.load %arg10[%c0_263, %c0_264, %c0_265, %c0_266] : memref<1x8x8x16xf32, #tpu.memory_space<vmem>>, vector<1x8x8x16xf32>
    %217 = vector.shape_cast %216 : vector<1x8x8x16xf32> to vector<8x8x16xf32>
    %218 = vector.shape_cast %215 : vector<8x8x16xf32> to vector<1x8x8x16xf32>
    tpu.vector_store %arg10[%c0_263, %c0_264, %c0_265, %c0_266], %218 {strides = array<i32>} : memref<1x8x8x16xf32, #tpu.memory_space<vmem>>, vector<1x8x8x16xf32>,
    return
  }
  func.func @transform_0(%arg0: i32) -> (i32, i32, i32, i32) {
    %c0_i32 = arith.constant 0 : i32
    %c0_i32_0 = arith.constant 0 : i32
    %c0_i32_1 = arith.constant 0 : i32
    %c0_i32_2 = arith.constant 0 : i32
    return %arg0, %c0_i32, %c0_i32_0, %c0_i32_1 : i32, i32, i32, i32
  }
  func.func @transform_1(%arg0: i32) -> (i32, i32, i32, i32) {
    %c0_i32 = arith.constant 0 : i32
    %c0_i32_0 = arith.constant 0 : i32
    %c0_i32_1 = arith.constant 0 : i32
    %c0_i32_2 = arith.constant 0 : i32
    %c0_i32_3 = arith.constant 0 : i32
    return %c0_i32, %c0_i32_0, %c0_i32_1, %c0_i32_2 : i32, i32, i32, i32
  }
  func.func @transform_2(%arg0: i32) -> (i32, i32) {
    %c0_i32 = arith.constant 0 : i32
    %c0_i32_0 = arith.constant 0 : i32
    %c0_i32_1 = arith.constant 0 : i32
    return %c0_i32, %c0_i32_0 : i32, i32
  }
  func.func @transform_3(%arg0: i32) -> (i32, i32, i32, i32) {
    %c0_i32 = arith.constant 0 : i32
    %c0_i32_0 = arith.constant 0 : i32
    %c0_i32_1 = arith.constant 0 : i32
    %c0_i32_2 = arith.constant 0 : i32
    %c0_i32_3 = arith.constant 0 : i32
    return %c0_i32, %c0_i32_0, %c0_i32_1, %c0_i32_2 : i32, i32, i32, i32
  }
  func.func @transform_4(%arg0: i32) -> (i32, i32) {
    %c0_i32 = arith.constant 0 : i32
    %c0_i32_0 = arith.constant 0 : i32
    %c0_i32_1 = arith.constant 0 : i32
    return %c0_i32, %c0_i32_0 : i32, i32
  }
  func.func @transform_5(%arg0: i32) -> (i32, i32, i32, i32) {
    %c0_i32 = arith.constant 0 : i32
    %c0_i32_0 = arith.constant 0 : i32
    %c0_i32_1 = arith.constant 0 : i32
    %c0_i32_2 = arith.constant 0 : i32
    %c0_i32_3 = arith.constant 0 : i32
    return %c0_i32, %c0_i32_0, %c0_i32_1, %c0_i32_2 : i32, i32, i32, i32
  }
  func.func @transform_6(%arg0: i32) -> (i32, i32) {
    %c0_i32 = arith.constant 0 : i32
    %c0_i32_0 = arith.constant 0 : i32
    %c0_i32_1 = arith.constant 0 : i32
    return %c0_i32, %c0_i32_0 : i32, i32
  }
  func.func @transform_7(%arg0: i32) -> (i32, i32, i32, i32) {
    %c0_i32 = arith.constant 0 : i32
    %c0_i32_0 = arith.constant 0 : i32
    %c0_i32_1 = arith.constant 0 : i32
    %c0_i32_2 = arith.constant 0 : i32
    return %arg0, %c0_i32, %c0_i32_0, %c0_i32_1 : i32, i32, i32, i32
  }
  func.func @transform_8(%arg0: i32) -> (i32, i32, i32, i32) {
    %c0_i32 = arith.constant 0 : i32
    %c0_i32_0 = arith.constant 0 : i32
    %c0_i32_1 = arith.constant 0 : i32
    %c0_i32_2 = arith.constant 0 : i32
    return %arg0, %c0_i32, %c0_i32_0, %c0_i32_1 : i32, i32, i32, i32
  }
  func.func @transform_9(%arg0: i32) -> (i32, i32, i32, i32) {
    %c0_i32 = arith.constant 0 : i32
    %c0_i32_0 = arith.constant 0 : i32
    %c0_i32_1 = arith.constant 0 : i32
    %c0_i32_2 = arith.constant 0 : i32
    return %arg0, %c0_i32, %c0_i32_0, %c0_i32_1 : i32, i32, i32, i32
  }
}

</mosaic_0001>

<llo_original>
// kernel: tpu_custom_call.1
$region0: #{tpu_custom_call.1}
  #allocation0 [shape = 'u32[]', space=smem, size = 0x4, offset = 0x4, fixed_abs, tag = 'smem constant byte address 0x4 - core index']
  #allocation1 [shape = 'u32[144,128]{1,0:T(1,128)}', space=vmem, size = 0x12000, scoped, tag = 'internal scratch']
  #allocation2 [shape = 'f32[18,18,4]{2,1,0:T(8,128)}', space=vmem, size = 0x36000, scoped, tag = 'scratch operand']
  #allocation3 [shape = 'f32[18,18,8]{2,1,0:T(8,128)}', space=vmem, size = 0x36000, scoped, tag = 'scratch operand']
  #allocation4 [shape = 'f32[10,10,8]{2,1,0:T(8,128)}', space=vmem, size = 0x14000, scoped, tag = 'scratch operand']
  #allocation5 [shape = 'f32[256,8]{1,0:T(8,128)}', space=vmem, size = 0x20000, scoped, tag = 'scratch operand']
  %s0 = inlined_call_operand.vmem [shape: f32[2,16,16,4], index: 0, kind: input, shape index: {}]
  %s1 = inlined_call_operand.vmem [shape: f32[3,3,4,8], index: 1, kind: input, shape index: {}]
  %s2 = inlined_call_operand.vmem [shape: f32[1,8], index: 2, kind: input, shape index: {}]
  %s3 = inlined_call_operand.vmem [shape: f32[3,3,8,8], index: 3, kind: input, shape index: {}]
  %s4 = inlined_call_operand.vmem [shape: f32[1,8], index: 4, kind: input, shape index: {}]
  %s5 = inlined_call_operand.vmem [shape: f32[3,3,8,16], index: 5, kind: input, shape index: {}]
  %s6 = inlined_call_operand.vmem [shape: f32[1,16], index: 6, kind: input, shape index: {}]
  %s7 = inlined_call_operand.vmem [shape: f32[2,16,16,8], index: 7, kind: output, shape index: {0}]
  %s8 = inlined_call_operand.hbm [shape: f32[2,8,8,8], index: 8, kind: output, shape index: {1}]
  %s9 = inlined_call_operand.hbm [shape: f32[2,8,8,16], index: 9, kind: output, shape index: {2}]
  %10 = xla_tuple %s7, %s8, %s9
  %s11 = sld [smem:[#allocation0]]
  $region77: #{tpu_custom_call.1} parent=0
    _
  %s13 = ssub.s32 1, %s11
  %s14 = scalar_select 0, %s13, %s11
  $region1: #{tpu_custom_call.1} parent=0
    #allocation6 [shape = 'u8[65536]{0}', space=vmem, size = 0x10000, scoped, tag = 'output window, operand 1']
    #allocation7 [shape = 's32[2]{0}', space=sflag, size = 0x8, scoped, tag = 'scoped memory for tpu_custom_call.1']
    #allocation8 [shape = 'u8[65536]{0}', space=vmem, size = 0x10000, scoped, tag = 'output window, operand 2']
    #allocation9 [shape = 's32[2]{0}', space=sflag, size = 0x8, scoped, tag = 'scoped memory for tpu_custom_call.1']
    %15 = vsyncpa [#allocation7], 0
    %s16 = scalar_lea.sflag [#allocation7], 1
    %17 = vsyncpa %s16, 0
    %18 = vsyncpa [#allocation9], 0
    %s19 = scalar_lea.sflag [#allocation9], 1
    %20 = vsyncpa %s19, 0
    loop: start=0, step=1, limit=4
    $region2: #{tpu_custom_call.1} parent=1 // loop_pre_header
      _
    $region3: #{tpu_custom_call.1} parent=1 // loop_header
      %s22 = sphi 0, %s26
      %p23 = scmp.ge.s32.totalorder %s22, 4
      %s32 = sphi 0, %s34
      %s35 = sphi 0, %s32
      %s36 = sphi 0, %s35
      %s52 = sphi 0, %s36
      %s56 = sphi 0, %s56
      %s58 = sphi 0, %s56
      %s59 = sphi 0, %s58
      %s73 = sphi 0, %s59
      %s77 = sphi 0, %s77
      %s79 = sphi 0, %s77
      %s80 = sphi 0, %s79
      %s94 = sphi 0, %s80
      %s98 = sphi 0, %s98
      %s100 = sphi 0, %s98
      %s101 = sphi 0, %s100
      %s115 = sphi 0, %s101
      %s119 = sphi 0, %s119
      %s121 = sphi 0, %s119
      %s122 = sphi 0, %s121
      %s136 = sphi 0, %s122
      %s140 = sphi 0, %s140
      %s142 = sphi 0, %s140
      %s143 = sphi 0, %s142
      %s157 = sphi 0, %s143
      %s161 = sphi 0, %s161
      %s163 = sphi 0, %s161
      %s164 = sphi 0, %s163
      %s178 = sphi 0, %s164
      %s184 = sphi 0, %s186
      %s187 = sphi 0, %s184
      %s188 = sphi 0, %s187
      %s204 = sphi 0, %s188
      %s210 = sphi 0, %s212
      %s213 = sphi 0, %s210
      %s214 = sphi 0, %s213
      %s230 = sphi 0, %s214
      %s236 = sphi 0, %s238
      %s239 = sphi 0, %s236
      %s240 = sphi 0, %s239
      %s256 = sphi 0, %s240
    $region4: #{tpu_custom_call.1} parent=1 // loop_header_branch
      %25 = sbr.rel (%p23) target = $region8
    $region5: #{tpu_custom_call.1} parent=1 // loop_body
      %s27 = ssub.s32 %s22, 1
      %s28 = ssub.s32 %s22, 2
      %s29 = sadd.s32 %s22, 1
      %s30 = ssub.s32 %s22, %s29
      %p31 = scmp.eq.s32.totalorder %s30, 0
      %s33 = sadd.s32 %s32, 1
      %s34 = scalar_select %p31, %s32, %s33
      %p37 = pneg %p31
      %p38 = scmp.eq.s32.totalorder %s22, 1
      %p39 = por %p37, %p38
      %p40 = scmp.ne.s32.totalorder %s32, %s35
      %p41 = scmp.eq.s32.totalorder %s22, 0
      %p42 = por %p40, %p41
      %p43 = scmp.ne.s32.totalorder %s32, %s35
      %p44 = scmp.eq.s32.totalorder %s27, 1
      %p45 = por %p43, %p44
      %p46 = scmp.ne.s32.totalorder %s35, %s36
      %p47 = scmp.eq.s32.totalorder %s27, 0
      %p48 = por %p46, %p47
      %p49 = scmp.ne.s32.totalorder %s35, %s36
      %p50 = scmp.eq.s32.totalorder %s28, 1
      %p51 = por %p49, %p50
      %p53 = scmp.ne.s32.totalorder %s36, %s52
      %p54 = scmp.eq.s32.totalorder %s28, 0
      %p55 = por %p53, %p54
      %s57 = sadd.s32 %s56, 1
      %p60 = scmp.eq.s32.totalorder %s22, 1
      %p61 = scmp.ne.s32.totalorder %s56, %s58
      %p62 = scmp.eq.s32.totalorder %s22, 0
      %p63 = por %p61, %p62
      %p64 = scmp.ne.s32.totalorder %s56, %s58
      %p65 = scmp.eq.s32.totalorder %s27, 1
      %p66 = por %p64, %p65
      %p67 = scmp.ne.s32.totalorder %s58, %s59
      %p68 = scmp.eq.s32.totalorder %s27, 0
      %p69 = por %p67, %p68
      %p70 = scmp.ne.s32.totalorder %s58, %s59
      %p71 = scmp.eq.s32.totalorder %s28, 1
      %p72 = por %p70, %p71
      %p74 = scmp.ne.s32.totalorder %s59, %s73
      %p75 = scmp.eq.s32.totalorder %s28, 0
      %p76 = por %p74, %p75
      %s78 = sadd.s32 %s77, 1
      %p81 = scmp.eq.s32.totalorder %s22, 1
      %p82 = scmp.ne.s32.totalorder %s77, %s79
      %p83 = scmp.eq.s32.totalorder %s22, 0
      %p84 = por %p82, %p83
      %p85 = scmp.ne.s32.totalorder %s77, %s79
      %p86 = scmp.eq.s32.totalorder %s27, 1
      %p87 = por %p85, %p86
      %p88 = scmp.ne.s32.totalorder %s79, %s80
      %p89 = scmp.eq.s32.totalorder %s27, 0
      %p90 = por %p88, %p89
      %p91 = scmp.ne.s32.totalorder %s79, %s80
      %p92 = scmp.eq.s32.totalorder %s28, 1
      %p93 = por %p91, %p92
      %p95 = scmp.ne.s32.totalorder %s80, %s94
      %p96 = scmp.eq.s32.totalorder %s28, 0
      %p97 = por %p95, %p96
      %s99 = sadd.s32 %s98, 1
      %p102 = scmp.eq.s32.totalorder %s22, 1
      %p103 = scmp.ne.s32.totalorder %s98, %s100
      %p104 = scmp.eq.s32.totalorder %s22, 0
      %p105 = por %p103, %p104
      %p106 = scmp.ne.s32.totalorder %s98, %s100
      %p107 = scmp.eq.s32.totalorder %s27, 1
      %p108 = por %p106, %p107
      %p109 = scmp.ne.s32.totalorder %s100, %s101
      %p110 = scmp.eq.s32.totalorder %s27, 0
      %p111 = por %p109, %p110
      %p112 = scmp.ne.s32.totalorder %s100, %s101
      %p113 = scmp.eq.s32.totalorder %s28, 1
      %p114 = por %p112, %p113
      %p116 = scmp.ne.s32.totalorder %s101, %s115
      %p117 = scmp.eq.s32.totalorder %s28, 0
      %p118 = por %p116, %p117
      %s120 = sadd.s32 %s119, 1
      %p123 = scmp.eq.s32.totalorder %s22, 1
      %p124 = scmp.ne.s32.totalorder %s119, %s121
      %p125 = scmp.eq.s32.totalorder %s22, 0
      %p126 = por %p124, %p125
      %p127 = scmp.ne.s32.totalorder %s119, %s121
      %p128 = scmp.eq.s32.totalorder %s27, 1
      %p129 = por %p127, %p128
      %p130 = scmp.ne.s32.totalorder %s121, %s122
      %p131 = scmp.eq.s32.totalorder %s27, 0
      %p132 = por %p130, %p131
      %p133 = scmp.ne.s32.totalorder %s121, %s122
      %p134 = scmp.eq.s32.totalorder %s28, 1
      %p135 = por %p133, %p134
      %p137 = scmp.ne.s32.totalorder %s122, %s136
      %p138 = scmp.eq.s32.totalorder %s28, 0
      %p139 = por %p137, %p138
      %s141 = sadd.s32 %s140, 1
      %p144 = scmp.eq.s32.totalorder %s22, 1
      %p145 = scmp.ne.s32.totalorder %s140, %s142
      %p146 = scmp.eq.s32.totalorder %s22, 0
      %p147 = por %p145, %p146
      %p148 = scmp.ne.s32.totalorder %s140, %s142
      %p149 = scmp.eq.s32.totalorder %s27, 1
      %p150 = por %p148, %p149
      %p151 = scmp.ne.s32.totalorder %s142, %s143
      %p152 = scmp.eq.s32.totalorder %s27, 0
      %p153 = por %p151, %p152
      %p154 = scmp.ne.s32.totalorder %s142, %s143
      %p155 = scmp.eq.s32.totalorder %s28, 1
      %p156 = por %p154, %p155
      %p158 = scmp.ne.s32.totalorder %s143, %s157
      %p159 = scmp.eq.s32.totalorder %s28, 0
      %p160 = por %p158, %p159
      %s162 = sadd.s32 %s161, 1
      %p165 = scmp.eq.s32.totalorder %s22, 1
      %p166 = scmp.ne.s32.totalorder %s161, %s163
      %p167 = scmp.eq.s32.totalorder %s22, 0
      %p168 = por %p166, %p167
      %p169 = scmp.ne.s32.totalorder %s161, %s163
      %p170 = scmp.eq.s32.totalorder %s27, 1
      %p171 = por %p169, %p170
      %p172 = scmp.ne.s32.totalorder %s163, %s164
      %p173 = scmp.eq.s32.totalorder %s27, 0
      %p174 = por %p172, %p173
      %p175 = scmp.ne.s32.totalorder %s163, %s164
      %p176 = scmp.eq.s32.totalorder %s28, 1
      %p177 = por %p175, %p176
      %p179 = scmp.ne.s32.totalorder %s164, %s178
      %p180 = scmp.eq.s32.totalorder %s28, 0
      %p181 = por %p179, %p180
      %s182 = ssub.s32 %s22, %s29
      %p183 = scmp.eq.s32.totalorder %s182, 0
      %s185 = sadd.s32 %s184, 1
      %s186 = scalar_select %p183, %s184, %s185
      %p189 = pneg %p183
      %p190 = scmp.eq.s32.totalorder %s22, 1
      %p191 = por %p189, %p190
      %p192 = scmp.ne.s32.totalorder %s184, %s187
      %p193 = scmp.eq.s32.totalorder %s22, 0
      %p194 = por %p192, %p193
      %p195 = scmp.ne.s32.totalorder %s184, %s187
      %p196 = scmp.eq.s32.totalorder %s27, 1
      %p197 = por %p195, %p196
      %p198 = scmp.ne.s32.totalorder %s187, %s188
      %p199 = scmp.eq.s32.totalorder %s27, 0
      %p200 = por %p198, %p199
      %p201 = scmp.ne.s32.totalorder %s187, %s188
      %p202 = scmp.eq.s32.totalorder %s28, 1
      %p203 = por %p201, %p202
      %p205 = scmp.ne.s32.totalorder %s188, %s204
      %p206 = scmp.eq.s32.totalorder %s28, 0
      %p207 = por %p205, %p206
      %s208 = ssub.s32 %s22, %s29
      %p209 = scmp.eq.s32.totalorder %s208, 0
      %s211 = sadd.s32 %s210, 1
      %s212 = scalar_select %p209, %s210, %s211
      %p215 = pneg %p209
      %p216 = scmp.eq.s32.totalorder %s22, 1
      %p217 = por %p215, %p216
      %p218 = scmp.ne.s32.totalorder %s210, %s213
      %p219 = scmp.eq.s32.totalorder %s22, 0
      %p220 = por %p218, %p219
      %p221 = scmp.ne.s32.totalorder %s210, %s213
      %p222 = scmp.eq.s32.totalorder %s27, 1
      %p223 = por %p221, %p222
      %p224 = scmp.ne.s32.totalorder %s213, %s214
      %p225 = scmp.eq.s32.totalorder %s27, 0
      %p226 = por %p224, %p225
      %p227 = scmp.ne.s32.totalorder %s213, %s214
      %p228 = scmp.eq.s32.totalorder %s28, 1
      %p229 = por %p227, %p228
      %p231 = scmp.ne.s32.totalorder %s214, %s230
      %p232 = scmp.eq.s32.totalorder %s28, 0
      %p233 = por %p231, %p232
      %s234 = ssub.s32 %s22, %s29
      %p235 = scmp.eq.s32.totalorder %s234, 0
      %s237 = sadd.s32 %s236, 1
      %s238 = scalar_select %p235, %s236, %s237
      %p241 = pneg %p235
      %p242 = scmp.eq.s32.totalorder %s22, 1
      %p243 = por %p241, %p242
      %p244 = scmp.ne.s32.totalorder %s236, %s239
      %p245 = scmp.eq.s32.totalorder %s22, 0
      %p246 = por %p244, %p245
      %p247 = scmp.ne.s32.totalorder %s236, %s239
      %p248 = scmp.eq.s32.totalorder %s27, 1
      %p249 = por %p247, %p248
      %p250 = scmp.ne.s32.totalorder %s239, %s240
      %p251 = scmp.eq.s32.totalorder %s27, 0
      %p252 = por %p250, %p251
      %p253 = scmp.ne.s32.totalorder %s239, %s240
      %p254 = scmp.eq.s32.totalorder %s28, 1
      %p255 = por %p253, %p254
      %p257 = scmp.ne.s32.totalorder %s240, %s256
      %p258 = scmp.eq.s32.totalorder %s28, 0
      %p259 = por %p257, %p258
      %p260 = scmp.le.s32.totalorder 1, %s22
      %p261 = scmp.lt.s32.totalorder %s22, 3
      %p262 = pnand %p260, %p261
      %p263 = pneg %p262
      // Predicated region
      $region9: #{tpu_custom_call.1} parent=5 // pred_check
        _
      $region10: #{tpu_custom_call.1} parent=5 // pred_check_branch
        %265 = sbr.rel (%p262) target = $region12
      $region11: #{tpu_custom_call.1} parent=5 // pred_region
        %s266 = ssub.s32 %s22, 1
        // Predicated region
        $region13: #{tpu_custom_call.1} parent=11 // pred_check
          %p267 = pneg %p69
        $region14: #{tpu_custom_call.1} parent=11 // pred_check_branch
          %269 = sbr.rel (%p267) target = $region16
        $region15: #{tpu_custom_call.1} parent=11 // pred_region
          _
        $region16: #{tpu_custom_call.1} parent=11 // pred_fallthru
          _
        // Predicated region
        $region17: #{tpu_custom_call.1} parent=11 // pred_check
          %p270 = pneg %p90
        $region18: #{tpu_custom_call.1} parent=11 // pred_check_branch
          %272 = sbr.rel (%p270) target = $region20
        $region19: #{tpu_custom_call.1} parent=11 // pred_region
          _
        $region20: #{tpu_custom_call.1} parent=11 // pred_fallthru
          _
        // Predicated region
        $region21: #{tpu_custom_call.1} parent=11 // pred_check
          %p273 = pneg %p111
        $region22: #{tpu_custom_call.1} parent=11 // pred_check_branch
          %275 = sbr.rel (%p273) target = $region24
        $region23: #{tpu_custom_call.1} parent=11 // pred_region
          _
        $region24: #{tpu_custom_call.1} parent=11 // pred_fallthru
          _
        // Predicated region
        $region25: #{tpu_custom_call.1} parent=11 // pred_check
          %p276 = pneg %p132
        $region26: #{tpu_custom_call.1} parent=11 // pred_check_branch
          %278 = sbr.rel (%p276) target = $region28
        $region27: #{tpu_custom_call.1} parent=11 // pred_region
          _
        $region28: #{tpu_custom_call.1} parent=11 // pred_fallthru
          _
        // Predicated region
        $region29: #{tpu_custom_call.1} parent=11 // pred_check
          %p279 = pneg %p153
        $region30: #{tpu_custom_call.1} parent=11 // pred_check_branch
          %281 = sbr.rel (%p279) target = $region32
        $region31: #{tpu_custom_call.1} parent=11 // pred_region
          _
        $region32: #{tpu_custom_call.1} parent=11 // pred_fallthru
          _
        // Predicated region
        $region33: #{tpu_custom_call.1} parent=11 // pred_check
          %p282 = pneg %p174
        $region34: #{tpu_custom_call.1} parent=11 // pred_check_branch
          %284 = sbr.rel (%p282) target = $region36
        $region35: #{tpu_custom_call.1} parent=11 // pred_region
          _
        $region36: #{tpu_custom_call.1} parent=11 // pred_fallthru
          _
      $region12: #{tpu_custom_call.1} parent=5 // pred_fallthru
        _
      %p285 = scmp.lt.s32.totalorder %s22, 2
      // Predicated region
      $region37: #{tpu_custom_call.1} parent=5 // pred_check
        %p286 = pneg %p285
      $region38: #{tpu_custom_call.1} parent=5 // pred_check_branch
        %288 = sbr.rel (%p286) target = $region40
      $region39: #{tpu_custom_call.1} parent=5 // pred_region
        // Predicated region
        $region41: #{tpu_custom_call.1} parent=39 // pred_check
          %p289 = pneg %p42
        $region42: #{tpu_custom_call.1} parent=39 // pred_check_branch
          %291 = sbr.rel (%p289) target = $region44
        $region43: #{tpu_custom_call.1} parent=39 // pred_region
          %p292 = scmp.lt.s32.totalorder %s22, 1
          %s293 = scalar_select %p292, %s22, 1
          %s294 = smul.addr %s293, 32
          %s295 = smul.addr %s294, 8
          %s296 = scalar_lea.vmem %s0, %s295
        $region44: #{tpu_custom_call.1} parent=39 // pred_fallthru
          _
      $region40: #{tpu_custom_call.1} parent=5 // pred_fallthru
        _
      %p297 = scmp.le.s32.totalorder 1, %s22
      %p298 = scmp.lt.s32.totalorder %s22, 3
      %p299 = pnand %p297, %p298
      %p300 = pneg %p299
      // Predicated region
      $region45: #{tpu_custom_call.1} parent=5 // pred_check
        _
      $region46: #{tpu_custom_call.1} parent=5 // pred_check_branch
        %302 = sbr.rel (%p299) target = $region48
      $region47: #{tpu_custom_call.1} parent=5 // pred_region
        %s303 = ssub.s32 %s22, 1
        %p304 = scmp.lt.s32.totalorder %s27, 1
        %s305 = scalar_select %p304, %s27, 1
        %s306 = smul.addr %s305, 32
        %s307 = smul.addr %s306, 8
        %s308 = scalar_lea.vmem %s0, %s307
        %p309 = pneg %p48
        %p310 = pneg %p45
        %p311 = pneg %p69
        %p312 = pneg %p66
        %p313 = pneg %p90
        %p314 = pneg %p87
        %p315 = pneg %p111
        %p316 = pneg %p108
        %p317 = pneg %p132
        %p318 = pneg %p129
        %p319 = pneg %p153
        %p320 = pneg %p150
        %p321 = pneg %p174
        %p322 = pneg %p171
        %p323 = pneg %p200
        %p324 = pneg %p197
        %p325 = scmp.lt.s32.totalorder %s27, 1
        %s326 = scalar_select %p325, %s27, 1
        %s327 = smul.addr %s326, 32
        %s328 = smul.addr %s327, 8
        %s329 = scalar_lea.vmem %s7, %s328
        %p330 = pneg %p226
        %p331 = pneg %p223
        %s332 = sand.u32 %s213, 1
        %s333 = scalar_lea.sflag [#allocation7], %s332
        %s334 = sand.u32 %s213, 1
        %s335 = smul.addr %s334, 64
        %s336 = scalar_lea.vmem [#allocation6], %s335
        %p337 = pneg %p252
        %p338 = pneg %p249
        %s339 = sand.u32 %s239, 1
        %s340 = scalar_lea.sflag [#allocation9], %s339
        %s341 = sand.u32 %s239, 1
        %s342 = smul.addr %s341, 64
        %s343 = scalar_lea.vmem [#allocation8], %s342
        %p344 = scmp.lt.s32.totalorder %s27, 1
        %s345 = scalar_select %p344, %s27, 1
        %s346 = smul.addr %s345, 32
        %s347 = smul.addr %s346, 8
        %s348 = scalar_lea.vmem %s0, %s347
        %p349 = scmp.lt.s32.totalorder %s27, 1
        %s350 = scalar_select %p349, %s27, 1
        %s351 = smul.addr %s350, 32
        %s352 = smul.addr %s351, 8
        %s353 = scalar_lea.vmem %s7, %s352
        %vm354 = vcmask 31744
        %355 = vst.msk [vmem:[#allocation2] sm:$0xff] %vm354, 0.0
        %356 = vst.msk [vmem:[#allocation2 + $0x8] sm:$0xff] %vm354, 0.0
        %vm357 = vcmask 25600
        %358 = vst.msk [vmem:[#allocation2 + $0x10] sm:$0x3] %vm357, 0.0
        %359 = vst.msk [vmem:[#allocation2 + $0x18] sm:$0xff] %vm354, 0.0
        %360 = vst.msk [vmem:[#allocation2 + $0x20] sm:$0xff] %vm354, 0.0
        %361 = vst.msk [vmem:[#allocation2 + $0x28] sm:$0x3] %vm357, 0.0
        %362 = vst.msk [vmem:[#allocation2 + $0x30] sm:$0xff] %vm354, 0.0
        %363 = vst.msk [vmem:[#allocation2 + $0x38] sm:$0xff] %vm354, 0.0
        %364 = vst.msk [vmem:[#allocation2 + $0x40] sm:$0x3] %vm357, 0.0
        %365 = vst.msk [vmem:[#allocation2 + $0x48] sm:$0xff] %vm354, 0.0
        %366 = vst.msk [vmem:[#allocation2 + $0x50] sm:$0xff] %vm354, 0.0
        %367 = vst.msk [vmem:[#allocation2 + $0x58] sm:$0x3] %vm357, 0.0
        %368 = vst.msk [vmem:[#allocation2 + $0x60] sm:$0xff] %vm354, 0.0
        %369 = vst.msk [vmem:[#allocation2 + $0x68] sm:$0xff] %vm354, 0.0
        %370 = vst.msk [vmem:[#allocation2 + $0x70] sm:$0x3] %vm357, 0.0
        %371 = vst.msk [vmem:[#allocation2 + $0x78] sm:$0xff] %vm354, 0.0
        %372 = vst.msk [vmem:[#allocation2 + $0x80] sm:$0xff] %vm354, 0.0
        %373 = vst.msk [vmem:[#allocation2 + $0x88] sm:$0x3] %vm357, 0.0
        %374 = vst.msk [vmem:[#allocation2 + $0x90] sm:$0xff] %vm354, 0.0
        %375 = vst.msk [vmem:[#allocation2 + $0x98] sm:$0xff] %vm354, 0.0
        %376 = vst.msk [vmem:[#allocation2 + $0xa0] sm:$0x3] %vm357, 0.0
        %377 = vst.msk [vmem:[#allocation2 + $0xa8] sm:$0xff] %vm354, 0.0
        %378 = vst.msk [vmem:[#allocation2 + $0xb0] sm:$0xff] %vm354, 0.0
        %379 = vst.msk [vmem:[#allocation2 + $0xb8] sm:$0x3] %vm357, 0.0
        %380 = vst.msk [vmem:[#allocation2 + $0xc0] sm:$0xff] %vm354, 0.0
        %381 = vst.msk [vmem:[#allocation2 + $0xc8] sm:$0xff] %vm354, 0.0
        %382 = vst.msk [vmem:[#allocation2 + $0xd0] sm:$0x3] %vm357, 0.0
        %383 = vst.msk [vmem:[#allocation2 + $0xd8] sm:$0xff] %vm354, 0.0
        %384 = vst.msk [vmem:[#allocation2 + $0xe0] sm:$0xff] %vm354, 0.0
        %385 = vst.msk [vmem:[#allocation2 + $0xe8] sm:$0x3] %vm357, 0.0
        %386 = vst.msk [vmem:[#allocation2 + $0xf0] sm:$0xff] %vm354, 0.0
        %387 = vst.msk [vmem:[#allocation2 + $0xf8] sm:$0xff] %vm354, 0.0
        %388 = vst.msk [vmem:[#allocation2 + $0x100] sm:$0x3] %vm357, 0.0
        %389 = vst.msk [vmem:[#allocation2 + $0x108] sm:$0xff] %vm354, 0.0
        %390 = vst.msk [vmem:[#allocation2 + $0x110] sm:$0xff] %vm354, 0.0
        %391 = vst.msk [vmem:[#allocation2 + $0x118] sm:$0x3] %vm357, 0.0
        %392 = vst.msk [vmem:[#allocation2 + $0x120] sm:$0xff] %vm354, 0.0
        %393 = vst.msk [vmem:[#allocation2 + $0x128] sm:$0xff] %vm354, 0.0
        %394 = vst.msk [vmem:[#allocation2 + $0x130] sm:$0x3] %vm357, 0.0
        %395 = vst.msk [vmem:[#allocation2 + $0x138] sm:$0xff] %vm354, 0.0
        %396 = vst.msk [vmem:[#allocation2 + $0x140] sm:$0xff] %vm354, 0.0
        %397 = vst.msk [vmem:[#allocation2 + $0x148] sm:$0x3] %vm357, 0.0
        %398 = vst.msk [vmem:[#allocation2 + $0x150] sm:$0xff] %vm354, 0.0
        %399 = vst.msk [vmem:[#allocation2 + $0x158] sm:$0xff] %vm354, 0.0
        %400 = vst.msk [vmem:[#allocation2 + $0x160] sm:$0x3] %vm357, 0.0
        %401 = vst.msk [vmem:[#allocation2 + $0x168] sm:$0xff] %vm354, 0.0
        %402 = vst.msk [vmem:[#allocation2 + $0x170] sm:$0xff] %vm354, 0.0
        %403 = vst.msk [vmem:[#allocation2 + $0x178] sm:$0x3] %vm357, 0.0
        %404 = vst.msk [vmem:[#allocation2 + $0x180] sm:$0xff] %vm354, 0.0
        %405 = vst.msk [vmem:[#allocation2 + $0x188] sm:$0xff] %vm354, 0.0
        %406 = vst.msk [vmem:[#allocation2 + $0x190] sm:$0x3] %vm357, 0.0
        %407 = vst.msk [vmem:[#allocation2 + $0x198] sm:$0xff] %vm354, 0.0
        %408 = vst.msk [vmem:[#allocation2 + $0x1a0] sm:$0xff] %vm354, 0.0
        %409 = vst.msk [vmem:[#allocation2 + $0x1a8] sm:$0x3] %vm357, 0.0
        %vm410 = vcmask 64512
        %411 = vst.msk [vmem:[#allocation3] sm:$0xff] %vm410, 0.0
        %412 = vst.msk [vmem:[#allocation3 + $0x8] sm:$0xff] %vm410, 0.0
        %vm413 = vcmask 58368
        %414 = vst.msk [vmem:[#allocation3 + $0x10] sm:$0x3] %vm413, 0.0
        %415 = vst.msk [vmem:[#allocation3 + $0x18] sm:$0xff] %vm410, 0.0
        %416 = vst.msk [vmem:[#allocation3 + $0x20] sm:$0xff] %vm410, 0.0
        %417 = vst.msk [vmem:[#allocation3 + $0x28] sm:$0x3] %vm413, 0.0
        %418 = vst.msk [vmem:[#allocation3 + $0x30] sm:$0xff] %vm410, 0.0
        %419 = vst.msk [vmem:[#allocation3 + $0x38] sm:$0xff] %vm410, 0.0
        %420 = vst.msk [vmem:[#allocation3 + $0x40] sm:$0x3] %vm413, 0.0
        %421 = vst.msk [vmem:[#allocation3 + $0x48] sm:$0xff] %vm410, 0.0
        %422 = vst.msk [vmem:[#allocation3 + $0x50] sm:$0xff] %vm410, 0.0
        %423 = vst.msk [vmem:[#allocation3 + $0x58] sm:$0x3] %vm413, 0.0
        %424 = vst.msk [vmem:[#allocation3 + $0x60] sm:$0xff] %vm410, 0.0
        %425 = vst.msk [vmem:[#allocation3 + $0x68] sm:$0xff] %vm410, 0.0
        %426 = vst.msk [vmem:[#allocation3 + $0x70] sm:$0x3] %vm413, 0.0
        %427 = vst.msk [vmem:[#allocation3 + $0x78] sm:$0xff] %vm410, 0.0
        %428 = vst.msk [vmem:[#allocation3 + $0x80] sm:$0xff] %vm410, 0.0
        %429 = vst.msk [vmem:[#allocation3 + $0x88] sm:$0x3] %vm413, 0.0
        %430 = vst.msk [vmem:[#allocation3 + $0x90] sm:$0xff] %vm410, 0.0
        %431 = vst.msk [vmem:[#allocation3 + $0x98] sm:$0xff] %vm410, 0.0
        %432 = vst.msk [vmem:[#allocation3 + $0xa0] sm:$0x3] %vm413, 0.0
        %433 = vst.msk [vmem:[#allocation3 + $0xa8] sm:$0xff] %vm410, 0.0
        %434 = vst.msk [vmem:[#allocation3 + $0xb0] sm:$0xff] %vm410, 0.0
        %435 = vst.msk [vmem:[#allocation3 + $0xb8] sm:$0x3] %vm413, 0.0
        %436 = vst.msk [vmem:[#allocation3 + $0xc0] sm:$0xff] %vm410, 0.0
        %437 = vst.msk [vmem:[#allocation3 + $0xc8] sm:$0xff] %vm410, 0.0
        %438 = vst.msk [vmem:[#allocation3 + $0xd0] sm:$0x3] %vm413, 0.0
        %439 = vst.msk [vmem:[#allocation3 + $0xd8] sm:$0xff] %vm410, 0.0
        %440 = vst.msk [vmem:[#allocation3 + $0xe0] sm:$0xff] %vm410, 0.0
        %441 = vst.msk [vmem:[#allocation3 + $0xe8] sm:$0x3] %vm413, 0.0
        %442 = vst.msk [vmem:[#allocation3 + $0xf0] sm:$0xff] %vm410, 0.0
        %443 = vst.msk [vmem:[#allocation3 + $0xf8] sm:$0xff] %vm410, 0.0
        %444 = vst.msk [vmem:[#allocation3 + $0x100] sm:$0x3] %vm413, 0.0
        %445 = vst.msk [vmem:[#allocation3 + $0x108] sm:$0xff] %vm410, 0.0
        %446 = vst.msk [vmem:[#allocation3 + $0x110] sm:$0xff] %vm410, 0.0
        %447 = vst.msk [vmem:[#allocation3 + $0x118] sm:$0x3] %vm413, 0.0
        %448 = vst.msk [vmem:[#allocation3 + $0x120] sm:$0xff] %vm410, 0.0
        %449 = vst.msk [vmem:[#allocation3 + $0x128] sm:$0xff] %vm410, 0.0
        %450 = vst.msk [vmem:[#allocation3 + $0x130] sm:$0x3] %vm413, 0.0
        %451 = vst.msk [vmem:[#allocation3 + $0x138] sm:$0xff] %vm410, 0.0
        %452 = vst.msk [vmem:[#allocation3 + $0x140] sm:$0xff] %vm410, 0.0
        %453 = vst.msk [vmem:[#allocation3 + $0x148] sm:$0x3] %vm413, 0.0
        %454 = vst.msk [vmem:[#allocation3 + $0x150] sm:$0xff] %vm410, 0.0
        %455 = vst.msk [vmem:[#allocation3 + $0x158] sm:$0xff] %vm410, 0.0
        %456 = vst.msk [vmem:[#allocation3 + $0x160] sm:$0x3] %vm413, 0.0
        %457 = vst.msk [vmem:[#allocation3 + $0x168] sm:$0xff] %vm410, 0.0
        %458 = vst.msk [vmem:[#allocation3 + $0x170] sm:$0xff] %vm410, 0.0
        %459 = vst.msk [vmem:[#allocation3 + $0x178] sm:$0x3] %vm413, 0.0
        %460 = vst.msk [vmem:[#allocation3 + $0x180] sm:$0xff] %vm410, 0.0
        %461 = vst.msk [vmem:[#allocation3 + $0x188] sm:$0xff] %vm410, 0.0
        %462 = vst.msk [vmem:[#allocation3 + $0x190] sm:$0x3] %vm413, 0.0
        %463 = vst.msk [vmem:[#allocation3 + $0x198] sm:$0xff] %vm410, 0.0
        %464 = vst.msk [vmem:[#allocation3 + $0x1a0] sm:$0xff] %vm410, 0.0
        %465 = vst.msk [vmem:[#allocation3 + $0x1a8] sm:$0x3] %vm413, 0.0
        %466 = vst.msk [vmem:[#allocation4] sm:$0xff] %vm410, 0.0
        %467 = vst.msk [vmem:[#allocation4 + $0x8] sm:$0x3] %vm413, 0.0
        %468 = vst.msk [vmem:[#allocation4 + $0x10] sm:$0xff] %vm410, 0.0
        %469 = vst.msk [vmem:[#allocation4 + $0x18] sm:$0x3] %vm413, 0.0
        %470 = vst.msk [vmem:[#allocation4 + $0x20] sm:$0xff] %vm410, 0.0
        %471 = vst.msk [vmem:[#allocation4 + $0x28] sm:$0x3] %vm413, 0.0
        %472 = vst.msk [vmem:[#allocation4 + $0x30] sm:$0xff] %vm410, 0.0
        %473 = vst.msk [vmem:[#allocation4 + $0x38] sm:$0x3] %vm413, 0.0
        %474 = vst.msk [vmem:[#allocation4 + $0x40] sm:$0xff] %vm410, 0.0
        %475 = vst.msk [vmem:[#allocation4 + $0x48] sm:$0x3] %vm413, 0.0
        %476 = vst.msk [vmem:[#allocation4 + $0x50] sm:$0xff] %vm410, 0.0
        %477 = vst.msk [vmem:[#allocation4 + $0x58] sm:$0x3] %vm413, 0.0
        %478 = vst.msk [vmem:[#allocation4 + $0x60] sm:$0xff] %vm410, 0.0
        %479 = vst.msk [vmem:[#allocation4 + $0x68] sm:$0x3] %vm413, 0.0
        %480 = vst.msk [vmem:[#allocation4 + $0x70] sm:$0xff] %vm410, 0.0
        %481 = vst.msk [vmem:[#allocation4 + $0x78] sm:$0x3] %vm413, 0.0
        %482 = vst.msk [vmem:[#allocation4 + $0x80] sm:$0xff] %vm410, 0.0
        %483 = vst.msk [vmem:[#allocation4 + $0x88] sm:$0x3] %vm413, 0.0
        %484 = vst.msk [vmem:[#allocation4 + $0x90] sm:$0xff] %vm410, 0.0
        %485 = vst.msk [vmem:[#allocation4 + $0x98] sm:$0x3] %vm413, 0.0
        %v486 = vld [vmem:[%s348] sm:$0xff]
        %v487 = vld [vmem:[%s348 + $0x8] sm:$0xff]
        %v488 = vld [vmem:[%s348 + $0x10] sm:$0xff]
        %v489 = vld [vmem:[%s348 + $0x18] sm:$0xff]
        %v490 = vld [vmem:[%s348 + $0x20] sm:$0xff]
        %v491 = vld [vmem:[%s348 + $0x28] sm:$0xff]
        %v492 = vld [vmem:[%s348 + $0x30] sm:$0xff]
        %v493 = vld [vmem:[%s348 + $0x38] sm:$0xff]
        %v494 = vld [vmem:[%s348 + $0x40] sm:$0xff]
        %v495 = vld [vmem:[%s348 + $0x48] sm:$0xff]
        %v496 = vld [vmem:[%s348 + $0x50] sm:$0xff]
        %v497 = vld [vmem:[%s348 + $0x58] sm:$0xff]
        %v498 = vld [vmem:[%s348 + $0x60] sm:$0xff]
        %v499 = vld [vmem:[%s348 + $0x68] sm:$0xff]
        %v500 = vld [vmem:[%s348 + $0x70] sm:$0xff]
        %v501 = vld [vmem:[%s348 + $0x78] sm:$0xff]
        %v502 = vld [vmem:[%s348 + $0x80] sm:$0xff]
        %v503 = vld [vmem:[%s348 + $0x88] sm:$0xff]
        %v504 = vld [vmem:[%s348 + $0x90] sm:$0xff]
        %v505 = vld [vmem:[%s348 + $0x98] sm:$0xff]
        %v506 = vld [vmem:[%s348 + $0xa0] sm:$0xff]
        %v507 = vld [vmem:[%s348 + $0xa8] sm:$0xff]
        %v508 = vld [vmem:[%s348 + $0xb0] sm:$0xff]
        %v509 = vld [vmem:[%s348 + $0xb8] sm:$0xff]
        %v510 = vld [vmem:[%s348 + $0xc0] sm:$0xff]
        %v511 = vld [vmem:[%s348 + $0xc8] sm:$0xff]
        %v512 = vld [vmem:[%s348 + $0xd0] sm:$0xff]
        %v513 = vld [vmem:[%s348 + $0xd8] sm:$0xff]
        %v514 = vld [vmem:[%s348 + $0xe0] sm:$0xff]
        %v515 = vld [vmem:[%s348 + $0xe8] sm:$0xff]
        %v516 = vld [vmem:[%s348 + $0xf0] sm:$0xff]
        %v517 = vld [vmem:[%s348 + $0xf8] sm:$0xff]
        %s518 = scalar_lea.vmem [#allocation2], 24
        %519 = vst.msk [vmem:[%s518 + $0x1] sm:$0xff] %vm354, %v486
        %520 = vst.msk [vmem:[%s518 + $0x9] sm:$0xff] %vm354, %v487
        %521 = vst.msk [vmem:[%s518 + $0x19] sm:$0xff] %vm354, %v488
        %522 = vst.msk [vmem:[%s518 + $0x21] sm:$0xff] %vm354, %v489
        %523 = vst.msk [vmem:[%s518 + $0x31] sm:$0xff] %vm354, %v490
        %524 = vst.msk [vmem:[%s518 + $0x39] sm:$0xff] %vm354, %v491
        %525 = vst.msk [vmem:[%s518 + $0x49] sm:$0xff] %vm354, %v492
        %526 = vst.msk [vmem:[%s518 + $0x51] sm:$0xff] %vm354, %v493
        %527 = vst.msk [vmem:[%s518 + $0x61] sm:$0xff] %vm354, %v494
        %528 = vst.msk [vmem:[%s518 + $0x69] sm:$0xff] %vm354, %v495
        %529 = vst.msk [vmem:[%s518 + $0x79] sm:$0xff] %vm354, %v496
        %530 = vst.msk [vmem:[%s518 + $0x81] sm:$0xff] %vm354, %v497
        %531 = vst.msk [vmem:[%s518 + $0x91] sm:$0xff] %vm354, %v498
        %532 = vst.msk [vmem:[%s518 + $0x99] sm:$0xff] %vm354, %v499
        %533 = vst.msk [vmem:[%s518 + $0xa9] sm:$0xff] %vm354, %v500
        %534 = vst.msk [vmem:[%s518 + $0xb1] sm:$0xff] %vm354, %v501
        %535 = vst.msk [vmem:[%s518 + $0xc1] sm:$0xff] %vm354, %v502
        %536 = vst.msk [vmem:[%s518 + $0xc9] sm:$0xff] %vm354, %v503
        %537 = vst.msk [vmem:[%s518 + $0xd9] sm:$0xff] %vm354, %v504
        %538 = vst.msk [vmem:[%s518 + $0xe1] sm:$0xff] %vm354, %v505
        %539 = vst.msk [vmem:[%s518 + $0xf1] sm:$0xff] %vm354, %v506
        %540 = vst.msk [vmem:[%s518 + $0xf9] sm:$0xff] %vm354, %v507
        %541 = vst.msk [vmem:[%s518 + $0x109] sm:$0xff] %vm354, %v508
        %542 = vst.msk [vmem:[%s518 + $0x111] sm:$0xff] %vm354, %v509
        %543 = vst.msk [vmem:[%s518 + $0x121] sm:$0xff] %vm354, %v510
        %544 = vst.msk [vmem:[%s518 + $0x129] sm:$0xff] %vm354, %v511
        %545 = vst.msk [vmem:[%s518 + $0x139] sm:$0xff] %vm354, %v512
        %546 = vst.msk [vmem:[%s518 + $0x141] sm:$0xff] %vm354, %v513
        %547 = vst.msk [vmem:[%s518 + $0x151] sm:$0xff] %vm354, %v514
        %548 = vst.msk [vmem:[%s518 + $0x159] sm:$0xff] %vm354, %v515
        %549 = vst.msk [vmem:[%s518 + $0x169] sm:$0xff] %vm354, %v516
        %550 = vst.msk [vmem:[%s518 + $0x171] sm:$0xff] %vm354, %v517
        %v551 = vld [vmem:[#allocation2] sm:$0xff]
        %v552 = vld [vmem:[#allocation2 + $0x8] sm:$0xff]
        %v553 = vld [vmem:[#allocation2 + $0x18] sm:$0xff]
        %v554 = vld [vmem:[#allocation2 + $0x20] sm:$0xff]
        %v555 = vld [vmem:[#allocation2 + $0x30] sm:$0xff]
        %v556 = vld [vmem:[#allocation2 + $0x38] sm:$0xff]
        %v557 = vld [vmem:[#allocation2 + $0x48] sm:$0xff]
        %v558 = vld [vmem:[#allocation2 + $0x50] sm:$0xff]
        %v559 = vld [vmem:[#allocation2 + $0x60] sm:$0xff]
        %v560 = vld [vmem:[#allocation2 + $0x68] sm:$0xff]
        %v561 = vld [vmem:[#allocation2 + $0x78] sm:$0xff]
        %v562 = vld [vmem:[#allocation2 + $0x80] sm:$0xff]
        %v563 = vld [vmem:[#allocation2 + $0x90] sm:$0xff]
        %v564 = vld [vmem:[#allocation2 + $0x98] sm:$0xff]
        %v565 = vld [vmem:[#allocation2 + $0xa8] sm:$0xff]
        %v566 = vld [vmem:[#allocation2 + $0xb0] sm:$0xff]
        %v567 = vld [vmem:[#allocation2 + $0xc0] sm:$0xff]
        %v568 = vld [vmem:[#allocation2 + $0xc8] sm:$0xff]
        %v569 = vld [vmem:[#allocation2 + $0xd8] sm:$0xff]
        %v570 = vld [vmem:[#allocation2 + $0xe0] sm:$0xff]
        %v571 = vld [vmem:[#allocation2 + $0xf0] sm:$0xff]
        %v572 = vld [vmem:[#allocation2 + $0xf8] sm:$0xff]
        %v573 = vld [vmem:[#allocation2 + $0x108] sm:$0xff]
        %v574 = vld [vmem:[#allocation2 + $0x110] sm:$0xff]
        %v575 = vld [vmem:[#allocation2 + $0x120] sm:$0xff]
        %v576 = vld [vmem:[#allocation2 + $0x128] sm:$0xff]
        %v577 = vld [vmem:[#allocation2 + $0x138] sm:$0xff]
        %v578 = vld [vmem:[#allocation2 + $0x140] sm:$0xff]
        %v579 = vld [vmem:[#allocation2 + $0x150] sm:$0xff]
        %v580 = vld [vmem:[#allocation2 + $0x158] sm:$0xff]
        %v581 = vld [vmem:[#allocation2 + $0x168] sm:$0xff]
        %v582 = vld [vmem:[#allocation2 + $0x170] sm:$0xff]
        %v583 = vld [vmem:[%s1] sm:$0xf]
        %v584 = vld [vmem:[#allocation2 + $0x1] sm:$0xff]
        %v585 = vld [vmem:[#allocation2 + $0x9] sm:$0xff]
        %v586 = vld [vmem:[#allocation2 + $0x19] sm:$0xff]
        %v587 = vld [vmem:[#allocation2 + $0x21] sm:$0xff]
        %v588 = vld [vmem:[#allocation2 + $0x31] sm:$0xff]
        %v589 = vld [vmem:[#allocation2 + $0x39] sm:$0xff]
        %v590 = vld [vmem:[#allocation2 + $0x49] sm:$0xff]
        %v591 = vld [vmem:[#allocation2 + $0x51] sm:$0xff]
        %v592 = vld [vmem:[#allocation2 + $0x61] sm:$0xff]
        %v593 = vld [vmem:[#allocation2 + $0x69] sm:$0xff]
        %v594 = vld [vmem:[#allocation2 + $0x79] sm:$0xff]
        %v595 = vld [vmem:[#allocation2 + $0x81] sm:$0xff]
        %v596 = vld [vmem:[#allocation2 + $0x91] sm:$0xff]
        %v597 = vld [vmem:[#allocation2 + $0x99] sm:$0xff]
        %v598 = vld [vmem:[#allocation2 + $0xa9] sm:$0xff]
        %v599 = vld [vmem:[#allocation2 + $0xb1] sm:$0xff]
        %v600 = vld [vmem:[#allocation2 + $0xc1] sm:$0xff]
        %v601 = vld [vmem:[#allocation2 + $0xc9] sm:$0xff]
        %v602 = vld [vmem:[#allocation2 + $0xd9] sm:$0xff]
        %v603 = vld [vmem:[#allocation2 + $0xe1] sm:$0xff]
        %v604 = vld [vmem:[#allocation2 + $0xf1] sm:$0xff]
        %v605 = vld [vmem:[#allocation2 + $0xf9] sm:$0xff]
        %v606 = vld [vmem:[#allocation2 + $0x109] sm:$0xff]
        %v607 = vld [vmem:[#allocation2 + $0x111] sm:$0xff]
        %v608 = vld [vmem:[#allocation2 + $0x121] sm:$0xff]
        %v609 = vld [vmem:[#allocation2 + $0x129] sm:$0xff]
        %v610 = vld [vmem:[#allocation2 + $0x139] sm:$0xff]
        %v611 = vld [vmem:[#allocation2 + $0x141] sm:$0xff]
        %v612 = vld [vmem:[#allocation2 + $0x151] sm:$0xff]
        %v613 = vld [vmem:[#allocation2 + $0x159] sm:$0xff]
        %v614 = vld [vmem:[#allocation2 + $0x169] sm:$0xff]
        %v615 = vld [vmem:[#allocation2 + $0x171] sm:$0xff]
        %s616 = scalar_lea.vmem %s1, 4
        %v617 = vld [vmem:[%s616] sm:$0xf]
        %v619 = vsel %vm354, %v584, 0
        %v622 = vsel %vm354, %v585, 0
        %v625 = vsel %vm354, %v586, 0
        %v628 = vsel %vm354, %v587, 0
        %v631 = vsel %vm354, %v588, 0
        %v634 = vsel %vm354, %v589, 0
        %v637 = vsel %vm354, %v590, 0
        %v640 = vsel %vm354, %v591, 0
        %v643 = vsel %vm354, %v592, 0
        %v646 = vsel %vm354, %v593, 0
        %v649 = vsel %vm354, %v594, 0
        %v652 = vsel %vm354, %v595, 0
        %v655 = vsel %vm354, %v596, 0
        %v658 = vsel %vm354, %v597, 0
        %v661 = vsel %vm354, %v598, 0
        %v664 = vsel %vm354, %v599, 0
        %v667 = vsel %vm354, %v600, 0
        %v670 = vsel %vm354, %v601, 0
        %v673 = vsel %vm354, %v602, 0
        %v676 = vsel %vm354, %v603, 0
        %v679 = vsel %vm354, %v604, 0
        %v682 = vsel %vm354, %v605, 0
        %v685 = vsel %vm354, %v606, 0
        %v688 = vsel %vm354, %v607, 0
        %v691 = vsel %vm354, %v608, 0
        %v694 = vsel %vm354, %v609, 0
        %v697 = vsel %vm354, %v610, 0
        %v700 = vsel %vm354, %v611, 0
        %v703 = vsel %vm354, %v612, 0
        %v706 = vsel %vm354, %v613, 0
        %v709 = vsel %vm354, %v614, 0
        %v712 = vsel %vm354, %v615, 0
        %vm714 = vcmask 1043456
        %v716 = vsel %vm714, %v617, 0
        %718 = vmatprep.subr.mxu0 0.0
        %719 = vmatpush1.msra.mxu0 %v716
        %720 = vmatprep.subr.mxu0 0.0
        %721 = vmatpush1.msra.mxu0 0.0
        %722 = vmatprep.subr.mxu0 0.0
        %723 = vmatpush1.msra.mxu0 0.0
        %724 = vmatprep.subr.mxu0 0.0
        %725 = vmatpush1.msra.mxu0 0.0
        %726 = vmatprep.subr.mxu0 0.0
        %727 = vmatpush1.msra.mxu0 0.0
        %728 = vmatprep.subr.mxu0 0.0
        %729 = vmatpush1.msra.mxu0 0.0
        %730 = vmatprep.subr.mxu0 0.0
        %731 = vmatpush1.msra.mxu0 0.0
        %732 = vmatprep.subr.mxu0 0.0
        %733 = vmatpush1.msra.mxu0 0.0
        %734 = vmatprep.subr.mxu0 0.0
        %735 = vmatpush1.msra.mxu0 0.0
        %736 = vmatprep.subr.mxu0 0.0
        %737 = vmatpush1.msra.mxu0 0.0
        %738 = vmatprep.subr.mxu0 0.0
        %739 = vmatpush1.msra.mxu0 0.0
        %740 = vmatprep.subr.mxu0 0.0
        %741 = vmatpush1.msra.mxu0 0.0
        %742 = vmatprep.subr.mxu0 0.0
        %743 = vmatpush1.msra.mxu0 0.0
        %744 = vmatprep.subr.mxu0 0.0
        %745 = vmatpush1.msra.mxu0 0.0
        %746 = vmatprep.subr.mxu0 0.0
        %747 = vmatpush1.msra.mxu0 0.0
        %748 = vmatprep.subr.mxu0 0.0
        %749 = vmatpush1.msra.mxu0 0.0
        %750 = vmatprep.subr.mxu0 0.0
        %751 = vmatpush1.msra.mxu0 0.0
        %752 = vmatprep.subr.mxu0 0.0
        %753 = vmatpush1.msra.mxu0 0.0
        %754 = vmatprep.subr.mxu0 0.0
        %755 = vmatpush1.msra.mxu0 0.0
        %756 = vmatprep.subr.mxu0 0.0
        %757 = vmatpush1.msra.mxu0 0.0
        %758 = vmatprep.subr.mxu0 0.0
        %759 = vmatpush1.msra.mxu0 0.0
        %760 = vmatprep.subr.mxu0 0.0
        %761 = vmatpush1.msra.mxu0 0.0
        %762 = vmatprep.subr.mxu0 0.0
        %763 = vmatpush1.msra.mxu0 0.0
        %764 = vmatprep.subr.mxu0 0.0
        %765 = vmatpush1.msra.mxu0 0.0
        %766 = vmatprep.subr.mxu0 0.0
        %767 = vmatpush1.msra.mxu0 0.0
        %768 = vmatprep.subr.mxu0 0.0
        %769 = vmatpush1.msra.mxu0 0.0
        %770 = vmatprep.subr.mxu0 0.0
        %771 = vmatpush1.msra.mxu0 0.0
        %772 = vmatprep.subr.mxu0 0.0
        %773 = vmatpush1.msra.mxu0 0.0
        %774 = vmatprep.subr.mxu0 0.0
        %775 = vmatpush1.msra.mxu0 0.0
        %776 = vmatprep.subr.mxu0 0.0
        %777 = vmatpush1.msra.mxu0 0.0
        %778 = vmatprep.subr.mxu0 0.0
        %779 = vmatpush1.msra.mxu0 0.0
        %780 = vmatprep.subr.mxu0 0.0
        %781 = vmatpush1.msra.mxu0 0.0
        %782 = vmatprep.mubr.f32.mxu0 0.0
        %783 = vmatmul.mubr.f32.gmra.mrb[0].mxu0 %v619
        %v784 = vpop.f32.mrb[0].mxu0
        %v785 = vadd.f32 0.0, %v784
        %v786 = vpop.f32.mrb[0].mxu0
        %787 = vmatprep.mubr.f32.mxu0 0.0
        %788 = vmatmul.mubr.f32.gmra.mrb[0].mxu0 %v622
        %v789 = vpop.f32.mrb[0].mxu0
        %v790 = vadd.f32 0.0, %v789
        %v791 = vpop.f32.mrb[0].mxu0
        %792 = vmatprep.mubr.f32.mxu0 0.0
        %793 = vmatmul.mubr.f32.gmra.mrb[0].mxu0 %v625
        %v794 = vpop.f32.mrb[0].mxu0
        %v795 = vadd.f32 0.0, %v794
        %v796 = vpop.f32.mrb[0].mxu0
        %797 = vmatprep.mubr.f32.mxu0 0.0
        %798 = vmatmul.mubr.f32.gmra.mrb[0].mxu0 %v628
        %v799 = vpop.f32.mrb[0].mxu0
        %v800 = vadd.f32 0.0, %v799
        %v801 = vpop.f32.mrb[0].mxu0
        %802 = vmatprep.mubr.f32.mxu0 0.0
        %803 = vmatmul.mubr.f32.gmra.mrb[0].mxu0 %v631
        %v804 = vpop.f32.mrb[0].mxu0
        %v805 = vadd.f32 0.0, %v804
        %v806 = vpop.f32.mrb[0].mxu0
        %807 = vmatprep.mubr.f32.mxu0 0.0
        %808 = vmatmul.mubr.f32.gmra.mrb[0].mxu0 %v634
        %v809 = vpop.f32.mrb[0].mxu0
        %v810 = vadd.f32 0.0, %v809
        %v811 = vpop.f32.mrb[0].mxu0
        %812 = vmatprep.mubr.f32.mxu0 0.0
        %813 = vmatmul.mubr.f32.gmra.mrb[0].mxu0 %v637
        %v814 = vpop.f32.mrb[0].mxu0
        %v815 = vadd.f32 0.0, %v814
        %v816 = vpop.f32.mrb[0].mxu0
        %817 = vmatprep.mubr.f32.mxu0 0.0
        %818 = vmatmul.mubr.f32.gmra.mrb[0].mxu0 %v640
        %v819 = vpop.f32.mrb[0].mxu0
        %v820 = vadd.f32 0.0, %v819
        %v821 = vpop.f32.mrb[0].mxu0
        %822 = vmatprep.mubr.f32.mxu0 0.0
        %823 = vmatmul.mubr.f32.gmra.mrb[0].mxu0 %v643
        %v824 = vpop.f32.mrb[0].mxu0
        %v825 = vadd.f32 0.0, %v824
        %v826 = vpop.f32.mrb[0].mxu0
        %827 = vmatprep.mubr.f32.mxu0 0.0
        %828 = vmatmul.mubr.f32.gmra.mrb[0].mxu0 %v646
        %v829 = vpop.f32.mrb[0].mxu0
        %v830 = vadd.f32 0.0, %v829
        %v831 = vpop.f32.mrb[0].mxu0
        %832 = vmatprep.mubr.f32.mxu0 0.0
        %833 = vmatmul.mubr.f32.gmra.mrb[0].mxu0 %v649
        %v834 = vpop.f32.mrb[0].mxu0
        %v835 = vadd.f32 0.0, %v834
        %v836 = vpop.f32.mrb[0].mxu0
        %837 = vmatprep.mubr.f32.mxu0 0.0
        %838 = vmatmul.mubr.f32.gmra.mrb[0].mxu0 %v652
        %v839 = vpop.f32.mrb[0].mxu0
        %v840 = vadd.f32 0.0, %v839
        %v841 = vpop.f32.mrb[0].mxu0
        %842 = vmatprep.mubr.f32.mxu0 0.0
        %843 = vmatmul.mubr.f32.gmra.mrb[0].mxu0 %v655
        %v844 = vpop.f32.mrb[0].mxu0
        %v845 = vadd.f32 0.0, %v844
        %v846 = vpop.f32.mrb[0].mxu0
        %847 = vmatprep.mubr.f32.mxu0 0.0
        %848 = vmatmul.mubr.f32.gmra.mrb[0].mxu0 %v658
        %v849 = vpop.f32.mrb[0].mxu0
        %v850 = vadd.f32 0.0, %v849
        %v851 = vpop.f32.mrb[0].mxu0
        %852 = vmatprep.mubr.f32.mxu0 0.0
        %853 = vmatmul.mubr.f32.gmra.mrb[0].mxu0 %v661
        %v854 = vpop.f32.mrb[0].mxu0
        %v855 = vadd.f32 0.0, %v854
        %v856 = vpop.f32.mrb[0].mxu0
        %857 = vmatprep.mubr.f32.mxu0 0.0
        %858 = vmatmul.mubr.f32.gmra.mrb[0].mxu0 %v664
        %v859 = vpop.f32.mrb[0].mxu0
        %v860 = vadd.f32 0.0, %v859
        %v861 = vpop.f32.mrb[0].mxu0
        %862 = vmatprep.mubr.f32.mxu0 0.0
        %863 = vmatmul.mubr.f32.gmra.mrb[0].mxu0 %v667
        %v864 = vpop.f32.mrb[0].mxu0
        %v865 = vadd.f32 0.0, %v864
        %v866 = vpop.f32.mrb[0].mxu0
        %867 = vmatprep.mubr.f32.mxu0 0.0
        %868 = vmatmul.mubr.f32.gmra.mrb[0].mxu0 %v670
        %v869 = vpop.f32.mrb[0].mxu0
        %v870 = vadd.f32 0.0, %v869
        %v871 = vpop.f32.mrb[0].mxu0
        %872 = vmatprep.mubr.f32.mxu0 0.0
        %873 = vmatmul.mubr.f32.gmra.mrb[0].mxu0 %v673
        %v874 = vpop.f32.mrb[0].mxu0
        %v875 = vadd.f32 0.0, %v874
        %v876 = vpop.f32.mrb[0].mxu0
        %877 = vmatprep.mubr.f32.mxu0 0.0
        %878 = vmatmul.mubr.f32.gmra.mrb[0].mxu0 %v676
        %v879 = vpop.f32.mrb[0].mxu0
        %v880 = vadd.f32 0.0, %v879
        %v881 = vpop.f32.mrb[0].mxu0
        %882 = vmatprep.mubr.f32.mxu0 0.0
        %883 = vmatmul.mubr.f32.gmra.mrb[0].mxu0 %v679
        %v884 = vpop.f32.mrb[0].mxu0
        %v885 = vadd.f32 0.0, %v884
        %v886 = vpop.f32.mrb[0].mxu0
        %887 = vmatprep.mubr.f32.mxu0 0.0
        %888 = vmatmul.mubr.f32.gmra.mrb[0].mxu0 %v682
        %v889 = vpop.f32.mrb[0].mxu0
        %v890 = vadd.f32 0.0, %v889
        %v891 = vpop.f32.mrb[0].mxu0
        %892 = vmatprep.mubr.f32.mxu0 0.0
        %893 = vmatmul.mubr.f32.gmra.mrb[0].mxu0 %v685
        %v894 = vpop.f32.mrb[0].mxu0
        %v895 = vadd.f32 0.0, %v894
        %v896 = vpop.f32.mrb[0].mxu0
        %897 = vmatprep.mubr.f32.mxu0 0.0
        %898 = vmatmul.mubr.f32.gmra.mrb[0].mxu0 %v688
        %v899 = vpop.f32.mrb[0].mxu0
        %v900 = vadd.f32 0.0, %v899
        %v901 = vpop.f32.mrb[0].mxu0
        %902 = vmatprep.mubr.f32.mxu0 0.0
        %903 = vmatmul.mubr.f32.gmra.mrb[0].mxu0 %v691
        %v904 = vpop.f32.mrb[0].mxu0
        %v905 = vadd.f32 0.0, %v904
        %v906 = vpop.f32.mrb[0].mxu0
        %907 = vmatprep.mubr.f32.mxu0 0.0
        %908 = vmatmul.mubr.f32.gmra.mrb[0].mxu0 %v694
        %v909 = vpop.f32.mrb[0].mxu0
        %v910 = vadd.f32 0.0, %v909
        %v911 = vpop.f32.mrb[0].mxu0
        %912 = vmatprep.mubr.f32.mxu0 0.0
        %913 = vmatmul.mubr.f32.gmra.mrb[0].mxu0 %v697
        %v914 = vpop.f32.mrb[0].mxu0
        %v915 = vadd.f32 0.0, %v914
        %v916 = vpop.f32.mrb[0].mxu0
        %917 = vmatprep.mubr.f32.mxu0 0.0
        %918 = vmatmul.mubr.f32.gmra.mrb[0].mxu0 %v700
        %v919 = vpop.f32.mrb[0].mxu0
        %v920 = vadd.f32 0.0, %v919
        %v921 = vpop.f32.mrb[0].mxu0
        %922 = vmatprep.mubr.f32.mxu0 0.0
        %923 = vmatmul.mubr.f32.gmra.mrb[0].mxu0 %v703
        %v924 = vpop.f32.mrb[0].mxu0
        %v925 = vadd.f32 0.0, %v924
        %v926 = vpop.f32.mrb[0].mxu0
        %927 = vmatprep.mubr.f32.mxu0 0.0
        %928 = vmatmul.mubr.f32.gmra.mrb[0].mxu0 %v706
        %v929 = vpop.f32.mrb[0].mxu0
        %v930 = vadd.f32 0.0, %v929
        %v931 = vpop.f32.mrb[0].mxu0
        %932 = vmatprep.mubr.f32.mxu0 0.0
        %933 = vmatmul.mubr.f32.gmra.mrb[0].mxu0 %v709
        %v934 = vpop.f32.mrb[0].mxu0
        %v935 = vadd.f32 0.0, %v934
        %v936 = vpop.f32.mrb[0].mxu0
        %937 = vmatprep.mubr.f32.mxu0 0.0
        %938 = vmatmul.mubr.f32.gmra.mrb[0].mxu0 %v712
        %v939 = vpop.f32.mrb[0].mxu0
        %v940 = vadd.f32 0.0, %v939
        %v941 = vpop.f32.mrb[0].mxu0
        %942 = vdwg.mxu0
        %v944 = vsel %vm354, %v551, 0
        %v947 = vsel %vm354, %v552, 0
        %v950 = vsel %vm354, %v553, 0
        %v953 = vsel %vm354, %v554, 0
        %v956 = vsel %vm354, %v555, 0
        %v959 = vsel %vm354, %v556, 0
        %v962 = vsel %vm354, %v557, 0
        %v965 = vsel %vm354, %v558, 0
        %v968 = vsel %vm354, %v559, 0
        %v971 = vsel %vm354, %v560, 0
        %v974 = vsel %vm354, %v561, 0
        %v977 = vsel %vm354, %v562, 0
        %v980 = vsel %vm354, %v563, 0
        %v983 = vsel %vm354, %v564, 0
        %v986 = vsel %vm354, %v565, 0
        %v989 = vsel %vm354, %v566, 0
        %v992 = vsel %vm354, %v567, 0
        %v995 = vsel %vm354, %v568, 0
        %v998 = vsel %vm354, %v569, 0
        %v1001 = vsel %vm354, %v570, 0
        %v1004 = vsel %vm354, %v571, 0
        %v1007 = vsel %vm354, %v572, 0
        %v1010 = vsel %vm354, %v573, 0
        %v1013 = vsel %vm354, %v574, 0
        %v1016 = vsel %vm354, %v575, 0
        %v1019 = vsel %vm354, %v576, 0
        %v1022 = vsel %vm354, %v577, 0
        %v1025 = vsel %vm354, %v578, 0
        %v1028 = vsel %vm354, %v579, 0
        %v1031 = vsel %vm354, %v580, 0
        %v1034 = vsel %vm354, %v581, 0
        %v1037 = vsel %vm354, %v582, 0
        %v1040 = vsel %vm714, %v583, 0
        %1042 = vmatprep.subr.mxu0 0.0
        %1043 = vmatpush1.msra.mxu0 %v1040
        %1044 = vmatprep.subr.mxu0 0.0
        %1045 = vmatpush1.msra.mxu0 0.0
        %1046 = vmatprep.subr.mxu0 0.0
        %1047 = vmatpush1.msra.mxu0 0.0
        %1048 = vmatprep.subr.mxu0 0.0
        %1049 = vmatpush1.msra.mxu0 0.0
        %1050 = vmatprep.subr.mxu0 0.0
        %1051 = vmatpush1.msra.mxu0 0.0
        %1052 = vmatprep.subr.mxu0 0.0
        %1053 = vmatpush1.msra.mxu0 0.0
        %1054 = vmatprep.subr.mxu0 0.0
        %1055 = vmatpush1.msra.mxu0 0.0
        %1056 = vmatprep.subr.mxu0 0.0
        %1057 = vmatpush1.msra.mxu0 0.0
        %1058 = vmatprep.subr.mxu0 0.0
        %1059 = vmatpush1.msra.mxu0 0.0
        %1060 = vmatprep.subr.mxu0 0.0
        %1061 = vmatpush1.msra.mxu0 0.0
        %1062 = vmatprep.subr.mxu0 0.0
        %1063 = vmatpush1.msra.mxu0 0.0
        %1064 = vmatprep.subr.mxu0 0.0
        %1065 = vmatpush1.msra.mxu0 0.0
        %1066 = vmatprep.subr.mxu0 0.0
        %1067 = vmatpush1.msra.mxu0 0.0
        %1068 = vmatprep.subr.mxu0 0.0
        %1069 = vmatpush1.msra.mxu0 0.0
        %1070 = vmatprep.subr.mxu0 0.0
        %1071 = vmatpush1.msra.mxu0 0.0
        %1072 = vmatprep.subr.mxu0 0.0
        %1073 = vmatpush1.msra.mxu0 0.0
        %1074 = vmatprep.subr.mxu0 0.0
        %1075 = vmatpush1.msra.mxu0 0.0
        %1076 = vmatprep.subr.mxu0 0.0
        %1077 = vmatpush1.msra.mxu0 0.0
        %1078 = vmatprep.subr.mxu0 0.0
        %1079 = vmatpush1.msra.mxu0 0.0
        %1080 = vmatprep.subr.mxu0 0.0
        %1081 = vmatpush1.msra.mxu0 0.0
        %1082 = vmatprep.subr.mxu0 0.0
        %1083 = vmatpush1.msra.mxu0 0.0
        %1084 = vmatprep.subr.mxu0 0.0
        %1085 = vmatpush1.msra.mxu0 0.0
        %1086 = vmatprep.subr.mxu0 0.0
        %1087 = vmatpush1.msra.mxu0 0.0
        %1088 = vmatprep.subr.mxu0 0.0
        %1089 = vmatpush1.msra.mxu0 0.0
        %1090 = vmatprep.subr.mxu0 0.0
        %1091 = vmatpush1.msra.mxu0 0.0
        %1092 = vmatprep.subr.mxu0 0.0
        %1093 = vmatpush1.msra.mxu0 0.0
        %1094 = vmatprep.subr.mxu0 0.0
        %1095 = vmatpush1.msra.mxu0 0.0
        %1096 = vmatprep.subr.mxu0 0.0
        %1097 = vmatpush1.msra.mxu0 0.0
        %1098 = vmatprep.subr.mxu0 0.0
        %1099 = vmatpush1.msra.mxu0 0.0
        %1100 = vmatprep.subr.mxu0 0.0
        %1101 = vmatpush1.msra.mxu0 0.0
        %1102 = vmatprep.subr.mxu0 0.0
        %1103 = vmatpush1.msra.mxu0 0.0
        %1104 = vmatprep.subr.mxu0 0.0
        %1105 = vmatpush1.msra.mxu0 0.0
        %1106 = vmatprep.mubr.f32.mxu0 0.0
        %1107 = vmatmul.mubr.f32.gmra.mrb[0].mxu0 %v944
        %v1108 = vpop.f32.mrb[0].mxu0
        %v1109 = vadd.f32 %v785, %v1108
        %v1110 = vpop.f32.mrb[0].mxu0
        %1111 = vmatprep.mubr.f32.mxu0 0.0
        %1112 = vmatmul.mubr.f32.gmra.mrb[0].mxu0 %v947
        %v1113 = vpop.f32.mrb[0].mxu0
        %v1114 = vadd.f32 %v790, %v1113
        %v1115 = vpop.f32.mrb[0].mxu0
        %1116 = vmatprep.mubr.f32.mxu0 0.0
        %1117 = vmatmul.mubr.f32.gmra.mrb[0].mxu0 %v950
        %v1118 = vpop.f32.mrb[0].mxu0
        %v1119 = vadd.f32 %v795, %v1118
        %v1120 = vpop.f32.mrb[0].mxu0
        %1121 = vmatprep.mubr.f32.mxu0 0.0
        %1122 = vmatmul.mubr.f32.gmra.mrb[0].mxu0 %v953
        %v1123 = vpop.f32.mrb[0].mxu0
        %v1124 = vadd.f32 %v800, %v1123
        %v1125 = vpop.f32.mrb[0].mxu0
        %1126 = vmatprep.mubr.f32.mxu0 0.0
        %1127 = vmatmul.mubr.f32.gmra.mrb[0].mxu0 %v956
        %v1128 = vpop.f32.mrb[0].mxu0
        %v1129 = vadd.f32 %v805, %v1128
        %v1130 = vpop.f32.mrb[0].mxu0
        %1131 = vmatprep.mubr.f32.mxu0 0.0
        %1132 = vmatmul.mubr.f32.gmra.mrb[0].mxu0 %v959
        %v1133 = vpop.f32.mrb[0].mxu0
        %v1134 = vadd.f32 %v810, %v1133
        %v1135 = vpop.f32.mrb[0].mxu0
        %1136 = vmatprep.mubr.f32.mxu0 0.0
        %1137 = vmatmul.mubr.f32.gmra.mrb[0].mxu0 %v962
        %v1138 = vpop.f32.mrb[0].mxu0
        %v1139 = vadd.f32 %v815, %v1138
        %v1140 = vpop.f32.mrb[0].mxu0
        %1141 = vmatprep.mubr.f32.mxu0 0.0
        %1142 = vmatmul.mubr.f32.gmra.mrb[0].mxu0 %v965
        %v1143 = vpop.f32.mrb[0].mxu0
        %v1144 = vadd.f32 %v820, %v1143
        %v1145 = vpop.f32.mrb[0].mxu0
        %1146 = vmatprep.mubr.f32.mxu0 0.0
        %1147 = vmatmul.mubr.f32.gmra.mrb[0].mxu0 %v968
        %v1148 = vpop.f32.mrb[0].mxu0
        %v1149 = vadd.f32 %v825, %v1148
        %v1150 = vpop.f32.mrb[0].mxu0
        %1151 = vmatprep.mubr.f32.mxu0 0.0
        %1152 = vmatmul.mubr.f32.gmra.mrb[0].mxu0 %v971
        %v1153 = vpop.f32.mrb[0].mxu0
        %v1154 = vadd.f32 %v830, %v1153
        %v1155 = vpop.f32.mrb[0].mxu0
        %1156 = vmatprep.mubr.f32.mxu0 0.0
        %1157 = vmatmul.mubr.f32.gmra.mrb[0].mxu0 %v974
        %v1158 = vpop.f32.mrb[0].mxu0
        %v1159 = vadd.f32 %v835, %v1158
        %v1160 = vpop.f32.mrb[0].mxu0
        %1161 = vmatprep.mubr.f32.mxu0 0.0
        %1162 = vmatmul.mubr.f32.gmra.mrb[0].mxu0 %v977
        %v1163 = vpop.f32.mrb[0].mxu0
        %v1164 = vadd.f32 %v840, %v1163
        %v1165 = vpop.f32.mrb[0].mxu0
        %1166 = vmatprep.mubr.f32.mxu0 0.0
        %1167 = vmatmul.mubr.f32.gmra.mrb[0].mxu0 %v980
        %v1168 = vpop.f32.mrb[0].mxu0
        %v1169 = vadd.f32 %v845, %v1168
        %v1170 = vpop.f32.mrb[0].mxu0
        %1171 = vmatprep.mubr.f32.mxu0 0.0
        %1172 = vmatmul.mubr.f32.gmra.mrb[0].mxu0 %v983
        %v1173 = vpop.f32.mrb[0].mxu0
        %v1174 = vadd.f32 %v850, %v1173
        %v1175 = vpop.f32.mrb[0].mxu0
        %1176 = vmatprep.mubr.f32.mxu0 0.0
        %1177 = vmatmul.mubr.f32.gmra.mrb[0].mxu0 %v986
        %v1178 = vpop.f32.mrb[0].mxu0
        %v1179 = vadd.f32 %v855, %v1178
        %v1180 = vpop.f32.mrb[0].mxu0
        %1181 = vmatprep.mubr.f32.mxu0 0.0
        %1182 = vmatmul.mubr.f32.gmra.mrb[0].mxu0 %v989
        %v1183 = vpop.f32.mrb[0].mxu0
        %v1184 = vadd.f32 %v860, %v1183
        %v1185 = vpop.f32.mrb[0].mxu0
        %1186 = vmatprep.mubr.f32.mxu0 0.0
        %1187 = vmatmul.mubr.f32.gmra.mrb[0].mxu0 %v992
        %v1188 = vpop.f32.mrb[0].mxu0
        %v1189 = vadd.f32 %v865, %v1188
        %v1190 = vpop.f32.mrb[0].mxu0
        %1191 = vmatprep.mubr.f32.mxu0 0.0
        %1192 = vmatmul.mubr.f32.gmra.mrb[0].mxu0 %v995
        %v1193 = vpop.f32.mrb[0].mxu0
        %v1194 = vadd.f32 %v870, %v1193
        %v1195 = vpop.f32.mrb[0].mxu0
        %1196 = vmatprep.mubr.f32.mxu0 0.0
        %1197 = vmatmul.mubr.f32.gmra.mrb[0].mxu0 %v998
        %v1198 = vpop.f32.mrb[0].mxu0
        %v1199 = vadd.f32 %v875, %v1198
        %v1200 = vpop.f32.mrb[0].mxu0
        %1201 = vmatprep.mubr.f32.mxu0 0.0
        %1202 = vmatmul.mubr.f32.gmra.mrb[0].mxu0 %v1001
        %v1203 = vpop.f32.mrb[0].mxu0
        %v1204 = vadd.f32 %v880, %v1203
        %v1205 = vpop.f32.mrb[0].mxu0
        %1206 = vmatprep.mubr.f32.mxu0 0.0
        %1207 = vmatmul.mubr.f32.gmra.mrb[0].mxu0 %v1004
        %v1208 = vpop.f32.mrb[0].mxu0
        %v1209 = vadd.f32 %v885, %v1208
        %v1210 = vpop.f32.mrb[0].mxu0
        %1211 = vmatprep.mubr.f32.mxu0 0.0
        %1212 = vmatmul.mubr.f32.gmra.mrb[0].mxu0 %v1007
        %v1213 = vpop.f32.mrb[0].mxu0
        %v1214 = vadd.f32 %v890, %v1213
        %v1215 = vpop.f32.mrb[0].mxu0
        %1216 = vmatprep.mubr.f32.mxu0 0.0
        %1217 = vmatmul.mubr.f32.gmra.mrb[0].mxu0 %v1010
        %v1218 = vpop.f32.mrb[0].mxu0
        %v1219 = vadd.f32 %v895, %v1218
        %v1220 = vpop.f32.mrb[0].mxu0
        %1221 = vmatprep.mubr.f32.mxu0 0.0
        %1222 = vmatmul.mubr.f32.gmra.mrb[0].mxu0 %v1013
        %v1223 = vpop.f32.mrb[0].mxu0
        %v1224 = vadd.f32 %v900, %v1223
        %v1225 = vpop.f32.mrb[0].mxu0
        %1226 = vmatprep.mubr.f32.mxu0 0.0
        %1227 = vmatmul.mubr.f32.gmra.mrb[0].mxu0 %v1016
        %v1228 = vpop.f32.mrb[0].mxu0
        %v1229 = vadd.f32 %v905, %v1228
        %v1230 = vpop.f32.mrb[0].mxu0
        %1231 = vmatprep.mubr.f32.mxu0 0.0
        %1232 = vmatmul.mubr.f32.gmra.mrb[0].mxu0 %v1019
        %v1233 = vpop.f32.mrb[0].mxu0
        %v1234 = vadd.f32 %v910, %v1233
        %v1235 = vpop.f32.mrb[0].mxu0
        %1236 = vmatprep.mubr.f32.mxu0 0.0
        %1237 = vmatmul.mubr.f32.gmra.mrb[0].mxu0 %v1022
        %v1238 = vpop.f32.mrb[0].mxu0
        %v1239 = vadd.f32 %v915, %v1238
        %v1240 = vpop.f32.mrb[0].mxu0
        %1241 = vmatprep.mubr.f32.mxu0 0.0
        %1242 = vmatmul.mubr.f32.gmra.mrb[0].mxu0 %v1025
        %v1243 = vpop.f32.mrb[0].mxu0
        %v1244 = vadd.f32 %v920, %v1243
        %v1245 = vpop.f32.mrb[0].mxu0
        %1246 = vmatprep.mubr.f32.mxu0 0.0
        %1247 = vmatmul.mubr.f32.gmra.mrb[0].mxu0 %v1028
        %v1248 = vpop.f32.mrb[0].mxu0
        %v1249 = vadd.f32 %v925, %v1248
        %v1250 = vpop.f32.mrb[0].mxu0
        %1251 = vmatprep.mubr.f32.mxu0 0.0
        %1252 = vmatmul.mubr.f32.gmra.mrb[0].mxu0 %v1031
        %v1253 = vpop.f32.mrb[0].mxu0
        %v1254 = vadd.f32 %v930, %v1253
        %v1255 = vpop.f32.mrb[0].mxu0
        %1256 = vmatprep.mubr.f32.mxu0 0.0
        %1257 = vmatmul.mubr.f32.gmra.mrb[0].mxu0 %v1034
        %v1258 = vpop.f32.mrb[0].mxu0
        %v1259 = vadd.f32 %v935, %v1258
        %v1260 = vpop.f32.mrb[0].mxu0
        %1261 = vmatprep.mubr.f32.mxu0 0.0
        %1262 = vmatmul.mubr.f32.gmra.mrb[0].mxu0 %v1037
        %v1263 = vpop.f32.mrb[0].mxu0
        %v1264 = vadd.f32 %v940, %v1263
        %v1265 = vpop.f32.mrb[0].mxu0
        %1266 = vdwg.mxu0
        %v1267 = vld [vmem:[#allocation2 + $0x2] sm:$0xff]
        %v1268 = vld [vmem:[#allocation2 + $0xa] sm:$0xff]
        %v1269 = vld [vmem:[#allocation2 + $0x1a] sm:$0xff]
        %v1270 = vld [vmem:[#allocation2 + $0x22] sm:$0xff]
        %v1271 = vld [vmem:[#allocation2 + $0x32] sm:$0xff]
        %v1272 = vld [vmem:[#allocation2 + $0x3a] sm:$0xff]
        %v1273 = vld [vmem:[#allocation2 + $0x4a] sm:$0xff]
        %v1274 = vld [vmem:[#allocation2 + $0x52] sm:$0xff]
        %v1275 = vld [vmem:[#allocation2 + $0x62] sm:$0xff]
        %v1276 = vld [vmem:[#allocation2 + $0x6a] sm:$0xff]
        %v1277 = vld [vmem:[#allocation2 + $0x7a] sm:$0xff]
        %v1278 = vld [vmem:[#allocation2 + $0x82] sm:$0xff]
        %v1279 = vld [vmem:[#allocation2 + $0x92] sm:$0xff]
        %v1280 = vld [vmem:[#allocation2 + $0x9a] sm:$0xff]
        %v1281 = vld [vmem:[#allocation2 + $0xaa] sm:$0xff]
        %v1282 = vld [vmem:[#allocation2 + $0xb2] sm:$0xff]
        %v1283 = vld [vmem:[#allocation2 + $0xc2] sm:$0xff]
        %v1284 = vld [vmem:[#allocation2 + $0xca] sm:$0xff]
        %v1285 = vld [vmem:[#allocation2 + $0xda] sm:$0xff]
        %v1286 = vld [vmem:[#allocation2 + $0xe2] sm:$0xff]
        %v1287 = vld [vmem:[#allocation2 + $0xf2] sm:$0xff]
        %v1288 = vld [vmem:[#allocation2 + $0xfa] sm:$0xff]
        %v1289 = vld [vmem:[#allocation2 + $0x10a] sm:$0xff]
        %v1290 = vld [vmem:[#allocation2 + $0x112] sm:$0xff]
        %v1291 = vld [vmem:[#allocation2 + $0x122] sm:$0xff]
        %v1292 = vld [vmem:[#allocation2 + $0x12a] sm:$0xff]
        %v1293 = vld [vmem:[#allocation2 + $0x13a] sm:$0xff]
        %v1294 = vld [vmem:[#allocation2 + $0x142] sm:$0xff]
        %v1295 = vld [vmem:[#allocation2 + $0x152] sm:$0xff]
        %v1296 = vld [vmem:[#allocation2 + $0x15a] sm:$0xff]
        %v1297 = vld [vmem:[#allocation2 + $0x16a] sm:$0xff]
        %v1298 = vld [vmem:[#allocation2 + $0x172] sm:$0xff]
        %s1299 = scalar_lea.vmem %s1, 8
        %v1300 = vld [vmem:[%s1299] sm:$0xf]
        %v1302 = vsel %vm354, %v1267, 0
        %v1305 = vsel %vm354, %v1268, 0
        %v1308 = vsel %vm354, %v1269, 0
        %v1311 = vsel %vm354, %v1270, 0
        %v1314 = vsel %vm354, %v1271, 0
        %v1317 = vsel %vm354, %v1272, 0
        %v1320 = vsel %vm354, %v1273, 0
        %v1323 = vsel %vm354, %v1274, 0
        %v1326 = vsel %vm354, %v1275, 0
        %v1329 = vsel %vm354, %v1276, 0
        %v1332 = vsel %vm354, %v1277, 0
        %v1335 = vsel %vm354, %v1278, 0
        %v1338 = vsel %vm354, %v1279, 0
        %v1341 = vsel %vm354, %v1280, 0
        %v1344 = vsel %vm354, %v1281, 0
        %v1347 = vsel %vm354, %v1282, 0
        %v1350 = vsel %vm354, %v1283, 0
        %v1353 = vsel %vm354, %v1284, 0
        %v1356 = vsel %vm354, %v1285, 0
        %v1359 = vsel %vm354, %v1286, 0
        %v1362 = vsel %vm354, %v1287, 0
        %v1365 = vsel %vm354, %v1288, 0
        %v1368 = vsel %vm354, %v1289, 0
        %v1371 = vsel %vm354, %v1290, 0
        %v1374 = vsel %vm354, %v1291, 0
        %v1377 = vsel %vm354, %v1292, 0
        %v1380 = vsel %vm354, %v1293, 0
        %v1383 = vsel %vm354, %v1294, 0
        %v1386 = vsel %vm354, %v1295, 0
        %v1389 = vsel %vm354, %v1296, 0
        %v1392 = vsel %vm354, %v1297, 0
        %v1395 = vsel %vm354, %v1298, 0
        %v1398 = vsel %vm714, %v1300, 0
        %1400 = vmatprep.subr.mxu0 0.0
        %1401 = vmatpush1.msra.mxu0 %v1398
        %1402 = vmatprep.subr.mxu0 0.0
        %1403 = vmatpush1.msra.mxu0 0.0
        %1404 = vmatprep.subr.mxu0 0.0
        %1405 = vmatpush1.msra.mxu0 0.0
        %1406 = vmatprep.subr.mxu0 0.0
        %1407 = vmatpush1.msra.mxu0 0.0
        %1408 = vmatprep.subr.mxu0 0.0
        %1409 = vmatpush1.msra.mxu0 0.0
        %1410 = vmatprep.subr.mxu0 0.0
        %1411 = vmatpush1.msra.mxu0 0.0
        %1412 = vmatprep.subr.mxu0 0.0
        %1413 = vmatpush1.msra.mxu0 0.0
        %1414 = vmatprep.subr.mxu0 0.0
        %1415 = vmatpush1.msra.mxu0 0.0
        %1416 = vmatprep.subr.mxu0 0.0
        %1417 = vmatpush1.msra.mxu0 0.0
        %1418 = vmatprep.subr.mxu0 0.0
        %1419 = vmatpush1.msra.mxu0 0.0
        %1420 = vmatprep.subr.mxu0 0.0
        %1421 = vmatpush1.msra.mxu0 0.0
        %1422 = vmatprep.subr.mxu0 0.0
        %1423 = vmatpush1.msra.mxu0 0.0
        %1424 = vmatprep.subr.mxu0 0.0
        %1425 = vmatpush1.msra.mxu0 0.0
        %1426 = vmatprep.subr.mxu0 0.0
        %1427 = vmatpush1.msra.mxu0 0.0
        %1428 = vmatprep.subr.mxu0 0.0
        %1429 = vmatpush1.msra.mxu0 0.0
        %1430 = vmatprep.subr.mxu0 0.0
        %1431 = vmatpush1.msra.mxu0 0.0
        %1432 = vmatprep.subr.mxu0 0.0
        %1433 = vmatpush1.msra.mxu0 0.0
        %1434 = vmatprep.subr.mxu0 0.0
        %1435 = vmatpush1.msra.mxu0 0.0
        %1436 = vmatprep.subr.mxu0 0.0
        %1437 = vmatpush1.msra.mxu0 0.0
        %1438 = vmatprep.subr.mxu0 0.0
        %1439 = vmatpush1.msra.mxu0 0.0
        %1440 = vmatprep.subr.mxu0 0.0
        %1441 = vmatpush1.msra.mxu0 0.0
        %1442 = vmatprep.subr.mxu0 0.0
        %1443 = vmatpush1.msra.mxu0 0.0
        %1444 = vmatprep.subr.mxu0 0.0
        %1445 = vmatpush1.msra.mxu0 0.0
        %1446 = vmatprep.subr.mxu0 0.0
        %1447 = vmatpush1.msra.mxu0 0.0
        %1448 = vmatprep.subr.mxu0 0.0
        %1449 = vmatpush1.msra.mxu0 0.0
        %1450 = vmatprep.subr.mxu0 0.0
        %1451 = vmatpush1.msra.mxu0 0.0
        %1452 = vmatprep.subr.mxu0 0.0
        %1453 = vmatpush1.msra.mxu0 0.0
        %1454 = vmatprep.subr.mxu0 0.0
        %1455 = vmatpush1.msra.mxu0 0.0
        %1456 = vmatprep.subr.mxu0 0.0
        %1457 = vmatpush1.msra.mxu0 0.0
        %1458 = vmatprep.subr.mxu0 0.0
        %1459 = vmatpush1.msra.mxu0 0.0
        %1460 = vmatprep.subr.mxu0 0.0
        %1461 = vmatpush1.msra.mxu0 0.0
        %1462 = vmatprep.subr.mxu0 0.0
        %1463 = vmatpush1.msra.mxu0 0.0
        %1464 = vmatprep.mubr.f32.mxu0 0.0
        %1465 = vmatmul.mubr.f32.gmra.mrb[0].mxu0 %v1302
        %v1466 = vpop.f32.mrb[0].mxu0
        %v1467 = vadd.f32 0.0, %v1466
        %v1468 = vpop.f32.mrb[0].mxu0
        %1469 = vmatprep.mubr.f32.mxu0 0.0
        %1470 = vmatmul.mubr.f32.gmra.mrb[0].mxu0 %v1305
        %v1471 = vpop.f32.mrb[0].mxu0
        %v1472 = vadd.f32 0.0, %v1471
        %v1473 = vpop.f32.mrb[0].mxu0
        %1474 = vmatprep.mubr.f32.mxu0 0.0
        %1475 = vmatmul.mubr.f32.gmra.mrb[0].mxu0 %v1308
        %v1476 = vpop.f32.mrb[0].mxu0
        %v1477 = vadd.f32 0.0, %v1476
        %v1478 = vpop.f32.mrb[0].mxu0
        %1479 = vmatprep.mubr.f32.mxu0 0.0
        %1480 = vmatmul.mubr.f32.gmra.mrb[0].mxu0 %v1311
        %v1481 = vpop.f32.mrb[0].mxu0
        %v1482 = vadd.f32 0.0, %v1481
        %v1483 = vpop.f32.mrb[0].mxu0
        %1484 = vmatprep.mubr.f32.mxu0 0.0
        %1485 = vmatmul.mubr.f32.gmra.mrb[0].mxu0 %v1314
        %v1486 = vpop.f32.mrb[0].mxu0
        %v1487 = vadd.f32 0.0, %v1486
        %v1488 = vpop.f32.mrb[0].mxu0
        %1489 = vmatprep.mubr.f32.mxu0 0.0
        %1490 = vmatmul.mubr.f32.gmra.mrb[0].mxu0 %v1317
        %v1491 = vpop.f32.mrb[0].mxu0
        %v1492 = vadd.f32 0.0, %v1491
        %v1493 = vpop.f32.mrb[0].mxu0
        %1494 = vmatprep.mubr.f32.mxu0 0.0
        %1495 = vmatmul.mubr.f32.gmra.mrb[0].mxu0 %v1320
        %v1496 = vpop.f32.mrb[0].mxu0
        %v1497 = vadd.f32 0.0, %v1496
        %v1498 = vpop.f32.mrb[0].mxu0
        %1499 = vmatprep.mubr.f32.mxu0 0.0
        %1500 = vmatmul.mubr.f32.gmra.mrb[0].mxu0 %v1323
        %v1501 = vpop.f32.mrb[0].mxu0
        %v1502 = vadd.f32 0.0, %v1501
        %v1503 = vpop.f32.mrb[0].mxu0
        %1504 = vmatprep.mubr.f32.mxu0 0.0
        %1505 = vmatmul.mubr.f32.gmra.mrb[0].mxu0 %v1326
        %v1506 = vpop.f32.mrb[0].mxu0
        %v1507 = vadd.f32 0.0, %v1506
        %v1508 = vpop.f32.mrb[0].mxu0
        %1509 = vmatprep.mubr.f32.mxu0 0.0
        %1510 = vmatmul.mubr.f32.gmra.mrb[0].mxu0 %v1329
        %v1511 = vpop.f32.mrb[0].mxu0
        %v1512 = vadd.f32 0.0, %v1511
        %v1513 = vpop.f32.mrb[0].mxu0
        %1514 = vmatprep.mubr.f32.mxu0 0.0
        %1515 = vmatmul.mubr.f32.gmra.mrb[0].mxu0 %v1332
        %v1516 = vpop.f32.mrb[0].mxu0
        %v1517 = vadd.f32 0.0, %v1516
        %v1518 = vpop.f32.mrb[0].mxu0
        %1519 = vmatprep.mubr.f32.mxu0 0.0
        %1520 = vmatmul.mubr.f32.gmra.mrb[0].mxu0 %v1335
        %v1521 = vpop.f32.mrb[0].mxu0
        %v1522 = vadd.f32 0.0, %v1521
        %v1523 = vpop.f32.mrb[0].mxu0
        %1524 = vmatprep.mubr.f32.mxu0 0.0
        %1525 = vmatmul.mubr.f32.gmra.mrb[0].mxu0 %v1338
        %v1526 = vpop.f32.mrb[0].mxu0
        %v1527 = vadd.f32 0.0, %v1526
        %v1528 = vpop.f32.mrb[0].mxu0
        %1529 = vmatprep.mubr.f32.mxu0 0.0
        %1530 = vmatmul.mubr.f32.gmra.mrb[0].mxu0 %v1341
        %v1531 = vpop.f32.mrb[0].mxu0
        %v1532 = vadd.f32 0.0, %v1531
        %v1533 = vpop.f32.mrb[0].mxu0
        %1534 = vmatprep.mubr.f32.mxu0 0.0
        %1535 = vmatmul.mubr.f32.gmra.mrb[0].mxu0 %v1344
        %v1536 = vpop.f32.mrb[0].mxu0
        %v1537 = vadd.f32 0.0, %v1536
        %v1538 = vpop.f32.mrb[0].mxu0
        %1539 = vmatprep.mubr.f32.mxu0 0.0
        %1540 = vmatmul.mubr.f32.gmra.mrb[0].mxu0 %v1347
        %v1541 = vpop.f32.mrb[0].mxu0
        %v1542 = vadd.f32 0.0, %v1541
        %v1543 = vpop.f32.mrb[0].mxu0
        %1544 = vmatprep.mubr.f32.mxu0 0.0
        %1545 = vmatmul.mubr.f32.gmra.mrb[0].mxu0 %v1350
        %v1546 = vpop.f32.mrb[0].mxu0
        %v1547 = vadd.f32 0.0, %v1546
        %v1548 = vpop.f32.mrb[0].mxu0
        %1549 = vmatprep.mubr.f32.mxu0 0.0
        %1550 = vmatmul.mubr.f32.gmra.mrb[0].mxu0 %v1353
        %v1551 = vpop.f32.mrb[0].mxu0
        %v1552 = vadd.f32 0.0, %v1551
        %v1553 = vpop.f32.mrb[0].mxu0
        %1554 = vmatprep.mubr.f32.mxu0 0.0
        %1555 = vmatmul.mubr.f32.gmra.mrb[0].mxu0 %v1356
        %v1556 = vpop.f32.mrb[0].mxu0
        %v1557 = vadd.f32 0.0, %v1556
        %v1558 = vpop.f32.mrb[0].mxu0
        %1559 = vmatprep.mubr.f32.mxu0 0.0
        %1560 = vmatmul.mubr.f32.gmra.mrb[0].mxu0 %v1359
        %v1561 = vpop.f32.mrb[0].mxu0
        %v1562 = vadd.f32 0.0, %v1561
        %v1563 = vpop.f32.mrb[0].mxu0
        %1564 = vmatprep.mubr.f32.mxu0 0.0
        %1565 = vmatmul.mubr.f32.gmra.mrb[0].mxu0 %v1362
        %v1566 = vpop.f32.mrb[0].mxu0
        %v1567 = vadd.f32 0.0, %v1566
        %v1568 = vpop.f32.mrb[0].mxu0
        %1569 = vmatprep.mubr.f32.mxu0 0.0
        %1570 = vmatmul.mubr.f32.gmra.mrb[0].mxu0 %v1365
        %v1571 = vpop.f32.mrb[0].mxu0
        %v1572 = vadd.f32 0.0, %v1571
        %v1573 = vpop.f32.mrb[0].mxu0
        %1574 = vmatprep.mubr.f32.mxu0 0.0
        %1575 = vmatmul.mubr.f32.gmra.mrb[0].mxu0 %v1368
        %v1576 = vpop.f32.mrb[0].mxu0
        %v1577 = vadd.f32 0.0, %v1576
        %v1578 = vpop.f32.mrb[0].mxu0
        %1579 = vmatprep.mubr.f32.mxu0 0.0
        %1580 = vmatmul.mubr.f32.gmra.mrb[0].mxu0 %v1371
        %v1581 = vpop.f32.mrb[0].mxu0
        %v1582 = vadd.f32 0.0, %v1581
        %v1583 = vpop.f32.mrb[0].mxu0
        %1584 = vmatprep.mubr.f32.mxu0 0.0
        %1585 = vmatmul.mubr.f32.gmra.mrb[0].mxu0 %v1374
        %v1586 = vpop.f32.mrb[0].mxu0
        %v1587 = vadd.f32 0.0, %v1586
        %v1588 = vpop.f32.mrb[0].mxu0
        %1589 = vmatprep.mubr.f32.mxu0 0.0
        %1590 = vmatmul.mubr.f32.gmra.mrb[0].mxu0 %v1377
        %v1591 = vpop.f32.mrb[0].mxu0
        %v1592 = vadd.f32 0.0, %v1591
        %v1593 = vpop.f32.mrb[0].mxu0
        %1594 = vmatprep.mubr.f32.mxu0 0.0
        %1595 = vmatmul.mubr.f32.gmra.mrb[0].mxu0 %v1380
        %v1596 = vpop.f32.mrb[0].mxu0
        %v1597 = vadd.f32 0.0, %v1596
        %v1598 = vpop.f32.mrb[0].mxu0
        %1599 = vmatprep.mubr.f32.mxu0 0.0
        %1600 = vmatmul.mubr.f32.gmra.mrb[0].mxu0 %v1383
        %v1601 = vpop.f32.mrb[0].mxu0
        %v1602 = vadd.f32 0.0, %v1601
        %v1603 = vpop.f32.mrb[0].mxu0
        %1604 = vmatprep.mubr.f32.mxu0 0.0
        %1605 = vmatmul.mubr.f32.gmra.mrb[0].mxu0 %v1386
        %v1606 = vpop.f32.mrb[0].mxu0
        %v1607 = vadd.f32 0.0, %v1606
        %v1608 = vpop.f32.mrb[0].mxu0
        %1609 = vmatprep.mubr.f32.mxu0 0.0
        %1610 = vmatmul.mubr.f32.gmra.mrb[0].mxu0 %v1389
        %v1611 = vpop.f32.mrb[0].mxu0
        %v1612 = vadd.f32 0.0, %v1611
        %v1613 = vpop.f32.mrb[0].mxu0
        %1614 = vmatprep.mubr.f32.mxu0 0.0
        %1615 = vmatmul.mubr.f32.gmra.mrb[0].mxu0 %v1392
        %v1616 = vpop.f32.mrb[0].mxu0
        %v1617 = vadd.f32 0.0, %v1616
        %v1618 = vpop.f32.mrb[0].mxu0
        %1619 = vmatprep.mubr.f32.mxu0 0.0
        %1620 = vmatmul.mubr.f32.gmra.mrb[0].mxu0 %v1395
        %v1621 = vpop.f32.mrb[0].mxu0
        %v1622 = vadd.f32 0.0, %v1621
        %v1623 = vpop.f32.mrb[0].mxu0
        %1624 = vdwg.mxu0
        %v1625 = vadd.f32 %v1109, %v1467
        %v1626 = vadd.f32 %v1114, %v1472
        %v1627 = vadd.f32 %v1119, %v1477
        %v1628 = vadd.f32 %v1124, %v1482
        %v1629 = vadd.f32 %v1129, %v1487
        %v1630 = vadd.f32 %v1134, %v1492
        %v1631 = vadd.f32 %v1139, %v1497
        %v1632 = vadd.f32 %v1144, %v1502
        %v1633 = vadd.f32 %v1149, %v1507
        %v1634 = vadd.f32 %v1154, %v1512
        %v1635 = vadd.f32 %v1159, %v1517
        %v1636 = vadd.f32 %v1164, %v1522
        %v1637 = vadd.f32 %v1169, %v1527
        %v1638 = vadd.f32 %v1174, %v1532
        %v1639 = vadd.f32 %v1179, %v1537
        %v1640 = vadd.f32 %v1184, %v1542
        %v1641 = vadd.f32 %v1189, %v1547
        %v1642 = vadd.f32 %v1194, %v1552
        %v1643 = vadd.f32 %v1199, %v1557
        %v1644 = vadd.f32 %v1204, %v1562
        %v1645 = vadd.f32 %v1209, %v1567
        %v1646 = vadd.f32 %v1214, %v1572
        %v1647 = vadd.f32 %v1219, %v1577
        %v1648 = vadd.f32 %v1224, %v1582
        %v1649 = vadd.f32 %v1229, %v1587
        %v1650 = vadd.f32 %v1234, %v1592
        %v1651 = vadd.f32 %v1239, %v1597
        %v1652 = vadd.f32 %v1244, %v1602
        %v1653 = vadd.f32 %v1249, %v1607
        %v1654 = vadd.f32 %v1254, %v1612
        %v1655 = vadd.f32 %v1259, %v1617
        %v1656 = vadd.f32 %v1264, %v1622
        %v1657 = vld [vmem:[%s518] sm:$0xff]
        %v1658 = vld [vmem:[%s518 + $0x8] sm:$0xff]
        %v1659 = vld [vmem:[%s518 + $0x18] sm:$0xff]
        %v1660 = vld [vmem:[%s518 + $0x20] sm:$0xff]
        %v1661 = vld [vmem:[%s518 + $0x30] sm:$0xff]
        %v1662 = vld [vmem:[%s518 + $0x38] sm:$0xff]
        %v1663 = vld [vmem:[%s518 + $0x48] sm:$0xff]
        %v1664 = vld [vmem:[%s518 + $0x50] sm:$0xff]
        %v1665 = vld [vmem:[%s518 + $0x60] sm:$0xff]
        %v1666 = vld [vmem:[%s518 + $0x68] sm:$0xff]
        %v1667 = vld [vmem:[%s518 + $0x78] sm:$0xff]
        %v1668 = vld [vmem:[%s518 + $0x80] sm:$0xff]
        %v1669 = vld [vmem:[%s518 + $0x90] sm:$0xff]
        %v1670 = vld [vmem:[%s518 + $0x98] sm:$0xff]
        %v1671 = vld [vmem:[%s518 + $0xa8] sm:$0xff]
        %v1672 = vld [vmem:[%s518 + $0xb0] sm:$0xff]
        %v1673 = vld [vmem:[%s518 + $0xc0] sm:$0xff]
        %v1674 = vld [vmem:[%s518 + $0xc8] sm:$0xff]
        %v1675 = vld [vmem:[%s518 + $0xd8] sm:$0xff]
        %v1676 = vld [vmem:[%s518 + $0xe0] sm:$0xff]
        %v1677 = vld [vmem:[%s518 + $0xf0] sm:$0xff]
        %v1678 = vld [vmem:[%s518 + $0xf8] sm:$0xff]
        %v1679 = vld [vmem:[%s518 + $0x108] sm:$0xff]
        %v1680 = vld [vmem:[%s518 + $0x110] sm:$0xff]
        %v1681 = vld [vmem:[%s518 + $0x120] sm:$0xff]
        %v1682 = vld [vmem:[%s518 + $0x128] sm:$0xff]
        %v1683 = vld [vmem:[%s518 + $0x138] sm:$0xff]
        %v1684 = vld [vmem:[%s518 + $0x140] sm:$0xff]
        %v1685 = vld [vmem:[%s518 + $0x150] sm:$0xff]
        %v1686 = vld [vmem:[%s518 + $0x158] sm:$0xff]
        %v1687 = vld [vmem:[%s518 + $0x168] sm:$0xff]
        %v1688 = vld [vmem:[%s518 + $0x170] sm:$0xff]
        %s1689 = scalar_lea.vmem %s1, 12
        %v1690 = vld [vmem:[%s1689] sm:$0xf]
        %v1692 = vsel %vm354, %v1657, 0
        %v1695 = vsel %vm354, %v1658, 0
        %v1698 = vsel %vm354, %v1659, 0
        %v1701 = vsel %vm354, %v1660, 0
        %v1704 = vsel %vm354, %v1661, 0
        %v1707 = vsel %vm354, %v1662, 0
        %v1710 = vsel %vm354, %v1663, 0
        %v1713 = vsel %vm354, %v1664, 0
        %v1716 = vsel %vm354, %v1665, 0
        %v1719 = vsel %vm354, %v1666, 0
        %v1722 = vsel %vm354, %v1667, 0
        %v1725 = vsel %vm354, %v1668, 0
        %v1728 = vsel %vm354, %v1669, 0
        %v1731 = vsel %vm354, %v1670, 0
        %v1734 = vsel %vm354, %v1671, 0
        %v1737 = vsel %vm354, %v1672, 0
        %v1740 = vsel %vm354, %v1673, 0
        %v1743 = vsel %vm354, %v1674, 0
        %v1746 = vsel %vm354, %v1675, 0
        %v1749 = vsel %vm354, %v1676, 0
        %v1752 = vsel %vm354, %v1677, 0
        %v1755 = vsel %vm354, %v1678, 0
        %v1758 = vsel %vm354, %v1679, 0
        %v1761 = vsel %vm354, %v1680, 0
        %v1764 = vsel %vm354, %v1681, 0
        %v1767 = vsel %vm354, %v1682, 0
        %v1770 = vsel %vm354, %v1683, 0
        %v1773 = vsel %vm354, %v1684, 0
        %v1776 = vsel %vm354, %v1685, 0
        %v1779 = vsel %vm354, %v1686, 0
        %v1782 = vsel %vm354, %v1687, 0
        %v1785 = vsel %vm354, %v1688, 0
        %v1788 = vsel %vm714, %v1690, 0
        %1790 = vmatprep.subr.mxu0 0.0
        %1791 = vmatpush1.msra.mxu0 %v1788
        %1792 = vmatprep.subr.mxu0 0.0
        %1793 = vmatpush1.msra.mxu0 0.0
        %1794 = vmatprep.subr.mxu0 0.0
        %1795 = vmatpush1.msra.mxu0 0.0
        %1796 = vmatprep.subr.mxu0 0.0
        %1797 = vmatpush1.msra.mxu0 0.0
        %1798 = vmatprep.subr.mxu0 0.0
        %1799 = vmatpush1.msra.mxu0 0.0
        %1800 = vmatprep.subr.mxu0 0.0
        %1801 = vmatpush1.msra.mxu0 0.0
        %1802 = vmatprep.subr.mxu0 0.0
        %1803 = vmatpush1.msra.mxu0 0.0
        %1804 = vmatprep.subr.mxu0 0.0
        %1805 = vmatpush1.msra.mxu0 0.0
        %1806 = vmatprep.subr.mxu0 0.0
        %1807 = vmatpush1.msra.mxu0 0.0
        %1808 = vmatprep.subr.mxu0 0.0
        %1809 = vmatpush1.msra.mxu0 0.0
        %1810 = vmatprep.subr.mxu0 0.0
        %1811 = vmatpush1.msra.mxu0 0.0
        %1812 = vmatprep.subr.mxu0 0.0
        %1813 = vmatpush1.msra.mxu0 0.0
        %1814 = vmatprep.subr.mxu0 0.0
        %1815 = vmatpush1.msra.mxu0 0.0
        %1816 = vmatprep.subr.mxu0 0.0
        %1817 = vmatpush1.msra.mxu0 0.0
        %1818 = vmatprep.subr.mxu0 0.0
        %1819 = vmatpush1.msra.mxu0 0.0
        %1820 = vmatprep.subr.mxu0 0.0
        %1821 = vmatpush1.msra.mxu0 0.0
        %1822 = vmatprep.subr.mxu0 0.0
        %1823 = vmatpush1.msra.mxu0 0.0
        %1824 = vmatprep.subr.mxu0 0.0
        %1825 = vmatpush1.msra.mxu0 0.0
        %1826 = vmatprep.subr.mxu0 0.0
        %1827 = vmatpush1.msra.mxu0 0.0
        %1828 = vmatprep.subr.mxu0 0.0
        %1829 = vmatpush1.msra.mxu0 0.0
        %1830 = vmatprep.subr.mxu0 0.0
        %1831 = vmatpush1.msra.mxu0 0.0
        %1832 = vmatprep.subr.mxu0 0.0
        %1833 = vmatpush1.msra.mxu0 0.0
        %1834 = vmatprep.subr.mxu0 0.0
        %1835 = vmatpush1.msra.mxu0 0.0
        %1836 = vmatprep.subr.mxu0 0.0
        %1837 = vmatpush1.msra.mxu0 0.0
        %1838 = vmatprep.subr.mxu0 0.0
        %1839 = vmatpush1.msra.mxu0 0.0
        %1840 = vmatprep.subr.mxu0 0.0
        %1841 = vmatpush1.msra.mxu0 0.0
        %1842 = vmatprep.subr.mxu0 0.0
        %1843 = vmatpush1.msra.mxu0 0.0
        %1844 = vmatprep.subr.mxu0 0.0
        %1845 = vmatpush1.msra.mxu0 0.0
        %1846 = vmatprep.subr.mxu0 0.0
        %1847 = vmatpush1.msra.mxu0 0.0
        %1848 = vmatprep.subr.mxu0 0.0
        %1849 = vmatpush1.msra.mxu0 0.0
        %1850 = vmatprep.subr.mxu0 0.0
        %1851 = vmatpush1.msra.mxu0 0.0
        %1852 = vmatprep.subr.mxu0 0.0
        %1853 = vmatpush1.msra.mxu0 0.0
        %1854 = vmatprep.mubr.f32.mxu0 0.0
        %1855 = vmatmul.mubr.f32.gmra.mrb[0].mxu0 %v1692
        %v1856 = vpop.f32.mrb[0].mxu0
        %v1857 = vadd.f32 0.0, %v1856
        %v1858 = vpop.f32.mrb[0].mxu0
        %1859 = vmatprep.mubr.f32.mxu0 0.0
        %1860 = vmatmul.mubr.f32.gmra.mrb[0].mxu0 %v1695
        %v1861 = vpop.f32.mrb[0].mxu0
        %v1862 = vadd.f32 0.0, %v1861
        %v1863 = vpop.f32.mrb[0].mxu0
        %1864 = vmatprep.mubr.f32.mxu0 0.0
        %1865 = vmatmul.mubr.f32.gmra.mrb[0].mxu0 %v1698
        %v1866 = vpop.f32.mrb[0].mxu0
        %v1867 = vadd.f32 0.0, %v1866
        %v1868 = vpop.f32.mrb[0].mxu0
        %1869 = vmatprep.mubr.f32.mxu0 0.0
        %1870 = vmatmul.mubr.f32.gmra.mrb[0].mxu0 %v1701
        %v1871 = vpop.f32.mrb[0].mxu0
        %v1872 = vadd.f32 0.0, %v1871
        %v1873 = vpop.f32.mrb[0].mxu0
        %1874 = vmatprep.mubr.f32.mxu0 0.0
        %1875 = vmatmul.mubr.f32.gmra.mrb[0].mxu0 %v1704
        %v1876 = vpop.f32.mrb[0].mxu0
        %v1877 = vadd.f32 0.0, %v1876
        %v1878 = vpop.f32.mrb[0].mxu0
        %1879 = vmatprep.mubr.f32.mxu0 0.0
        %1880 = vmatmul.mubr.f32.gmra.mrb[0].mxu0 %v1707
        %v1881 = vpop.f32.mrb[0].mxu0
        %v1882 = vadd.f32 0.0, %v1881
        %v1883 = vpop.f32.mrb[0].mxu0
        %1884 = vmatprep.mubr.f32.mxu0 0.0
        %1885 = vmatmul.mubr.f32.gmra.mrb[0].mxu0 %v1710
        %v1886 = vpop.f32.mrb[0].mxu0
        %v1887 = vadd.f32 0.0, %v1886
        %v1888 = vpop.f32.mrb[0].mxu0
        %1889 = vmatprep.mubr.f32.mxu0 0.0
        %1890 = vmatmul.mubr.f32.gmra.mrb[0].mxu0 %v1713
        %v1891 = vpop.f32.mrb[0].mxu0
        %v1892 = vadd.f32 0.0, %v1891
        %v1893 = vpop.f32.mrb[0].mxu0
        %1894 = vmatprep.mubr.f32.mxu0 0.0
        %1895 = vmatmul.mubr.f32.gmra.mrb[0].mxu0 %v1716
        %v1896 = vpop.f32.mrb[0].mxu0
        %v1897 = vadd.f32 0.0, %v1896
        %v1898 = vpop.f32.mrb[0].mxu0
        %1899 = vmatprep.mubr.f32.mxu0 0.0
        %1900 = vmatmul.mubr.f32.gmra.mrb[0].mxu0 %v1719
        %v1901 = vpop.f32.mrb[0].mxu0
        %v1902 = vadd.f32 0.0, %v1901
        %v1903 = vpop.f32.mrb[0].mxu0
        %1904 = vmatprep.mubr.f32.mxu0 0.0
        %1905 = vmatmul.mubr.f32.gmra.mrb[0].mxu0 %v1722
        %v1906 = vpop.f32.mrb[0].mxu0
        %v1907 = vadd.f32 0.0, %v1906
        %v1908 = vpop.f32.mrb[0].mxu0
        %1909 = vmatprep.mubr.f32.mxu0 0.0
        %1910 = vmatmul.mubr.f32.gmra.mrb[0].mxu0 %v1725
        %v1911 = vpop.f32.mrb[0].mxu0
        %v1912 = vadd.f32 0.0, %v1911
        %v1913 = vpop.f32.mrb[0].mxu0
        %1914 = vmatprep.mubr.f32.mxu0 0.0
        %1915 = vmatmul.mubr.f32.gmra.mrb[0].mxu0 %v1728
        %v1916 = vpop.f32.mrb[0].mxu0
        %v1917 = vadd.f32 0.0, %v1916
        %v1918 = vpop.f32.mrb[0].mxu0
        %1919 = vmatprep.mubr.f32.mxu0 0.0
        %1920 = vmatmul.mubr.f32.gmra.mrb[0].mxu0 %v1731
        %v1921 = vpop.f32.mrb[0].mxu0
        %v1922 = vadd.f32 0.0, %v1921
        %v1923 = vpop.f32.mrb[0].mxu0
        %1924 = vmatprep.mubr.f32.mxu0 0.0
        %1925 = vmatmul.mubr.f32.gmra.mrb[0].mxu0 %v1734
        %v1926 = vpop.f32.mrb[0].mxu0
        %v1927 = vadd.f32 0.0, %v1926
        %v1928 = vpop.f32.mrb[0].mxu0
        %1929 = vmatprep.mubr.f32.mxu0 0.0
        %1930 = vmatmul.mubr.f32.gmra.mrb[0].mxu0 %v1737
        %v1931 = vpop.f32.mrb[0].mxu0
        %v1932 = vadd.f32 0.0, %v1931
        %v1933 = vpop.f32.mrb[0].mxu0
        %1934 = vmatprep.mubr.f32.mxu0 0.0
        %1935 = vmatmul.mubr.f32.gmra.mrb[0].mxu0 %v1740
        %v1936 = vpop.f32.mrb[0].mxu0
        %v1937 = vadd.f32 0.0, %v1936
        %v1938 = vpop.f32.mrb[0].mxu0
        %1939 = vmatprep.mubr.f32.mxu0 0.0
        %1940 = vmatmul.mubr.f32.gmra.mrb[0].mxu0 %v1743
        %v1941 = vpop.f32.mrb[0].mxu0
        %v1942 = vadd.f32 0.0, %v1941
        %v1943 = vpop.f32.mrb[0].mxu0
        %1944 = vmatprep.mubr.f32.mxu0 0.0
        %1945 = vmatmul.mubr.f32.gmra.mrb[0].mxu0 %v1746
        %v1946 = vpop.f32.mrb[0].mxu0
        %v1947 = vadd.f32 0.0, %v1946
        %v1948 = vpop.f32.mrb[0].mxu0
        %1949 = vmatprep.mubr.f32.mxu0 0.0
        %1950 = vmatmul.mubr.f32.gmra.mrb[0].mxu0 %v1749
        %v1951 = vpop.f32.mrb[0].mxu0
        %v1952 = vadd.f32 0.0, %v1951
        %v1953 = vpop.f32.mrb[0].mxu0
        %1954 = vmatprep.mubr.f32.mxu0 0.0
        %1955 = vmatmul.mubr.f32.gmra.mrb[0].mxu0 %v1752
        %v1956 = vpop.f32.mrb[0].mxu0
        %v1957 = vadd.f32 0.0, %v1956
        %v1958 = vpop.f32.mrb[0].mxu0
        %1959 = vmatprep.mubr.f32.mxu0 0.0
        %1960 = vmatmul.mubr.f32.gmra.mrb[0].mxu0 %v1755
        %v1961 = vpop.f32.mrb[0].mxu0
        %v1962 = vadd.f32 0.0, %v1961
        %v1963 = vpop.f32.mrb[0].mxu0
        %1964 = vmatprep.mubr.f32.mxu0 0.0
        %1965 = vmatmul.mubr.f32.gmra.mrb[0].mxu0 %v1758
        %v1966 = vpop.f32.mrb[0].mxu0
        %v1967 = vadd.f32 0.0, %v1966
        %v1968 = vpop.f32.mrb[0].mxu0
        %1969 = vmatprep.mubr.f32.mxu0 0.0
        %1970 = vmatmul.mubr.f32.gmra.mrb[0].mxu0 %v1761
        %v1971 = vpop.f32.mrb[0].mxu0
        %v1972 = vadd.f32 0.0, %v1971
        %v1973 = vpop.f32.mrb[0].mxu0
        %1974 = vmatprep.mubr.f32.mxu0 0.0
        %1975 = vmatmul.mubr.f32.gmra.mrb[0].mxu0 %v1764
        %v1976 = vpop.f32.mrb[0].mxu0
        %v1977 = vadd.f32 0.0, %v1976
        %v1978 = vpop.f32.mrb[0].mxu0
        %1979 = vmatprep.mubr.f32.mxu0 0.0
        %1980 = vmatmul.mubr.f32.gmra.mrb[0].mxu0 %v1767
        %v1981 = vpop.f32.mrb[0].mxu0
        %v1982 = vadd.f32 0.0, %v1981
        %v1983 = vpop.f32.mrb[0].mxu0
        %1984 = vmatprep.mubr.f32.mxu0 0.0
        %1985 = vmatmul.mubr.f32.gmra.mrb[0].mxu0 %v1770
        %v1986 = vpop.f32.mrb[0].mxu0
        %v1987 = vadd.f32 0.0, %v1986
        %v1988 = vpop.f32.mrb[0].mxu0
        %1989 = vmatprep.mubr.f32.mxu0 0.0
        %1990 = vmatmul.mubr.f32.gmra.mrb[0].mxu0 %v1773
        %v1991 = vpop.f32.mrb[0].mxu0
        %v1992 = vadd.f32 0.0, %v1991
        %v1993 = vpop.f32.mrb[0].mxu0
        %1994 = vmatprep.mubr.f32.mxu0 0.0
        %1995 = vmatmul.mubr.f32.gmra.mrb[0].mxu0 %v1776
        %v1996 = vpop.f32.mrb[0].mxu0
        %v1997 = vadd.f32 0.0, %v1996
        %v1998 = vpop.f32.mrb[0].mxu0
        %1999 = vmatprep.mubr.f32.mxu0 0.0
        %2000 = vmatmul.mubr.f32.gmra.mrb[0].mxu0 %v1779
        %v2001 = vpop.f32.mrb[0].mxu0
        %v2002 = vadd.f32 0.0, %v2001
        %v2003 = vpop.f32.mrb[0].mxu0
        %2004 = vmatprep.mubr.f32.mxu0 0.0
        %2005 = vmatmul.mubr.f32.gmra.mrb[0].mxu0 %v1782
        %v2006 = vpop.f32.mrb[0].mxu0
        %v2007 = vadd.f32 0.0, %v2006
        %v2008 = vpop.f32.mrb[0].mxu0
        %2009 = vmatprep.mubr.f32.mxu0 0.0
        %2010 = vmatmul.mubr.f32.gmra.mrb[0].mxu0 %v1785
        %v2011 = vpop.f32.mrb[0].mxu0
        %v2012 = vadd.f32 0.0, %v2011
        %v2013 = vpop.f32.mrb[0].mxu0
        %2014 = vdwg.mxu0
        %v2015 = vadd.f32 %v1625, %v1857
        %v2016 = vadd.f32 %v1626, %v1862
        %v2017 = vadd.f32 %v1627, %v1867
        %v2018 = vadd.f32 %v1628, %v1872
        %v2019 = vadd.f32 %v1629, %v1877
        %v2020 = vadd.f32 %v1630, %v1882
        %v2021 = vadd.f32 %v1631, %v1887
        %v2022 = vadd.f32 %v1632, %v1892
        %v2023 = vadd.f32 %v1633, %v1897
        %v2024 = vadd.f32 %v1634, %v1902
        %v2025 = vadd.f32 %v1635, %v1907
        %v2026 = vadd.f32 %v1636, %v1912
        %v2027 = vadd.f32 %v1637, %v1917
        %v2028 = vadd.f32 %v1638, %v1922
        %v2029 = vadd.f32 %v1639, %v1927
        %v2030 = vadd.f32 %v1640, %v1932
        %v2031 = vadd.f32 %v1641, %v1937
        %v2032 = vadd.f32 %v1642, %v1942
        %v2033 = vadd.f32 %v1643, %v1947
        %v2034 = vadd.f32 %v1644, %v1952
        %v2035 = vadd.f32 %v1645, %v1957
        %v2036 = vadd.f32 %v1646, %v1962
        %v2037 = vadd.f32 %v1647, %v1967
        %v2038 = vadd.f32 %v1648, %v1972
        %v2039 = vadd.f32 %v1649, %v1977
        %v2040 = vadd.f32 %v1650, %v1982
        %v2041 = vadd.f32 %v1651, %v1987
        %v2042 = vadd.f32 %v1652, %v1992
        %v2043 = vadd.f32 %v1653, %v1997
        %v2044 = vadd.f32 %v1654, %v2002
        %v2045 = vadd.f32 %v1655, %v2007
        %v2046 = vadd.f32 %v1656, %v2012
        %v2047 = vld [vmem:[%s518 + $0x1] sm:$0xff]
        %v2048 = vld [vmem:[%s518 + $0x9] sm:$0xff]
        %v2049 = vld [vmem:[%s518 + $0x19] sm:$0xff]
        %v2050 = vld [vmem:[%s518 + $0x21] sm:$0xff]
        %v2051 = vld [vmem:[%s518 + $0x31] sm:$0xff]
        %v2052 = vld [vmem:[%s518 + $0x39] sm:$0xff]
        %v2053 = vld [vmem:[%s518 + $0x49] sm:$0xff]
        %v2054 = vld [vmem:[%s518 + $0x51] sm:$0xff]
        %v2055 = vld [vmem:[%s518 + $0x61] sm:$0xff]
        %v2056 = vld [vmem:[%s518 + $0x69] sm:$0xff]
        %v2057 = vld [vmem:[%s518 + $0x79] sm:$0xff]
        %v2058 = vld [vmem:[%s518 + $0x81] sm:$0xff]
        %v2059 = vld [vmem:[%s518 + $0x91] sm:$0xff]
        %v2060 = vld [vmem:[%s518 + $0x99] sm:$0xff]
        %v2061 = vld [vmem:[%s518 + $0xa9] sm:$0xff]
        %v2062 = vld [vmem:[%s518 + $0xb1] sm:$0xff]
        %v2063 = vld [vmem:[%s518 + $0xc1] sm:$0xff]
        %v2064 = vld [vmem:[%s518 + $0xc9] sm:$0xff]
        %v2065 = vld [vmem:[%s518 + $0xd9] sm:$0xff]
        %v2066 = vld [vmem:[%s518 + $0xe1] sm:$0xff]
        %v2067 = vld [vmem:[%s518 + $0xf1] sm:$0xff]
        %v2068 = vld [vmem:[%s518 + $0xf9] sm:$0xff]
        %v2069 = vld [vmem:[%s518 + $0x109] sm:$0xff]
        %v2070 = vld [vmem:[%s518 + $0x111] sm:$0xff]
        %v2071 = vld [vmem:[%s518 + $0x121] sm:$0xff]
        %v2072 = vld [vmem:[%s518 + $0x129] sm:$0xff]
        %v2073 = vld [vmem:[%s518 + $0x139] sm:$0xff]
        %v2074 = vld [vmem:[%s518 + $0x141] sm:$0xff]
        %v2075 = vld [vmem:[%s518 + $0x151] sm:$0xff]
        %v2076 = vld [vmem:[%s518 + $0x159] sm:$0xff]
        %v2077 = vld [vmem:[%s518 + $0x169] sm:$0xff]
        %v2078 = vld [vmem:[%s518 + $0x171] sm:$0xff]
        %s2079 = scalar_lea.vmem %s1, 16
        %v2080 = vld [vmem:[%s2079] sm:$0xf]
        %v2082 = vsel %vm354, %v2047, 0
        %v2085 = vsel %vm354, %v2048, 0
        %v2088 = vsel %vm354, %v2049, 0
        %v2091 = vsel %vm354, %v2050, 0
        %v2094 = vsel %vm354, %v2051, 0
        %v2097 = vsel %vm354, %v2052, 0
        %v2100 = vsel %vm354, %v2053, 0
        %v2103 = vsel %vm354, %v2054, 0
        %v2106 = vsel %vm354, %v2055, 0
        %v2109 = vsel %vm354, %v2056, 0
        %v2112 = vsel %vm354, %v2057, 0
        %v2115 = vsel %vm354, %v2058, 0
        %v2118 = vsel %vm354, %v2059, 0
        %v2121 = vsel %vm354, %v2060, 0
        %v2124 = vsel %vm354, %v2061, 0
        %v2127 = vsel %vm354, %v2062, 0
        %v2130 = vsel %vm354, %v2063, 0
        %v2133 = vsel %vm354, %v2064, 0
        %v2136 = vsel %vm354, %v2065, 0
        %v2139 = vsel %vm354, %v2066, 0
        %v2142 = vsel %vm354, %v2067, 0
        %v2145 = vsel %vm354, %v2068, 0
        %v2148 = vsel %vm354, %v2069, 0
        %v2151 = vsel %vm354, %v2070, 0
        %v2154 = vsel %vm354, %v2071, 0
        %v2157 = vsel %vm354, %v2072, 0
        %v2160 = vsel %vm354, %v2073, 0
        %v2163 = vsel %vm354, %v2074, 0
        %v2166 = vsel %vm354, %v2075, 0
        %v2169 = vsel %vm354, %v2076, 0
        %v2172 = vsel %vm354, %v2077, 0
        %v2175 = vsel %vm354, %v2078, 0
        %v2178 = vsel %vm714, %v2080, 0
        %2180 = vmatprep.subr.mxu0 0.0
        %2181 = vmatpush1.msra.mxu0 %v2178
        %2182 = vmatprep.subr.mxu0 0.0
        %2183 = vmatpush1.msra.mxu0 0.0
        %2184 = vmatprep.subr.mxu0 0.0
        %2185 = vmatpush1.msra.mxu0 0.0
        %2186 = vmatprep.subr.mxu0 0.0
        %2187 = vmatpush1.msra.mxu0 0.0
        %2188 = vmatprep.subr.mxu0 0.0
        %2189 = vmatpush1.msra.mxu0 0.0
        %2190 = vmatprep.subr.mxu0 0.0
        %2191 = vmatpush1.msra.mxu0 0.0
        %2192 = vmatprep.subr.mxu0 0.0
        %2193 = vmatpush1.msra.mxu0 0.0
        %2194 = vmatprep.subr.mxu0 0.0
        %2195 = vmatpush1.msra.mxu0 0.0
        %2196 = vmatprep.subr.mxu0 0.0
        %2197 = vmatpush1.msra.mxu0 0.0
        %2198 = vmatprep.subr.mxu0 0.0
        %2199 = vmatpush1.msra.mxu0 0.0
        %2200 = vmatprep.subr.mxu0 0.0
        %2201 = vmatpush1.msra.mxu0 0.0
        %2202 = vmatprep.subr.mxu0 0.0
        %2203 = vmatpush1.msra.mxu0 0.0
        %2204 = vmatprep.subr.mxu0 0.0
        %2205 = vmatpush1.msra.mxu0 0.0
        %2206 = vmatprep.subr.mxu0 0.0
        %2207 = vmatpush1.msra.mxu0 0.0
        %2208 = vmatprep.subr.mxu0 0.0
        %2209 = vmatpush1.msra.mxu0 0.0
        %2210 = vmatprep.subr.mxu0 0.0
        %2211 = vmatpush1.msra.mxu0 0.0
        %2212 = vmatprep.subr.mxu0 0.0
        %2213 = vmatpush1.msra.mxu0 0.0
        %2214 = vmatprep.subr.mxu0 0.0
        %2215 = vmatpush1.msra.mxu0 0.0
        %2216 = vmatprep.subr.mxu0 0.0
        %2217 = vmatpush1.msra.mxu0 0.0
        %2218 = vmatprep.subr.mxu0 0.0
        %2219 = vmatpush1.msra.mxu0 0.0
        %2220 = vmatprep.subr.mxu0 0.0
        %2221 = vmatpush1.msra.mxu0 0.0
        %2222 = vmatprep.subr.mxu0 0.0
        %2223 = vmatpush1.msra.mxu0 0.0
        %2224 = vmatprep.subr.mxu0 0.0
        %2225 = vmatpush1.msra.mxu0 0.0
        %2226 = vmatprep.subr.mxu0 0.0
        %2227 = vmatpush1.msra.mxu0 0.0
        %2228 = vmatprep.subr.mxu0 0.0
        %2229 = vmatpush1.msra.mxu0 0.0
        %2230 = vmatprep.subr.mxu0 0.0
        %2231 = vmatpush1.msra.mxu0 0.0
        %2232 = vmatprep.subr.mxu0 0.0
        %2233 = vmatpush1.msra.mxu0 0.0
        %2234 = vmatprep.subr.mxu0 0.0
        %2235 = vmatpush1.msra.mxu0 0.0
        %2236 = vmatprep.subr.mxu0 0.0
        %2237 = vmatpush1.msra.mxu0 0.0
        %2238 = vmatprep.subr.mxu0 0.0
        %2239 = vmatpush1.msra.mxu0 0.0
        %2240 = vmatprep.subr.mxu0 0.0
        %2241 = vmatpush1.msra.mxu0 0.0
        %2242 = vmatprep.subr.mxu0 0.0
        %2243 = vmatpush1.msra.mxu0 0.0
        %2244 = vmatprep.mubr.f32.mxu0 0.0
        %2245 = vmatmul.mubr.f32.gmra.mrb[0].mxu0 %v2082
        %v2246 = vpop.f32.mrb[0].mxu0
        %v2247 = vadd.f32 0.0, %v2246
        %v2248 = vpop.f32.mrb[0].mxu0
        %2249 = vmatprep.mubr.f32.mxu0 0.0
        %2250 = vmatmul.mubr.f32.gmra.mrb[0].mxu0 %v2085
        %v2251 = vpop.f32.mrb[0].mxu0
        %v2252 = vadd.f32 0.0, %v2251
        %v2253 = vpop.f32.mrb[0].mxu0
        %2254 = vmatprep.mubr.f32.mxu0 0.0
        %2255 = vmatmul.mubr.f32.gmra.mrb[0].mxu0 %v2088
        %v2256 = vpop.f32.mrb[0].mxu0
        %v2257 = vadd.f32 0.0, %v2256
        %v2258 = vpop.f32.mrb[0].mxu0
        %2259 = vmatprep.mubr.f32.mxu0 0.0
        %2260 = vmatmul.mubr.f32.gmra.mrb[0].mxu0 %v2091
        %v2261 = vpop.f32.mrb[0].mxu0
        %v2262 = vadd.f32 0.0, %v2261
        %v2263 = vpop.f32.mrb[0].mxu0
        %2264 = vmatprep.mubr.f32.mxu0 0.0
        %2265 = vmatmul.mubr.f32.gmra.mrb[0].mxu0 %v2094
        %v2266 = vpop.f32.mrb[0].mxu0
        %v2267 = vadd.f32 0.0, %v2266
        %v2268 = vpop.f32.mrb[0].mxu0
        %2269 = vmatprep.mubr.f32.mxu0 0.0
        %2270 = vmatmul.mubr.f32.gmra.mrb[0].mxu0 %v2097
        %v2271 = vpop.f32.mrb[0].mxu0
        %v2272 = vadd.f32 0.0, %v2271
        %v2273 = vpop.f32.mrb[0].mxu0
        %2274 = vmatprep.mubr.f32.mxu0 0.0
        %2275 = vmatmul.mubr.f32.gmra.mrb[0].mxu0 %v2100
        %v2276 = vpop.f32.mrb[0].mxu0
        %v2277 = vadd.f32 0.0, %v2276
        %v2278 = vpop.f32.mrb[0].mxu0
        %2279 = vmatprep.mubr.f32.mxu0 0.0
        %2280 = vmatmul.mubr.f32.gmra.mrb[0].mxu0 %v2103
        %v2281 = vpop.f32.mrb[0].mxu0
        %v2282 = vadd.f32 0.0, %v2281
        %v2283 = vpop.f32.mrb[0].mxu0
        %2284 = vmatprep.mubr.f32.mxu0 0.0
        %2285 = vmatmul.mubr.f32.gmra.mrb[0].mxu0 %v2106
        %v2286 = vpop.f32.mrb[0].mxu0
        %v2287 = vadd.f32 0.0, %v2286
        %v2288 = vpop.f32.mrb[0].mxu0
        %2289 = vmatprep.mubr.f32.mxu0 0.0
        %2290 = vmatmul.mubr.f32.gmra.mrb[0].mxu0 %v2109
        %v2291 = vpop.f32.mrb[0].mxu0
        %v2292 = vadd.f32 0.0, %v2291
        %v2293 = vpop.f32.mrb[0].mxu0
        %2294 = vmatprep.mubr.f32.mxu0 0.0
        %2295 = vmatmul.mubr.f32.gmra.mrb[0].mxu0 %v2112
        %v2296 = vpop.f32.mrb[0].mxu0
        %v2297 = vadd.f32 0.0, %v2296
        %v2298 = vpop.f32.mrb[0].mxu0
        %2299 = vmatprep.mubr.f32.mxu0 0.0
        %2300 = vmatmul.mubr.f32.gmra.mrb[0].mxu0 %v2115
        %v2301 = vpop.f32.mrb[0].mxu0
        %v2302 = vadd.f32 0.0, %v2301
        %v2303 = vpop.f32.mrb[0].mxu0
        %2304 = vmatprep.mubr.f32.mxu0 0.0
        %2305 = vmatmul.mubr.f32.gmra.mrb[0].mxu0 %v2118
        %v2306 = vpop.f32.mrb[0].mxu0
        %v2307 = vadd.f32 0.0, %v2306
        %v2308 = vpop.f32.mrb[0].mxu0
        %2309 = vmatprep.mubr.f32.mxu0 0.0
        %2310 = vmatmul.mubr.f32.gmra.mrb[0].mxu0 %v2121
        %v2311 = vpop.f32.mrb[0].mxu0
        %v2312 = vadd.f32 0.0, %v2311
        %v2313 = vpop.f32.mrb[0].mxu0
        %2314 = vmatprep.mubr.f32.mxu0 0.0
        %2315 = vmatmul.mubr.f32.gmra.mrb[0].mxu0 %v2124
        %v2316 = vpop.f32.mrb[0].mxu0
        %v2317 = vadd.f32 0.0, %v2316
        %v2318 = vpop.f32.mrb[0].mxu0
        %2319 = vmatprep.mubr.f32.mxu0 0.0
        %2320 = vmatmul.mubr.f32.gmra.mrb[0].mxu0 %v2127
        %v2321 = vpop.f32.mrb[0].mxu0
        %v2322 = vadd.f32 0.0, %v2321
        %v2323 = vpop.f32.mrb[0].mxu0
        %2324 = vmatprep.mubr.f32.mxu0 0.0
        %2325 = vmatmul.mubr.f32.gmra.mrb[0].mxu0 %v2130
        %v2326 = vpop.f32.mrb[0].mxu0
        %v2327 = vadd.f32 0.0, %v2326
        %v2328 = vpop.f32.mrb[0].mxu0
        %2329 = vmatprep.mubr.f32.mxu0 0.0
        %2330 = vmatmul.mubr.f32.gmra.mrb[0].mxu0 %v2133
        %v2331 = vpop.f32.mrb[0].mxu0
        %v2332 = vadd.f32 0.0, %v2331
        %v2333 = vpop.f32.mrb[0].mxu0
        %2334 = vmatprep.mubr.f32.mxu0 0.0
        %2335 = vmatmul.mubr.f32.gmra.mrb[0].mxu0 %v2136
        %v2336 = vpop.f32.mrb[0].mxu0
        %v2337 = vadd.f32 0.0, %v2336
        %v2338 = vpop.f32.mrb[0].mxu0
        %2339 = vmatprep.mubr.f32.mxu0 0.0
        %2340 = vmatmul.mubr.f32.gmra.mrb[0].mxu0 %v2139
        %v2341 = vpop.f32.mrb[0].mxu0
        %v2342 = vadd.f32 0.0, %v2341
        %v2343 = vpop.f32.mrb[0].mxu0
        %2344 = vmatprep.mubr.f32.mxu0 0.0
        %2345 = vmatmul.mubr.f32.gmra.mrb[0].mxu0 %v2142
        %v2346 = vpop.f32.mrb[0].mxu0
        %v2347 = vadd.f32 0.0, %v2346
        %v2348 = vpop.f32.mrb[0].mxu0
        %2349 = vmatprep.mubr.f32.mxu0 0.0
        %2350 = vmatmul.mubr.f32.gmra.mrb[0].mxu0 %v2145
        %v2351 = vpop.f32.mrb[0].mxu0
        %v2352 = vadd.f32 0.0, %v2351
        %v2353 = vpop.f32.mrb[0].mxu0
        %2354 = vmatprep.mubr.f32.mxu0 0.0
        %2355 = vmatmul.mubr.f32.gmra.mrb[0].mxu0 %v2148
        %v2356 = vpop.f32.mrb[0].mxu0
        %v2357 = vadd.f32 0.0, %v2356
        %v2358 = vpop.f32.mrb[0].mxu0
        %2359 = vmatprep.mubr.f32.mxu0 0.0
        %2360 = vmatmul.mubr.f32.gmra.mrb[0].mxu0 %v2151
        %v2361 = vpop.f32.mrb[0].mxu0
        %v2362 = vadd.f32 0.0, %v2361
        %v2363 = vpop.f32.mrb[0].mxu0
        %2364 = vmatprep.mubr.f32.mxu0 0.0
        %2365 = vmatmul.mubr.f32.gmra.mrb[0].mxu0 %v2154
        %v2366 = vpop.f32.mrb[0].mxu0
        %v2367 = vadd.f32 0.0, %v2366
        %v2368 = vpop.f32.mrb[0].mxu0
        %2369 = vmatprep.mubr.f32.mxu0 0.0
        %2370 = vmatmul.mubr.f32.gmra.mrb[0].mxu0 %v2157
        %v2371 = vpop.f32.mrb[0].mxu0
        %v2372 = vadd.f32 0.0, %v2371
        %v2373 = vpop.f32.mrb[0].mxu0
        %2374 = vmatprep.mubr.f32.mxu0 0.0
        %2375 = vmatmul.mubr.f32.gmra.mrb[0].mxu0 %v2160
        %v2376 = vpop.f32.mrb[0].mxu0
        %v2377 = vadd.f32 0.0, %v2376
        %v2378 = vpop.f32.mrb[0].mxu0
        %2379 = vmatprep.mubr.f32.mxu0 0.0
        %2380 = vmatmul.mubr.f32.gmra.mrb[0].mxu0 %v2163
        %v2381 = vpop.f32.mrb[0].mxu0
        %v2382 = vadd.f32 0.0, %v2381
        %v2383 = vpop.f32.mrb[0].mxu0
        %2384 = vmatprep.mubr.f32.mxu0 0.0
        %2385 = vmatmul.mubr.f32.gmra.mrb[0].mxu0 %v2166
        %v2386 = vpop.f32.mrb[0].mxu0
        %v2387 = vadd.f32 0.0, %v2386
        %v2388 = vpop.f32.mrb[0].mxu0
        %2389 = vmatprep.mubr.f32.mxu0 0.0
        %2390 = vmatmul.mubr.f32.gmra.mrb[0].mxu0 %v2169
        %v2391 = vpop.f32.mrb[0].mxu0
        %v2392 = vadd.f32 0.0, %v2391
        %v2393 = vpop.f32.mrb[0].mxu0
        %2394 = vmatprep.mubr.f32.mxu0 0.0
        %2395 = vmatmul.mubr.f32.gmra.mrb[0].mxu0 %v2172
        %v2396 = vpop.f32.mrb[0].mxu0
        %v2397 = vadd.f32 0.0, %v2396
        %v2398 = vpop.f32.mrb[0].mxu0
        %2399 = vmatprep.mubr.f32.mxu0 0.0
        %2400 = vmatmul.mubr.f32.gmra.mrb[0].mxu0 %v2175
        %v2401 = vpop.f32.mrb[0].mxu0
        %v2402 = vadd.f32 0.0, %v2401
        %v2403 = vpop.f32.mrb[0].mxu0
        %2404 = vdwg.mxu0
        %v2405 = vadd.f32 %v2015, %v2247
        %v2406 = vadd.f32 %v2016, %v2252
        %v2407 = vadd.f32 %v2017, %v2257
        %v2408 = vadd.f32 %v2018, %v2262
        %v2409 = vadd.f32 %v2019, %v2267
        %v2410 = vadd.f32 %v2020, %v2272
        %v2411 = vadd.f32 %v2021, %v2277
        %v2412 = vadd.f32 %v2022, %v2282
        %v2413 = vadd.f32 %v2023, %v2287
        %v2414 = vadd.f32 %v2024, %v2292
        %v2415 = vadd.f32 %v2025, %v2297
        %v2416 = vadd.f32 %v2026, %v2302
        %v2417 = vadd.f32 %v2027, %v2307
        %v2418 = vadd.f32 %v2028, %v2312
        %v2419 = vadd.f32 %v2029, %v2317
        %v2420 = vadd.f32 %v2030, %v2322
        %v2421 = vadd.f32 %v2031, %v2327
        %v2422 = vadd.f32 %v2032, %v2332
        %v2423 = vadd.f32 %v2033, %v2337
        %v2424 = vadd.f32 %v2034, %v2342
        %v2425 = vadd.f32 %v2035, %v2347
        %v2426 = vadd.f32 %v2036, %v2352
        %v2427 = vadd.f32 %v2037, %v2357
        %v2428 = vadd.f32 %v2038, %v2362
        %v2429 = vadd.f32 %v2039, %v2367
        %v2430 = vadd.f32 %v2040, %v2372
        %v2431 = vadd.f32 %v2041, %v2377
        %v2432 = vadd.f32 %v2042, %v2382
        %v2433 = vadd.f32 %v2043, %v2387
        %v2434 = vadd.f32 %v2044, %v2392
        %v2435 = vadd.f32 %v2045, %v2397
        %v2436 = vadd.f32 %v2046, %v2402
        %v2437 = vld [vmem:[%s518 + $0x2] sm:$0xff]
        %v2438 = vld [vmem:[%s518 + $0xa] sm:$0xff]
        %v2439 = vld [vmem:[%s518 + $0x1a] sm:$0xff]
        %v2440 = vld [vmem:[%s518 + $0x22] sm:$0xff]
        %v2441 = vld [vmem:[%s518 + $0x32] sm:$0xff]
        %v2442 = vld [vmem:[%s518 + $0x3a] sm:$0xff]
        %v2443 = vld [vmem:[%s518 + $0x4a] sm:$0xff]
        %v2444 = vld [vmem:[%s518 + $0x52] sm:$0xff]
        %v2445 = vld [vmem:[%s518 + $0x62] sm:$0xff]
        %v2446 = vld [vmem:[%s518 + $0x6a] sm:$0xff]
        %v2447 = vld [vmem:[%s518 + $0x7a] sm:$0xff]
        %v2448 = vld [vmem:[%s518 + $0x82] sm:$0xff]
        %v2449 = vld [vmem:[%s518 + $0x92] sm:$0xff]
        %v2450 = vld [vmem:[%s518 + $0x9a] sm:$0xff]
        %v2451 = vld [vmem:[%s518 + $0xaa] sm:$0xff]
        %v2452 = vld [vmem:[%s518 + $0xb2] sm:$0xff]
        %v2453 = vld [vmem:[%s518 + $0xc2] sm:$0xff]
        %v2454 = vld [vmem:[%s518 + $0xca] sm:$0xff]
        %v2455 = vld [vmem:[%s518 + $0xda] sm:$0xff]
        %v2456 = vld [vmem:[%s518 + $0xe2] sm:$0xff]
        %v2457 = vld [vmem:[%s518 + $0xf2] sm:$0xff]
        %v2458 = vld [vmem:[%s518 + $0xfa] sm:$0xff]
        %v2459 = vld [vmem:[%s518 + $0x10a] sm:$0xff]
        %v2460 = vld [vmem:[%s518 + $0x112] sm:$0xff]
        %v2461 = vld [vmem:[%s518 + $0x122] sm:$0xff]
        %v2462 = vld [vmem:[%s518 + $0x12a] sm:$0xff]
        %v2463 = vld [vmem:[%s518 + $0x13a] sm:$0xff]
        %v2464 = vld [vmem:[%s518 + $0x142] sm:$0xff]
        %v2465 = vld [vmem:[%s518 + $0x152] sm:$0xff]
        %v2466 = vld [vmem:[%s518 + $0x15a] sm:$0xff]
        %v2467 = vld [vmem:[%s518 + $0x16a] sm:$0xff]
        %v2468 = vld [vmem:[%s518 + $0x172] sm:$0xff]
        %s2469 = scalar_lea.vmem %s1, 20
        %v2470 = vld [vmem:[%s2469] sm:$0xf]
        %v2472 = vsel %vm354, %v2437, 0
        %v2475 = vsel %vm354, %v2438, 0
        %v2478 = vsel %vm354, %v2439, 0
        %v2481 = vsel %vm354, %v2440, 0
        %v2484 = vsel %vm354, %v2441, 0
        %v2487 = vsel %vm354, %v2442, 0
        %v2490 = vsel %vm354, %v2443, 0
        %v2493 = vsel %vm354, %v2444, 0
        %v2496 = vsel %vm354, %v2445, 0
        %v2499 = vsel %vm354, %v2446, 0
        %v2502 = vsel %vm354, %v2447, 0
        %v2505 = vsel %vm354, %v2448, 0
        %v2508 = vsel %vm354, %v2449, 0
        %v2511 = vsel %vm354, %v2450, 0
        %v2514 = vsel %vm354, %v2451, 0
        %v2517 = vsel %vm354, %v2452, 0
        %v2520 = vsel %vm354, %v2453, 0
        %v2523 = vsel %vm354, %v2454, 0
        %v2526 = vsel %vm354, %v2455, 0
        %v2529 = vsel %vm354, %v2456, 0
        %v2532 = vsel %vm354, %v2457, 0
        %v2535 = vsel %vm354, %v2458, 0
        %v2538 = vsel %vm354, %v2459, 0
        %v2541 = vsel %vm354, %v2460, 0
        %v2544 = vsel %vm354, %v2461, 0
        %v2547 = vsel %vm354, %v2462, 0
        %v2550 = vsel %vm354, %v2463, 0
        %v2553 = vsel %vm354, %v2464, 0
        %v2556 = vsel %vm354, %v2465, 0
        %v2559 = vsel %vm354, %v2466, 0
        %v2562 = vsel %vm354, %v2467, 0
        %v2565 = vsel %vm354, %v2468, 0
        %v2568 = vsel %vm714, %v2470, 0
        %2570 = vmatprep.subr.mxu0 0.0
        %2571 = vmatpush1.msra.mxu0 %v2568
        %2572 = vmatprep.subr.mxu0 0.0
        %2573 = vmatpush1.msra.mxu0 0.0
        %2574 = vmatprep.subr.mxu0 0.0
        %2575 = vmatpush1.msra.mxu0 0.0
        %2576 = vmatprep.subr.mxu0 0.0
        %2577 = vmatpush1.msra.mxu0 0.0
        %2578 = vmatprep.subr.mxu0 0.0
        %2579 = vmatpush1.msra.mxu0 0.0
        %2580 = vmatprep.subr.mxu0 0.0
        %2581 = vmatpush1.msra.mxu0 0.0
        %2582 = vmatprep.subr.mxu0 0.0
        %2583 = vmatpush1.msra.mxu0 0.0
        %2584 = vmatprep.subr.mxu0 0.0
        %2585 = vmatpush1.msra.mxu0 0.0
        %2586 = vmatprep.subr.mxu0 0.0
        %2587 = vmatpush1.msra.mxu0 0.0
        %2588 = vmatprep.subr.mxu0 0.0
        %2589 = vmatpush1.msra.mxu0 0.0
        %2590 = vmatprep.subr.mxu0 0.0
        %2591 = vmatpush1.msra.mxu0 0.0
        %2592 = vmatprep.subr.mxu0 0.0
        %2593 = vmatpush1.msra.mxu0 0.0
        %2594 = vmatprep.subr.mxu0 0.0
        %2595 = vmatpush1.msra.mxu0 0.0
        %2596 = vmatprep.subr.mxu0 0.0
        %2597 = vmatpush1.msra.mxu0 0.0
        %2598 = vmatprep.subr.mxu0 0.0
        %2599 = vmatpush1.msra.mxu0 0.0
        %2600 = vmatprep.subr.mxu0 0.0
        %2601 = vmatpush1.msra.mxu0 0.0
        %2602 = vmatprep.subr.mxu0 0.0
        %2603 = vmatpush1.msra.mxu0 0.0
        %2604 = vmatprep.subr.mxu0 0.0
        %2605 = vmatpush1.msra.mxu0 0.0
        %2606 = vmatprep.subr.mxu0 0.0
        %2607 = vmatpush1.msra.mxu0 0.0
        %2608 = vmatprep.subr.mxu0 0.0
        %2609 = vmatpush1.msra.mxu0 0.0
        %2610 = vmatprep.subr.mxu0 0.0
        %2611 = vmatpush1.msra.mxu0 0.0
        %2612 = vmatprep.subr.mxu0 0.0
        %2613 = vmatpush1.msra.mxu0 0.0
        %2614 = vmatprep.subr.mxu0 0.0
        %2615 = vmatpush1.msra.mxu0 0.0
        %2616 = vmatprep.subr.mxu0 0.0
        %2617 = vmatpush1.msra.mxu0 0.0
        %2618 = vmatprep.subr.mxu0 0.0
        %2619 = vmatpush1.msra.mxu0 0.0
        %2620 = vmatprep.subr.mxu0 0.0
        %2621 = vmatpush1.msra.mxu0 0.0
        %2622 = vmatprep.subr.mxu0 0.0
        %2623 = vmatpush1.msra.mxu0 0.0
        %2624 = vmatprep.subr.mxu0 0.0
        %2625 = vmatpush1.msra.mxu0 0.0
        %2626 = vmatprep.subr.mxu0 0.0
        %2627 = vmatpush1.msra.mxu0 0.0
        %2628 = vmatprep.subr.mxu0 0.0
        %2629 = vmatpush1.msra.mxu0 0.0
        %2630 = vmatprep.subr.mxu0 0.0
        %2631 = vmatpush1.msra.mxu0 0.0
        %2632 = vmatprep.subr.mxu0 0.0
        %2633 = vmatpush1.msra.mxu0 0.0
        %2634 = vmatprep.mubr.f32.mxu0 0.0
        %2635 = vmatmul.mubr.f32.gmra.mrb[0].mxu0 %v2472
        %v2636 = vpop.f32.mrb[0].mxu0
        %v2637 = vadd.f32 0.0, %v2636
        %v2638 = vpop.f32.mrb[0].mxu0
        %2639 = vmatprep.mubr.f32.mxu0 0.0
        %2640 = vmatmul.mubr.f32.gmra.mrb[0].mxu0 %v2475
        %v2641 = vpop.f32.mrb[0].mxu0
        %v2642 = vadd.f32 0.0, %v2641
        %v2643 = vpop.f32.mrb[0].mxu0
        %2644 = vmatprep.mubr.f32.mxu0 0.0
        %2645 = vmatmul.mubr.f32.gmra.mrb[0].mxu0 %v2478
        %v2646 = vpop.f32.mrb[0].mxu0
        %v2647 = vadd.f32 0.0, %v2646
        %v2648 = vpop.f32.mrb[0].mxu0
        %2649 = vmatprep.mubr.f32.mxu0 0.0
        %2650 = vmatmul.mubr.f32.gmra.mrb[0].mxu0 %v2481
        %v2651 = vpop.f32.mrb[0].mxu0
        %v2652 = vadd.f32 0.0, %v2651
        %v2653 = vpop.f32.mrb[0].mxu0
        %2654 = vmatprep.mubr.f32.mxu0 0.0
        %2655 = vmatmul.mubr.f32.gmra.mrb[0].mxu0 %v2484
        %v2656 = vpop.f32.mrb[0].mxu0
        %v2657 = vadd.f32 0.0, %v2656
        %v2658 = vpop.f32.mrb[0].mxu0
        %2659 = vmatprep.mubr.f32.mxu0 0.0
        %2660 = vmatmul.mubr.f32.gmra.mrb[0].mxu0 %v2487
        %v2661 = vpop.f32.mrb[0].mxu0
        %v2662 = vadd.f32 0.0, %v2661
        %v2663 = vpop.f32.mrb[0].mxu0
        %2664 = vmatprep.mubr.f32.mxu0 0.0
        %2665 = vmatmul.mubr.f32.gmra.mrb[0].mxu0 %v2490
        %v2666 = vpop.f32.mrb[0].mxu0
        %v2667 = vadd.f32 0.0, %v2666
        %v2668 = vpop.f32.mrb[0].mxu0
        %2669 = vmatprep.mubr.f32.mxu0 0.0
        %2670 = vmatmul.mubr.f32.gmra.mrb[0].mxu0 %v2493
        %v2671 = vpop.f32.mrb[0].mxu0
        %v2672 = vadd.f32 0.0, %v2671
        %v2673 = vpop.f32.mrb[0].mxu0
        %2674 = vmatprep.mubr.f32.mxu0 0.0
        %2675 = vmatmul.mubr.f32.gmra.mrb[0].mxu0 %v2496
        %v2676 = vpop.f32.mrb[0].mxu0
        %v2677 = vadd.f32 0.0, %v2676
        %v2678 = vpop.f32.mrb[0].mxu0
        %2679 = vmatprep.mubr.f32.mxu0 0.0
        %2680 = vmatmul.mubr.f32.gmra.mrb[0].mxu0 %v2499
        %v2681 = vpop.f32.mrb[0].mxu0
        %v2682 = vadd.f32 0.0, %v2681
        %v2683 = vpop.f32.mrb[0].mxu0
        %2684 = vmatprep.mubr.f32.mxu0 0.0
        %2685 = vmatmul.mubr.f32.gmra.mrb[0].mxu0 %v2502
        %v2686 = vpop.f32.mrb[0].mxu0
        %v2687 = vadd.f32 0.0, %v2686
        %v2688 = vpop.f32.mrb[0].mxu0
        %2689 = vmatprep.mubr.f32.mxu0 0.0
        %2690 = vmatmul.mubr.f32.gmra.mrb[0].mxu0 %v2505
        %v2691 = vpop.f32.mrb[0].mxu0
        %v2692 = vadd.f32 0.0, %v2691
        %v2693 = vpop.f32.mrb[0].mxu0
        %2694 = vmatprep.mubr.f32.mxu0 0.0
        %2695 = vmatmul.mubr.f32.gmra.mrb[0].mxu0 %v2508
        %v2696 = vpop.f32.mrb[0].mxu0
        %v2697 = vadd.f32 0.0, %v2696
        %v2698 = vpop.f32.mrb[0].mxu0
        %2699 = vmatprep.mubr.f32.mxu0 0.0
        %2700 = vmatmul.mubr.f32.gmra.mrb[0].mxu0 %v2511
        %v2701 = vpop.f32.mrb[0].mxu0
        %v2702 = vadd.f32 0.0, %v2701
        %v2703 = vpop.f32.mrb[0].mxu0
        %2704 = vmatprep.mubr.f32.mxu0 0.0
        %2705 = vmatmul.mubr.f32.gmra.mrb[0].mxu0 %v2514
        %v2706 = vpop.f32.mrb[0].mxu0
        %v2707 = vadd.f32 0.0, %v2706
        %v2708 = vpop.f32.mrb[0].mxu0
        %2709 = vmatprep.mubr.f32.mxu0 0.0
        %2710 = vmatmul.mubr.f32.gmra.mrb[0].mxu0 %v2517
        %v2711 = vpop.f32.mrb[0].mxu0
        %v2712 = vadd.f32 0.0, %v2711
        %v2713 = vpop.f32.mrb[0].mxu0
        %2714 = vmatprep.mubr.f32.mxu0 0.0
        %2715 = vmatmul.mubr.f32.gmra.mrb[0].mxu0 %v2520
        %v2716 = vpop.f32.mrb[0].mxu0
        %v2717 = vadd.f32 0.0, %v2716
        %v2718 = vpop.f32.mrb[0].mxu0
        %2719 = vmatprep.mubr.f32.mxu0 0.0
        %2720 = vmatmul.mubr.f32.gmra.mrb[0].mxu0 %v2523
        %v2721 = vpop.f32.mrb[0].mxu0
        %v2722 = vadd.f32 0.0, %v2721
        %v2723 = vpop.f32.mrb[0].mxu0
        %2724 = vmatprep.mubr.f32.mxu0 0.0
        %2725 = vmatmul.mubr.f32.gmra.mrb[0].mxu0 %v2526
        %v2726 = vpop.f32.mrb[0].mxu0
        %v2727 = vadd.f32 0.0, %v2726
        %v2728 = vpop.f32.mrb[0].mxu0
        %2729 = vmatprep.mubr.f32.mxu0 0.0
        %2730 = vmatmul.mubr.f32.gmra.mrb[0].mxu0 %v2529
        %v2731 = vpop.f32.mrb[0].mxu0
        %v2732 = vadd.f32 0.0, %v2731
        %v2733 = vpop.f32.mrb[0].mxu0
        %2734 = vmatprep.mubr.f32.mxu0 0.0
        %2735 = vmatmul.mubr.f32.gmra.mrb[0].mxu0 %v2532
        %v2736 = vpop.f32.mrb[0].mxu0
        %v2737 = vadd.f32 0.0, %v2736
        %v2738 = vpop.f32.mrb[0].mxu0
        %2739 = vmatprep.mubr.f32.mxu0 0.0
        %2740 = vmatmul.mubr.f32.gmra.mrb[0].mxu0 %v2535
        %v2741 = vpop.f32.mrb[0].mxu0
        %v2742 = vadd.f32 0.0, %v2741
        %v2743 = vpop.f32.mrb[0].mxu0
        %2744 = vmatprep.mubr.f32.mxu0 0.0
        %2745 = vmatmul.mubr.f32.gmra.mrb[0].mxu0 %v2538
        %v2746 = vpop.f32.mrb[0].mxu0
        %v2747 = vadd.f32 0.0, %v2746
        %v2748 = vpop.f32.mrb[0].mxu0
        %2749 = vmatprep.mubr.f32.mxu0 0.0
        %2750 = vmatmul.mubr.f32.gmra.mrb[0].mxu0 %v2541
        %v2751 = vpop.f32.mrb[0].mxu0
        %v2752 = vadd.f32 0.0, %v2751
        %v2753 = vpop.f32.mrb[0].mxu0
        %2754 = vmatprep.mubr.f32.mxu0 0.0
        %2755 = vmatmul.mubr.f32.gmra.mrb[0].mxu0 %v2544
        %v2756 = vpop.f32.mrb[0].mxu0
        %v2757 = vadd.f32 0.0, %v2756
        %v2758 = vpop.f32.mrb[0].mxu0
        %2759 = vmatprep.mubr.f32.mxu0 0.0
        %2760 = vmatmul.mubr.f32.gmra.mrb[0].mxu0 %v2547
        %v2761 = vpop.f32.mrb[0].mxu0
        %v2762 = vadd.f32 0.0, %v2761
        %v2763 = vpop.f32.mrb[0].mxu0
        %2764 = vmatprep.mubr.f32.mxu0 0.0
        %2765 = vmatmul.mubr.f32.gmra.mrb[0].mxu0 %v2550
        %v2766 = vpop.f32.mrb[0].mxu0
        %v2767 = vadd.f32 0.0, %v2766
        %v2768 = vpop.f32.mrb[0].mxu0
        %2769 = vmatprep.mubr.f32.mxu0 0.0
        %2770 = vmatmul.mubr.f32.gmra.mrb[0].mxu0 %v2553
        %v2771 = vpop.f32.mrb[0].mxu0
        %v2772 = vadd.f32 0.0, %v2771
        %v2773 = vpop.f32.mrb[0].mxu0
        %2774 = vmatprep.mubr.f32.mxu0 0.0
        %2775 = vmatmul.mubr.f32.gmra.mrb[0].mxu0 %v2556
        %v2776 = vpop.f32.mrb[0].mxu0
        %v2777 = vadd.f32 0.0, %v2776
        %v2778 = vpop.f32.mrb[0].mxu0
        %2779 = vmatprep.mubr.f32.mxu0 0.0
        %2780 = vmatmul.mubr.f32.gmra.mrb[0].mxu0 %v2559
        %v2781 = vpop.f32.mrb[0].mxu0
        %v2782 = vadd.f32 0.0, %v2781
        %v2783 = vpop.f32.mrb[0].mxu0
        %2784 = vmatprep.mubr.f32.mxu0 0.0
        %2785 = vmatmul.mubr.f32.gmra.mrb[0].mxu0 %v2562
        %v2786 = vpop.f32.mrb[0].mxu0
        %v2787 = vadd.f32 0.0, %v2786
        %v2788 = vpop.f32.mrb[0].mxu0
        %2789 = vmatprep.mubr.f32.mxu0 0.0
        %2790 = vmatmul.mubr.f32.gmra.mrb[0].mxu0 %v2565
        %v2791 = vpop.f32.mrb[0].mxu0
        %v2792 = vadd.f32 0.0, %v2791
        %v2793 = vpop.f32.mrb[0].mxu0
        %2794 = vdwg.mxu0
        %v2795 = vadd.f32 %v2405, %v2637
        %v2796 = vadd.f32 %v2406, %v2642
        %v2797 = vadd.f32 %v2407, %v2647
        %v2798 = vadd.f32 %v2408, %v2652
        %v2799 = vadd.f32 %v2409, %v2657
        %v2800 = vadd.f32 %v2410, %v2662
        %v2801 = vadd.f32 %v2411, %v2667
        %v2802 = vadd.f32 %v2412, %v2672
        %v2803 = vadd.f32 %v2413, %v2677
        %v2804 = vadd.f32 %v2414, %v2682
        %v2805 = vadd.f32 %v2415, %v2687
        %v2806 = vadd.f32 %v2416, %v2692
        %v2807 = vadd.f32 %v2417, %v2697
        %v2808 = vadd.f32 %v2418, %v2702
        %v2809 = vadd.f32 %v2419, %v2707
        %v2810 = vadd.f32 %v2420, %v2712
        %v2811 = vadd.f32 %v2421, %v2717
        %v2812 = vadd.f32 %v2422, %v2722
        %v2813 = vadd.f32 %v2423, %v2727
        %v2814 = vadd.f32 %v2424, %v2732
        %v2815 = vadd.f32 %v2425, %v2737
        %v2816 = vadd.f32 %v2426, %v2742
        %v2817 = vadd.f32 %v2427, %v2747
        %v2818 = vadd.f32 %v2428, %v2752
        %v2819 = vadd.f32 %v2429, %v2757
        %v2820 = vadd.f32 %v2430, %v2762
        %v2821 = vadd.f32 %v2431, %v2767
        %v2822 = vadd.f32 %v2432, %v2772
        %v2823 = vadd.f32 %v2433, %v2777
        %v2824 = vadd.f32 %v2434, %v2782
        %v2825 = vadd.f32 %v2435, %v2787
        %v2826 = vadd.f32 %v2436, %v2792
        %s2827 = scalar_lea.vmem [#allocation2], 48
        %v2828 = vld [vmem:[%s2827] sm:$0xff]
        %v2829 = vld [vmem:[%s2827 + $0x8] sm:$0xff]
        %v2830 = vld [vmem:[%s2827 + $0x18] sm:$0xff]
        %v2831 = vld [vmem:[%s2827 + $0x20] sm:$0xff]
        %v2832 = vld [vmem:[%s2827 + $0x30] sm:$0xff]
        %v2833 = vld [vmem:[%s2827 + $0x38] sm:$0xff]
        %v2834 = vld [vmem:[%s2827 + $0x48] sm:$0xff]
        %v2835 = vld [vmem:[%s2827 + $0x50] sm:$0xff]
        %v2836 = vld [vmem:[%s2827 + $0x60] sm:$0xff]
        %v2837 = vld [vmem:[%s2827 + $0x68] sm:$0xff]
        %v2838 = vld [vmem:[%s2827 + $0x78] sm:$0xff]
        %v2839 = vld [vmem:[%s2827 + $0x80] sm:$0xff]
        %v2840 = vld [vmem:[%s2827 + $0x90] sm:$0xff]
        %v2841 = vld [vmem:[%s2827 + $0x98] sm:$0xff]
        %v2842 = vld [vmem:[%s2827 + $0xa8] sm:$0xff]
        %v2843 = vld [vmem:[%s2827 + $0xb0] sm:$0xff]
        %v2844 = vld [vmem:[%s2827 + $0xc0] sm:$0xff]
        %v2845 = vld [vmem:[%s2827 + $0xc8] sm:$0xff]
        %v2846 = vld [vmem:[%s2827 + $0xd8] sm:$0xff]
        %v2847 = vld [vmem:[%s2827 + $0xe0] sm:$0xff]
        %v2848 = vld [vmem:[%s2827 + $0xf0] sm:$0xff]
        %v2849 = vld [vmem:[%s2827 + $0xf8] sm:$0xff]
        %v2850 = vld [vmem:[%s2827 + $0x108] sm:$0xff]
        %v2851 = vld [vmem:[%s2827 + $0x110] sm:$0xff]
        %v2852 = vld [vmem:[%s2827 + $0x120] sm:$0xff]
        %v2853 = vld [vmem:[%s2827 + $0x128] sm:$0xff]
        %v2854 = vld [vmem:[%s2827 + $0x138] sm:$0xff]
        %v2855 = vld [vmem:[%s2827 + $0x140] sm:$0xff]
        %v2856 = vld [vmem:[%s2827 + $0x150] sm:$0xff]
        %v2857 = vld [vmem:[%s2827 + $0x158] sm:$0xff]
        %v2858 = vld [vmem:[%s2827 + $0x168] sm:$0xff]
        %v2859 = vld [vmem:[%s2827 + $0x170] sm:$0xff]
        %s2860 = scalar_lea.vmem %s1, 24
        %v2861 = vld [vmem:[%s2860] sm:$0xf]
        %v2863 = vsel %vm354, %v2828, 0
        %v2866 = vsel %vm354, %v2829, 0
        %v2869 = vsel %vm354, %v2830, 0
        %v2872 = vsel %vm354, %v2831, 0
        %v2875 = vsel %vm354, %v2832, 0
        %v2878 = vsel %vm354, %v2833, 0
        %v2881 = vsel %vm354, %v2834, 0
        %v2884 = vsel %vm354, %v2835, 0
        %v2887 = vsel %vm354, %v2836, 0
        %v2890 = vsel %vm354, %v2837, 0
        %v2893 = vsel %vm354, %v2838, 0
        %v2896 = vsel %vm354, %v2839, 0
        %v2899 = vsel %vm354, %v2840, 0
        %v2902 = vsel %vm354, %v2841, 0
        %v2905 = vsel %vm354, %v2842, 0
        %v2908 = vsel %vm354, %v2843, 0
        %v2911 = vsel %vm354, %v2844, 0
        %v2914 = vsel %vm354, %v2845, 0
        %v2917 = vsel %vm354, %v2846, 0
        %v2920 = vsel %vm354, %v2847, 0
        %v2923 = vsel %vm354, %v2848, 0
        %v2926 = vsel %vm354, %v2849, 0
        %v2929 = vsel %vm354, %v2850, 0
        %v2932 = vsel %vm354, %v2851, 0
        %v2935 = vsel %vm354, %v2852, 0
        %v2938 = vsel %vm354, %v2853, 0
        %v2941 = vsel %vm354, %v2854, 0
        %v2944 = vsel %vm354, %v2855, 0
        %v2947 = vsel %vm354, %v2856, 0
        %v2950 = vsel %vm354, %v2857, 0
        %v2953 = vsel %vm354, %v2858, 0
        %v2956 = vsel %vm354, %v2859, 0
        %v2959 = vsel %vm714, %v2861, 0
        %2961 = vmatprep.subr.mxu0 0.0
        %2962 = vmatpush1.msra.mxu0 %v2959
        %2963 = vmatprep.subr.mxu0 0.0
        %2964 = vmatpush1.msra.mxu0 0.0
        %2965 = vmatprep.subr.mxu0 0.0
        %2966 = vmatpush1.msra.mxu0 0.0
        %2967 = vmatprep.subr.mxu0 0.0
        %2968 = vmatpush1.msra.mxu0 0.0
        %2969 = vmatprep.subr.mxu0 0.0
        %2970 = vmatpush1.msra.mxu0 0.0
        %2971 = vmatprep.subr.mxu0 0.0
        %2972 = vmatpush1.msra.mxu0 0.0
        %2973 = vmatprep.subr.mxu0 0.0
        %2974 = vmatpush1.msra.mxu0 0.0
        %2975 = vmatprep.subr.mxu0 0.0
        %2976 = vmatpush1.msra.mxu0 0.0
        %2977 = vmatprep.subr.mxu0 0.0
        %2978 = vmatpush1.msra.mxu0 0.0
        %2979 = vmatprep.subr.mxu0 0.0
        %2980 = vmatpush1.msra.mxu0 0.0
        %2981 = vmatprep.subr.mxu0 0.0
        %2982 = vmatpush1.msra.mxu0 0.0
        %2983 = vmatprep.subr.mxu0 0.0
        %2984 = vmatpush1.msra.mxu0 0.0
        %2985 = vmatprep.subr.mxu0 0.0
        %2986 = vmatpush1.msra.mxu0 0.0
        %2987 = vmatprep.subr.mxu0 0.0
        %2988 = vmatpush1.msra.mxu0 0.0
        %2989 = vmatprep.subr.mxu0 0.0
        %2990 = vmatpush1.msra.mxu0 0.0
        %2991 = vmatprep.subr.mxu0 0.0
        %2992 = vmatpush1.msra.mxu0 0.0
        %2993 = vmatprep.subr.mxu0 0.0
        %2994 = vmatpush1.msra.mxu0 0.0
        %2995 = vmatprep.subr.mxu0 0.0
        %2996 = vmatpush1.msra.mxu0 0.0
        %2997 = vmatprep.subr.mxu0 0.0
        %2998 = vmatpush1.msra.mxu0 0.0
        %2999 = vmatprep.subr.mxu0 0.0
        %3000 = vmatpush1.msra.mxu0 0.0
        %3001 = vmatprep.subr.mxu0 0.0
        %3002 = vmatpush1.msra.mxu0 0.0
        %3003 = vmatprep.subr.mxu0 0.0
        %3004 = vmatpush1.msra.mxu0 0.0
        %3005 = vmatprep.subr.mxu0 0.0
        %3006 = vmatpush1.msra.mxu0 0.0
        %3007 = vmatprep.subr.mxu0 0.0
        %3008 = vmatpush1.msra.mxu0 0.0
        %3009 = vmatprep.subr.mxu0 0.0
        %3010 = vmatpush1.msra.mxu0 0.0
        %3011 = vmatprep.subr.mxu0 0.0
        %3012 = vmatpush1.msra.mxu0 0.0
        %3013 = vmatprep.subr.mxu0 0.0
        %3014 = vmatpush1.msra.mxu0 0.0
        %3015 = vmatprep.subr.mxu0 0.0
        %3016 = vmatpush1.msra.mxu0 0.0
        %3017 = vmatprep.subr.mxu0 0.0
        %3018 = vmatpush1.msra.mxu0 0.0
        %3019 = vmatprep.subr.mxu0 0.0
        %3020 = vmatpush1.msra.mxu0 0.0
        %3021 = vmatprep.subr.mxu0 0.0
        %3022 = vmatpush1.msra.mxu0 0.0
        %3023 = vmatprep.subr.mxu0 0.0
        %3024 = vmatpush1.msra.mxu0 0.0
        %3025 = vmatprep.mubr.f32.mxu0 0.0
        %3026 = vmatmul.mubr.f32.gmra.mrb[0].mxu0 %v2863
        %v3027 = vpop.f32.mrb[0].mxu0
        %v3028 = vadd.f32 0.0, %v3027
        %v3029 = vpop.f32.mrb[0].mxu0
        %3030 = vmatprep.mubr.f32.mxu0 0.0
        %3031 = vmatmul.mubr.f32.gmra.mrb[0].mxu0 %v2866
        %v3032 = vpop.f32.mrb[0].mxu0
        %v3033 = vadd.f32 0.0, %v3032
        %v3034 = vpop.f32.mrb[0].mxu0
        %3035 = vmatprep.mubr.f32.mxu0 0.0
        %3036 = vmatmul.mubr.f32.gmra.mrb[0].mxu0 %v2869
        %v3037 = vpop.f32.mrb[0].mxu0
        %v3038 = vadd.f32 0.0, %v3037
        %v3039 = vpop.f32.mrb[0].mxu0
        %3040 = vmatprep.mubr.f32.mxu0 0.0
        %3041 = vmatmul.mubr.f32.gmra.mrb[0].mxu0 %v2872
        %v3042 = vpop.f32.mrb[0].mxu0
        %v3043 = vadd.f32 0.0, %v3042
        %v3044 = vpop.f32.mrb[0].mxu0
        %3045 = vmatprep.mubr.f32.mxu0 0.0
        %3046 = vmatmul.mubr.f32.gmra.mrb[0].mxu0 %v2875
        %v3047 = vpop.f32.mrb[0].mxu0
        %v3048 = vadd.f32 0.0, %v3047
        %v3049 = vpop.f32.mrb[0].mxu0
        %3050 = vmatprep.mubr.f32.mxu0 0.0
        %3051 = vmatmul.mubr.f32.gmra.mrb[0].mxu0 %v2878
        %v3052 = vpop.f32.mrb[0].mxu0
        %v3053 = vadd.f32 0.0, %v3052
        %v3054 = vpop.f32.mrb[0].mxu0
        %3055 = vmatprep.mubr.f32.mxu0 0.0
        %3056 = vmatmul.mubr.f32.gmra.mrb[0].mxu0 %v2881
        %v3057 = vpop.f32.mrb[0].mxu0
        %v3058 = vadd.f32 0.0, %v3057
        %v3059 = vpop.f32.mrb[0].mxu0
        %3060 = vmatprep.mubr.f32.mxu0 0.0
        %3061 = vmatmul.mubr.f32.gmra.mrb[0].mxu0 %v2884
        %v3062 = vpop.f32.mrb[0].mxu0
        %v3063 = vadd.f32 0.0, %v3062
        %v3064 = vpop.f32.mrb[0].mxu0
        %3065 = vmatprep.mubr.f32.mxu0 0.0
        %3066 = vmatmul.mubr.f32.gmra.mrb[0].mxu0 %v2887
        %v3067 = vpop.f32.mrb[0].mxu0
        %v3068 = vadd.f32 0.0, %v3067
        %v3069 = vpop.f32.mrb[0].mxu0
        %3070 = vmatprep.mubr.f32.mxu0 0.0
        %3071 = vmatmul.mubr.f32.gmra.mrb[0].mxu0 %v2890
        %v3072 = vpop.f32.mrb[0].mxu0
        %v3073 = vadd.f32 0.0, %v3072
        %v3074 = vpop.f32.mrb[0].mxu0
        %3075 = vmatprep.mubr.f32.mxu0 0.0
        %3076 = vmatmul.mubr.f32.gmra.mrb[0].mxu0 %v2893
        %v3077 = vpop.f32.mrb[0].mxu0
        %v3078 = vadd.f32 0.0, %v3077
        %v3079 = vpop.f32.mrb[0].mxu0
        %3080 = vmatprep.mubr.f32.mxu0 0.0
        %3081 = vmatmul.mubr.f32.gmra.mrb[0].mxu0 %v2896
        %v3082 = vpop.f32.mrb[0].mxu0
        %v3083 = vadd.f32 0.0, %v3082
        %v3084 = vpop.f32.mrb[0].mxu0
        %3085 = vmatprep.mubr.f32.mxu0 0.0
        %3086 = vmatmul.mubr.f32.gmra.mrb[0].mxu0 %v2899
        %v3087 = vpop.f32.mrb[0].mxu0
        %v3088 = vadd.f32 0.0, %v3087
        %v3089 = vpop.f32.mrb[0].mxu0
        %3090 = vmatprep.mubr.f32.mxu0 0.0
        %3091 = vmatmul.mubr.f32.gmra.mrb[0].mxu0 %v2902
        %v3092 = vpop.f32.mrb[0].mxu0
        %v3093 = vadd.f32 0.0, %v3092
        %v3094 = vpop.f32.mrb[0].mxu0
        %3095 = vmatprep.mubr.f32.mxu0 0.0
        %3096 = vmatmul.mubr.f32.gmra.mrb[0].mxu0 %v2905
        %v3097 = vpop.f32.mrb[0].mxu0
        %v3098 = vadd.f32 0.0, %v3097
        %v3099 = vpop.f32.mrb[0].mxu0
        %3100 = vmatprep.mubr.f32.mxu0 0.0
        %3101 = vmatmul.mubr.f32.gmra.mrb[0].mxu0 %v2908
        %v3102 = vpop.f32.mrb[0].mxu0
        %v3103 = vadd.f32 0.0, %v3102
        %v3104 = vpop.f32.mrb[0].mxu0
        %3105 = vmatprep.mubr.f32.mxu0 0.0
        %3106 = vmatmul.mubr.f32.gmra.mrb[0].mxu0 %v2911
        %v3107 = vpop.f32.mrb[0].mxu0
        %v3108 = vadd.f32 0.0, %v3107
        %v3109 = vpop.f32.mrb[0].mxu0
        %3110 = vmatprep.mubr.f32.mxu0 0.0
        %3111 = vmatmul.mubr.f32.gmra.mrb[0].mxu0 %v2914
        %v3112 = vpop.f32.mrb[0].mxu0
        %v3113 = vadd.f32 0.0, %v3112
        %v3114 = vpop.f32.mrb[0].mxu0
        %3115 = vmatprep.mubr.f32.mxu0 0.0
        %3116 = vmatmul.mubr.f32.gmra.mrb[0].mxu0 %v2917
        %v3117 = vpop.f32.mrb[0].mxu0
        %v3118 = vadd.f32 0.0, %v3117
        %v3119 = vpop.f32.mrb[0].mxu0
        %3120 = vmatprep.mubr.f32.mxu0 0.0
        %3121 = vmatmul.mubr.f32.gmra.mrb[0].mxu0 %v2920
        %v3122 = vpop.f32.mrb[0].mxu0
        %v3123 = vadd.f32 0.0, %v3122
        %v3124 = vpop.f32.mrb[0].mxu0
        %3125 = vmatprep.mubr.f32.mxu0 0.0
        %3126 = vmatmul.mubr.f32.gmra.mrb[0].mxu0 %v2923
        %v3127 = vpop.f32.mrb[0].mxu0
        %v3128 = vadd.f32 0.0, %v3127
        %v3129 = vpop.f32.mrb[0].mxu0
        %3130 = vmatprep.mubr.f32.mxu0 0.0
        %3131 = vmatmul.mubr.f32.gmra.mrb[0].mxu0 %v2926
        %v3132 = vpop.f32.mrb[0].mxu0
        %v3133 = vadd.f32 0.0, %v3132
        %v3134 = vpop.f32.mrb[0].mxu0
        %3135 = vmatprep.mubr.f32.mxu0 0.0
        %3136 = vmatmul.mubr.f32.gmra.mrb[0].mxu0 %v2929
        %v3137 = vpop.f32.mrb[0].mxu0
        %v3138 = vadd.f32 0.0, %v3137
        %v3139 = vpop.f32.mrb[0].mxu0
        %3140 = vmatprep.mubr.f32.mxu0 0.0
        %3141 = vmatmul.mubr.f32.gmra.mrb[0].mxu0 %v2932
        %v3142 = vpop.f32.mrb[0].mxu0
        %v3143 = vadd.f32 0.0, %v3142
        %v3144 = vpop.f32.mrb[0].mxu0
        %3145 = vmatprep.mubr.f32.mxu0 0.0
        %3146 = vmatmul.mubr.f32.gmra.mrb[0].mxu0 %v2935
        %v3147 = vpop.f32.mrb[0].mxu0
        %v3148 = vadd.f32 0.0, %v3147
        %v3149 = vpop.f32.mrb[0].mxu0
        %3150 = vmatprep.mubr.f32.mxu0 0.0
        %3151 = vmatmul.mubr.f32.gmra.mrb[0].mxu0 %v2938
        %v3152 = vpop.f32.mrb[0].mxu0
        %v3153 = vadd.f32 0.0, %v3152
        %v3154 = vpop.f32.mrb[0].mxu0
        %3155 = vmatprep.mubr.f32.mxu0 0.0
        %3156 = vmatmul.mubr.f32.gmra.mrb[0].mxu0 %v2941
        %v3157 = vpop.f32.mrb[0].mxu0
        %v3158 = vadd.f32 0.0, %v3157
        %v3159 = vpop.f32.mrb[0].mxu0
        %3160 = vmatprep.mubr.f32.mxu0 0.0
        %3161 = vmatmul.mubr.f32.gmra.mrb[0].mxu0 %v2944
        %v3162 = vpop.f32.mrb[0].mxu0
        %v3163 = vadd.f32 0.0, %v3162
        %v3164 = vpop.f32.mrb[0].mxu0
        %3165 = vmatprep.mubr.f32.mxu0 0.0
        %3166 = vmatmul.mubr.f32.gmra.mrb[0].mxu0 %v2947
        %v3167 = vpop.f32.mrb[0].mxu0
        %v3168 = vadd.f32 0.0, %v3167
        %v3169 = vpop.f32.mrb[0].mxu0
        %3170 = vmatprep.mubr.f32.mxu0 0.0
        %3171 = vmatmul.mubr.f32.gmra.mrb[0].mxu0 %v2950
        %v3172 = vpop.f32.mrb[0].mxu0
        %v3173 = vadd.f32 0.0, %v3172
        %v3174 = vpop.f32.mrb[0].mxu0
        %3175 = vmatprep.mubr.f32.mxu0 0.0
        %3176 = vmatmul.mubr.f32.gmra.mrb[0].mxu0 %v2953
        %v3177 = vpop.f32.mrb[0].mxu0
        %v3178 = vadd.f32 0.0, %v3177
        %v3179 = vpop.f32.mrb[0].mxu0
        %3180 = vmatprep.mubr.f32.mxu0 0.0
        %3181 = vmatmul.mubr.f32.gmra.mrb[0].mxu0 %v2956
        %v3182 = vpop.f32.mrb[0].mxu0
        %v3183 = vadd.f32 0.0, %v3182
        %v3184 = vpop.f32.mrb[0].mxu0
        %3185 = vdwg.mxu0
        %v3186 = vadd.f32 %v2795, %v3028
        %v3187 = vadd.f32 %v2796, %v3033
        %v3188 = vadd.f32 %v2797, %v3038
        %v3189 = vadd.f32 %v2798, %v3043
        %v3190 = vadd.f32 %v2799, %v3048
        %v3191 = vadd.f32 %v2800, %v3053
        %v3192 = vadd.f32 %v2801, %v3058
        %v3193 = vadd.f32 %v2802, %v3063
        %v3194 = vadd.f32 %v2803, %v3068
        %v3195 = vadd.f32 %v2804, %v3073
        %v3196 = vadd.f32 %v2805, %v3078
        %v3197 = vadd.f32 %v2806, %v3083
        %v3198 = vadd.f32 %v2807, %v3088
        %v3199 = vadd.f32 %v2808, %v3093
        %v3200 = vadd.f32 %v2809, %v3098
        %v3201 = vadd.f32 %v2810, %v3103
        %v3202 = vadd.f32 %v2811, %v3108
        %v3203 = vadd.f32 %v2812, %v3113
        %v3204 = vadd.f32 %v2813, %v3118
        %v3205 = vadd.f32 %v2814, %v3123
        %v3206 = vadd.f32 %v2815, %v3128
        %v3207 = vadd.f32 %v2816, %v3133
        %v3208 = vadd.f32 %v2817, %v3138
        %v3209 = vadd.f32 %v2818, %v3143
        %v3210 = vadd.f32 %v2819, %v3148
        %v3211 = vadd.f32 %v2820, %v3153
        %v3212 = vadd.f32 %v2821, %v3158
        %v3213 = vadd.f32 %v2822, %v3163
        %v3214 = vadd.f32 %v2823, %v3168
        %v3215 = vadd.f32 %v2824, %v3173
        %v3216 = vadd.f32 %v2825, %v3178
        %v3217 = vadd.f32 %v2826, %v3183
        %v3218 = vld [vmem:[%s2827 + $0x1] sm:$0xff]
        %v3219 = vld [vmem:[%s2827 + $0x9] sm:$0xff]
        %v3220 = vld [vmem:[%s2827 + $0x19] sm:$0xff]
        %v3221 = vld [vmem:[%s2827 + $0x21] sm:$0xff]
        %v3222 = vld [vmem:[%s2827 + $0x31] sm:$0xff]
        %v3223 = vld [vmem:[%s2827 + $0x39] sm:$0xff]
        %v3224 = vld [vmem:[%s2827 + $0x49] sm:$0xff]
        %v3225 = vld [vmem:[%s2827 + $0x51] sm:$0xff]
        %v3226 = vld [vmem:[%s2827 + $0x61] sm:$0xff]
        %v3227 = vld [vmem:[%s2827 + $0x69] sm:$0xff]
        %v3228 = vld [vmem:[%s2827 + $0x79] sm:$0xff]
        %v3229 = vld [vmem:[%s2827 + $0x81] sm:$0xff]
        %v3230 = vld [vmem:[%s2827 + $0x91] sm:$0xff]
        %v3231 = vld [vmem:[%s2827 + $0x99] sm:$0xff]
        %v3232 = vld [vmem:[%s2827 + $0xa9] sm:$0xff]
        %v3233 = vld [vmem:[%s2827 + $0xb1] sm:$0xff]
        %v3234 = vld [vmem:[%s2827 + $0xc1] sm:$0xff]
        %v3235 = vld [vmem:[%s2827 + $0xc9] sm:$0xff]
        %v3236 = vld [vmem:[%s2827 + $0xd9] sm:$0xff]
        %v3237 = vld [vmem:[%s2827 + $0xe1] sm:$0xff]
        %v3238 = vld [vmem:[%s2827 + $0xf1] sm:$0xff]
        %v3239 = vld [vmem:[%s2827 + $0xf9] sm:$0xff]
        %v3240 = vld [vmem:[%s2827 + $0x109] sm:$0xff]
        %v3241 = vld [vmem:[%s2827 + $0x111] sm:$0xff]
        %v3242 = vld [vmem:[%s2827 + $0x121] sm:$0xff]
        %v3243 = vld [vmem:[%s2827 + $0x129] sm:$0xff]
        %v3244 = vld [vmem:[%s2827 + $0x139] sm:$0xff]
        %v3245 = vld [vmem:[%s2827 + $0x141] sm:$0xff]
        %v3246 = vld [vmem:[%s2827 + $0x151] sm:$0xff]
        %v3247 = vld [vmem:[%s2827 + $0x159] sm:$0xff]
        %v3248 = vld [vmem:[%s2827 + $0x169] sm:$0xff]
        %v3249 = vld [vmem:[%s2827 + $0x171] sm:$0xff]
        %s3250 = scalar_lea.vmem %s1, 28
        %v3251 = vld [vmem:[%s3250] sm:$0xf]
        %v3253 = vsel %vm354, %v3218, 0
        %v3256 = vsel %vm354, %v3219, 0
        %v3259 = vsel %vm354, %v3220, 0
        %v3262 = vsel %vm354, %v3221, 0
        %v3265 = vsel %vm354, %v3222, 0
        %v3268 = vsel %vm354, %v3223, 0
        %v3271 = vsel %vm354, %v3224, 0
        %v3274 = vsel %vm354, %v3225, 0
        %v3277 = vsel %vm354, %v3226, 0
        %v3280 = vsel %vm354, %v3227, 0
        %v3283 = vsel %vm354, %v3228, 0
        %v3286 = vsel %vm354, %v3229, 0
        %v3289 = vsel %vm354, %v3230, 0
        %v3292 = vsel %vm354, %v3231, 0
        %v3295 = vsel %vm354, %v3232, 0
        %v3298 = vsel %vm354, %v3233, 0
        %v3301 = vsel %vm354, %v3234, 0
        %v3304 = vsel %vm354, %v3235, 0
        %v3307 = vsel %vm354, %v3236, 0
        %v3310 = vsel %vm354, %v3237, 0
        %v3313 = vsel %vm354, %v3238, 0
        %v3316 = vsel %vm354, %v3239, 0
        %v3319 = vsel %vm354, %v3240, 0
        %v3322 = vsel %vm354, %v3241, 0
        %v3325 = vsel %vm354, %v3242, 0
        %v3328 = vsel %vm354, %v3243, 0
        %v3331 = vsel %vm354, %v3244, 0
        %v3334 = vsel %vm354, %v3245, 0
        %v3337 = vsel %vm354, %v3246, 0
        %v3340 = vsel %vm354, %v3247, 0
        %v3343 = vsel %vm354, %v3248, 0
        %v3346 = vsel %vm354, %v3249, 0
        %v3349 = vsel %vm714, %v3251, 0
        %3351 = vmatprep.subr.mxu0 0.0
        %3352 = vmatpush1.msra.mxu0 %v3349
        %3353 = vmatprep.subr.mxu0 0.0
        %3354 = vmatpush1.msra.mxu0 0.0
        %3355 = vmatprep.subr.mxu0 0.0
        %3356 = vmatpush1.msra.mxu0 0.0
        %3357 = vmatprep.subr.mxu0 0.0
        %3358 = vmatpush1.msra.mxu0 0.0
        %3359 = vmatprep.subr.mxu0 0.0
        %3360 = vmatpush1.msra.mxu0 0.0
        %3361 = vmatprep.subr.mxu0 0.0
        %3362 = vmatpush1.msra.mxu0 0.0
        %3363 = vmatprep.subr.mxu0 0.0
        %3364 = vmatpush1.msra.mxu0 0.0
        %3365 = vmatprep.subr.mxu0 0.0
        %3366 = vmatpush1.msra.mxu0 0.0
        %3367 = vmatprep.subr.mxu0 0.0
        %3368 = vmatpush1.msra.mxu0 0.0
        %3369 = vmatprep.subr.mxu0 0.0
        %3370 = vmatpush1.msra.mxu0 0.0
        %3371 = vmatprep.subr.mxu0 0.0
        %3372 = vmatpush1.msra.mxu0 0.0
        %3373 = vmatprep.subr.mxu0 0.0
        %3374 = vmatpush1.msra.mxu0 0.0
        %3375 = vmatprep.subr.mxu0 0.0
        %3376 = vmatpush1.msra.mxu0 0.0
        %3377 = vmatprep.subr.mxu0 0.0
        %3378 = vmatpush1.msra.mxu0 0.0
        %3379 = vmatprep.subr.mxu0 0.0
        %3380 = vmatpush1.msra.mxu0 0.0
        %3381 = vmatprep.subr.mxu0 0.0
        %3382 = vmatpush1.msra.mxu0 0.0
        %3383 = vmatprep.subr.mxu0 0.0
        %3384 = vmatpush1.msra.mxu0 0.0
        %3385 = vmatprep.subr.mxu0 0.0
        %3386 = vmatpush1.msra.mxu0 0.0
        %3387 = vmatprep.subr.mxu0 0.0
        %3388 = vmatpush1.msra.mxu0 0.0
        %3389 = vmatprep.subr.mxu0 0.0
        %3390 = vmatpush1.msra.mxu0 0.0
        %3391 = vmatprep.subr.mxu0 0.0
        %3392 = vmatpush1.msra.mxu0 0.0
        %3393 = vmatprep.subr.mxu0 0.0
        %3394 = vmatpush1.msra.mxu0 0.0
        %3395 = vmatprep.subr.mxu0 0.0
        %3396 = vmatpush1.msra.mxu0 0.0
        %3397 = vmatprep.subr.mxu0 0.0
        %3398 = vmatpush1.msra.mxu0 0.0
        %3399 = vmatprep.subr.mxu0 0.0
        %3400 = vmatpush1.msra.mxu0 0.0
        %3401 = vmatprep.subr.mxu0 0.0
        %3402 = vmatpush1.msra.mxu0 0.0
        %3403 = vmatprep.subr.mxu0 0.0
        %3404 = vmatpush1.msra.mxu0 0.0
        %3405 = vmatprep.subr.mxu0 0.0
        %3406 = vmatpush1.msra.mxu0 0.0
        %3407 = vmatprep.subr.mxu0 0.0
        %3408 = vmatpush1.msra.mxu0 0.0
        %3409 = vmatprep.subr.mxu0 0.0
        %3410 = vmatpush1.msra.mxu0 0.0
        %3411 = vmatprep.subr.mxu0 0.0
        %3412 = vmatpush1.msra.mxu0 0.0
        %3413 = vmatprep.subr.mxu0 0.0
        %3414 = vmatpush1.msra.mxu0 0.0
        %3415 = vmatprep.mubr.f32.mxu0 0.0
        %3416 = vmatmul.mubr.f32.gmra.mrb[0].mxu0 %v3253
        %v3417 = vpop.f32.mrb[0].mxu0
        %v3418 = vadd.f32 0.0, %v3417
        %v3419 = vpop.f32.mrb[0].mxu0
        %3420 = vmatprep.mubr.f32.mxu0 0.0
        %3421 = vmatmul.mubr.f32.gmra.mrb[0].mxu0 %v3256
        %v3422 = vpop.f32.mrb[0].mxu0
        %v3423 = vadd.f32 0.0, %v3422
        %v3424 = vpop.f32.mrb[0].mxu0
        %3425 = vmatprep.mubr.f32.mxu0 0.0
        %3426 = vmatmul.mubr.f32.gmra.mrb[0].mxu0 %v3259
        %v3427 = vpop.f32.mrb[0].mxu0
        %v3428 = vadd.f32 0.0, %v3427
        %v3429 = vpop.f32.mrb[0].mxu0
        %3430 = vmatprep.mubr.f32.mxu0 0.0
        %3431 = vmatmul.mubr.f32.gmra.mrb[0].mxu0 %v3262
        %v3432 = vpop.f32.mrb[0].mxu0
        %v3433 = vadd.f32 0.0, %v3432
        %v3434 = vpop.f32.mrb[0].mxu0
        %3435 = vmatprep.mubr.f32.mxu0 0.0
        %3436 = vmatmul.mubr.f32.gmra.mrb[0].mxu0 %v3265
        %v3437 = vpop.f32.mrb[0].mxu0
        %v3438 = vadd.f32 0.0, %v3437
        %v3439 = vpop.f32.mrb[0].mxu0
        %3440 = vmatprep.mubr.f32.mxu0 0.0
        %3441 = vmatmul.mubr.f32.gmra.mrb[0].mxu0 %v3268
        %v3442 = vpop.f32.mrb[0].mxu0
        %v3443 = vadd.f32 0.0, %v3442
        %v3444 = vpop.f32.mrb[0].mxu0
        %3445 = vmatprep.mubr.f32.mxu0 0.0
        %3446 = vmatmul.mubr.f32.gmra.mrb[0].mxu0 %v3271
        %v3447 = vpop.f32.mrb[0].mxu0
        %v3448 = vadd.f32 0.0, %v3447
        %v3449 = vpop.f32.mrb[0].mxu0
        %3450 = vmatprep.mubr.f32.mxu0 0.0
        %3451 = vmatmul.mubr.f32.gmra.mrb[0].mxu0 %v3274
        %v3452 = vpop.f32.mrb[0].mxu0
        %v3453 = vadd.f32 0.0, %v3452
        %v3454 = vpop.f32.mrb[0].mxu0
        %3455 = vmatprep.mubr.f32.mxu0 0.0
        %3456 = vmatmul.mubr.f32.gmra.mrb[0].mxu0 %v3277
        %v3457 = vpop.f32.mrb[0].mxu0
        %v3458 = vadd.f32 0.0, %v3457
        %v3459 = vpop.f32.mrb[0].mxu0
        %3460 = vmatprep.mubr.f32.mxu0 0.0
        %3461 = vmatmul.mubr.f32.gmra.mrb[0].mxu0 %v3280
        %v3462 = vpop.f32.mrb[0].mxu0
        %v3463 = vadd.f32 0.0, %v3462
        %v3464 = vpop.f32.mrb[0].mxu0
        %3465 = vmatprep.mubr.f32.mxu0 0.0
        %3466 = vmatmul.mubr.f32.gmra.mrb[0].mxu0 %v3283
        %v3467 = vpop.f32.mrb[0].mxu0
        %v3468 = vadd.f32 0.0, %v3467
        %v3469 = vpop.f32.mrb[0].mxu0
        %3470 = vmatprep.mubr.f32.mxu0 0.0
        %3471 = vmatmul.mubr.f32.gmra.mrb[0].mxu0 %v3286
        %v3472 = vpop.f32.mrb[0].mxu0
        %v3473 = vadd.f32 0.0, %v3472
        %v3474 = vpop.f32.mrb[0].mxu0
        %3475 = vmatprep.mubr.f32.mxu0 0.0
        %3476 = vmatmul.mubr.f32.gmra.mrb[0].mxu0 %v3289
        %v3477 = vpop.f32.mrb[0].mxu0
        %v3478 = vadd.f32 0.0, %v3477
        %v3479 = vpop.f32.mrb[0].mxu0
        %3480 = vmatprep.mubr.f32.mxu0 0.0
        %3481 = vmatmul.mubr.f32.gmra.mrb[0].mxu0 %v3292
        %v3482 = vpop.f32.mrb[0].mxu0
        %v3483 = vadd.f32 0.0, %v3482
        %v3484 = vpop.f32.mrb[0].mxu0
        %3485 = vmatprep.mubr.f32.mxu0 0.0
        %3486 = vmatmul.mubr.f32.gmra.mrb[0].mxu0 %v3295
        %v3487 = vpop.f32.mrb[0].mxu0
        %v3488 = vadd.f32 0.0, %v3487
        %v3489 = vpop.f32.mrb[0].mxu0
        %3490 = vmatprep.mubr.f32.mxu0 0.0
        %3491 = vmatmul.mubr.f32.gmra.mrb[0].mxu0 %v3298
        %v3492 = vpop.f32.mrb[0].mxu0
        %v3493 = vadd.f32 0.0, %v3492
        %v3494 = vpop.f32.mrb[0].mxu0
        %3495 = vmatprep.mubr.f32.mxu0 0.0
        %3496 = vmatmul.mubr.f32.gmra.mrb[0].mxu0 %v3301
        %v3497 = vpop.f32.mrb[0].mxu0
        %v3498 = vadd.f32 0.0, %v3497
        %v3499 = vpop.f32.mrb[0].mxu0
        %3500 = vmatprep.mubr.f32.mxu0 0.0
        %3501 = vmatmul.mubr.f32.gmra.mrb[0].mxu0 %v3304
        %v3502 = vpop.f32.mrb[0].mxu0
        %v3503 = vadd.f32 0.0, %v3502
        %v3504 = vpop.f32.mrb[0].mxu0
        %3505 = vmatprep.mubr.f32.mxu0 0.0
        %3506 = vmatmul.mubr.f32.gmra.mrb[0].mxu0 %v3307
        %v3507 = vpop.f32.mrb[0].mxu0
        %v3508 = vadd.f32 0.0, %v3507
        %v3509 = vpop.f32.mrb[0].mxu0
        %3510 = vmatprep.mubr.f32.mxu0 0.0
        %3511 = vmatmul.mubr.f32.gmra.mrb[0].mxu0 %v3310
        %v3512 = vpop.f32.mrb[0].mxu0
        %v3513 = vadd.f32 0.0, %v3512
        %v3514 = vpop.f32.mrb[0].mxu0
        %3515 = vmatprep.mubr.f32.mxu0 0.0
        %3516 = vmatmul.mubr.f32.gmra.mrb[0].mxu0 %v3313
        %v3517 = vpop.f32.mrb[0].mxu0
        %v3518 = vadd.f32 0.0, %v3517
        %v3519 = vpop.f32.mrb[0].mxu0
        %3520 = vmatprep.mubr.f32.mxu0 0.0
        %3521 = vmatmul.mubr.f32.gmra.mrb[0].mxu0 %v3316
        %v3522 = vpop.f32.mrb[0].mxu0
        %v3523 = vadd.f32 0.0, %v3522
        %v3524 = vpop.f32.mrb[0].mxu0
        %3525 = vmatprep.mubr.f32.mxu0 0.0
        %3526 = vmatmul.mubr.f32.gmra.mrb[0].mxu0 %v3319
        %v3527 = vpop.f32.mrb[0].mxu0
        %v3528 = vadd.f32 0.0, %v3527
        %v3529 = vpop.f32.mrb[0].mxu0
        %3530 = vmatprep.mubr.f32.mxu0 0.0
        %3531 = vmatmul.mubr.f32.gmra.mrb[0].mxu0 %v3322
        %v3532 = vpop.f32.mrb[0].mxu0
        %v3533 = vadd.f32 0.0, %v3532
        %v3534 = vpop.f32.mrb[0].mxu0
        %3535 = vmatprep.mubr.f32.mxu0 0.0
        %3536 = vmatmul.mubr.f32.gmra.mrb[0].mxu0 %v3325
        %v3537 = vpop.f32.mrb[0].mxu0
        %v3538 = vadd.f32 0.0, %v3537
        %v3539 = vpop.f32.mrb[0].mxu0
        %3540 = vmatprep.mubr.f32.mxu0 0.0
        %3541 = vmatmul.mubr.f32.gmra.mrb[0].mxu0 %v3328
        %v3542 = vpop.f32.mrb[0].mxu0
        %v3543 = vadd.f32 0.0, %v3542
        %v3544 = vpop.f32.mrb[0].mxu0
        %3545 = vmatprep.mubr.f32.mxu0 0.0
        %3546 = vmatmul.mubr.f32.gmra.mrb[0].mxu0 %v3331
        %v3547 = vpop.f32.mrb[0].mxu0
        %v3548 = vadd.f32 0.0, %v3547
        %v3549 = vpop.f32.mrb[0].mxu0
        %3550 = vmatprep.mubr.f32.mxu0 0.0
        %3551 = vmatmul.mubr.f32.gmra.mrb[0].mxu0 %v3334
        %v3552 = vpop.f32.mrb[0].mxu0
        %v3553 = vadd.f32 0.0, %v3552
        %v3554 = vpop.f32.mrb[0].mxu0
        %3555 = vmatprep.mubr.f32.mxu0 0.0
        %3556 = vmatmul.mubr.f32.gmra.mrb[0].mxu0 %v3337
        %v3557 = vpop.f32.mrb[0].mxu0
        %v3558 = vadd.f32 0.0, %v3557
        %v3559 = vpop.f32.mrb[0].mxu0
        %3560 = vmatprep.mubr.f32.mxu0 0.0
        %3561 = vmatmul.mubr.f32.gmra.mrb[0].mxu0 %v3340
        %v3562 = vpop.f32.mrb[0].mxu0
        %v3563 = vadd.f32 0.0, %v3562
        %v3564 = vpop.f32.mrb[0].mxu0
        %3565 = vmatprep.mubr.f32.mxu0 0.0
        %3566 = vmatmul.mubr.f32.gmra.mrb[0].mxu0 %v3343
        %v3567 = vpop.f32.mrb[0].mxu0
        %v3568 = vadd.f32 0.0, %v3567
        %v3569 = vpop.f32.mrb[0].mxu0
        %3570 = vmatprep.mubr.f32.mxu0 0.0
        %3571 = vmatmul.mubr.f32.gmra.mrb[0].mxu0 %v3346
        %v3572 = vpop.f32.mrb[0].mxu0
        %v3573 = vadd.f32 0.0, %v3572
        %v3574 = vpop.f32.mrb[0].mxu0
        %3575 = vdwg.mxu0
        %v3576 = vadd.f32 %v3186, %v3418
        %v3577 = vadd.f32 %v3187, %v3423
        %v3578 = vadd.f32 %v3188, %v3428
        %v3579 = vadd.f32 %v3189, %v3433
        %v3580 = vadd.f32 %v3190, %v3438
        %v3581 = vadd.f32 %v3191, %v3443
        %v3582 = vadd.f32 %v3192, %v3448
        %v3583 = vadd.f32 %v3193, %v3453
        %v3584 = vadd.f32 %v3194, %v3458
        %v3585 = vadd.f32 %v3195, %v3463
        %v3586 = vadd.f32 %v3196, %v3468
        %v3587 = vadd.f32 %v3197, %v3473
        %v3588 = vadd.f32 %v3198, %v3478
        %v3589 = vadd.f32 %v3199, %v3483
        %v3590 = vadd.f32 %v3200, %v3488
        %v3591 = vadd.f32 %v3201, %v3493
        %v3592 = vadd.f32 %v3202, %v3498
        %v3593 = vadd.f32 %v3203, %v3503
        %v3594 = vadd.f32 %v3204, %v3508
        %v3595 = vadd.f32 %v3205, %v3513
        %v3596 = vadd.f32 %v3206, %v3518
        %v3597 = vadd.f32 %v3207, %v3523
        %v3598 = vadd.f32 %v3208, %v3528
        %v3599 = vadd.f32 %v3209, %v3533
        %v3600 = vadd.f32 %v3210, %v3538
        %v3601 = vadd.f32 %v3211, %v3543
        %v3602 = vadd.f32 %v3212, %v3548
        %v3603 = vadd.f32 %v3213, %v3553
        %v3604 = vadd.f32 %v3214, %v3558
        %v3605 = vadd.f32 %v3215, %v3563
        %v3606 = vadd.f32 %v3216, %v3568
        %v3607 = vadd.f32 %v3217, %v3573
        %v3608 = vld [vmem:[%s2827 + $0x2] sm:$0xff]
        %v3609 = vld [vmem:[%s2827 + $0xa] sm:$0xff]
        %v3610 = vld [vmem:[%s2827 + $0x1a] sm:$0xff]
        %v3611 = vld [vmem:[%s2827 + $0x22] sm:$0xff]
        %v3612 = vld [vmem:[%s2827 + $0x32] sm:$0xff]
        %v3613 = vld [vmem:[%s2827 + $0x3a] sm:$0xff]
        %v3614 = vld [vmem:[%s2827 + $0x4a] sm:$0xff]
        %v3615 = vld [vmem:[%s2827 + $0x52] sm:$0xff]
        %v3616 = vld [vmem:[%s2827 + $0x62] sm:$0xff]
        %v3617 = vld [vmem:[%s2827 + $0x6a] sm:$0xff]
        %v3618 = vld [vmem:[%s2827 + $0x7a] sm:$0xff]
        %v3619 = vld [vmem:[%s2827 + $0x82] sm:$0xff]
        %v3620 = vld [vmem:[%s2827 + $0x92] sm:$0xff]
        %v3621 = vld [vmem:[%s2827 + $0x9a] sm:$0xff]
        %v3622 = vld [vmem:[%s2827 + $0xaa] sm:$0xff]
        %v3623 = vld [vmem:[%s2827 + $0xb2] sm:$0xff]
        %v3624 = vld [vmem:[%s2827 + $0xc2] sm:$0xff]
        %v3625 = vld [vmem:[%s2827 + $0xca] sm:$0xff]
        %v3626 = vld [vmem:[%s2827 + $0xda] sm:$0xff]
        %v3627 = vld [vmem:[%s2827 + $0xe2] sm:$0xff]
        %v3628 = vld [vmem:[%s2827 + $0xf2] sm:$0xff]
        %v3629 = vld [vmem:[%s2827 + $0xfa] sm:$0xff]
        %v3630 = vld [vmem:[%s2827 + $0x10a] sm:$0xff]
        %v3631 = vld [vmem:[%s2827 + $0x112] sm:$0xff]
        %v3632 = vld [vmem:[%s2827 + $0x122] sm:$0xff]
        %v3633 = vld [vmem:[%s2827 + $0x12a] sm:$0xff]
        %v3634 = vld [vmem:[%s2827 + $0x13a] sm:$0xff]
        %v3635 = vld [vmem:[%s2827 + $0x142] sm:$0xff]
        %v3636 = vld [vmem:[%s2827 + $0x152] sm:$0xff]
        %v3637 = vld [vmem:[%s2827 + $0x15a] sm:$0xff]
        %v3638 = vld [vmem:[%s2827 + $0x16a] sm:$0xff]
        %v3639 = vld [vmem:[%s2827 + $0x172] sm:$0xff]
        %s3640 = scalar_lea.vmem %s1, 32
        %v3641 = vld [vmem:[%s3640] sm:$0xf]
        %v3643 = vsel %vm354, %v3608, 0
        %v3646 = vsel %vm354, %v3609, 0
        %v3649 = vsel %vm354, %v3610, 0
        %v3652 = vsel %vm354, %v3611, 0
        %v3655 = vsel %vm354, %v3612, 0
        %v3658 = vsel %vm354, %v3613, 0
        %v3661 = vsel %vm354, %v3614, 0
        %v3664 = vsel %vm354, %v3615, 0
        %v3667 = vsel %vm354, %v3616, 0
        %v3670 = vsel %vm354, %v3617, 0
        %v3673 = vsel %vm354, %v3618, 0
        %v3676 = vsel %vm354, %v3619, 0
        %v3679 = vsel %vm354, %v3620, 0
        %v3682 = vsel %vm354, %v3621, 0
        %v3685 = vsel %vm354, %v3622, 0
        %v3688 = vsel %vm354, %v3623, 0
        %v3691 = vsel %vm354, %v3624, 0
        %v3694 = vsel %vm354, %v3625, 0
        %v3697 = vsel %vm354, %v3626, 0
        %v3700 = vsel %vm354, %v3627, 0
        %v3703 = vsel %vm354, %v3628, 0
        %v3706 = vsel %vm354, %v3629, 0
        %v3709 = vsel %vm354, %v3630, 0
        %v3712 = vsel %vm354, %v3631, 0
        %v3715 = vsel %vm354, %v3632, 0
        %v3718 = vsel %vm354, %v3633, 0
        %v3721 = vsel %vm354, %v3634, 0
        %v3724 = vsel %vm354, %v3635, 0
        %v3727 = vsel %vm354, %v3636, 0
        %v3730 = vsel %vm354, %v3637, 0
        %v3733 = vsel %vm354, %v3638, 0
        %v3736 = vsel %vm354, %v3639, 0
        %v3739 = vsel %vm714, %v3641, 0
        %3741 = vmatprep.subr.mxu0 0.0
        %3742 = vmatpush1.msra.mxu0 %v3739
        %3743 = vmatprep.subr.mxu0 0.0
        %3744 = vmatpush1.msra.mxu0 0.0
        %3745 = vmatprep.subr.mxu0 0.0
        %3746 = vmatpush1.msra.mxu0 0.0
        %3747 = vmatprep.subr.mxu0 0.0
        %3748 = vmatpush1.msra.mxu0 0.0
        %3749 = vmatprep.subr.mxu0 0.0
        %3750 = vmatpush1.msra.mxu0 0.0
        %3751 = vmatprep.subr.mxu0 0.0
        %3752 = vmatpush1.msra.mxu0 0.0
        %3753 = vmatprep.subr.mxu0 0.0
        %3754 = vmatpush1.msra.mxu0 0.0
        %3755 = vmatprep.subr.mxu0 0.0
        %3756 = vmatpush1.msra.mxu0 0.0
        %3757 = vmatprep.subr.mxu0 0.0
        %3758 = vmatpush1.msra.mxu0 0.0
        %3759 = vmatprep.subr.mxu0 0.0
        %3760 = vmatpush1.msra.mxu0 0.0
        %3761 = vmatprep.subr.mxu0 0.0
        %3762 = vmatpush1.msra.mxu0 0.0
        %3763 = vmatprep.subr.mxu0 0.0
        %3764 = vmatpush1.msra.mxu0 0.0
        %3765 = vmatprep.subr.mxu0 0.0
        %3766 = vmatpush1.msra.mxu0 0.0
        %3767 = vmatprep.subr.mxu0 0.0
        %3768 = vmatpush1.msra.mxu0 0.0
        %3769 = vmatprep.subr.mxu0 0.0
        %3770 = vmatpush1.msra.mxu0 0.0
        %3771 = vmatprep.subr.mxu0 0.0
        %3772 = vmatpush1.msra.mxu0 0.0
        %3773 = vmatprep.subr.mxu0 0.0
        %3774 = vmatpush1.msra.mxu0 0.0
        %3775 = vmatprep.subr.mxu0 0.0
        %3776 = vmatpush1.msra.mxu0 0.0
        %3777 = vmatprep.subr.mxu0 0.0
        %3778 = vmatpush1.msra.mxu0 0.0
        %3779 = vmatprep.subr.mxu0 0.0
        %3780 = vmatpush1.msra.mxu0 0.0
        %3781 = vmatprep.subr.mxu0 0.0
        %3782 = vmatpush1.msra.mxu0 0.0
        %3783 = vmatprep.subr.mxu0 0.0
        %3784 = vmatpush1.msra.mxu0 0.0
        %3785 = vmatprep.subr.mxu0 0.0
        %3786 = vmatpush1.msra.mxu0 0.0
        %3787 = vmatprep.subr.mxu0 0.0
        %3788 = vmatpush1.msra.mxu0 0.0
        %3789 = vmatprep.subr.mxu0 0.0
        %3790 = vmatpush1.msra.mxu0 0.0
        %3791 = vmatprep.subr.mxu0 0.0
        %3792 = vmatpush1.msra.mxu0 0.0
        %3793 = vmatprep.subr.mxu0 0.0
        %3794 = vmatpush1.msra.mxu0 0.0
        %3795 = vmatprep.subr.mxu0 0.0
        %3796 = vmatpush1.msra.mxu0 0.0
        %3797 = vmatprep.subr.mxu0 0.0
        %3798 = vmatpush1.msra.mxu0 0.0
        %3799 = vmatprep.subr.mxu0 0.0
        %3800 = vmatpush1.msra.mxu0 0.0
        %3801 = vmatprep.subr.mxu0 0.0
        %3802 = vmatpush1.msra.mxu0 0.0
        %3803 = vmatprep.subr.mxu0 0.0
        %3804 = vmatpush1.msra.mxu0 0.0
        %3805 = vmatprep.mubr.f32.mxu0 0.0
        %3806 = vmatmul.mubr.f32.gmra.mrb[0].mxu0 %v3643
        %v3807 = vpop.f32.mrb[0].mxu0
        %v3808 = vadd.f32 0.0, %v3807
        %v3809 = vpop.f32.mrb[0].mxu0
        %3810 = vmatprep.mubr.f32.mxu0 0.0
        %3811 = vmatmul.mubr.f32.gmra.mrb[0].mxu0 %v3646
        %v3812 = vpop.f32.mrb[0].mxu0
        %v3813 = vadd.f32 0.0, %v3812
        %v3814 = vpop.f32.mrb[0].mxu0
        %3815 = vmatprep.mubr.f32.mxu0 0.0
        %3816 = vmatmul.mubr.f32.gmra.mrb[0].mxu0 %v3649
        %v3817 = vpop.f32.mrb[0].mxu0
        %v3818 = vadd.f32 0.0, %v3817
        %v3819 = vpop.f32.mrb[0].mxu0
        %3820 = vmatprep.mubr.f32.mxu0 0.0
        %3821 = vmatmul.mubr.f32.gmra.mrb[0].mxu0 %v3652
        %v3822 = vpop.f32.mrb[0].mxu0
        %v3823 = vadd.f32 0.0, %v3822
        %v3824 = vpop.f32.mrb[0].mxu0
        %3825 = vmatprep.mubr.f32.mxu0 0.0
        %3826 = vmatmul.mubr.f32.gmra.mrb[0].mxu0 %v3655
        %v3827 = vpop.f32.mrb[0].mxu0
        %v3828 = vadd.f32 0.0, %v3827
        %v3829 = vpop.f32.mrb[0].mxu0
        %3830 = vmatprep.mubr.f32.mxu0 0.0
        %3831 = vmatmul.mubr.f32.gmra.mrb[0].mxu0 %v3658
        %v3832 = vpop.f32.mrb[0].mxu0
        %v3833 = vadd.f32 0.0, %v3832
        %v3834 = vpop.f32.mrb[0].mxu0
        %3835 = vmatprep.mubr.f32.mxu0 0.0
        %3836 = vmatmul.mubr.f32.gmra.mrb[0].mxu0 %v3661
        %v3837 = vpop.f32.mrb[0].mxu0
        %v3838 = vadd.f32 0.0, %v3837
        %v3839 = vpop.f32.mrb[0].mxu0
        %3840 = vmatprep.mubr.f32.mxu0 0.0
        %3841 = vmatmul.mubr.f32.gmra.mrb[0].mxu0 %v3664
        %v3842 = vpop.f32.mrb[0].mxu0
        %v3843 = vadd.f32 0.0, %v3842
        %v3844 = vpop.f32.mrb[0].mxu0
        %3845 = vmatprep.mubr.f32.mxu0 0.0
        %3846 = vmatmul.mubr.f32.gmra.mrb[0].mxu0 %v3667
        %v3847 = vpop.f32.mrb[0].mxu0
        %v3848 = vadd.f32 0.0, %v3847
        %v3849 = vpop.f32.mrb[0].mxu0
        %3850 = vmatprep.mubr.f32.mxu0 0.0
        %3851 = vmatmul.mubr.f32.gmra.mrb[0].mxu0 %v3670
        %v3852 = vpop.f32.mrb[0].mxu0
        %v3853 = vadd.f32 0.0, %v3852
        %v3854 = vpop.f32.mrb[0].mxu0
        %3855 = vmatprep.mubr.f32.mxu0 0.0
        %3856 = vmatmul.mubr.f32.gmra.mrb[0].mxu0 %v3673
        %v3857 = vpop.f32.mrb[0].mxu0
        %v3858 = vadd.f32 0.0, %v3857
        %v3859 = vpop.f32.mrb[0].mxu0
        %3860 = vmatprep.mubr.f32.mxu0 0.0
        %3861 = vmatmul.mubr.f32.gmra.mrb[0].mxu0 %v3676
        %v3862 = vpop.f32.mrb[0].mxu0
        %v3863 = vadd.f32 0.0, %v3862
        %v3864 = vpop.f32.mrb[0].mxu0
        %3865 = vmatprep.mubr.f32.mxu0 0.0
        %3866 = vmatmul.mubr.f32.gmra.mrb[0].mxu0 %v3679
        %v3867 = vpop.f32.mrb[0].mxu0
        %v3868 = vadd.f32 0.0, %v3867
        %v3869 = vpop.f32.mrb[0].mxu0
        %3870 = vmatprep.mubr.f32.mxu0 0.0
        %3871 = vmatmul.mubr.f32.gmra.mrb[0].mxu0 %v3682
        %v3872 = vpop.f32.mrb[0].mxu0
        %v3873 = vadd.f32 0.0, %v3872
        %v3874 = vpop.f32.mrb[0].mxu0
        %3875 = vmatprep.mubr.f32.mxu0 0.0
        %3876 = vmatmul.mubr.f32.gmra.mrb[0].mxu0 %v3685
        %v3877 = vpop.f32.mrb[0].mxu0
        %v3878 = vadd.f32 0.0, %v3877
        %v3879 = vpop.f32.mrb[0].mxu0
        %3880 = vmatprep.mubr.f32.mxu0 0.0
        %3881 = vmatmul.mubr.f32.gmra.mrb[0].mxu0 %v3688
        %v3882 = vpop.f32.mrb[0].mxu0
        %v3883 = vadd.f32 0.0, %v3882
        %v3884 = vpop.f32.mrb[0].mxu0
        %3885 = vmatprep.mubr.f32.mxu0 0.0
        %3886 = vmatmul.mubr.f32.gmra.mrb[0].mxu0 %v3691
        %v3887 = vpop.f32.mrb[0].mxu0
        %v3888 = vadd.f32 0.0, %v3887
        %v3889 = vpop.f32.mrb[0].mxu0
        %3890 = vmatprep.mubr.f32.mxu0 0.0
        %3891 = vmatmul.mubr.f32.gmra.mrb[0].mxu0 %v3694
        %v3892 = vpop.f32.mrb[0].mxu0
        %v3893 = vadd.f32 0.0, %v3892
        %v3894 = vpop.f32.mrb[0].mxu0
        %3895 = vmatprep.mubr.f32.mxu0 0.0
        %3896 = vmatmul.mubr.f32.gmra.mrb[0].mxu0 %v3697
        %v3897 = vpop.f32.mrb[0].mxu0
        %v3898 = vadd.f32 0.0, %v3897
        %v3899 = vpop.f32.mrb[0].mxu0
        %3900 = vmatprep.mubr.f32.mxu0 0.0
        %3901 = vmatmul.mubr.f32.gmra.mrb[0].mxu0 %v3700
        %v3902 = vpop.f32.mrb[0].mxu0
        %v3903 = vadd.f32 0.0, %v3902
        %v3904 = vpop.f32.mrb[0].mxu0
        %3905 = vmatprep.mubr.f32.mxu0 0.0
        %3906 = vmatmul.mubr.f32.gmra.mrb[0].mxu0 %v3703
        %v3907 = vpop.f32.mrb[0].mxu0
        %v3908 = vadd.f32 0.0, %v3907
        %v3909 = vpop.f32.mrb[0].mxu0
        %3910 = vmatprep.mubr.f32.mxu0 0.0
        %3911 = vmatmul.mubr.f32.gmra.mrb[0].mxu0 %v3706
        %v3912 = vpop.f32.mrb[0].mxu0
        %v3913 = vadd.f32 0.0, %v3912
        %v3914 = vpop.f32.mrb[0].mxu0
        %3915 = vmatprep.mubr.f32.mxu0 0.0
        %3916 = vmatmul.mubr.f32.gmra.mrb[0].mxu0 %v3709
        %v3917 = vpop.f32.mrb[0].mxu0
        %v3918 = vadd.f32 0.0, %v3917
        %v3919 = vpop.f32.mrb[0].mxu0
        %3920 = vmatprep.mubr.f32.mxu0 0.0
        %3921 = vmatmul.mubr.f32.gmra.mrb[0].mxu0 %v3712
        %v3922 = vpop.f32.mrb[0].mxu0
        %v3923 = vadd.f32 0.0, %v3922
        %v3924 = vpop.f32.mrb[0].mxu0
        %3925 = vmatprep.mubr.f32.mxu0 0.0
        %3926 = vmatmul.mubr.f32.gmra.mrb[0].mxu0 %v3715
        %v3927 = vpop.f32.mrb[0].mxu0
        %v3928 = vadd.f32 0.0, %v3927
        %v3929 = vpop.f32.mrb[0].mxu0
        %3930 = vmatprep.mubr.f32.mxu0 0.0
        %3931 = vmatmul.mubr.f32.gmra.mrb[0].mxu0 %v3718
        %v3932 = vpop.f32.mrb[0].mxu0
        %v3933 = vadd.f32 0.0, %v3932
        %v3934 = vpop.f32.mrb[0].mxu0
        %3935 = vmatprep.mubr.f32.mxu0 0.0
        %3936 = vmatmul.mubr.f32.gmra.mrb[0].mxu0 %v3721
        %v3937 = vpop.f32.mrb[0].mxu0
        %v3938 = vadd.f32 0.0, %v3937
        %v3939 = vpop.f32.mrb[0].mxu0
        %3940 = vmatprep.mubr.f32.mxu0 0.0
        %3941 = vmatmul.mubr.f32.gmra.mrb[0].mxu0 %v3724
        %v3942 = vpop.f32.mrb[0].mxu0
        %v3943 = vadd.f32 0.0, %v3942
        %v3944 = vpop.f32.mrb[0].mxu0
        %3945 = vmatprep.mubr.f32.mxu0 0.0
        %3946 = vmatmul.mubr.f32.gmra.mrb[0].mxu0 %v3727
        %v3947 = vpop.f32.mrb[0].mxu0
        %v3948 = vadd.f32 0.0, %v3947
        %v3949 = vpop.f32.mrb[0].mxu0
        %3950 = vmatprep.mubr.f32.mxu0 0.0
        %3951 = vmatmul.mubr.f32.gmra.mrb[0].mxu0 %v3730
        %v3952 = vpop.f32.mrb[0].mxu0
        %v3953 = vadd.f32 0.0, %v3952
        %v3954 = vpop.f32.mrb[0].mxu0
        %3955 = vmatprep.mubr.f32.mxu0 0.0
        %3956 = vmatmul.mubr.f32.gmra.mrb[0].mxu0 %v3733
        %v3957 = vpop.f32.mrb[0].mxu0
        %v3958 = vadd.f32 0.0, %v3957
        %v3959 = vpop.f32.mrb[0].mxu0
        %3960 = vmatprep.mubr.f32.mxu0 0.0
        %3961 = vmatmul.mubr.f32.gmra.mrb[0].mxu0 %v3736
        %v3962 = vpop.f32.mrb[0].mxu0
        %v3963 = vadd.f32 0.0, %v3962
        %v3964 = vpop.f32.mrb[0].mxu0
        %3965 = vdwg.mxu0
        %v3966 = vadd.f32 %v3576, %v3808
        %v3967 = vadd.f32 %v3577, %v3813
        %v3968 = vadd.f32 %v3578, %v3818
        %v3969 = vadd.f32 %v3579, %v3823
        %v3970 = vadd.f32 %v3580, %v3828
        %v3971 = vadd.f32 %v3581, %v3833
        %v3972 = vadd.f32 %v3582, %v3838
        %v3973 = vadd.f32 %v3583, %v3843
        %v3974 = vadd.f32 %v3584, %v3848
        %v3975 = vadd.f32 %v3585, %v3853
        %v3976 = vadd.f32 %v3586, %v3858
        %v3977 = vadd.f32 %v3587, %v3863
        %v3978 = vadd.f32 %v3588, %v3868
        %v3979 = vadd.f32 %v3589, %v3873
        %v3980 = vadd.f32 %v3590, %v3878
        %v3981 = vadd.f32 %v3591, %v3883
        %v3982 = vadd.f32 %v3592, %v3888
        %v3983 = vadd.f32 %v3593, %v3893
        %v3984 = vadd.f32 %v3594, %v3898
        %v3985 = vadd.f32 %v3595, %v3903
        %v3986 = vadd.f32 %v3596, %v3908
        %v3987 = vadd.f32 %v3597, %v3913
        %v3988 = vadd.f32 %v3598, %v3918
        %v3989 = vadd.f32 %v3599, %v3923
        %v3990 = vadd.f32 %v3600, %v3928
        %v3991 = vadd.f32 %v3601, %v3933
        %v3992 = vadd.f32 %v3602, %v3938
        %v3993 = vadd.f32 %v3603, %v3943
        %v3994 = vadd.f32 %v3604, %v3948
        %v3995 = vadd.f32 %v3605, %v3953
        %v3996 = vadd.f32 %v3606, %v3958
        %v3997 = vadd.f32 %v3607, %v3963
        %v3998 = vld [vmem:[%s2] sm:$0x1]
        %v4000 = vlaneseq
        %v4001 = vshrl.u32 %v4000, 7
        %v4002 = vsub.s32 0, %v4001
        %v4003 = vrot.slane %v3998, %v4002
        %v4005 = vadd.f32 %v3966, %v4003
        %v4006 = vadd.f32 %v3967, %v4003
        %v4007 = vadd.f32 %v3968, %v4003
        %v4008 = vadd.f32 %v3969, %v4003
        %v4009 = vadd.f32 %v3970, %v4003
        %v4010 = vadd.f32 %v3971, %v4003
        %v4011 = vadd.f32 %v3972, %v4003
        %v4012 = vadd.f32 %v3973, %v4003
        %v4013 = vadd.f32 %v3974, %v4003
        %v4014 = vadd.f32 %v3975, %v4003
        %v4015 = vadd.f32 %v3976, %v4003
        %v4016 = vadd.f32 %v3977, %v4003
        %v4017 = vadd.f32 %v3978, %v4003
        %v4018 = vadd.f32 %v3979, %v4003
        %v4019 = vadd.f32 %v3980, %v4003
        %v4020 = vadd.f32 %v3981, %v4003
        %v4021 = vadd.f32 %v3982, %v4003
        %v4022 = vadd.f32 %v3983, %v4003
        %v4023 = vadd.f32 %v3984, %v4003
        %v4024 = vadd.f32 %v3985, %v4003
        %v4025 = vadd.f32 %v3986, %v4003
        %v4026 = vadd.f32 %v3987, %v4003
        %v4027 = vadd.f32 %v3988, %v4003
        %v4028 = vadd.f32 %v3989, %v4003
        %v4029 = vadd.f32 %v3990, %v4003
        %v4030 = vadd.f32 %v3991, %v4003
        %v4031 = vadd.f32 %v3992, %v4003
        %v4032 = vadd.f32 %v3993, %v4003
        %v4033 = vadd.f32 %v3994, %v4003
        %v4034 = vadd.f32 %v3995, %v4003
        %v4035 = vadd.f32 %v3996, %v4003
        %v4036 = vadd.f32 %v3997, %v4003
        %v4037 = vmax.f32 %v4005, 0.0
        %v4038 = vmax.f32 %v4006, 0.0
        %v4039 = vmax.f32 %v4007, 0.0
        %v4040 = vmax.f32 %v4008, 0.0
        %v4041 = vmax.f32 %v4009, 0.0
        %v4042 = vmax.f32 %v4010, 0.0
        %v4043 = vmax.f32 %v4011, 0.0
        %v4044 = vmax.f32 %v4012, 0.0
        %v4045 = vmax.f32 %v4013, 0.0
        %v4046 = vmax.f32 %v4014, 0.0
        %v4047 = vmax.f32 %v4015, 0.0
        %v4048 = vmax.f32 %v4016, 0.0
        %v4049 = vmax.f32 %v4017, 0.0
        %v4050 = vmax.f32 %v4018, 0.0
        %v4051 = vmax.f32 %v4019, 0.0
        %v4052 = vmax.f32 %v4020, 0.0
        %v4053 = vmax.f32 %v4021, 0.0
        %v4054 = vmax.f32 %v4022, 0.0
        %v4055 = vmax.f32 %v4023, 0.0
        %v4056 = vmax.f32 %v4024, 0.0
        %v4057 = vmax.f32 %v4025, 0.0
        %v4058 = vmax.f32 %v4026, 0.0
        %v4059 = vmax.f32 %v4027, 0.0
        %v4060 = vmax.f32 %v4028, 0.0
        %v4061 = vmax.f32 %v4029, 0.0
        %v4062 = vmax.f32 %v4030, 0.0
        %v4063 = vmax.f32 %v4031, 0.0
        %v4064 = vmax.f32 %v4032, 0.0
        %v4065 = vmax.f32 %v4033, 0.0
        %v4066 = vmax.f32 %v4034, 0.0
        %v4067 = vmax.f32 %v4035, 0.0
        %v4068 = vmax.f32 %v4036, 0.0
        %4069 = vst.msk [vmem:[%s353] sm:$0xff] %vm410, %v4037
        %4070 = vst.msk [vmem:[%s353 + $0x8] sm:$0xff] %vm410, %v4038
        %4071 = vst.msk [vmem:[%s353 + $0x10] sm:$0xff] %vm410, %v4039
        %4072 = vst.msk [vmem:[%s353 + $0x18] sm:$0xff] %vm410, %v4040
        %4073 = vst.msk [vmem:[%s353 + $0x20] sm:$0xff] %vm410, %v4041
        %4074 = vst.msk [vmem:[%s353 + $0x28] sm:$0xff] %vm410, %v4042
        %4075 = vst.msk [vmem:[%s353 + $0x30] sm:$0xff] %vm410, %v4043
        %4076 = vst.msk [vmem:[%s353 + $0x38] sm:$0xff] %vm410, %v4044
        %4077 = vst.msk [vmem:[%s353 + $0x40] sm:$0xff] %vm410, %v4045
        %4078 = vst.msk [vmem:[%s353 + $0x48] sm:$0xff] %vm410, %v4046
        %4079 = vst.msk [vmem:[%s353 + $0x50] sm:$0xff] %vm410, %v4047
        %4080 = vst.msk [vmem:[%s353 + $0x58] sm:$0xff] %vm410, %v4048
        %4081 = vst.msk [vmem:[%s353 + $0x60] sm:$0xff] %vm410, %v4049
        %4082 = vst.msk [vmem:[%s353 + $0x68] sm:$0xff] %vm410, %v4050
        %4083 = vst.msk [vmem:[%s353 + $0x70] sm:$0xff] %vm410, %v4051
        %4084 = vst.msk [vmem:[%s353 + $0x78] sm:$0xff] %vm410, %v4052
        %4085 = vst.msk [vmem:[%s353 + $0x80] sm:$0xff] %vm410, %v4053
        %4086 = vst.msk [vmem:[%s353 + $0x88] sm:$0xff] %vm410, %v4054
        %4087 = vst.msk [vmem:[%s353 + $0x90] sm:$0xff] %vm410, %v4055
        %4088 = vst.msk [vmem:[%s353 + $0x98] sm:$0xff] %vm410, %v4056
        %4089 = vst.msk [vmem:[%s353 + $0xa0] sm:$0xff] %vm410, %v4057
        %4090 = vst.msk [vmem:[%s353 + $0xa8] sm:$0xff] %vm410, %v4058
        %4091 = vst.msk [vmem:[%s353 + $0xb0] sm:$0xff] %vm410, %v4059
        %4092 = vst.msk [vmem:[%s353 + $0xb8] sm:$0xff] %vm410, %v4060
        %4093 = vst.msk [vmem:[%s353 + $0xc0] sm:$0xff] %vm410, %v4061
        %4094 = vst.msk [vmem:[%s353 + $0xc8] sm:$0xff] %vm410, %v4062
        %4095 = vst.msk [vmem:[%s353 + $0xd0] sm:$0xff] %vm410, %v4063
        %4096 = vst.msk [vmem:[%s353 + $0xd8] sm:$0xff] %vm410, %v4064
        %4097 = vst.msk [vmem:[%s353 + $0xe0] sm:$0xff] %vm410, %v4065
        %4098 = vst.msk [vmem:[%s353 + $0xe8] sm:$0xff] %vm410, %v4066
        %4099 = vst.msk [vmem:[%s353 + $0xf0] sm:$0xff] %vm410, %v4067
        %4100 = vst.msk [vmem:[%s353 + $0xf8] sm:$0xff] %vm410, %v4068
        %s4101 = scalar_lea.vmem [#allocation3], 24
        %4102 = vst.msk [vmem:[%s4101 + $0x1] sm:$0xff] %vm410, %v4037
        %4103 = vst.msk [vmem:[%s4101 + $0x9] sm:$0xff] %vm410, %v4038
        %4104 = vst.msk [vmem:[%s4101 + $0x19] sm:$0xff] %vm410, %v4039
        %4105 = vst.msk [vmem:[%s4101 + $0x21] sm:$0xff] %vm410, %v4040
        %4106 = vst.msk [vmem:[%s4101 + $0x31] sm:$0xff] %vm410, %v4041
        %4107 = vst.msk [vmem:[%s4101 + $0x39] sm:$0xff] %vm410, %v4042
        %4108 = vst.msk [vmem:[%s4101 + $0x49] sm:$0xff] %vm410, %v4043
        %4109 = vst.msk [vmem:[%s4101 + $0x51] sm:$0xff] %vm410, %v4044
        %4110 = vst.msk [vmem:[%s4101 + $0x61] sm:$0xff] %vm410, %v4045
        %4111 = vst.msk [vmem:[%s4101 + $0x69] sm:$0xff] %vm410, %v4046
        %4112 = vst.msk [vmem:[%s4101 + $0x79] sm:$0xff] %vm410, %v4047
        %4113 = vst.msk [vmem:[%s4101 + $0x81] sm:$0xff] %vm410, %v4048
        %4114 = vst.msk [vmem:[%s4101 + $0x91] sm:$0xff] %vm410, %v4049
        %4115 = vst.msk [vmem:[%s4101 + $0x99] sm:$0xff] %vm410, %v4050
        %4116 = vst.msk [vmem:[%s4101 + $0xa9] sm:$0xff] %vm410, %v4051
        %4117 = vst.msk [vmem:[%s4101 + $0xb1] sm:$0xff] %vm410, %v4052
        %4118 = vst.msk [vmem:[%s4101 + $0xc1] sm:$0xff] %vm410, %v4053
        %4119 = vst.msk [vmem:[%s4101 + $0xc9] sm:$0xff] %vm410, %v4054
        %4120 = vst.msk [vmem:[%s4101 + $0xd9] sm:$0xff] %vm410, %v4055
        %4121 = vst.msk [vmem:[%s4101 + $0xe1] sm:$0xff] %vm410, %v4056
        %4122 = vst.msk [vmem:[%s4101 + $0xf1] sm:$0xff] %vm410, %v4057
        %4123 = vst.msk [vmem:[%s4101 + $0xf9] sm:$0xff] %vm410, %v4058
        %4124 = vst.msk [vmem:[%s4101 + $0x109] sm:$0xff] %vm410, %v4059
        %4125 = vst.msk [vmem:[%s4101 + $0x111] sm:$0xff] %vm410, %v4060
        %4126 = vst.msk [vmem:[%s4101 + $0x121] sm:$0xff] %vm410, %v4061
        %4127 = vst.msk [vmem:[%s4101 + $0x129] sm:$0xff] %vm410, %v4062
        %4128 = vst.msk [vmem:[%s4101 + $0x139] sm:$0xff] %vm410, %v4063
        %4129 = vst.msk [vmem:[%s4101 + $0x141] sm:$0xff] %vm410, %v4064
        %4130 = vst.msk [vmem:[%s4101 + $0x151] sm:$0xff] %vm410, %v4065
        %4131 = vst.msk [vmem:[%s4101 + $0x159] sm:$0xff] %vm410, %v4066
        %4132 = vst.msk [vmem:[%s4101 + $0x169] sm:$0xff] %vm410, %v4067
        %4133 = vst.msk [vmem:[%s4101 + $0x171] sm:$0xff] %vm410, %v4068
        %v4134 = vld [vmem:[#allocation3] sm:$0xff]
        %v4135 = vld [vmem:[#allocation3 + $0x8] sm:$0xff]
        %v4136 = vld [vmem:[#allocation3 + $0x18] sm:$0xff]
        %v4137 = vld [vmem:[#allocation3 + $0x20] sm:$0xff]
        %v4138 = vld [vmem:[#allocation3 + $0x30] sm:$0xff]
        %v4139 = vld [vmem:[#allocation3 + $0x38] sm:$0xff]
        %v4140 = vld [vmem:[#allocation3 + $0x48] sm:$0xff]
        %v4141 = vld [vmem:[#allocation3 + $0x50] sm:$0xff]
        %v4142 = vld [vmem:[#allocation3 + $0x60] sm:$0xff]
        %v4143 = vld [vmem:[#allocation3 + $0x68] sm:$0xff]
        %v4144 = vld [vmem:[#allocation3 + $0x78] sm:$0xff]
        %v4145 = vld [vmem:[#allocation3 + $0x80] sm:$0xff]
        %v4146 = vld [vmem:[#allocation3 + $0x90] sm:$0xff]
        %v4147 = vld [vmem:[#allocation3 + $0x98] sm:$0xff]
        %v4148 = vld [vmem:[#allocation3 + $0xa8] sm:$0xff]
        %v4149 = vld [vmem:[#allocation3 + $0xb0] sm:$0xff]
        %v4150 = vld [vmem:[#allocation3 + $0xc0] sm:$0xff]
        %v4151 = vld [vmem:[#allocation3 + $0xc8] sm:$0xff]
        %v4152 = vld [vmem:[#allocation3 + $0xd8] sm:$0xff]
        %v4153 = vld [vmem:[#allocation3 + $0xe0] sm:$0xff]
        %v4154 = vld [vmem:[#allocation3 + $0xf0] sm:$0xff]
        %v4155 = vld [vmem:[#allocation3 + $0xf8] sm:$0xff]
        %v4156 = vld [vmem:[#allocation3 + $0x108] sm:$0xff]
        %v4157 = vld [vmem:[#allocation3 + $0x110] sm:$0xff]
        %v4158 = vld [vmem:[#allocation3 + $0x120] sm:$0xff]
        %v4159 = vld [vmem:[#allocation3 + $0x128] sm:$0xff]
        %v4160 = vld [vmem:[#allocation3 + $0x138] sm:$0xff]
        %v4161 = vld [vmem:[#allocation3 + $0x140] sm:$0xff]
        %v4162 = vld [vmem:[#allocation3 + $0x150] sm:$0xff]
        %v4163 = vld [vmem:[#allocation3 + $0x158] sm:$0xff]
        %v4164 = vld [vmem:[#allocation3 + $0x168] sm:$0xff]
        %v4165 = vld [vmem:[#allocation3 + $0x170] sm:$0xff]
        %v4166 = vld [vmem:[%s3] sm:$0xff]
        %v4167 = vld [vmem:[#allocation3 + $0x1] sm:$0xff]
        %v4168 = vld [vmem:[#allocation3 + $0x9] sm:$0xff]
        %v4169 = vld [vmem:[#allocation3 + $0x19] sm:$0xff]
        %v4170 = vld [vmem:[#allocation3 + $0x21] sm:$0xff]
        %v4171 = vld [vmem:[#allocation3 + $0x31] sm:$0xff]
        %v4172 = vld [vmem:[#allocation3 + $0x39] sm:$0xff]
        %v4173 = vld [vmem:[#allocation3 + $0x49] sm:$0xff]
        %v4174 = vld [vmem:[#allocation3 + $0x51] sm:$0xff]
        %v4175 = vld [vmem:[#allocation3 + $0x61] sm:$0xff]
        %v4176 = vld [vmem:[#allocation3 + $0x69] sm:$0xff]
        %v4177 = vld [vmem:[#allocation3 + $0x79] sm:$0xff]
        %v4178 = vld [vmem:[#allocation3 + $0x81] sm:$0xff]
        %v4179 = vld [vmem:[#allocation3 + $0x91] sm:$0xff]
        %v4180 = vld [vmem:[#allocation3 + $0x99] sm:$0xff]
        %v4181 = vld [vmem:[#allocation3 + $0xa9] sm:$0xff]
        %v4182 = vld [vmem:[#allocation3 + $0xb1] sm:$0xff]
        %v4183 = vld [vmem:[#allocation3 + $0xc1] sm:$0xff]
        %v4184 = vld [vmem:[#allocation3 + $0xc9] sm:$0xff]
        %v4185 = vld [vmem:[#allocation3 + $0xd9] sm:$0xff]
        %v4186 = vld [vmem:[#allocation3 + $0xe1] sm:$0xff]
        %v4187 = vld [vmem:[#allocation3 + $0xf1] sm:$0xff]
        %v4188 = vld [vmem:[#allocation3 + $0xf9] sm:$0xff]
        %v4189 = vld [vmem:[#allocation3 + $0x109] sm:$0xff]
        %v4190 = vld [vmem:[#allocation3 + $0x111] sm:$0xff]
        %v4191 = vld [vmem:[#allocation3 + $0x121] sm:$0xff]
        %v4192 = vld [vmem:[#allocation3 + $0x129] sm:$0xff]
        %v4193 = vld [vmem:[#allocation3 + $0x139] sm:$0xff]
        %v4194 = vld [vmem:[#allocation3 + $0x141] sm:$0xff]
        %v4195 = vld [vmem:[#allocation3 + $0x151] sm:$0xff]
        %v4196 = vld [vmem:[#allocation3 + $0x159] sm:$0xff]
        %v4197 = vld [vmem:[#allocation3 + $0x169] sm:$0xff]
        %v4198 = vld [vmem:[#allocation3 + $0x171] sm:$0xff]
        %s4199 = scalar_lea.vmem %s3, 8
        %v4200 = vld [vmem:[%s4199] sm:$0xff]
        %v4202 = vsel %vm410, %v4167, 0
        %v4205 = vsel %vm410, %v4168, 0
        %v4208 = vsel %vm410, %v4169, 0
        %v4211 = vsel %vm410, %v4170, 0
        %v4214 = vsel %vm410, %v4171, 0
        %v4217 = vsel %vm410, %v4172, 0
        %v4220 = vsel %vm410, %v4173, 0
        %v4223 = vsel %vm410, %v4174, 0
        %v4226 = vsel %vm410, %v4175, 0
        %v4229 = vsel %vm410, %v4176, 0
        %v4232 = vsel %vm410, %v4177, 0
        %v4235 = vsel %vm410, %v4178, 0
        %v4238 = vsel %vm410, %v4179, 0
        %v4241 = vsel %vm410, %v4180, 0
        %v4244 = vsel %vm410, %v4181, 0
        %v4247 = vsel %vm410, %v4182, 0
        %v4250 = vsel %vm410, %v4183, 0
        %v4253 = vsel %vm410, %v4184, 0
        %v4256 = vsel %vm410, %v4185, 0
        %v4259 = vsel %vm410, %v4186, 0
        %v4262 = vsel %vm410, %v4187, 0
        %v4265 = vsel %vm410, %v4188, 0
        %v4268 = vsel %vm410, %v4189, 0
        %v4271 = vsel %vm410, %v4190, 0
        %v4274 = vsel %vm410, %v4191, 0
        %v4277 = vsel %vm410, %v4192, 0
        %v4280 = vsel %vm410, %v4193, 0
        %v4283 = vsel %vm410, %v4194, 0
        %v4286 = vsel %vm410, %v4195, 0
        %v4289 = vsel %vm410, %v4196, 0
        %v4292 = vsel %vm410, %v4197, 0
        %v4295 = vsel %vm410, %v4198, 0
        %4297 = vmatprep.subr.mxu0 0.0
        %4298 = vmatpush1.msra.mxu0 %v4200
        %4299 = vmatprep.subr.mxu0 0.0
        %4300 = vmatpush1.msra.mxu0 0.0
        %4301 = vmatprep.subr.mxu0 0.0
        %4302 = vmatpush1.msra.mxu0 0.0
        %4303 = vmatprep.subr.mxu0 0.0
        %4304 = vmatpush1.msra.mxu0 0.0
        %4305 = vmatprep.subr.mxu0 0.0
        %4306 = vmatpush1.msra.mxu0 0.0
        %4307 = vmatprep.subr.mxu0 0.0
        %4308 = vmatpush1.msra.mxu0 0.0
        %4309 = vmatprep.subr.mxu0 0.0
        %4310 = vmatpush1.msra.mxu0 0.0
        %4311 = vmatprep.subr.mxu0 0.0
        %4312 = vmatpush1.msra.mxu0 0.0
        %4313 = vmatprep.subr.mxu0 0.0
        %4314 = vmatpush1.msra.mxu0 0.0
        %4315 = vmatprep.subr.mxu0 0.0
        %4316 = vmatpush1.msra.mxu0 0.0
        %4317 = vmatprep.subr.mxu0 0.0
        %4318 = vmatpush1.msra.mxu0 0.0
        %4319 = vmatprep.subr.mxu0 0.0
        %4320 = vmatpush1.msra.mxu0 0.0
        %4321 = vmatprep.subr.mxu0 0.0
        %4322 = vmatpush1.msra.mxu0 0.0
        %4323 = vmatprep.subr.mxu0 0.0
        %4324 = vmatpush1.msra.mxu0 0.0
        %4325 = vmatprep.subr.mxu0 0.0
        %4326 = vmatpush1.msra.mxu0 0.0
        %4327 = vmatprep.subr.mxu0 0.0
        %4328 = vmatpush1.msra.mxu0 0.0
        %4329 = vmatprep.subr.mxu0 0.0
        %4330 = vmatpush1.msra.mxu0 0.0
        %4331 = vmatprep.subr.mxu0 0.0
        %4332 = vmatpush1.msra.mxu0 0.0
        %4333 = vmatprep.subr.mxu0 0.0
        %4334 = vmatpush1.msra.mxu0 0.0
        %4335 = vmatprep.subr.mxu0 0.0
        %4336 = vmatpush1.msra.mxu0 0.0
        %4337 = vmatprep.subr.mxu0 0.0
        %4338 = vmatpush1.msra.mxu0 0.0
        %4339 = vmatprep.subr.mxu0 0.0
        %4340 = vmatpush1.msra.mxu0 0.0
        %4341 = vmatprep.subr.mxu0 0.0
        %4342 = vmatpush1.msra.mxu0 0.0
        %4343 = vmatprep.subr.mxu0 0.0
        %4344 = vmatpush1.msra.mxu0 0.0
        %4345 = vmatprep.subr.mxu0 0.0
        %4346 = vmatpush1.msra.mxu0 0.0
        %4347 = vmatprep.subr.mxu0 0.0
        %4348 = vmatpush1.msra.mxu0 0.0
        %4349 = vmatprep.subr.mxu0 0.0
        %4350 = vmatpush1.msra.mxu0 0.0
        %4351 = vmatprep.subr.mxu0 0.0
        %4352 = vmatpush1.msra.mxu0 0.0
        %4353 = vmatprep.subr.mxu0 0.0
        %4354 = vmatpush1.msra.mxu0 0.0
        %4355 = vmatprep.subr.mxu0 0.0
        %4356 = vmatpush1.msra.mxu0 0.0
        %4357 = vmatprep.subr.mxu0 0.0
        %4358 = vmatpush1.msra.mxu0 0.0
        %4359 = vmatprep.subr.mxu0 0.0
        %4360 = vmatpush1.msra.mxu0 0.0
        %4361 = vmatprep.mubr.f32.mxu0 0.0
        %4362 = vmatmul.mubr.f32.gmra.mrb[0].mxu0 %v4202
        %v4363 = vpop.f32.mrb[0].mxu0
        %v4364 = vadd.f32 0.0, %v4363
        %v4365 = vpop.f32.mrb[0].mxu0
        %4366 = vmatprep.mubr.f32.mxu0 0.0
        %4367 = vmatmul.mubr.f32.gmra.mrb[0].mxu0 %v4205
        %v4368 = vpop.f32.mrb[0].mxu0
        %v4369 = vadd.f32 0.0, %v4368
        %v4370 = vpop.f32.mrb[0].mxu0
        %4371 = vmatprep.mubr.f32.mxu0 0.0
        %4372 = vmatmul.mubr.f32.gmra.mrb[0].mxu0 %v4208
        %v4373 = vpop.f32.mrb[0].mxu0
        %v4374 = vadd.f32 0.0, %v4373
        %v4375 = vpop.f32.mrb[0].mxu0
        %4376 = vmatprep.mubr.f32.mxu0 0.0
        %4377 = vmatmul.mubr.f32.gmra.mrb[0].mxu0 %v4211
        %v4378 = vpop.f32.mrb[0].mxu0
        %v4379 = vadd.f32 0.0, %v4378
        %v4380 = vpop.f32.mrb[0].mxu0
        %4381 = vmatprep.mubr.f32.mxu0 0.0
        %4382 = vmatmul.mubr.f32.gmra.mrb[0].mxu0 %v4214
        %v4383 = vpop.f32.mrb[0].mxu0
        %v4384 = vadd.f32 0.0, %v4383
        %v4385 = vpop.f32.mrb[0].mxu0
        %4386 = vmatprep.mubr.f32.mxu0 0.0
        %4387 = vmatmul.mubr.f32.gmra.mrb[0].mxu0 %v4217
        %v4388 = vpop.f32.mrb[0].mxu0
        %v4389 = vadd.f32 0.0, %v4388
        %v4390 = vpop.f32.mrb[0].mxu0
        %4391 = vmatprep.mubr.f32.mxu0 0.0
        %4392 = vmatmul.mubr.f32.gmra.mrb[0].mxu0 %v4220
        %v4393 = vpop.f32.mrb[0].mxu0
        %v4394 = vadd.f32 0.0, %v4393
        %v4395 = vpop.f32.mrb[0].mxu0
        %4396 = vmatprep.mubr.f32.mxu0 0.0
        %4397 = vmatmul.mubr.f32.gmra.mrb[0].mxu0 %v4223
        %v4398 = vpop.f32.mrb[0].mxu0
        %v4399 = vadd.f32 0.0, %v4398
        %v4400 = vpop.f32.mrb[0].mxu0
        %4401 = vmatprep.mubr.f32.mxu0 0.0
        %4402 = vmatmul.mubr.f32.gmra.mrb[0].mxu0 %v4226
        %v4403 = vpop.f32.mrb[0].mxu0
        %v4404 = vadd.f32 0.0, %v4403
        %v4405 = vpop.f32.mrb[0].mxu0
        %4406 = vmatprep.mubr.f32.mxu0 0.0
        %4407 = vmatmul.mubr.f32.gmra.mrb[0].mxu0 %v4229
        %v4408 = vpop.f32.mrb[0].mxu0
        %v4409 = vadd.f32 0.0, %v4408
        %v4410 = vpop.f32.mrb[0].mxu0
        %4411 = vmatprep.mubr.f32.mxu0 0.0
        %4412 = vmatmul.mubr.f32.gmra.mrb[0].mxu0 %v4232
        %v4413 = vpop.f32.mrb[0].mxu0
        %v4414 = vadd.f32 0.0, %v4413
        %v4415 = vpop.f32.mrb[0].mxu0
        %4416 = vmatprep.mubr.f32.mxu0 0.0
        %4417 = vmatmul.mubr.f32.gmra.mrb[0].mxu0 %v4235
        %v4418 = vpop.f32.mrb[0].mxu0
        %v4419 = vadd.f32 0.0, %v4418
        %v4420 = vpop.f32.mrb[0].mxu0
        %4421 = vmatprep.mubr.f32.mxu0 0.0
        %4422 = vmatmul.mubr.f32.gmra.mrb[0].mxu0 %v4238
        %v4423 = vpop.f32.mrb[0].mxu0
        %v4424 = vadd.f32 0.0, %v4423
        %v4425 = vpop.f32.mrb[0].mxu0
        %4426 = vmatprep.mubr.f32.mxu0 0.0
        %4427 = vmatmul.mubr.f32.gmra.mrb[0].mxu0 %v4241
        %v4428 = vpop.f32.mrb[0].mxu0
        %v4429 = vadd.f32 0.0, %v4428
        %v4430 = vpop.f32.mrb[0].mxu0
        %4431 = vmatprep.mubr.f32.mxu0 0.0
        %4432 = vmatmul.mubr.f32.gmra.mrb[0].mxu0 %v4244
        %v4433 = vpop.f32.mrb[0].mxu0
        %v4434 = vadd.f32 0.0, %v4433
        %v4435 = vpop.f32.mrb[0].mxu0
        %4436 = vmatprep.mubr.f32.mxu0 0.0
        %4437 = vmatmul.mubr.f32.gmra.mrb[0].mxu0 %v4247
        %v4438 = vpop.f32.mrb[0].mxu0
        %v4439 = vadd.f32 0.0, %v4438
        %v4440 = vpop.f32.mrb[0].mxu0
        %4441 = vmatprep.mubr.f32.mxu0 0.0
        %4442 = vmatmul.mubr.f32.gmra.mrb[0].mxu0 %v4250
        %v4443 = vpop.f32.mrb[0].mxu0
        %v4444 = vadd.f32 0.0, %v4443
        %v4445 = vpop.f32.mrb[0].mxu0
        %4446 = vmatprep.mubr.f32.mxu0 0.0
        %4447 = vmatmul.mubr.f32.gmra.mrb[0].mxu0 %v4253
        %v4448 = vpop.f32.mrb[0].mxu0
        %v4449 = vadd.f32 0.0, %v4448
        %v4450 = vpop.f32.mrb[0].mxu0
        %4451 = vmatprep.mubr.f32.mxu0 0.0
        %4452 = vmatmul.mubr.f32.gmra.mrb[0].mxu0 %v4256
        %v4453 = vpop.f32.mrb[0].mxu0
        %v4454 = vadd.f32 0.0, %v4453
        %v4455 = vpop.f32.mrb[0].mxu0
        %4456 = vmatprep.mubr.f32.mxu0 0.0
        %4457 = vmatmul.mubr.f32.gmra.mrb[0].mxu0 %v4259
        %v4458 = vpop.f32.mrb[0].mxu0
        %v4459 = vadd.f32 0.0, %v4458
        %v4460 = vpop.f32.mrb[0].mxu0
        %4461 = vmatprep.mubr.f32.mxu0 0.0
        %4462 = vmatmul.mubr.f32.gmra.mrb[0].mxu0 %v4262
        %v4463 = vpop.f32.mrb[0].mxu0
        %v4464 = vadd.f32 0.0, %v4463
        %v4465 = vpop.f32.mrb[0].mxu0
        %4466 = vmatprep.mubr.f32.mxu0 0.0
        %4467 = vmatmul.mubr.f32.gmra.mrb[0].mxu0 %v4265
        %v4468 = vpop.f32.mrb[0].mxu0
        %v4469 = vadd.f32 0.0, %v4468
        %v4470 = vpop.f32.mrb[0].mxu0
        %4471 = vmatprep.mubr.f32.mxu0 0.0
        %4472 = vmatmul.mubr.f32.gmra.mrb[0].mxu0 %v4268
        %v4473 = vpop.f32.mrb[0].mxu0
        %v4474 = vadd.f32 0.0, %v4473
        %v4475 = vpop.f32.mrb[0].mxu0
        %4476 = vmatprep.mubr.f32.mxu0 0.0
        %4477 = vmatmul.mubr.f32.gmra.mrb[0].mxu0 %v4271
        %v4478 = vpop.f32.mrb[0].mxu0
        %v4479 = vadd.f32 0.0, %v4478
        %v4480 = vpop.f32.mrb[0].mxu0
        %4481 = vmatprep.mubr.f32.mxu0 0.0
        %4482 = vmatmul.mubr.f32.gmra.mrb[0].mxu0 %v4274
        %v4483 = vpop.f32.mrb[0].mxu0
        %v4484 = vadd.f32 0.0, %v4483
        %v4485 = vpop.f32.mrb[0].mxu0
        %4486 = vmatprep.mubr.f32.mxu0 0.0
        %4487 = vmatmul.mubr.f32.gmra.mrb[0].mxu0 %v4277
        %v4488 = vpop.f32.mrb[0].mxu0
        %v4489 = vadd.f32 0.0, %v4488
        %v4490 = vpop.f32.mrb[0].mxu0
        %4491 = vmatprep.mubr.f32.mxu0 0.0
        %4492 = vmatmul.mubr.f32.gmra.mrb[0].mxu0 %v4280
        %v4493 = vpop.f32.mrb[0].mxu0
        %v4494 = vadd.f32 0.0, %v4493
        %v4495 = vpop.f32.mrb[0].mxu0
        %4496 = vmatprep.mubr.f32.mxu0 0.0
        %4497 = vmatmul.mubr.f32.gmra.mrb[0].mxu0 %v4283
        %v4498 = vpop.f32.mrb[0].mxu0
        %v4499 = vadd.f32 0.0, %v4498
        %v4500 = vpop.f32.mrb[0].mxu0
        %4501 = vmatprep.mubr.f32.mxu0 0.0
        %4502 = vmatmul.mubr.f32.gmra.mrb[0].mxu0 %v4286
        %v4503 = vpop.f32.mrb[0].mxu0
        %v4504 = vadd.f32 0.0, %v4503
        %v4505 = vpop.f32.mrb[0].mxu0
        %4506 = vmatprep.mubr.f32.mxu0 0.0
        %4507 = vmatmul.mubr.f32.gmra.mrb[0].mxu0 %v4289
        %v4508 = vpop.f32.mrb[0].mxu0
        %v4509 = vadd.f32 0.0, %v4508
        %v4510 = vpop.f32.mrb[0].mxu0
        %4511 = vmatprep.mubr.f32.mxu0 0.0
        %4512 = vmatmul.mubr.f32.gmra.mrb[0].mxu0 %v4292
        %v4513 = vpop.f32.mrb[0].mxu0
        %v4514 = vadd.f32 0.0, %v4513
        %v4515 = vpop.f32.mrb[0].mxu0
        %4516 = vmatprep.mubr.f32.mxu0 0.0
        %4517 = vmatmul.mubr.f32.gmra.mrb[0].mxu0 %v4295
        %v4518 = vpop.f32.mrb[0].mxu0
        %v4519 = vadd.f32 0.0, %v4518
        %v4520 = vpop.f32.mrb[0].mxu0
        %4521 = vdwg.mxu0
        %v4523 = vsel %vm410, %v4134, 0
        %v4526 = vsel %vm410, %v4135, 0
        %v4529 = vsel %vm410, %v4136, 0
        %v4532 = vsel %vm410, %v4137, 0
        %v4535 = vsel %vm410, %v4138, 0
        %v4538 = vsel %vm410, %v4139, 0
        %v4541 = vsel %vm410, %v4140, 0
        %v4544 = vsel %vm410, %v4141, 0
        %v4547 = vsel %vm410, %v4142, 0
        %v4550 = vsel %vm410, %v4143, 0
        %v4553 = vsel %vm410, %v4144, 0
        %v4556 = vsel %vm410, %v4145, 0
        %v4559 = vsel %vm410, %v4146, 0
        %v4562 = vsel %vm410, %v4147, 0
        %v4565 = vsel %vm410, %v4148, 0
        %v4568 = vsel %vm410, %v4149, 0
        %v4571 = vsel %vm410, %v4150, 0
        %v4574 = vsel %vm410, %v4151, 0
        %v4577 = vsel %vm410, %v4152, 0
        %v4580 = vsel %vm410, %v4153, 0
        %v4583 = vsel %vm410, %v4154, 0
        %v4586 = vsel %vm410, %v4155, 0
        %v4589 = vsel %vm410, %v4156, 0
        %v4592 = vsel %vm410, %v4157, 0
        %v4595 = vsel %vm410, %v4158, 0
        %v4598 = vsel %vm410, %v4159, 0
        %v4601 = vsel %vm410, %v4160, 0
        %v4604 = vsel %vm410, %v4161, 0
        %v4607 = vsel %vm410, %v4162, 0
        %v4610 = vsel %vm410, %v4163, 0
        %v4613 = vsel %vm410, %v4164, 0
        %v4616 = vsel %vm410, %v4165, 0
        %4618 = vmatprep.subr.mxu0 0.0
        %4619 = vmatpush1.msra.mxu0 %v4166
        %4620 = vmatprep.subr.mxu0 0.0
        %4621 = vmatpush1.msra.mxu0 0.0
        %4622 = vmatprep.subr.mxu0 0.0
        %4623 = vmatpush1.msra.mxu0 0.0
        %4624 = vmatprep.subr.mxu0 0.0
        %4625 = vmatpush1.msra.mxu0 0.0
        %4626 = vmatprep.subr.mxu0 0.0
        %4627 = vmatpush1.msra.mxu0 0.0
        %4628 = vmatprep.subr.mxu0 0.0
        %4629 = vmatpush1.msra.mxu0 0.0
        %4630 = vmatprep.subr.mxu0 0.0
        %4631 = vmatpush1.msra.mxu0 0.0
        %4632 = vmatprep.subr.mxu0 0.0
        %4633 = vmatpush1.msra.mxu0 0.0
        %4634 = vmatprep.subr.mxu0 0.0
        %4635 = vmatpush1.msra.mxu0 0.0
        %4636 = vmatprep.subr.mxu0 0.0
        %4637 = vmatpush1.msra.mxu0 0.0
        %4638 = vmatprep.subr.mxu0 0.0
        %4639 = vmatpush1.msra.mxu0 0.0
        %4640 = vmatprep.subr.mxu0 0.0
        %4641 = vmatpush1.msra.mxu0 0.0
        %4642 = vmatprep.subr.mxu0 0.0
        %4643 = vmatpush1.msra.mxu0 0.0
        %4644 = vmatprep.subr.mxu0 0.0
        %4645 = vmatpush1.msra.mxu0 0.0
        %4646 = vmatprep.subr.mxu0 0.0
        %4647 = vmatpush1.msra.mxu0 0.0
        %4648 = vmatprep.subr.mxu0 0.0
        %4649 = vmatpush1.msra.mxu0 0.0
        %4650 = vmatprep.subr.mxu0 0.0
        %4651 = vmatpush1.msra.mxu0 0.0
        %4652 = vmatprep.subr.mxu0 0.0
        %4653 = vmatpush1.msra.mxu0 0.0
        %4654 = vmatprep.subr.mxu0 0.0
        %4655 = vmatpush1.msra.mxu0 0.0
        %4656 = vmatprep.subr.mxu0 0.0
        %4657 = vmatpush1.msra.mxu0 0.0
        %4658 = vmatprep.subr.mxu0 0.0
        %4659 = vmatpush1.msra.mxu0 0.0
        %4660 = vmatprep.subr.mxu0 0.0
        %4661 = vmatpush1.msra.mxu0 0.0
        %4662 = vmatprep.subr.mxu0 0.0
        %4663 = vmatpush1.msra.mxu0 0.0
        %4664 = vmatprep.subr.mxu0 0.0
        %4665 = vmatpush1.msra.mxu0 0.0
        %4666 = vmatprep.subr.mxu0 0.0
        %4667 = vmatpush1.msra.mxu0 0.0
        %4668 = vmatprep.subr.mxu0 0.0
        %4669 = vmatpush1.msra.mxu0 0.0
        %4670 = vmatprep.subr.mxu0 0.0
        %4671 = vmatpush1.msra.mxu0 0.0
        %4672 = vmatprep.subr.mxu0 0.0
        %4673 = vmatpush1.msra.mxu0 0.0
        %4674 = vmatprep.subr.mxu0 0.0
        %4675 = vmatpush1.msra.mxu0 0.0
        %4676 = vmatprep.subr.mxu0 0.0
        %4677 = vmatpush1.msra.mxu0 0.0
        %4678 = vmatprep.subr.mxu0 0.0
        %4679 = vmatpush1.msra.mxu0 0.0
        %4680 = vmatprep.subr.mxu0 0.0
        %4681 = vmatpush1.msra.mxu0 0.0
        %4682 = vmatprep.mubr.f32.mxu0 0.0
        %4683 = vmatmul.mubr.f32.gmra.mrb[0].mxu0 %v4523
        %v4684 = vpop.f32.mrb[0].mxu0
        %v4685 = vadd.f32 %v4364, %v4684
        %v4686 = vpop.f32.mrb[0].mxu0
        %4687 = vmatprep.mubr.f32.mxu0 0.0
        %4688 = vmatmul.mubr.f32.gmra.mrb[0].mxu0 %v4526
        %v4689 = vpop.f32.mrb[0].mxu0
        %v4690 = vadd.f32 %v4369, %v4689
        %v4691 = vpop.f32.mrb[0].mxu0
        %4692 = vmatprep.mubr.f32.mxu0 0.0
        %4693 = vmatmul.mubr.f32.gmra.mrb[0].mxu0 %v4529
        %v4694 = vpop.f32.mrb[0].mxu0
        %v4695 = vadd.f32 %v4374, %v4694
        %v4696 = vpop.f32.mrb[0].mxu0
        %4697 = vmatprep.mubr.f32.mxu0 0.0
        %4698 = vmatmul.mubr.f32.gmra.mrb[0].mxu0 %v4532
        %v4699 = vpop.f32.mrb[0].mxu0
        %v4700 = vadd.f32 %v4379, %v4699
        %v4701 = vpop.f32.mrb[0].mxu0
        %4702 = vmatprep.mubr.f32.mxu0 0.0
        %4703 = vmatmul.mubr.f32.gmra.mrb[0].mxu0 %v4535
        %v4704 = vpop.f32.mrb[0].mxu0
        %v4705 = vadd.f32 %v4384, %v4704
        %v4706 = vpop.f32.mrb[0].mxu0
        %4707 = vmatprep.mubr.f32.mxu0 0.0
        %4708 = vmatmul.mubr.f32.gmra.mrb[0].mxu0 %v4538
        %v4709 = vpop.f32.mrb[0].mxu0
        %v4710 = vadd.f32 %v4389, %v4709
        %v4711 = vpop.f32.mrb[0].mxu0
        %4712 = vmatprep.mubr.f32.mxu0 0.0
        %4713 = vmatmul.mubr.f32.gmra.mrb[0].mxu0 %v4541
        %v4714 = vpop.f32.mrb[0].mxu0
        %v4715 = vadd.f32 %v4394, %v4714
        %v4716 = vpop.f32.mrb[0].mxu0
        %4717 = vmatprep.mubr.f32.mxu0 0.0
        %4718 = vmatmul.mubr.f32.gmra.mrb[0].mxu0 %v4544
        %v4719 = vpop.f32.mrb[0].mxu0
        %v4720 = vadd.f32 %v4399, %v4719
        %v4721 = vpop.f32.mrb[0].mxu0
        %4722 = vmatprep.mubr.f32.mxu0 0.0
        %4723 = vmatmul.mubr.f32.gmra.mrb[0].mxu0 %v4547
        %v4724 = vpop.f32.mrb[0].mxu0
        %v4725 = vadd.f32 %v4404, %v4724
        %v4726 = vpop.f32.mrb[0].mxu0
        %4727 = vmatprep.mubr.f32.mxu0 0.0
        %4728 = vmatmul.mubr.f32.gmra.mrb[0].mxu0 %v4550
        %v4729 = vpop.f32.mrb[0].mxu0
        %v4730 = vadd.f32 %v4409, %v4729
        %v4731 = vpop.f32.mrb[0].mxu0
        %4732 = vmatprep.mubr.f32.mxu0 0.0
        %4733 = vmatmul.mubr.f32.gmra.mrb[0].mxu0 %v4553
        %v4734 = vpop.f32.mrb[0].mxu0
        %v4735 = vadd.f32 %v4414, %v4734
        %v4736 = vpop.f32.mrb[0].mxu0
        %4737 = vmatprep.mubr.f32.mxu0 0.0
        %4738 = vmatmul.mubr.f32.gmra.mrb[0].mxu0 %v4556
        %v4739 = vpop.f32.mrb[0].mxu0
        %v4740 = vadd.f32 %v4419, %v4739
        %v4741 = vpop.f32.mrb[0].mxu0
        %4742 = vmatprep.mubr.f32.mxu0 0.0
        %4743 = vmatmul.mubr.f32.gmra.mrb[0].mxu0 %v4559
        %v4744 = vpop.f32.mrb[0].mxu0
        %v4745 = vadd.f32 %v4424, %v4744
        %v4746 = vpop.f32.mrb[0].mxu0
        %4747 = vmatprep.mubr.f32.mxu0 0.0
        %4748 = vmatmul.mubr.f32.gmra.mrb[0].mxu0 %v4562
        %v4749 = vpop.f32.mrb[0].mxu0
        %v4750 = vadd.f32 %v4429, %v4749
        %v4751 = vpop.f32.mrb[0].mxu0
        %4752 = vmatprep.mubr.f32.mxu0 0.0
        %4753 = vmatmul.mubr.f32.gmra.mrb[0].mxu0 %v4565
        %v4754 = vpop.f32.mrb[0].mxu0
        %v4755 = vadd.f32 %v4434, %v4754
        %v4756 = vpop.f32.mrb[0].mxu0
        %4757 = vmatprep.mubr.f32.mxu0 0.0
        %4758 = vmatmul.mubr.f32.gmra.mrb[0].mxu0 %v4568
        %v4759 = vpop.f32.mrb[0].mxu0
        %v4760 = vadd.f32 %v4439, %v4759
        %v4761 = vpop.f32.mrb[0].mxu0
        %4762 = vmatprep.mubr.f32.mxu0 0.0
        %4763 = vmatmul.mubr.f32.gmra.mrb[0].mxu0 %v4571
        %v4764 = vpop.f32.mrb[0].mxu0
        %v4765 = vadd.f32 %v4444, %v4764
        %v4766 = vpop.f32.mrb[0].mxu0
        %4767 = vmatprep.mubr.f32.mxu0 0.0
        %4768 = vmatmul.mubr.f32.gmra.mrb[0].mxu0 %v4574
        %v4769 = vpop.f32.mrb[0].mxu0
        %v4770 = vadd.f32 %v4449, %v4769
        %v4771 = vpop.f32.mrb[0].mxu0
        %4772 = vmatprep.mubr.f32.mxu0 0.0
        %4773 = vmatmul.mubr.f32.gmra.mrb[0].mxu0 %v4577
        %v4774 = vpop.f32.mrb[0].mxu0
        %v4775 = vadd.f32 %v4454, %v4774
        %v4776 = vpop.f32.mrb[0].mxu0
        %4777 = vmatprep.mubr.f32.mxu0 0.0
        %4778 = vmatmul.mubr.f32.gmra.mrb[0].mxu0 %v4580
        %v4779 = vpop.f32.mrb[0].mxu0
        %v4780 = vadd.f32 %v4459, %v4779
        %v4781 = vpop.f32.mrb[0].mxu0
        %4782 = vmatprep.mubr.f32.mxu0 0.0
        %4783 = vmatmul.mubr.f32.gmra.mrb[0].mxu0 %v4583
        %v4784 = vpop.f32.mrb[0].mxu0
        %v4785 = vadd.f32 %v4464, %v4784
        %v4786 = vpop.f32.mrb[0].mxu0
        %4787 = vmatprep.mubr.f32.mxu0 0.0
        %4788 = vmatmul.mubr.f32.gmra.mrb[0].mxu0 %v4586
        %v4789 = vpop.f32.mrb[0].mxu0
        %v4790 = vadd.f32 %v4469, %v4789
        %v4791 = vpop.f32.mrb[0].mxu0
        %4792 = vmatprep.mubr.f32.mxu0 0.0
        %4793 = vmatmul.mubr.f32.gmra.mrb[0].mxu0 %v4589
        %v4794 = vpop.f32.mrb[0].mxu0
        %v4795 = vadd.f32 %v4474, %v4794
        %v4796 = vpop.f32.mrb[0].mxu0
        %4797 = vmatprep.mubr.f32.mxu0 0.0
        %4798 = vmatmul.mubr.f32.gmra.mrb[0].mxu0 %v4592
        %v4799 = vpop.f32.mrb[0].mxu0
        %v4800 = vadd.f32 %v4479, %v4799
        %v4801 = vpop.f32.mrb[0].mxu0
        %4802 = vmatprep.mubr.f32.mxu0 0.0
        %4803 = vmatmul.mubr.f32.gmra.mrb[0].mxu0 %v4595
        %v4804 = vpop.f32.mrb[0].mxu0
        %v4805 = vadd.f32 %v4484, %v4804
        %v4806 = vpop.f32.mrb[0].mxu0
        %4807 = vmatprep.mubr.f32.mxu0 0.0
        %4808 = vmatmul.mubr.f32.gmra.mrb[0].mxu0 %v4598
        %v4809 = vpop.f32.mrb[0].mxu0
        %v4810 = vadd.f32 %v4489, %v4809
        %v4811 = vpop.f32.mrb[0].mxu0
        %4812 = vmatprep.mubr.f32.mxu0 0.0
        %4813 = vmatmul.mubr.f32.gmra.mrb[0].mxu0 %v4601
        %v4814 = vpop.f32.mrb[0].mxu0
        %v4815 = vadd.f32 %v4494, %v4814
        %v4816 = vpop.f32.mrb[0].mxu0
        %4817 = vmatprep.mubr.f32.mxu0 0.0
        %4818 = vmatmul.mubr.f32.gmra.mrb[0].mxu0 %v4604
        %v4819 = vpop.f32.mrb[0].mxu0
        %v4820 = vadd.f32 %v4499, %v4819
        %v4821 = vpop.f32.mrb[0].mxu0
        %4822 = vmatprep.mubr.f32.mxu0 0.0
        %4823 = vmatmul.mubr.f32.gmra.mrb[0].mxu0 %v4607
        %v4824 = vpop.f32.mrb[0].mxu0
        %v4825 = vadd.f32 %v4504, %v4824
        %v4826 = vpop.f32.mrb[0].mxu0
        %4827 = vmatprep.mubr.f32.mxu0 0.0
        %4828 = vmatmul.mubr.f32.gmra.mrb[0].mxu0 %v4610
        %v4829 = vpop.f32.mrb[0].mxu0
        %v4830 = vadd.f32 %v4509, %v4829
        %v4831 = vpop.f32.mrb[0].mxu0
        %4832 = vmatprep.mubr.f32.mxu0 0.0
        %4833 = vmatmul.mubr.f32.gmra.mrb[0].mxu0 %v4613
        %v4834 = vpop.f32.mrb[0].mxu0
        %v4835 = vadd.f32 %v4514, %v4834
        %v4836 = vpop.f32.mrb[0].mxu0
        %4837 = vmatprep.mubr.f32.mxu0 0.0
        %4838 = vmatmul.mubr.f32.gmra.mrb[0].mxu0 %v4616
        %v4839 = vpop.f32.mrb[0].mxu0
        %v4840 = vadd.f32 %v4519, %v4839
        %v4841 = vpop.f32.mrb[0].mxu0
        %4842 = vdwg.mxu0
        %v4843 = vld [vmem:[#allocation3 + $0x2] sm:$0xff]
        %v4844 = vld [vmem:[#allocation3 + $0xa] sm:$0xff]
        %v4845 = vld [vmem:[#allocation3 + $0x1a] sm:$0xff]
        %v4846 = vld [vmem:[#allocation3 + $0x22] sm:$0xff]
        %v4847 = vld [vmem:[#allocation3 + $0x32] sm:$0xff]
        %v4848 = vld [vmem:[#allocation3 + $0x3a] sm:$0xff]
        %v4849 = vld [vmem:[#allocation3 + $0x4a] sm:$0xff]
        %v4850 = vld [vmem:[#allocation3 + $0x52] sm:$0xff]
        %v4851 = vld [vmem:[#allocation3 + $0x62] sm:$0xff]
        %v4852 = vld [vmem:[#allocation3 + $0x6a] sm:$0xff]
        %v4853 = vld [vmem:[#allocation3 + $0x7a] sm:$0xff]
        %v4854 = vld [vmem:[#allocation3 + $0x82] sm:$0xff]
        %v4855 = vld [vmem:[#allocation3 + $0x92] sm:$0xff]
        %v4856 = vld [vmem:[#allocation3 + $0x9a] sm:$0xff]
        %v4857 = vld [vmem:[#allocation3 + $0xaa] sm:$0xff]
        %v4858 = vld [vmem:[#allocation3 + $0xb2] sm:$0xff]
        %v4859 = vld [vmem:[#allocation3 + $0xc2] sm:$0xff]
        %v4860 = vld [vmem:[#allocation3 + $0xca] sm:$0xff]
        %v4861 = vld [vmem:[#allocation3 + $0xda] sm:$0xff]
        %v4862 = vld [vmem:[#allocation3 + $0xe2] sm:$0xff]
        %v4863 = vld [vmem:[#allocation3 + $0xf2] sm:$0xff]
        %v4864 = vld [vmem:[#allocation3 + $0xfa] sm:$0xff]
        %v4865 = vld [vmem:[#allocation3 + $0x10a] sm:$0xff]
        %v4866 = vld [vmem:[#allocation3 + $0x112] sm:$0xff]
        %v4867 = vld [vmem:[#allocation3 + $0x122] sm:$0xff]
        %v4868 = vld [vmem:[#allocation3 + $0x12a] sm:$0xff]
        %v4869 = vld [vmem:[#allocation3 + $0x13a] sm:$0xff]
        %v4870 = vld [vmem:[#allocation3 + $0x142] sm:$0xff]
        %v4871 = vld [vmem:[#allocation3 + $0x152] sm:$0xff]
        %v4872 = vld [vmem:[#allocation3 + $0x15a] sm:$0xff]
        %v4873 = vld [vmem:[#allocation3 + $0x16a] sm:$0xff]
        %v4874 = vld [vmem:[#allocation3 + $0x172] sm:$0xff]
        %s4875 = scalar_lea.vmem %s3, 16
        %v4876 = vld [vmem:[%s4875] sm:$0xff]
        %v4878 = vsel %vm410, %v4843, 0
        %v4881 = vsel %vm410, %v4844, 0
        %v4884 = vsel %vm410, %v4845, 0
        %v4887 = vsel %vm410, %v4846, 0
        %v4890 = vsel %vm410, %v4847, 0
        %v4893 = vsel %vm410, %v4848, 0
        %v4896 = vsel %vm410, %v4849, 0
        %v4899 = vsel %vm410, %v4850, 0
        %v4902 = vsel %vm410, %v4851, 0
        %v4905 = vsel %vm410, %v4852, 0
        %v4908 = vsel %vm410, %v4853, 0
        %v4911 = vsel %vm410, %v4854, 0
        %v4914 = vsel %vm410, %v4855, 0
        %v4917 = vsel %vm410, %v4856, 0
        %v4920 = vsel %vm410, %v4857, 0
        %v4923 = vsel %vm410, %v4858, 0
        %v4926 = vsel %vm410, %v4859, 0
        %v4929 = vsel %vm410, %v4860, 0
        %v4932 = vsel %vm410, %v4861, 0
        %v4935 = vsel %vm410, %v4862, 0
        %v4938 = vsel %vm410, %v4863, 0
        %v4941 = vsel %vm410, %v4864, 0
        %v4944 = vsel %vm410, %v4865, 0
        %v4947 = vsel %vm410, %v4866, 0
        %v4950 = vsel %vm410, %v4867, 0
        %v4953 = vsel %vm410, %v4868, 0
        %v4956 = vsel %vm410, %v4869, 0
        %v4959 = vsel %vm410, %v4870, 0
        %v4962 = vsel %vm410, %v4871, 0
        %v4965 = vsel %vm410, %v4872, 0
        %v4968 = vsel %vm410, %v4873, 0
        %v4971 = vsel %vm410, %v4874, 0
        %4973 = vmatprep.subr.mxu0 0.0
        %4974 = vmatpush1.msra.mxu0 %v4876
        %4975 = vmatprep.subr.mxu0 0.0
        %4976 = vmatpush1.msra.mxu0 0.0
        %4977 = vmatprep.subr.mxu0 0.0
        %4978 = vmatpush1.msra.mxu0 0.0
        %4979 = vmatprep.subr.mxu0 0.0
        %4980 = vmatpush1.msra.mxu0 0.0
        %4981 = vmatprep.subr.mxu0 0.0
        %4982 = vmatpush1.msra.mxu0 0.0
        %4983 = vmatprep.subr.mxu0 0.0
        %4984 = vmatpush1.msra.mxu0 0.0
        %4985 = vmatprep.subr.mxu0 0.0
        %4986 = vmatpush1.msra.mxu0 0.0
        %4987 = vmatprep.subr.mxu0 0.0
        %4988 = vmatpush1.msra.mxu0 0.0
        %4989 = vmatprep.subr.mxu0 0.0
        %4990 = vmatpush1.msra.mxu0 0.0
        %4991 = vmatprep.subr.mxu0 0.0
        %4992 = vmatpush1.msra.mxu0 0.0
        %4993 = vmatprep.subr.mxu0 0.0
        %4994 = vmatpush1.msra.mxu0 0.0
        %4995 = vmatprep.subr.mxu0 0.0
        %4996 = vmatpush1.msra.mxu0 0.0
        %4997 = vmatprep.subr.mxu0 0.0
        %4998 = vmatpush1.msra.mxu0 0.0
        %4999 = vmatprep.subr.mxu0 0.0
        %5000 = vmatpush1.msra.mxu0 0.0
        %5001 = vmatprep.subr.mxu0 0.0
        %5002 = vmatpush1.msra.mxu0 0.0
        %5003 = vmatprep.subr.mxu0 0.0
        %5004 = vmatpush1.msra.mxu0 0.0
        %5005 = vmatprep.subr.mxu0 0.0
        %5006 = vmatpush1.msra.mxu0 0.0
        %5007 = vmatprep.subr.mxu0 0.0
        %5008 = vmatpush1.msra.mxu0 0.0
        %5009 = vmatprep.subr.mxu0 0.0
        %5010 = vmatpush1.msra.mxu0 0.0
        %5011 = vmatprep.subr.mxu0 0.0
        %5012 = vmatpush1.msra.mxu0 0.0
        %5013 = vmatprep.subr.mxu0 0.0
        %5014 = vmatpush1.msra.mxu0 0.0
        %5015 = vmatprep.subr.mxu0 0.0
        %5016 = vmatpush1.msra.mxu0 0.0
        %5017 = vmatprep.subr.mxu0 0.0
        %5018 = vmatpush1.msra.mxu0 0.0
        %5019 = vmatprep.subr.mxu0 0.0
        %5020 = vmatpush1.msra.mxu0 0.0
        %5021 = vmatprep.subr.mxu0 0.0
        %5022 = vmatpush1.msra.mxu0 0.0
        %5023 = vmatprep.subr.mxu0 0.0
        %5024 = vmatpush1.msra.mxu0 0.0
        %5025 = vmatprep.subr.mxu0 0.0
        %5026 = vmatpush1.msra.mxu0 0.0
        %5027 = vmatprep.subr.mxu0 0.0
        %5028 = vmatpush1.msra.mxu0 0.0
        %5029 = vmatprep.subr.mxu0 0.0
        %5030 = vmatpush1.msra.mxu0 0.0
        %5031 = vmatprep.subr.mxu0 0.0
        %5032 = vmatpush1.msra.mxu0 0.0
        %5033 = vmatprep.subr.mxu0 0.0
        %5034 = vmatpush1.msra.mxu0 0.0
        %5035 = vmatprep.subr.mxu0 0.0
        %5036 = vmatpush1.msra.mxu0 0.0
        %5037 = vmatprep.mubr.f32.mxu0 0.0
        %5038 = vmatmul.mubr.f32.gmra.mrb[0].mxu0 %v4878
        %v5039 = vpop.f32.mrb[0].mxu0
        %v5040 = vadd.f32 0.0, %v5039
        %v5041 = vpop.f32.mrb[0].mxu0
        %5042 = vmatprep.mubr.f32.mxu0 0.0
        %5043 = vmatmul.mubr.f32.gmra.mrb[0].mxu0 %v4881
        %v5044 = vpop.f32.mrb[0].mxu0
        %v5045 = vadd.f32 0.0, %v5044
        %v5046 = vpop.f32.mrb[0].mxu0
        %5047 = vmatprep.mubr.f32.mxu0 0.0
        %5048 = vmatmul.mubr.f32.gmra.mrb[0].mxu0 %v4884
        %v5049 = vpop.f32.mrb[0].mxu0
        %v5050 = vadd.f32 0.0, %v5049
        %v5051 = vpop.f32.mrb[0].mxu0
        %5052 = vmatprep.mubr.f32.mxu0 0.0
        %5053 = vmatmul.mubr.f32.gmra.mrb[0].mxu0 %v4887
        %v5054 = vpop.f32.mrb[0].mxu0
        %v5055 = vadd.f32 0.0, %v5054
        %v5056 = vpop.f32.mrb[0].mxu0
        %5057 = vmatprep.mubr.f32.mxu0 0.0
        %5058 = vmatmul.mubr.f32.gmra.mrb[0].mxu0 %v4890
        %v5059 = vpop.f32.mrb[0].mxu0
        %v5060 = vadd.f32 0.0, %v5059
        %v5061 = vpop.f32.mrb[0].mxu0
        %5062 = vmatprep.mubr.f32.mxu0 0.0
        %5063 = vmatmul.mubr.f32.gmra.mrb[0].mxu0 %v4893
        %v5064 = vpop.f32.mrb[0].mxu0
        %v5065 = vadd.f32 0.0, %v5064
        %v5066 = vpop.f32.mrb[0].mxu0
        %5067 = vmatprep.mubr.f32.mxu0 0.0
        %5068 = vmatmul.mubr.f32.gmra.mrb[0].mxu0 %v4896
        %v5069 = vpop.f32.mrb[0].mxu0
        %v5070 = vadd.f32 0.0, %v5069
        %v5071 = vpop.f32.mrb[0].mxu0
        %5072 = vmatprep.mubr.f32.mxu0 0.0
        %5073 = vmatmul.mubr.f32.gmra.mrb[0].mxu0 %v4899
        %v5074 = vpop.f32.mrb[0].mxu0
        %v5075 = vadd.f32 0.0, %v5074
        %v5076 = vpop.f32.mrb[0].mxu0
        %5077 = vmatprep.mubr.f32.mxu0 0.0
        %5078 = vmatmul.mubr.f32.gmra.mrb[0].mxu0 %v4902
        %v5079 = vpop.f32.mrb[0].mxu0
        %v5080 = vadd.f32 0.0, %v5079
        %v5081 = vpop.f32.mrb[0].mxu0
        %5082 = vmatprep.mubr.f32.mxu0 0.0
        %5083 = vmatmul.mubr.f32.gmra.mrb[0].mxu0 %v4905
        %v5084 = vpop.f32.mrb[0].mxu0
        %v5085 = vadd.f32 0.0, %v5084
        %v5086 = vpop.f32.mrb[0].mxu0
        %5087 = vmatprep.mubr.f32.mxu0 0.0
        %5088 = vmatmul.mubr.f32.gmra.mrb[0].mxu0 %v4908
        %v5089 = vpop.f32.mrb[0].mxu0
        %v5090 = vadd.f32 0.0, %v5089
        %v5091 = vpop.f32.mrb[0].mxu0
        %5092 = vmatprep.mubr.f32.mxu0 0.0
        %5093 = vmatmul.mubr.f32.gmra.mrb[0].mxu0 %v4911
        %v5094 = vpop.f32.mrb[0].mxu0
        %v5095 = vadd.f32 0.0, %v5094
        %v5096 = vpop.f32.mrb[0].mxu0
        %5097 = vmatprep.mubr.f32.mxu0 0.0
        %5098 = vmatmul.mubr.f32.gmra.mrb[0].mxu0 %v4914
        %v5099 = vpop.f32.mrb[0].mxu0
        %v5100 = vadd.f32 0.0, %v5099
        %v5101 = vpop.f32.mrb[0].mxu0
        %5102 = vmatprep.mubr.f32.mxu0 0.0
        %5103 = vmatmul.mubr.f32.gmra.mrb[0].mxu0 %v4917
        %v5104 = vpop.f32.mrb[0].mxu0
        %v5105 = vadd.f32 0.0, %v5104
        %v5106 = vpop.f32.mrb[0].mxu0
        %5107 = vmatprep.mubr.f32.mxu0 0.0
        %5108 = vmatmul.mubr.f32.gmra.mrb[0].mxu0 %v4920
        %v5109 = vpop.f32.mrb[0].mxu0
        %v5110 = vadd.f32 0.0, %v5109
        %v5111 = vpop.f32.mrb[0].mxu0
        %5112 = vmatprep.mubr.f32.mxu0 0.0
        %5113 = vmatmul.mubr.f32.gmra.mrb[0].mxu0 %v4923
        %v5114 = vpop.f32.mrb[0].mxu0
        %v5115 = vadd.f32 0.0, %v5114
        %v5116 = vpop.f32.mrb[0].mxu0
        %5117 = vmatprep.mubr.f32.mxu0 0.0
        %5118 = vmatmul.mubr.f32.gmra.mrb[0].mxu0 %v4926
        %v5119 = vpop.f32.mrb[0].mxu0
        %v5120 = vadd.f32 0.0, %v5119
        %v5121 = vpop.f32.mrb[0].mxu0
        %5122 = vmatprep.mubr.f32.mxu0 0.0
        %5123 = vmatmul.mubr.f32.gmra.mrb[0].mxu0 %v4929
        %v5124 = vpop.f32.mrb[0].mxu0
        %v5125 = vadd.f32 0.0, %v5124
        %v5126 = vpop.f32.mrb[0].mxu0
        %5127 = vmatprep.mubr.f32.mxu0 0.0
        %5128 = vmatmul.mubr.f32.gmra.mrb[0].mxu0 %v4932
        %v5129 = vpop.f32.mrb[0].mxu0
        %v5130 = vadd.f32 0.0, %v5129
        %v5131 = vpop.f32.mrb[0].mxu0
        %5132 = vmatprep.mubr.f32.mxu0 0.0
        %5133 = vmatmul.mubr.f32.gmra.mrb[0].mxu0 %v4935
        %v5134 = vpop.f32.mrb[0].mxu0
        %v5135 = vadd.f32 0.0, %v5134
        %v5136 = vpop.f32.mrb[0].mxu0
        %5137 = vmatprep.mubr.f32.mxu0 0.0
        %5138 = vmatmul.mubr.f32.gmra.mrb[0].mxu0 %v4938
        %v5139 = vpop.f32.mrb[0].mxu0
        %v5140 = vadd.f32 0.0, %v5139
        %v5141 = vpop.f32.mrb[0].mxu0
        %5142 = vmatprep.mubr.f32.mxu0 0.0
        %5143 = vmatmul.mubr.f32.gmra.mrb[0].mxu0 %v4941
        %v5144 = vpop.f32.mrb[0].mxu0
        %v5145 = vadd.f32 0.0, %v5144
        %v5146 = vpop.f32.mrb[0].mxu0
        %5147 = vmatprep.mubr.f32.mxu0 0.0
        %5148 = vmatmul.mubr.f32.gmra.mrb[0].mxu0 %v4944
        %v5149 = vpop.f32.mrb[0].mxu0
        %v5150 = vadd.f32 0.0, %v5149
        %v5151 = vpop.f32.mrb[0].mxu0
        %5152 = vmatprep.mubr.f32.mxu0 0.0
        %5153 = vmatmul.mubr.f32.gmra.mrb[0].mxu0 %v4947
        %v5154 = vpop.f32.mrb[0].mxu0
        %v5155 = vadd.f32 0.0, %v5154
        %v5156 = vpop.f32.mrb[0].mxu0
        %5157 = vmatprep.mubr.f32.mxu0 0.0
        %5158 = vmatmul.mubr.f32.gmra.mrb[0].mxu0 %v4950
        %v5159 = vpop.f32.mrb[0].mxu0
        %v5160 = vadd.f32 0.0, %v5159
        %v5161 = vpop.f32.mrb[0].mxu0
        %5162 = vmatprep.mubr.f32.mxu0 0.0
        %5163 = vmatmul.mubr.f32.gmra.mrb[0].mxu0 %v4953
        %v5164 = vpop.f32.mrb[0].mxu0
        %v5165 = vadd.f32 0.0, %v5164
        %v5166 = vpop.f32.mrb[0].mxu0
        %5167 = vmatprep.mubr.f32.mxu0 0.0
        %5168 = vmatmul.mubr.f32.gmra.mrb[0].mxu0 %v4956
        %v5169 = vpop.f32.mrb[0].mxu0
        %v5170 = vadd.f32 0.0, %v5169
        %v5171 = vpop.f32.mrb[0].mxu0
        %5172 = vmatprep.mubr.f32.mxu0 0.0
        %5173 = vmatmul.mubr.f32.gmra.mrb[0].mxu0 %v4959
        %v5174 = vpop.f32.mrb[0].mxu0
        %v5175 = vadd.f32 0.0, %v5174
        %v5176 = vpop.f32.mrb[0].mxu0
        %5177 = vmatprep.mubr.f32.mxu0 0.0
        %5178 = vmatmul.mubr.f32.gmra.mrb[0].mxu0 %v4962
        %v5179 = vpop.f32.mrb[0].mxu0
        %v5180 = vadd.f32 0.0, %v5179
        %v5181 = vpop.f32.mrb[0].mxu0
        %5182 = vmatprep.mubr.f32.mxu0 0.0
        %5183 = vmatmul.mubr.f32.gmra.mrb[0].mxu0 %v4965
        %v5184 = vpop.f32.mrb[0].mxu0
        %v5185 = vadd.f32 0.0, %v5184
        %v5186 = vpop.f32.mrb[0].mxu0
        %5187 = vmatprep.mubr.f32.mxu0 0.0
        %5188 = vmatmul.mubr.f32.gmra.mrb[0].mxu0 %v4968
        %v5189 = vpop.f32.mrb[0].mxu0
        %v5190 = vadd.f32 0.0, %v5189
        %v5191 = vpop.f32.mrb[0].mxu0
        %5192 = vmatprep.mubr.f32.mxu0 0.0
        %5193 = vmatmul.mubr.f32.gmra.mrb[0].mxu0 %v4971
        %v5194 = vpop.f32.mrb[0].mxu0
        %v5195 = vadd.f32 0.0, %v5194
        %v5196 = vpop.f32.mrb[0].mxu0
        %5197 = vdwg.mxu0
        %v5198 = vadd.f32 %v4685, %v5040
        %v5199 = vadd.f32 %v4690, %v5045
        %v5200 = vadd.f32 %v4695, %v5050
        %v5201 = vadd.f32 %v4700, %v5055
        %v5202 = vadd.f32 %v4705, %v5060
        %v5203 = vadd.f32 %v4710, %v5065
        %v5204 = vadd.f32 %v4715, %v5070
        %v5205 = vadd.f32 %v4720, %v5075
        %v5206 = vadd.f32 %v4725, %v5080
        %v5207 = vadd.f32 %v4730, %v5085
        %v5208 = vadd.f32 %v4735, %v5090
        %v5209 = vadd.f32 %v4740, %v5095
        %v5210 = vadd.f32 %v4745, %v5100
        %v5211 = vadd.f32 %v4750, %v5105
        %v5212 = vadd.f32 %v4755, %v5110
        %v5213 = vadd.f32 %v4760, %v5115
        %v5214 = vadd.f32 %v4765, %v5120
        %v5215 = vadd.f32 %v4770, %v5125
        %v5216 = vadd.f32 %v4775, %v5130
        %v5217 = vadd.f32 %v4780, %v5135
        %v5218 = vadd.f32 %v4785, %v5140
        %v5219 = vadd.f32 %v4790, %v5145
        %v5220 = vadd.f32 %v4795, %v5150
        %v5221 = vadd.f32 %v4800, %v5155
        %v5222 = vadd.f32 %v4805, %v5160
        %v5223 = vadd.f32 %v4810, %v5165
        %v5224 = vadd.f32 %v4815, %v5170
        %v5225 = vadd.f32 %v4820, %v5175
        %v5226 = vadd.f32 %v4825, %v5180
        %v5227 = vadd.f32 %v4830, %v5185
        %v5228 = vadd.f32 %v4835, %v5190
        %v5229 = vadd.f32 %v4840, %v5195
        %v5230 = vld [vmem:[%s4101] sm:$0xff]
        %v5231 = vld [vmem:[%s4101 + $0x8] sm:$0xff]
        %v5232 = vld [vmem:[%s4101 + $0x18] sm:$0xff]
        %v5233 = vld [vmem:[%s4101 + $0x20] sm:$0xff]
        %v5234 = vld [vmem:[%s4101 + $0x30] sm:$0xff]
        %v5235 = vld [vmem:[%s4101 + $0x38] sm:$0xff]
        %v5236 = vld [vmem:[%s4101 + $0x48] sm:$0xff]
        %v5237 = vld [vmem:[%s4101 + $0x50] sm:$0xff]
        %v5238 = vld [vmem:[%s4101 + $0x60] sm:$0xff]
        %v5239 = vld [vmem:[%s4101 + $0x68] sm:$0xff]
        %v5240 = vld [vmem:[%s4101 + $0x78] sm:$0xff]
        %v5241 = vld [vmem:[%s4101 + $0x80] sm:$0xff]
        %v5242 = vld [vmem:[%s4101 + $0x90] sm:$0xff]
        %v5243 = vld [vmem:[%s4101 + $0x98] sm:$0xff]
        %v5244 = vld [vmem:[%s4101 + $0xa8] sm:$0xff]
        %v5245 = vld [vmem:[%s4101 + $0xb0] sm:$0xff]
        %v5246 = vld [vmem:[%s4101 + $0xc0] sm:$0xff]
        %v5247 = vld [vmem:[%s4101 + $0xc8] sm:$0xff]
        %v5248 = vld [vmem:[%s4101 + $0xd8] sm:$0xff]
        %v5249 = vld [vmem:[%s4101 + $0xe0] sm:$0xff]
        %v5250 = vld [vmem:[%s4101 + $0xf0] sm:$0xff]
        %v5251 = vld [vmem:[%s4101 + $0xf8] sm:$0xff]
        %v5252 = vld [vmem:[%s4101 + $0x108] sm:$0xff]
        %v5253 = vld [vmem:[%s4101 + $0x110] sm:$0xff]
        %v5254 = vld [vmem:[%s4101 + $0x120] sm:$0xff]
        %v5255 = vld [vmem:[%s4101 + $0x128] sm:$0xff]
        %v5256 = vld [vmem:[%s4101 + $0x138] sm:$0xff]
        %v5257 = vld [vmem:[%s4101 + $0x140] sm:$0xff]
        %v5258 = vld [vmem:[%s4101 + $0x150] sm:$0xff]
        %v5259 = vld [vmem:[%s4101 + $0x158] sm:$0xff]
        %v5260 = vld [vmem:[%s4101 + $0x168] sm:$0xff]
        %v5261 = vld [vmem:[%s4101 + $0x170] sm:$0xff]
        %s5262 = scalar_lea.vmem %s3, 24
        %v5263 = vld [vmem:[%s5262] sm:$0xff]
        %v5265 = vsel %vm410, %v5230, 0
        %v5268 = vsel %vm410, %v5231, 0
        %v5271 = vsel %vm410, %v5232, 0
        %v5274 = vsel %vm410, %v5233, 0
        %v5277 = vsel %vm410, %v5234, 0
        %v5280 = vsel %vm410, %v5235, 0
        %v5283 = vsel %vm410, %v5236, 0
        %v5286 = vsel %vm410, %v5237, 0
        %v5289 = vsel %vm410, %v5238, 0
        %v5292 = vsel %vm410, %v5239, 0
        %v5295 = vsel %vm410, %v5240, 0
        %v5298 = vsel %vm410, %v5241, 0
        %v5301 = vsel %vm410, %v5242, 0
        %v5304 = vsel %vm410, %v5243, 0
        %v5307 = vsel %vm410, %v5244, 0
        %v5310 = vsel %vm410, %v5245, 0
        %v5313 = vsel %vm410, %v5246, 0
        %v5316 = vsel %vm410, %v5247, 0
        %v5319 = vsel %vm410, %v5248, 0
        %v5322 = vsel %vm410, %v5249, 0
        %v5325 = vsel %vm410, %v5250, 0
        %v5328 = vsel %vm410, %v5251, 0
        %v5331 = vsel %vm410, %v5252, 0
        %v5334 = vsel %vm410, %v5253, 0
        %v5337 = vsel %vm410, %v5254, 0
        %v5340 = vsel %vm410, %v5255, 0
        %v5343 = vsel %vm410, %v5256, 0
        %v5346 = vsel %vm410, %v5257, 0
        %v5349 = vsel %vm410, %v5258, 0
        %v5352 = vsel %vm410, %v5259, 0
        %v5355 = vsel %vm410, %v5260, 0
        %v5358 = vsel %vm410, %v5261, 0
        %5360 = vmatprep.subr.mxu0 0.0
        %5361 = vmatpush1.msra.mxu0 %v5263
        %5362 = vmatprep.subr.mxu0 0.0
        %5363 = vmatpush1.msra.mxu0 0.0
        %5364 = vmatprep.subr.mxu0 0.0
        %5365 = vmatpush1.msra.mxu0 0.0
        %5366 = vmatprep.subr.mxu0 0.0
        %5367 = vmatpush1.msra.mxu0 0.0
        %5368 = vmatprep.subr.mxu0 0.0
        %5369 = vmatpush1.msra.mxu0 0.0
        %5370 = vmatprep.subr.mxu0 0.0
        %5371 = vmatpush1.msra.mxu0 0.0
        %5372 = vmatprep.subr.mxu0 0.0
        %5373 = vmatpush1.msra.mxu0 0.0
        %5374 = vmatprep.subr.mxu0 0.0
        %5375 = vmatpush1.msra.mxu0 0.0
        %5376 = vmatprep.subr.mxu0 0.0
        %5377 = vmatpush1.msra.mxu0 0.0
        %5378 = vmatprep.subr.mxu0 0.0
        %5379 = vmatpush1.msra.mxu0 0.0
        %5380 = vmatprep.subr.mxu0 0.0
        %5381 = vmatpush1.msra.mxu0 0.0
        %5382 = vmatprep.subr.mxu0 0.0
        %5383 = vmatpush1.msra.mxu0 0.0
        %5384 = vmatprep.subr.mxu0 0.0
        %5385 = vmatpush1.msra.mxu0 0.0
        %5386 = vmatprep.subr.mxu0 0.0
        %5387 = vmatpush1.msra.mxu0 0.0
        %5388 = vmatprep.subr.mxu0 0.0
        %5389 = vmatpush1.msra.mxu0 0.0
        %5390 = vmatprep.subr.mxu0 0.0
        %5391 = vmatpush1.msra.mxu0 0.0
        %5392 = vmatprep.subr.mxu0 0.0
        %5393 = vmatpush1.msra.mxu0 0.0
        %5394 = vmatprep.subr.mxu0 0.0
        %5395 = vmatpush1.msra.mxu0 0.0
        %5396 = vmatprep.subr.mxu0 0.0
        %5397 = vmatpush1.msra.mxu0 0.0
        %5398 = vmatprep.subr.mxu0 0.0
        %5399 = vmatpush1.msra.mxu0 0.0
        %5400 = vmatprep.subr.mxu0 0.0
        %5401 = vmatpush1.msra.mxu0 0.0
        %5402 = vmatprep.subr.mxu0 0.0
        %5403 = vmatpush1.msra.mxu0 0.0
        %5404 = vmatprep.subr.mxu0 0.0
        %5405 = vmatpush1.msra.mxu0 0.0
        %5406 = vmatprep.subr.mxu0 0.0
        %5407 = vmatpush1.msra.mxu0 0.0
        %5408 = vmatprep.subr.mxu0 0.0
        %5409 = vmatpush1.msra.mxu0 0.0
        %5410 = vmatprep.subr.mxu0 0.0
        %5411 = vmatpush1.msra.mxu0 0.0
        %5412 = vmatprep.subr.mxu0 0.0
        %5413 = vmatpush1.msra.mxu0 0.0
        %5414 = vmatprep.subr.mxu0 0.0
        %5415 = vmatpush1.msra.mxu0 0.0
        %5416 = vmatprep.subr.mxu0 0.0
        %5417 = vmatpush1.msra.mxu0 0.0
        %5418 = vmatprep.subr.mxu0 0.0
        %5419 = vmatpush1.msra.mxu0 0.0
        %5420 = vmatprep.subr.mxu0 0.0
        %5421 = vmatpush1.msra.mxu0 0.0
        %5422 = vmatprep.subr.mxu0 0.0
        %5423 = vmatpush1.msra.mxu0 0.0
        %5424 = vmatprep.mubr.f32.mxu0 0.0
        %5425 = vmatmul.mubr.f32.gmra.mrb[0].mxu0 %v5265
        %v5426 = vpop.f32.mrb[0].mxu0
        %v5427 = vadd.f32 0.0, %v5426
        %v5428 = vpop.f32.mrb[0].mxu0
        %5429 = vmatprep.mubr.f32.mxu0 0.0
        %5430 = vmatmul.mubr.f32.gmra.mrb[0].mxu0 %v5268
        %v5431 = vpop.f32.mrb[0].mxu0
        %v5432 = vadd.f32 0.0, %v5431
        %v5433 = vpop.f32.mrb[0].mxu0
        %5434 = vmatprep.mubr.f32.mxu0 0.0
        %5435 = vmatmul.mubr.f32.gmra.mrb[0].mxu0 %v5271
        %v5436 = vpop.f32.mrb[0].mxu0
        %v5437 = vadd.f32 0.0, %v5436
        %v5438 = vpop.f32.mrb[0].mxu0
        %5439 = vmatprep.mubr.f32.mxu0 0.0
        %5440 = vmatmul.mubr.f32.gmra.mrb[0].mxu0 %v5274
        %v5441 = vpop.f32.mrb[0].mxu0
        %v5442 = vadd.f32 0.0, %v5441
        %v5443 = vpop.f32.mrb[0].mxu0
        %5444 = vmatprep.mubr.f32.mxu0 0.0
        %5445 = vmatmul.mubr.f32.gmra.mrb[0].mxu0 %v5277
        %v5446 = vpop.f32.mrb[0].mxu0
        %v5447 = vadd.f32 0.0, %v5446
        %v5448 = vpop.f32.mrb[0].mxu0
        %5449 = vmatprep.mubr.f32.mxu0 0.0
        %5450 = vmatmul.mubr.f32.gmra.mrb[0].mxu0 %v5280
        %v5451 = vpop.f32.mrb[0].mxu0
        %v5452 = vadd.f32 0.0, %v5451
        %v5453 = vpop.f32.mrb[0].mxu0
        %5454 = vmatprep.mubr.f32.mxu0 0.0
        %5455 = vmatmul.mubr.f32.gmra.mrb[0].mxu0 %v5283
        %v5456 = vpop.f32.mrb[0].mxu0
        %v5457 = vadd.f32 0.0, %v5456
        %v5458 = vpop.f32.mrb[0].mxu0
        %5459 = vmatprep.mubr.f32.mxu0 0.0
        %5460 = vmatmul.mubr.f32.gmra.mrb[0].mxu0 %v5286
        %v5461 = vpop.f32.mrb[0].mxu0
        %v5462 = vadd.f32 0.0, %v5461
        %v5463 = vpop.f32.mrb[0].mxu0
        %5464 = vmatprep.mubr.f32.mxu0 0.0
        %5465 = vmatmul.mubr.f32.gmra.mrb[0].mxu0 %v5289
        %v5466 = vpop.f32.mrb[0].mxu0
        %v5467 = vadd.f32 0.0, %v5466
        %v5468 = vpop.f32.mrb[0].mxu0
        %5469 = vmatprep.mubr.f32.mxu0 0.0
        %5470 = vmatmul.mubr.f32.gmra.mrb[0].mxu0 %v5292
        %v5471 = vpop.f32.mrb[0].mxu0
        %v5472 = vadd.f32 0.0, %v5471
        %v5473 = vpop.f32.mrb[0].mxu0
        %5474 = vmatprep.mubr.f32.mxu0 0.0
        %5475 = vmatmul.mubr.f32.gmra.mrb[0].mxu0 %v5295
        %v5476 = vpop.f32.mrb[0].mxu0
        %v5477 = vadd.f32 0.0, %v5476
        %v5478 = vpop.f32.mrb[0].mxu0
        %5479 = vmatprep.mubr.f32.mxu0 0.0
        %5480 = vmatmul.mubr.f32.gmra.mrb[0].mxu0 %v5298
        %v5481 = vpop.f32.mrb[0].mxu0
        %v5482 = vadd.f32 0.0, %v5481
        %v5483 = vpop.f32.mrb[0].mxu0
        %5484 = vmatprep.mubr.f32.mxu0 0.0
        %5485 = vmatmul.mubr.f32.gmra.mrb[0].mxu0 %v5301
        %v5486 = vpop.f32.mrb[0].mxu0
        %v5487 = vadd.f32 0.0, %v5486
        %v5488 = vpop.f32.mrb[0].mxu0
        %5489 = vmatprep.mubr.f32.mxu0 0.0
        %5490 = vmatmul.mubr.f32.gmra.mrb[0].mxu0 %v5304
        %v5491 = vpop.f32.mrb[0].mxu0
        %v5492 = vadd.f32 0.0, %v5491
        %v5493 = vpop.f32.mrb[0].mxu0
        %5494 = vmatprep.mubr.f32.mxu0 0.0
        %5495 = vmatmul.mubr.f32.gmra.mrb[0].mxu0 %v5307
        %v5496 = vpop.f32.mrb[0].mxu0
        %v5497 = vadd.f32 0.0, %v5496
        %v5498 = vpop.f32.mrb[0].mxu0
        %5499 = vmatprep.mubr.f32.mxu0 0.0
        %5500 = vmatmul.mubr.f32.gmra.mrb[0].mxu0 %v5310
        %v5501 = vpop.f32.mrb[0].mxu0
        %v5502 = vadd.f32 0.0, %v5501
        %v5503 = vpop.f32.mrb[0].mxu0
        %5504 = vmatprep.mubr.f32.mxu0 0.0
        %5505 = vmatmul.mubr.f32.gmra.mrb[0].mxu0 %v5313
        %v5506 = vpop.f32.mrb[0].mxu0
        %v5507 = vadd.f32 0.0, %v5506
        %v5508 = vpop.f32.mrb[0].mxu0
        %5509 = vmatprep.mubr.f32.mxu0 0.0
        %5510 = vmatmul.mubr.f32.gmra.mrb[0].mxu0 %v5316
        %v5511 = vpop.f32.mrb[0].mxu0
        %v5512 = vadd.f32 0.0, %v5511
        %v5513 = vpop.f32.mrb[0].mxu0
        %5514 = vmatprep.mubr.f32.mxu0 0.0
        %5515 = vmatmul.mubr.f32.gmra.mrb[0].mxu0 %v5319
        %v5516 = vpop.f32.mrb[0].mxu0
        %v5517 = vadd.f32 0.0, %v5516
        %v5518 = vpop.f32.mrb[0].mxu0
        %5519 = vmatprep.mubr.f32.mxu0 0.0
        %5520 = vmatmul.mubr.f32.gmra.mrb[0].mxu0 %v5322
        %v5521 = vpop.f32.mrb[0].mxu0
        %v5522 = vadd.f32 0.0, %v5521
        %v5523 = vpop.f32.mrb[0].mxu0
        %5524 = vmatprep.mubr.f32.mxu0 0.0
        %5525 = vmatmul.mubr.f32.gmra.mrb[0].mxu0 %v5325
        %v5526 = vpop.f32.mrb[0].mxu0
        %v5527 = vadd.f32 0.0, %v5526
        %v5528 = vpop.f32.mrb[0].mxu0
        %5529 = vmatprep.mubr.f32.mxu0 0.0
        %5530 = vmatmul.mubr.f32.gmra.mrb[0].mxu0 %v5328
        %v5531 = vpop.f32.mrb[0].mxu0
        %v5532 = vadd.f32 0.0, %v5531
        %v5533 = vpop.f32.mrb[0].mxu0
        %5534 = vmatprep.mubr.f32.mxu0 0.0
        %5535 = vmatmul.mubr.f32.gmra.mrb[0].mxu0 %v5331
        %v5536 = vpop.f32.mrb[0].mxu0
        %v5537 = vadd.f32 0.0, %v5536
        %v5538 = vpop.f32.mrb[0].mxu0
        %5539 = vmatprep.mubr.f32.mxu0 0.0
        %5540 = vmatmul.mubr.f32.gmra.mrb[0].mxu0 %v5334
        %v5541 = vpop.f32.mrb[0].mxu0
        %v5542 = vadd.f32 0.0, %v5541
        %v5543 = vpop.f32.mrb[0].mxu0
        %5544 = vmatprep.mubr.f32.mxu0 0.0
        %5545 = vmatmul.mubr.f32.gmra.mrb[0].mxu0 %v5337
        %v5546 = vpop.f32.mrb[0].mxu0
        %v5547 = vadd.f32 0.0, %v5546
        %v5548 = vpop.f32.mrb[0].mxu0
        %5549 = vmatprep.mubr.f32.mxu0 0.0
        %5550 = vmatmul.mubr.f32.gmra.mrb[0].mxu0 %v5340
        %v5551 = vpop.f32.mrb[0].mxu0
        %v5552 = vadd.f32 0.0, %v5551
        %v5553 = vpop.f32.mrb[0].mxu0
        %5554 = vmatprep.mubr.f32.mxu0 0.0
        %5555 = vmatmul.mubr.f32.gmra.mrb[0].mxu0 %v5343
        %v5556 = vpop.f32.mrb[0].mxu0
        %v5557 = vadd.f32 0.0, %v5556
        %v5558 = vpop.f32.mrb[0].mxu0
        %5559 = vmatprep.mubr.f32.mxu0 0.0
        %5560 = vmatmul.mubr.f32.gmra.mrb[0].mxu0 %v5346
        %v5561 = vpop.f32.mrb[0].mxu0
        %v5562 = vadd.f32 0.0, %v5561
        %v5563 = vpop.f32.mrb[0].mxu0
        %5564 = vmatprep.mubr.f32.mxu0 0.0
        %5565 = vmatmul.mubr.f32.gmra.mrb[0].mxu0 %v5349
        %v5566 = vpop.f32.mrb[0].mxu0
        %v5567 = vadd.f32 0.0, %v5566
        %v5568 = vpop.f32.mrb[0].mxu0
        %5569 = vmatprep.mubr.f32.mxu0 0.0
        %5570 = vmatmul.mubr.f32.gmra.mrb[0].mxu0 %v5352
        %v5571 = vpop.f32.mrb[0].mxu0
        %v5572 = vadd.f32 0.0, %v5571
        %v5573 = vpop.f32.mrb[0].mxu0
        %5574 = vmatprep.mubr.f32.mxu0 0.0
        %5575 = vmatmul.mubr.f32.gmra.mrb[0].mxu0 %v5355
        %v5576 = vpop.f32.mrb[0].mxu0
        %v5577 = vadd.f32 0.0, %v5576
        %v5578 = vpop.f32.mrb[0].mxu0
        %5579 = vmatprep.mubr.f32.mxu0 0.0
        %5580 = vmatmul.mubr.f32.gmra.mrb[0].mxu0 %v5358
        %v5581 = vpop.f32.mrb[0].mxu0
        %v5582 = vadd.f32 0.0, %v5581
        %v5583 = vpop.f32.mrb[0].mxu0
        %5584 = vdwg.mxu0
        %v5585 = vadd.f32 %v5198, %v5427
        %v5586 = vadd.f32 %v5199, %v5432
        %v5587 = vadd.f32 %v5200, %v5437
        %v5588 = vadd.f32 %v5201, %v5442
        %v5589 = vadd.f32 %v5202, %v5447
        %v5590 = vadd.f32 %v5203, %v5452
        %v5591 = vadd.f32 %v5204, %v5457
        %v5592 = vadd.f32 %v5205, %v5462
        %v5593 = vadd.f32 %v5206, %v5467
        %v5594 = vadd.f32 %v5207, %v5472
        %v5595 = vadd.f32 %v5208, %v5477
        %v5596 = vadd.f32 %v5209, %v5482
        %v5597 = vadd.f32 %v5210, %v5487
        %v5598 = vadd.f32 %v5211, %v5492
        %v5599 = vadd.f32 %v5212, %v5497
        %v5600 = vadd.f32 %v5213, %v5502
        %v5601 = vadd.f32 %v5214, %v5507
        %v5602 = vadd.f32 %v5215, %v5512
        %v5603 = vadd.f32 %v5216, %v5517
        %v5604 = vadd.f32 %v5217, %v5522
        %v5605 = vadd.f32 %v5218, %v5527
        %v5606 = vadd.f32 %v5219, %v5532
        %v5607 = vadd.f32 %v5220, %v5537
        %v5608 = vadd.f32 %v5221, %v5542
        %v5609 = vadd.f32 %v5222, %v5547
        %v5610 = vadd.f32 %v5223, %v5552
        %v5611 = vadd.f32 %v5224, %v5557
        %v5612 = vadd.f32 %v5225, %v5562
        %v5613 = vadd.f32 %v5226, %v5567
        %v5614 = vadd.f32 %v5227, %v5572
        %v5615 = vadd.f32 %v5228, %v5577
        %v5616 = vadd.f32 %v5229, %v5582
        %v5617 = vld [vmem:[%s4101 + $0x1] sm:$0xff]
        %v5618 = vld [vmem:[%s4101 + $0x9] sm:$0xff]
        %v5619 = vld [vmem:[%s4101 + $0x19] sm:$0xff]
        %v5620 = vld [vmem:[%s4101 + $0x21] sm:$0xff]
        %v5621 = vld [vmem:[%s4101 + $0x31] sm:$0xff]
        %v5622 = vld [vmem:[%s4101 + $0x39] sm:$0xff]
        %v5623 = vld [vmem:[%s4101 + $0x49] sm:$0xff]
        %v5624 = vld [vmem:[%s4101 + $0x51] sm:$0xff]
        %v5625 = vld [vmem:[%s4101 + $0x61] sm:$0xff]
        %v5626 = vld [vmem:[%s4101 + $0x69] sm:$0xff]
        %v5627 = vld [vmem:[%s4101 + $0x79] sm:$0xff]
        %v5628 = vld [vmem:[%s4101 + $0x81] sm:$0xff]
        %v5629 = vld [vmem:[%s4101 + $0x91] sm:$0xff]
        %v5630 = vld [vmem:[%s4101 + $0x99] sm:$0xff]
        %v5631 = vld [vmem:[%s4101 + $0xa9] sm:$0xff]
        %v5632 = vld [vmem:[%s4101 + $0xb1] sm:$0xff]
        %v5633 = vld [vmem:[%s4101 + $0xc1] sm:$0xff]
        %v5634 = vld [vmem:[%s4101 + $0xc9] sm:$0xff]
        %v5635 = vld [vmem:[%s4101 + $0xd9] sm:$0xff]
        %v5636 = vld [vmem:[%s4101 + $0xe1] sm:$0xff]
        %v5637 = vld [vmem:[%s4101 + $0xf1] sm:$0xff]
        %v5638 = vld [vmem:[%s4101 + $0xf9] sm:$0xff]
        %v5639 = vld [vmem:[%s4101 + $0x109] sm:$0xff]
        %v5640 = vld [vmem:[%s4101 + $0x111] sm:$0xff]
        %v5641 = vld [vmem:[%s4101 + $0x121] sm:$0xff]
        %v5642 = vld [vmem:[%s4101 + $0x129] sm:$0xff]
        %v5643 = vld [vmem:[%s4101 + $0x139] sm:$0xff]
        %v5644 = vld [vmem:[%s4101 + $0x141] sm:$0xff]
        %v5645 = vld [vmem:[%s4101 + $0x151] sm:$0xff]
        %v5646 = vld [vmem:[%s4101 + $0x159] sm:$0xff]
        %v5647 = vld [vmem:[%s4101 + $0x169] sm:$0xff]
        %v5648 = vld [vmem:[%s4101 + $0x171] sm:$0xff]
        %s5649 = scalar_lea.vmem %s3, 32
        %v5650 = vld [vmem:[%s5649] sm:$0xff]
        %v5652 = vsel %vm410, %v5617, 0
        %v5655 = vsel %vm410, %v5618, 0
        %v5658 = vsel %vm410, %v5619, 0
        %v5661 = vsel %vm410, %v5620, 0
        %v5664 = vsel %vm410, %v5621, 0
        %v5667 = vsel %vm410, %v5622, 0
        %v5670 = vsel %vm410, %v5623, 0
        %v5673 = vsel %vm410, %v5624, 0
        %v5676 = vsel %vm410, %v5625, 0
        %v5679 = vsel %vm410, %v5626, 0
        %v5682 = vsel %vm410, %v5627, 0
        %v5685 = vsel %vm410, %v5628, 0
        %v5688 = vsel %vm410, %v5629, 0
        %v5691 = vsel %vm410, %v5630, 0
        %v5694 = vsel %vm410, %v5631, 0
        %v5697 = vsel %vm410, %v5632, 0
        %v5700 = vsel %vm410, %v5633, 0
        %v5703 = vsel %vm410, %v5634, 0
        %v5706 = vsel %vm410, %v5635, 0
        %v5709 = vsel %vm410, %v5636, 0
        %v5712 = vsel %vm410, %v5637, 0
        %v5715 = vsel %vm410, %v5638, 0
        %v5718 = vsel %vm410, %v5639, 0
        %v5721 = vsel %vm410, %v5640, 0
        %v5724 = vsel %vm410, %v5641, 0
        %v5727 = vsel %vm410, %v5642, 0
        %v5730 = vsel %vm410, %v5643, 0
        %v5733 = vsel %vm410, %v5644, 0
        %v5736 = vsel %vm410, %v5645, 0
        %v5739 = vsel %vm410, %v5646, 0
        %v5742 = vsel %vm410, %v5647, 0
        %v5745 = vsel %vm410, %v5648, 0
        %5747 = vmatprep.subr.mxu0 0.0
        %5748 = vmatpush1.msra.mxu0 %v5650
        %5749 = vmatprep.subr.mxu0 0.0
        %5750 = vmatpush1.msra.mxu0 0.0
        %5751 = vmatprep.subr.mxu0 0.0
        %5752 = vmatpush1.msra.mxu0 0.0
        %5753 = vmatprep.subr.mxu0 0.0
        %5754 = vmatpush1.msra.mxu0 0.0
        %5755 = vmatprep.subr.mxu0 0.0
        %5756 = vmatpush1.msra.mxu0 0.0
        %5757 = vmatprep.subr.mxu0 0.0
        %5758 = vmatpush1.msra.mxu0 0.0
        %5759 = vmatprep.subr.mxu0 0.0
        %5760 = vmatpush1.msra.mxu0 0.0
        %5761 = vmatprep.subr.mxu0 0.0
        %5762 = vmatpush1.msra.mxu0 0.0
        %5763 = vmatprep.subr.mxu0 0.0
        %5764 = vmatpush1.msra.mxu0 0.0
        %5765 = vmatprep.subr.mxu0 0.0
        %5766 = vmatpush1.msra.mxu0 0.0
        %5767 = vmatprep.subr.mxu0 0.0
        %5768 = vmatpush1.msra.mxu0 0.0
        %5769 = vmatprep.subr.mxu0 0.0
        %5770 = vmatpush1.msra.mxu0 0.0
        %5771 = vmatprep.subr.mxu0 0.0
        %5772 = vmatpush1.msra.mxu0 0.0
        %5773 = vmatprep.subr.mxu0 0.0
        %5774 = vmatpush1.msra.mxu0 0.0
        %5775 = vmatprep.subr.mxu0 0.0
        %5776 = vmatpush1.msra.mxu0 0.0
        %5777 = vmatprep.subr.mxu0 0.0
        %5778 = vmatpush1.msra.mxu0 0.0
        %5779 = vmatprep.subr.mxu0 0.0
        %5780 = vmatpush1.msra.mxu0 0.0
        %5781 = vmatprep.subr.mxu0 0.0
        %5782 = vmatpush1.msra.mxu0 0.0
        %5783 = vmatprep.subr.mxu0 0.0
        %5784 = vmatpush1.msra.mxu0 0.0
        %5785 = vmatprep.subr.mxu0 0.0
        %5786 = vmatpush1.msra.mxu0 0.0
        %5787 = vmatprep.subr.mxu0 0.0
        %5788 = vmatpush1.msra.mxu0 0.0
        %5789 = vmatprep.subr.mxu0 0.0
        %5790 = vmatpush1.msra.mxu0 0.0
        %5791 = vmatprep.subr.mxu0 0.0
        %5792 = vmatpush1.msra.mxu0 0.0
        %5793 = vmatprep.subr.mxu0 0.0
        %5794 = vmatpush1.msra.mxu0 0.0
        %5795 = vmatprep.subr.mxu0 0.0
        %5796 = vmatpush1.msra.mxu0 0.0
        %5797 = vmatprep.subr.mxu0 0.0
        %5798 = vmatpush1.msra.mxu0 0.0
        %5799 = vmatprep.subr.mxu0 0.0
        %5800 = vmatpush1.msra.mxu0 0.0
        %5801 = vmatprep.subr.mxu0 0.0
        %5802 = vmatpush1.msra.mxu0 0.0
        %5803 = vmatprep.subr.mxu0 0.0
        %5804 = vmatpush1.msra.mxu0 0.0
        %5805 = vmatprep.subr.mxu0 0.0
        %5806 = vmatpush1.msra.mxu0 0.0
        %5807 = vmatprep.subr.mxu0 0.0
        %5808 = vmatpush1.msra.mxu0 0.0
        %5809 = vmatprep.subr.mxu0 0.0
        %5810 = vmatpush1.msra.mxu0 0.0
        %5811 = vmatprep.mubr.f32.mxu0 0.0
        %5812 = vmatmul.mubr.f32.gmra.mrb[0].mxu0 %v5652
        %v5813 = vpop.f32.mrb[0].mxu0
        %v5814 = vadd.f32 0.0, %v5813
        %v5815 = vpop.f32.mrb[0].mxu0
        %5816 = vmatprep.mubr.f32.mxu0 0.0
        %5817 = vmatmul.mubr.f32.gmra.mrb[0].mxu0 %v5655
        %v5818 = vpop.f32.mrb[0].mxu0
        %v5819 = vadd.f32 0.0, %v5818
        %v5820 = vpop.f32.mrb[0].mxu0
        %5821 = vmatprep.mubr.f32.mxu0 0.0
        %5822 = vmatmul.mubr.f32.gmra.mrb[0].mxu0 %v5658
        %v5823 = vpop.f32.mrb[0].mxu0
        %v5824 = vadd.f32 0.0, %v5823
        %v5825 = vpop.f32.mrb[0].mxu0
        %5826 = vmatprep.mubr.f32.mxu0 0.0
        %5827 = vmatmul.mubr.f32.gmra.mrb[0].mxu0 %v5661
        %v5828 = vpop.f32.mrb[0].mxu0
        %v5829 = vadd.f32 0.0, %v5828
        %v5830 = vpop.f32.mrb[0].mxu0
        %5831 = vmatprep.mubr.f32.mxu0 0.0
        %5832 = vmatmul.mubr.f32.gmra.mrb[0].mxu0 %v5664
        %v5833 = vpop.f32.mrb[0].mxu0
        %v5834 = vadd.f32 0.0, %v5833
        %v5835 = vpop.f32.mrb[0].mxu0
        %5836 = vmatprep.mubr.f32.mxu0 0.0
        %5837 = vmatmul.mubr.f32.gmra.mrb[0].mxu0 %v5667
        %v5838 = vpop.f32.mrb[0].mxu0
        %v5839 = vadd.f32 0.0, %v5838
        %v5840 = vpop.f32.mrb[0].mxu0
        %5841 = vmatprep.mubr.f32.mxu0 0.0
        %5842 = vmatmul.mubr.f32.gmra.mrb[0].mxu0 %v5670
        %v5843 = vpop.f32.mrb[0].mxu0
        %v5844 = vadd.f32 0.0, %v5843
        %v5845 = vpop.f32.mrb[0].mxu0
        %5846 = vmatprep.mubr.f32.mxu0 0.0
        %5847 = vmatmul.mubr.f32.gmra.mrb[0].mxu0 %v5673
        %v5848 = vpop.f32.mrb[0].mxu0
        %v5849 = vadd.f32 0.0, %v5848
        %v5850 = vpop.f32.mrb[0].mxu0
        %5851 = vmatprep.mubr.f32.mxu0 0.0
        %5852 = vmatmul.mubr.f32.gmra.mrb[0].mxu0 %v5676
        %v5853 = vpop.f32.mrb[0].mxu0
        %v5854 = vadd.f32 0.0, %v5853
        %v5855 = vpop.f32.mrb[0].mxu0
        %5856 = vmatprep.mubr.f32.mxu0 0.0
        %5857 = vmatmul.mubr.f32.gmra.mrb[0].mxu0 %v5679
        %v5858 = vpop.f32.mrb[0].mxu0
        %v5859 = vadd.f32 0.0, %v5858
        %v5860 = vpop.f32.mrb[0].mxu0
        %5861 = vmatprep.mubr.f32.mxu0 0.0
        %5862 = vmatmul.mubr.f32.gmra.mrb[0].mxu0 %v5682
        %v5863 = vpop.f32.mrb[0].mxu0
        %v5864 = vadd.f32 0.0, %v5863
        %v5865 = vpop.f32.mrb[0].mxu0
        %5866 = vmatprep.mubr.f32.mxu0 0.0
        %5867 = vmatmul.mubr.f32.gmra.mrb[0].mxu0 %v5685
        %v5868 = vpop.f32.mrb[0].mxu0
        %v5869 = vadd.f32 0.0, %v5868
        %v5870 = vpop.f32.mrb[0].mxu0
        %5871 = vmatprep.mubr.f32.mxu0 0.0
        %5872 = vmatmul.mubr.f32.gmra.mrb[0].mxu0 %v5688
        %v5873 = vpop.f32.mrb[0].mxu0
        %v5874 = vadd.f32 0.0, %v5873
        %v5875 = vpop.f32.mrb[0].mxu0
        %5876 = vmatprep.mubr.f32.mxu0 0.0
        %5877 = vmatmul.mubr.f32.gmra.mrb[0].mxu0 %v5691
        %v5878 = vpop.f32.mrb[0].mxu0
        %v5879 = vadd.f32 0.0, %v5878
        %v5880 = vpop.f32.mrb[0].mxu0
        %5881 = vmatprep.mubr.f32.mxu0 0.0
        %5882 = vmatmul.mubr.f32.gmra.mrb[0].mxu0 %v5694
        %v5883 = vpop.f32.mrb[0].mxu0
        %v5884 = vadd.f32 0.0, %v5883
        %v5885 = vpop.f32.mrb[0].mxu0
        %5886 = vmatprep.mubr.f32.mxu0 0.0
        %5887 = vmatmul.mubr.f32.gmra.mrb[0].mxu0 %v5697
        %v5888 = vpop.f32.mrb[0].mxu0
        %v5889 = vadd.f32 0.0, %v5888
        %v5890 = vpop.f32.mrb[0].mxu0
        %5891 = vmatprep.mubr.f32.mxu0 0.0
        %5892 = vmatmul.mubr.f32.gmra.mrb[0].mxu0 %v5700
        %v5893 = vpop.f32.mrb[0].mxu0
        %v5894 = vadd.f32 0.0, %v5893
        %v5895 = vpop.f32.mrb[0].mxu0
        %5896 = vmatprep.mubr.f32.mxu0 0.0
        %5897 = vmatmul.mubr.f32.gmra.mrb[0].mxu0 %v5703
        %v5898 = vpop.f32.mrb[0].mxu0
        %v5899 = vadd.f32 0.0, %v5898
        %v5900 = vpop.f32.mrb[0].mxu0
        %5901 = vmatprep.mubr.f32.mxu0 0.0
        %5902 = vmatmul.mubr.f32.gmra.mrb[0].mxu0 %v5706
        %v5903 = vpop.f32.mrb[0].mxu0
        %v5904 = vadd.f32 0.0, %v5903
        %v5905 = vpop.f32.mrb[0].mxu0
        %5906 = vmatprep.mubr.f32.mxu0 0.0
        %5907 = vmatmul.mubr.f32.gmra.mrb[0].mxu0 %v5709
        %v5908 = vpop.f32.mrb[0].mxu0
        %v5909 = vadd.f32 0.0, %v5908
        %v5910 = vpop.f32.mrb[0].mxu0
        %5911 = vmatprep.mubr.f32.mxu0 0.0
        %5912 = vmatmul.mubr.f32.gmra.mrb[0].mxu0 %v5712
        %v5913 = vpop.f32.mrb[0].mxu0
        %v5914 = vadd.f32 0.0, %v5913
        %v5915 = vpop.f32.mrb[0].mxu0
        %5916 = vmatprep.mubr.f32.mxu0 0.0
        %5917 = vmatmul.mubr.f32.gmra.mrb[0].mxu0 %v5715
        %v5918 = vpop.f32.mrb[0].mxu0
        %v5919 = vadd.f32 0.0, %v5918
        %v5920 = vpop.f32.mrb[0].mxu0
        %5921 = vmatprep.mubr.f32.mxu0 0.0
        %5922 = vmatmul.mubr.f32.gmra.mrb[0].mxu0 %v5718
        %v5923 = vpop.f32.mrb[0].mxu0
        %v5924 = vadd.f32 0.0, %v5923
        %v5925 = vpop.f32.mrb[0].mxu0
        %5926 = vmatprep.mubr.f32.mxu0 0.0
        %5927 = vmatmul.mubr.f32.gmra.mrb[0].mxu0 %v5721
        %v5928 = vpop.f32.mrb[0].mxu0
        %v5929 = vadd.f32 0.0, %v5928
        %v5930 = vpop.f32.mrb[0].mxu0
        %5931 = vmatprep.mubr.f32.mxu0 0.0
        %5932 = vmatmul.mubr.f32.gmra.mrb[0].mxu0 %v5724
        %v5933 = vpop.f32.mrb[0].mxu0
        %v5934 = vadd.f32 0.0, %v5933
        %v5935 = vpop.f32.mrb[0].mxu0
        %5936 = vmatprep.mubr.f32.mxu0 0.0
        %5937 = vmatmul.mubr.f32.gmra.mrb[0].mxu0 %v5727
        %v5938 = vpop.f32.mrb[0].mxu0
        %v5939 = vadd.f32 0.0, %v5938
        %v5940 = vpop.f32.mrb[0].mxu0
        %5941 = vmatprep.mubr.f32.mxu0 0.0
        %5942 = vmatmul.mubr.f32.gmra.mrb[0].mxu0 %v5730
        %v5943 = vpop.f32.mrb[0].mxu0
        %v5944 = vadd.f32 0.0, %v5943
        %v5945 = vpop.f32.mrb[0].mxu0
        %5946 = vmatprep.mubr.f32.mxu0 0.0
        %5947 = vmatmul.mubr.f32.gmra.mrb[0].mxu0 %v5733
        %v5948 = vpop.f32.mrb[0].mxu0
        %v5949 = vadd.f32 0.0, %v5948
        %v5950 = vpop.f32.mrb[0].mxu0
        %5951 = vmatprep.mubr.f32.mxu0 0.0
        %5952 = vmatmul.mubr.f32.gmra.mrb[0].mxu0 %v5736
        %v5953 = vpop.f32.mrb[0].mxu0
        %v5954 = vadd.f32 0.0, %v5953
        %v5955 = vpop.f32.mrb[0].mxu0
        %5956 = vmatprep.mubr.f32.mxu0 0.0
        %5957 = vmatmul.mubr.f32.gmra.mrb[0].mxu0 %v5739
        %v5958 = vpop.f32.mrb[0].mxu0
        %v5959 = vadd.f32 0.0, %v5958
        %v5960 = vpop.f32.mrb[0].mxu0
        %5961 = vmatprep.mubr.f32.mxu0 0.0
        %5962 = vmatmul.mubr.f32.gmra.mrb[0].mxu0 %v5742
        %v5963 = vpop.f32.mrb[0].mxu0
        %v5964 = vadd.f32 0.0, %v5963
        %v5965 = vpop.f32.mrb[0].mxu0
        %5966 = vmatprep.mubr.f32.mxu0 0.0
        %5967 = vmatmul.mubr.f32.gmra.mrb[0].mxu0 %v5745
        %v5968 = vpop.f32.mrb[0].mxu0
        %v5969 = vadd.f32 0.0, %v5968
        %v5970 = vpop.f32.mrb[0].mxu0
        %5971 = vdwg.mxu0
        %v5972 = vadd.f32 %v5585, %v5814
        %v5973 = vadd.f32 %v5586, %v5819
        %v5974 = vadd.f32 %v5587, %v5824
        %v5975 = vadd.f32 %v5588, %v5829
        %v5976 = vadd.f32 %v5589, %v5834
        %v5977 = vadd.f32 %v5590, %v5839
        %v5978 = vadd.f32 %v5591, %v5844
        %v5979 = vadd.f32 %v5592, %v5849
        %v5980 = vadd.f32 %v5593, %v5854
        %v5981 = vadd.f32 %v5594, %v5859
        %v5982 = vadd.f32 %v5595, %v5864
        %v5983 = vadd.f32 %v5596, %v5869
        %v5984 = vadd.f32 %v5597, %v5874
        %v5985 = vadd.f32 %v5598, %v5879
        %v5986 = vadd.f32 %v5599, %v5884
        %v5987 = vadd.f32 %v5600, %v5889
        %v5988 = vadd.f32 %v5601, %v5894
        %v5989 = vadd.f32 %v5602, %v5899
        %v5990 = vadd.f32 %v5603, %v5904
        %v5991 = vadd.f32 %v5604, %v5909
        %v5992 = vadd.f32 %v5605, %v5914
        %v5993 = vadd.f32 %v5606, %v5919
        %v5994 = vadd.f32 %v5607, %v5924
        %v5995 = vadd.f32 %v5608, %v5929
        %v5996 = vadd.f32 %v5609, %v5934
        %v5997 = vadd.f32 %v5610, %v5939
        %v5998 = vadd.f32 %v5611, %v5944
        %v5999 = vadd.f32 %v5612, %v5949
        %v6000 = vadd.f32 %v5613, %v5954
        %v6001 = vadd.f32 %v5614, %v5959
        %v6002 = vadd.f32 %v5615, %v5964
        %v6003 = vadd.f32 %v5616, %v5969
        %v6004 = vld [vmem:[%s4101 + $0x2] sm:$0xff]
        %v6005 = vld [vmem:[%s4101 + $0xa] sm:$0xff]
        %v6006 = vld [vmem:[%s4101 + $0x1a] sm:$0xff]
        %v6007 = vld [vmem:[%s4101 + $0x22] sm:$0xff]
        %v6008 = vld [vmem:[%s4101 + $0x32] sm:$0xff]
        %v6009 = vld [vmem:[%s4101 + $0x3a] sm:$0xff]
        %v6010 = vld [vmem:[%s4101 + $0x4a] sm:$0xff]
        %v6011 = vld [vmem:[%s4101 + $0x52] sm:$0xff]
        %v6012 = vld [vmem:[%s4101 + $0x62] sm:$0xff]
        %v6013 = vld [vmem:[%s4101 + $0x6a] sm:$0xff]
        %v6014 = vld [vmem:[%s4101 + $0x7a] sm:$0xff]
        %v6015 = vld [vmem:[%s4101 + $0x82] sm:$0xff]
        %v6016 = vld [vmem:[%s4101 + $0x92] sm:$0xff]
        %v6017 = vld [vmem:[%s4101 + $0x9a] sm:$0xff]
        %v6018 = vld [vmem:[%s4101 + $0xaa] sm:$0xff]
        %v6019 = vld [vmem:[%s4101 + $0xb2] sm:$0xff]
        %v6020 = vld [vmem:[%s4101 + $0xc2] sm:$0xff]
        %v6021 = vld [vmem:[%s4101 + $0xca] sm:$0xff]
        %v6022 = vld [vmem:[%s4101 + $0xda] sm:$0xff]
        %v6023 = vld [vmem:[%s4101 + $0xe2] sm:$0xff]
        %v6024 = vld [vmem:[%s4101 + $0xf2] sm:$0xff]
        %v6025 = vld [vmem:[%s4101 + $0xfa] sm:$0xff]
        %v6026 = vld [vmem:[%s4101 + $0x10a] sm:$0xff]
        %v6027 = vld [vmem:[%s4101 + $0x112] sm:$0xff]
        %v6028 = vld [vmem:[%s4101 + $0x122] sm:$0xff]
        %v6029 = vld [vmem:[%s4101 + $0x12a] sm:$0xff]
        %v6030 = vld [vmem:[%s4101 + $0x13a] sm:$0xff]
        %v6031 = vld [vmem:[%s4101 + $0x142] sm:$0xff]
        %v6032 = vld [vmem:[%s4101 + $0x152] sm:$0xff]
        %v6033 = vld [vmem:[%s4101 + $0x15a] sm:$0xff]
        %v6034 = vld [vmem:[%s4101 + $0x16a] sm:$0xff]
        %v6035 = vld [vmem:[%s4101 + $0x172] sm:$0xff]
        %s6036 = scalar_lea.vmem %s3, 40
        %v6037 = vld [vmem:[%s6036] sm:$0xff]
        %v6039 = vsel %vm410, %v6004, 0
        %v6042 = vsel %vm410, %v6005, 0
        %v6045 = vsel %vm410, %v6006, 0
        %v6048 = vsel %vm410, %v6007, 0
        %v6051 = vsel %vm410, %v6008, 0
        %v6054 = vsel %vm410, %v6009, 0
        %v6057 = vsel %vm410, %v6010, 0
        %v6060 = vsel %vm410, %v6011, 0
        %v6063 = vsel %vm410, %v6012, 0
        %v6066 = vsel %vm410, %v6013, 0
        %v6069 = vsel %vm410, %v6014, 0
        %v6072 = vsel %vm410, %v6015, 0
        %v6075 = vsel %vm410, %v6016, 0
        %v6078 = vsel %vm410, %v6017, 0
        %v6081 = vsel %vm410, %v6018, 0
        %v6084 = vsel %vm410, %v6019, 0
        %v6087 = vsel %vm410, %v6020, 0
        %v6090 = vsel %vm410, %v6021, 0
        %v6093 = vsel %vm410, %v6022, 0
        %v6096 = vsel %vm410, %v6023, 0
        %v6099 = vsel %vm410, %v6024, 0
        %v6102 = vsel %vm410, %v6025, 0
        %v6105 = vsel %vm410, %v6026, 0
        %v6108 = vsel %vm410, %v6027, 0
        %v6111 = vsel %vm410, %v6028, 0
        %v6114 = vsel %vm410, %v6029, 0
        %v6117 = vsel %vm410, %v6030, 0
        %v6120 = vsel %vm410, %v6031, 0
        %v6123 = vsel %vm410, %v6032, 0
        %v6126 = vsel %vm410, %v6033, 0
        %v6129 = vsel %vm410, %v6034, 0
        %v6132 = vsel %vm410, %v6035, 0
        %6134 = vmatprep.subr.mxu0 0.0
        %6135 = vmatpush1.msra.mxu0 %v6037
        %6136 = vmatprep.subr.mxu0 0.0
        %6137 = vmatpush1.msra.mxu0 0.0
        %6138 = vmatprep.subr.mxu0 0.0
        %6139 = vmatpush1.msra.mxu0 0.0
        %6140 = vmatprep.subr.mxu0 0.0
        %6141 = vmatpush1.msra.mxu0 0.0
        %6142 = vmatprep.subr.mxu0 0.0
        %6143 = vmatpush1.msra.mxu0 0.0
        %6144 = vmatprep.subr.mxu0 0.0
        %6145 = vmatpush1.msra.mxu0 0.0
        %6146 = vmatprep.subr.mxu0 0.0
        %6147 = vmatpush1.msra.mxu0 0.0
        %6148 = vmatprep.subr.mxu0 0.0
        %6149 = vmatpush1.msra.mxu0 0.0
        %6150 = vmatprep.subr.mxu0 0.0
        %6151 = vmatpush1.msra.mxu0 0.0
        %6152 = vmatprep.subr.mxu0 0.0
        %6153 = vmatpush1.msra.mxu0 0.0
        %6154 = vmatprep.subr.mxu0 0.0
        %6155 = vmatpush1.msra.mxu0 0.0
        %6156 = vmatprep.subr.mxu0 0.0
        %6157 = vmatpush1.msra.mxu0 0.0
        %6158 = vmatprep.subr.mxu0 0.0
        %6159 = vmatpush1.msra.mxu0 0.0
        %6160 = vmatprep.subr.mxu0 0.0
        %6161 = vmatpush1.msra.mxu0 0.0
        %6162 = vmatprep.subr.mxu0 0.0
        %6163 = vmatpush1.msra.mxu0 0.0
        %6164 = vmatprep.subr.mxu0 0.0
        %6165 = vmatpush1.msra.mxu0 0.0
        %6166 = vmatprep.subr.mxu0 0.0
        %6167 = vmatpush1.msra.mxu0 0.0
        %6168 = vmatprep.subr.mxu0 0.0
        %6169 = vmatpush1.msra.mxu0 0.0
        %6170 = vmatprep.subr.mxu0 0.0
        %6171 = vmatpush1.msra.mxu0 0.0
        %6172 = vmatprep.subr.mxu0 0.0
        %6173 = vmatpush1.msra.mxu0 0.0
        %6174 = vmatprep.subr.mxu0 0.0
        %6175 = vmatpush1.msra.mxu0 0.0
        %6176 = vmatprep.subr.mxu0 0.0
        %6177 = vmatpush1.msra.mxu0 0.0
        %6178 = vmatprep.subr.mxu0 0.0
        %6179 = vmatpush1.msra.mxu0 0.0
        %6180 = vmatprep.subr.mxu0 0.0
        %6181 = vmatpush1.msra.mxu0 0.0
        %6182 = vmatprep.subr.mxu0 0.0
        %6183 = vmatpush1.msra.mxu0 0.0
        %6184 = vmatprep.subr.mxu0 0.0
        %6185 = vmatpush1.msra.mxu0 0.0
        %6186 = vmatprep.subr.mxu0 0.0
        %6187 = vmatpush1.msra.mxu0 0.0
        %6188 = vmatprep.subr.mxu0 0.0
        %6189 = vmatpush1.msra.mxu0 0.0
        %6190 = vmatprep.subr.mxu0 0.0
        %6191 = vmatpush1.msra.mxu0 0.0
        %6192 = vmatprep.subr.mxu0 0.0
        %6193 = vmatpush1.msra.mxu0 0.0
        %6194 = vmatprep.subr.mxu0 0.0
        %6195 = vmatpush1.msra.mxu0 0.0
        %6196 = vmatprep.subr.mxu0 0.0
        %6197 = vmatpush1.msra.mxu0 0.0
        %6198 = vmatprep.mubr.f32.mxu0 0.0
        %6199 = vmatmul.mubr.f32.gmra.mrb[0].mxu0 %v6039
        %v6200 = vpop.f32.mrb[0].mxu0
        %v6201 = vadd.f32 0.0, %v6200
        %v6202 = vpop.f32.mrb[0].mxu0
        %6203 = vmatprep.mubr.f32.mxu0 0.0
        %6204 = vmatmul.mubr.f32.gmra.mrb[0].mxu0 %v6042
        %v6205 = vpop.f32.mrb[0].mxu0
        %v6206 = vadd.f32 0.0, %v6205
        %v6207 = vpop.f32.mrb[0].mxu0
        %6208 = vmatprep.mubr.f32.mxu0 0.0
        %6209 = vmatmul.mubr.f32.gmra.mrb[0].mxu0 %v6045
        %v6210 = vpop.f32.mrb[0].mxu0
        %v6211 = vadd.f32 0.0, %v6210
        %v6212 = vpop.f32.mrb[0].mxu0
        %6213 = vmatprep.mubr.f32.mxu0 0.0
        %6214 = vmatmul.mubr.f32.gmra.mrb[0].mxu0 %v6048
        %v6215 = vpop.f32.mrb[0].mxu0
        %v6216 = vadd.f32 0.0, %v6215
        %v6217 = vpop.f32.mrb[0].mxu0
        %6218 = vmatprep.mubr.f32.mxu0 0.0
        %6219 = vmatmul.mubr.f32.gmra.mrb[0].mxu0 %v6051
        %v6220 = vpop.f32.mrb[0].mxu0
        %v6221 = vadd.f32 0.0, %v6220
        %v6222 = vpop.f32.mrb[0].mxu0
        %6223 = vmatprep.mubr.f32.mxu0 0.0
        %6224 = vmatmul.mubr.f32.gmra.mrb[0].mxu0 %v6054
        %v6225 = vpop.f32.mrb[0].mxu0
        %v6226 = vadd.f32 0.0, %v6225
        %v6227 = vpop.f32.mrb[0].mxu0
        %6228 = vmatprep.mubr.f32.mxu0 0.0
        %6229 = vmatmul.mubr.f32.gmra.mrb[0].mxu0 %v6057
        %v6230 = vpop.f32.mrb[0].mxu0
        %v6231 = vadd.f32 0.0, %v6230
        %v6232 = vpop.f32.mrb[0].mxu0
        %6233 = vmatprep.mubr.f32.mxu0 0.0
        %6234 = vmatmul.mubr.f32.gmra.mrb[0].mxu0 %v6060
        %v6235 = vpop.f32.mrb[0].mxu0
        %v6236 = vadd.f32 0.0, %v6235
        %v6237 = vpop.f32.mrb[0].mxu0
        %6238 = vmatprep.mubr.f32.mxu0 0.0
        %6239 = vmatmul.mubr.f32.gmra.mrb[0].mxu0 %v6063
        %v6240 = vpop.f32.mrb[0].mxu0
        %v6241 = vadd.f32 0.0, %v6240
        %v6242 = vpop.f32.mrb[0].mxu0
        %6243 = vmatprep.mubr.f32.mxu0 0.0
        %6244 = vmatmul.mubr.f32.gmra.mrb[0].mxu0 %v6066
        %v6245 = vpop.f32.mrb[0].mxu0
        %v6246 = vadd.f32 0.0, %v6245
        %v6247 = vpop.f32.mrb[0].mxu0
        %6248 = vmatprep.mubr.f32.mxu0 0.0
        %6249 = vmatmul.mubr.f32.gmra.mrb[0].mxu0 %v6069
        %v6250 = vpop.f32.mrb[0].mxu0
        %v6251 = vadd.f32 0.0, %v6250
        %v6252 = vpop.f32.mrb[0].mxu0
        %6253 = vmatprep.mubr.f32.mxu0 0.0
        %6254 = vmatmul.mubr.f32.gmra.mrb[0].mxu0 %v6072
        %v6255 = vpop.f32.mrb[0].mxu0
        %v6256 = vadd.f32 0.0, %v6255
        %v6257 = vpop.f32.mrb[0].mxu0
        %6258 = vmatprep.mubr.f32.mxu0 0.0
        %6259 = vmatmul.mubr.f32.gmra.mrb[0].mxu0 %v6075
        %v6260 = vpop.f32.mrb[0].mxu0
        %v6261 = vadd.f32 0.0, %v6260
        %v6262 = vpop.f32.mrb[0].mxu0
        %6263 = vmatprep.mubr.f32.mxu0 0.0
        %6264 = vmatmul.mubr.f32.gmra.mrb[0].mxu0 %v6078
        %v6265 = vpop.f32.mrb[0].mxu0
        %v6266 = vadd.f32 0.0, %v6265
        %v6267 = vpop.f32.mrb[0].mxu0
        %6268 = vmatprep.mubr.f32.mxu0 0.0
        %6269 = vmatmul.mubr.f32.gmra.mrb[0].mxu0 %v6081
        %v6270 = vpop.f32.mrb[0].mxu0
        %v6271 = vadd.f32 0.0, %v6270
        %v6272 = vpop.f32.mrb[0].mxu0
        %6273 = vmatprep.mubr.f32.mxu0 0.0
        %6274 = vmatmul.mubr.f32.gmra.mrb[0].mxu0 %v6084
        %v6275 = vpop.f32.mrb[0].mxu0
        %v6276 = vadd.f32 0.0, %v6275
        %v6277 = vpop.f32.mrb[0].mxu0
        %6278 = vmatprep.mubr.f32.mxu0 0.0
        %6279 = vmatmul.mubr.f32.gmra.mrb[0].mxu0 %v6087
        %v6280 = vpop.f32.mrb[0].mxu0
        %v6281 = vadd.f32 0.0, %v6280
        %v6282 = vpop.f32.mrb[0].mxu0
        %6283 = vmatprep.mubr.f32.mxu0 0.0
        %6284 = vmatmul.mubr.f32.gmra.mrb[0].mxu0 %v6090
        %v6285 = vpop.f32.mrb[0].mxu0
        %v6286 = vadd.f32 0.0, %v6285
        %v6287 = vpop.f32.mrb[0].mxu0
        %6288 = vmatprep.mubr.f32.mxu0 0.0
        %6289 = vmatmul.mubr.f32.gmra.mrb[0].mxu0 %v6093
        %v6290 = vpop.f32.mrb[0].mxu0
        %v6291 = vadd.f32 0.0, %v6290
        %v6292 = vpop.f32.mrb[0].mxu0
        %6293 = vmatprep.mubr.f32.mxu0 0.0
        %6294 = vmatmul.mubr.f32.gmra.mrb[0].mxu0 %v6096
        %v6295 = vpop.f32.mrb[0].mxu0
        %v6296 = vadd.f32 0.0, %v6295
        %v6297 = vpop.f32.mrb[0].mxu0
        %6298 = vmatprep.mubr.f32.mxu0 0.0
        %6299 = vmatmul.mubr.f32.gmra.mrb[0].mxu0 %v6099
        %v6300 = vpop.f32.mrb[0].mxu0
        %v6301 = vadd.f32 0.0, %v6300
        %v6302 = vpop.f32.mrb[0].mxu0
        %6303 = vmatprep.mubr.f32.mxu0 0.0
        %6304 = vmatmul.mubr.f32.gmra.mrb[0].mxu0 %v6102
        %v6305 = vpop.f32.mrb[0].mxu0
        %v6306 = vadd.f32 0.0, %v6305
        %v6307 = vpop.f32.mrb[0].mxu0
        %6308 = vmatprep.mubr.f32.mxu0 0.0
        %6309 = vmatmul.mubr.f32.gmra.mrb[0].mxu0 %v6105
        %v6310 = vpop.f32.mrb[0].mxu0
        %v6311 = vadd.f32 0.0, %v6310
        %v6312 = vpop.f32.mrb[0].mxu0
        %6313 = vmatprep.mubr.f32.mxu0 0.0
        %6314 = vmatmul.mubr.f32.gmra.mrb[0].mxu0 %v6108
        %v6315 = vpop.f32.mrb[0].mxu0
        %v6316 = vadd.f32 0.0, %v6315
        %v6317 = vpop.f32.mrb[0].mxu0
        %6318 = vmatprep.mubr.f32.mxu0 0.0
        %6319 = vmatmul.mubr.f32.gmra.mrb[0].mxu0 %v6111
        %v6320 = vpop.f32.mrb[0].mxu0
        %v6321 = vadd.f32 0.0, %v6320
        %v6322 = vpop.f32.mrb[0].mxu0
        %6323 = vmatprep.mubr.f32.mxu0 0.0
        %6324 = vmatmul.mubr.f32.gmra.mrb[0].mxu0 %v6114
        %v6325 = vpop.f32.mrb[0].mxu0
        %v6326 = vadd.f32 0.0, %v6325
        %v6327 = vpop.f32.mrb[0].mxu0
        %6328 = vmatprep.mubr.f32.mxu0 0.0
        %6329 = vmatmul.mubr.f32.gmra.mrb[0].mxu0 %v6117
        %v6330 = vpop.f32.mrb[0].mxu0
        %v6331 = vadd.f32 0.0, %v6330
        %v6332 = vpop.f32.mrb[0].mxu0
        %6333 = vmatprep.mubr.f32.mxu0 0.0
        %6334 = vmatmul.mubr.f32.gmra.mrb[0].mxu0 %v6120
        %v6335 = vpop.f32.mrb[0].mxu0
        %v6336 = vadd.f32 0.0, %v6335
        %v6337 = vpop.f32.mrb[0].mxu0
        %6338 = vmatprep.mubr.f32.mxu0 0.0
        %6339 = vmatmul.mubr.f32.gmra.mrb[0].mxu0 %v6123
        %v6340 = vpop.f32.mrb[0].mxu0
        %v6341 = vadd.f32 0.0, %v6340
        %v6342 = vpop.f32.mrb[0].mxu0
        %6343 = vmatprep.mubr.f32.mxu0 0.0
        %6344 = vmatmul.mubr.f32.gmra.mrb[0].mxu0 %v6126
        %v6345 = vpop.f32.mrb[0].mxu0
        %v6346 = vadd.f32 0.0, %v6345
        %v6347 = vpop.f32.mrb[0].mxu0
        %6348 = vmatprep.mubr.f32.mxu0 0.0
        %6349 = vmatmul.mubr.f32.gmra.mrb[0].mxu0 %v6129
        %v6350 = vpop.f32.mrb[0].mxu0
        %v6351 = vadd.f32 0.0, %v6350
        %v6352 = vpop.f32.mrb[0].mxu0
        %6353 = vmatprep.mubr.f32.mxu0 0.0
        %6354 = vmatmul.mubr.f32.gmra.mrb[0].mxu0 %v6132
        %v6355 = vpop.f32.mrb[0].mxu0
        %v6356 = vadd.f32 0.0, %v6355
        %v6357 = vpop.f32.mrb[0].mxu0
        %6358 = vdwg.mxu0
        %v6359 = vadd.f32 %v5972, %v6201
        %v6360 = vadd.f32 %v5973, %v6206
        %v6361 = vadd.f32 %v5974, %v6211
        %v6362 = vadd.f32 %v5975, %v6216
        %v6363 = vadd.f32 %v5976, %v6221
        %v6364 = vadd.f32 %v5977, %v6226
        %v6365 = vadd.f32 %v5978, %v6231
        %v6366 = vadd.f32 %v5979, %v6236
        %v6367 = vadd.f32 %v5980, %v6241
        %v6368 = vadd.f32 %v5981, %v6246
        %v6369 = vadd.f32 %v5982, %v6251
        %v6370 = vadd.f32 %v5983, %v6256
        %v6371 = vadd.f32 %v5984, %v6261
        %v6372 = vadd.f32 %v5985, %v6266
        %v6373 = vadd.f32 %v5986, %v6271
        %v6374 = vadd.f32 %v5987, %v6276
        %v6375 = vadd.f32 %v5988, %v6281
        %v6376 = vadd.f32 %v5989, %v6286
        %v6377 = vadd.f32 %v5990, %v6291
        %v6378 = vadd.f32 %v5991, %v6296
        %v6379 = vadd.f32 %v5992, %v6301
        %v6380 = vadd.f32 %v5993, %v6306
        %v6381 = vadd.f32 %v5994, %v6311
        %v6382 = vadd.f32 %v5995, %v6316
        %v6383 = vadd.f32 %v5996, %v6321
        %v6384 = vadd.f32 %v5997, %v6326
        %v6385 = vadd.f32 %v5998, %v6331
        %v6386 = vadd.f32 %v5999, %v6336
        %v6387 = vadd.f32 %v6000, %v6341
        %v6388 = vadd.f32 %v6001, %v6346
        %v6389 = vadd.f32 %v6002, %v6351
        %v6390 = vadd.f32 %v6003, %v6356
        %s6391 = scalar_lea.vmem [#allocation3], 48
        %v6392 = vld [vmem:[%s6391] sm:$0xff]
        %v6393 = vld [vmem:[%s6391 + $0x8] sm:$0xff]
        %v6394 = vld [vmem:[%s6391 + $0x18] sm:$0xff]
        %v6395 = vld [vmem:[%s6391 + $0x20] sm:$0xff]
        %v6396 = vld [vmem:[%s6391 + $0x30] sm:$0xff]
        %v6397 = vld [vmem:[%s6391 + $0x38] sm:$0xff]
        %v6398 = vld [vmem:[%s6391 + $0x48] sm:$0xff]
        %v6399 = vld [vmem:[%s6391 + $0x50] sm:$0xff]
        %v6400 = vld [vmem:[%s6391 + $0x60] sm:$0xff]
        %v6401 = vld [vmem:[%s6391 + $0x68] sm:$0xff]
        %v6402 = vld [vmem:[%s6391 + $0x78] sm:$0xff]
        %v6403 = vld [vmem:[%s6391 + $0x80] sm:$0xff]
        %v6404 = vld [vmem:[%s6391 + $0x90] sm:$0xff]
        %v6405 = vld [vmem:[%s6391 + $0x98] sm:$0xff]
        %v6406 = vld [vmem:[%s6391 + $0xa8] sm:$0xff]
        %v6407 = vld [vmem:[%s6391 + $0xb0] sm:$0xff]
        %v6408 = vld [vmem:[%s6391 + $0xc0] sm:$0xff]
        %v6409 = vld [vmem:[%s6391 + $0xc8] sm:$0xff]
        %v6410 = vld [vmem:[%s6391 + $0xd8] sm:$0xff]
        %v6411 = vld [vmem:[%s6391 + $0xe0] sm:$0xff]
        %v6412 = vld [vmem:[%s6391 + $0xf0] sm:$0xff]
        %v6413 = vld [vmem:[%s6391 + $0xf8] sm:$0xff]
        %v6414 = vld [vmem:[%s6391 + $0x108] sm:$0xff]
        %v6415 = vld [vmem:[%s6391 + $0x110] sm:$0xff]
        %v6416 = vld [vmem:[%s6391 + $0x120] sm:$0xff]
        %v6417 = vld [vmem:[%s6391 + $0x128] sm:$0xff]
        %v6418 = vld [vmem:[%s6391 + $0x138] sm:$0xff]
        %v6419 = vld [vmem:[%s6391 + $0x140] sm:$0xff]
        %v6420 = vld [vmem:[%s6391 + $0x150] sm:$0xff]
        %v6421 = vld [vmem:[%s6391 + $0x158] sm:$0xff]
        %v6422 = vld [vmem:[%s6391 + $0x168] sm:$0xff]
        %v6423 = vld [vmem:[%s6391 + $0x170] sm:$0xff]
        %s6424 = scalar_lea.vmem %s3, 48
        %v6425 = vld [vmem:[%s6424] sm:$0xff]
        %v6427 = vsel %vm410, %v6392, 0
        %v6430 = vsel %vm410, %v6393, 0
        %v6433 = vsel %vm410, %v6394, 0
        %v6436 = vsel %vm410, %v6395, 0
        %v6439 = vsel %vm410, %v6396, 0
        %v6442 = vsel %vm410, %v6397, 0
        %v6445 = vsel %vm410, %v6398, 0
        %v6448 = vsel %vm410, %v6399, 0
        %v6451 = vsel %vm410, %v6400, 0
        %v6454 = vsel %vm410, %v6401, 0
        %v6457 = vsel %vm410, %v6402, 0
        %v6460 = vsel %vm410, %v6403, 0
        %v6463 = vsel %vm410, %v6404, 0
        %v6466 = vsel %vm410, %v6405, 0
        %v6469 = vsel %vm410, %v6406, 0
        %v6472 = vsel %vm410, %v6407, 0
        %v6475 = vsel %vm410, %v6408, 0
        %v6478 = vsel %vm410, %v6409, 0
        %v6481 = vsel %vm410, %v6410, 0
        %v6484 = vsel %vm410, %v6411, 0
        %v6487 = vsel %vm410, %v6412, 0
        %v6490 = vsel %vm410, %v6413, 0
        %v6493 = vsel %vm410, %v6414, 0
        %v6496 = vsel %vm410, %v6415, 0
        %v6499 = vsel %vm410, %v6416, 0
        %v6502 = vsel %vm410, %v6417, 0
        %v6505 = vsel %vm410, %v6418, 0
        %v6508 = vsel %vm410, %v6419, 0
        %v6511 = vsel %vm410, %v6420, 0
        %v6514 = vsel %vm410, %v6421, 0
        %v6517 = vsel %vm410, %v6422, 0
        %v6520 = vsel %vm410, %v6423, 0
        %6522 = vmatprep.subr.mxu0 0.0
        %6523 = vmatpush1.msra.mxu0 %v6425
        %6524 = vmatprep.subr.mxu0 0.0
        %6525 = vmatpush1.msra.mxu0 0.0
        %6526 = vmatprep.subr.mxu0 0.0
        %6527 = vmatpush1.msra.mxu0 0.0
        %6528 = vmatprep.subr.mxu0 0.0
        %6529 = vmatpush1.msra.mxu0 0.0
        %6530 = vmatprep.subr.mxu0 0.0
        %6531 = vmatpush1.msra.mxu0 0.0
        %6532 = vmatprep.subr.mxu0 0.0
        %6533 = vmatpush1.msra.mxu0 0.0
        %6534 = vmatprep.subr.mxu0 0.0
        %6535 = vmatpush1.msra.mxu0 0.0
        %6536 = vmatprep.subr.mxu0 0.0
        %6537 = vmatpush1.msra.mxu0 0.0
        %6538 = vmatprep.subr.mxu0 0.0
        %6539 = vmatpush1.msra.mxu0 0.0
        %6540 = vmatprep.subr.mxu0 0.0
        %6541 = vmatpush1.msra.mxu0 0.0
        %6542 = vmatprep.subr.mxu0 0.0
        %6543 = vmatpush1.msra.mxu0 0.0
        %6544 = vmatprep.subr.mxu0 0.0
        %6545 = vmatpush1.msra.mxu0 0.0
        %6546 = vmatprep.subr.mxu0 0.0
        %6547 = vmatpush1.msra.mxu0 0.0
        %6548 = vmatprep.subr.mxu0 0.0
        %6549 = vmatpush1.msra.mxu0 0.0
        %6550 = vmatprep.subr.mxu0 0.0
        %6551 = vmatpush1.msra.mxu0 0.0
        %6552 = vmatprep.subr.mxu0 0.0
        %6553 = vmatpush1.msra.mxu0 0.0
        %6554 = vmatprep.subr.mxu0 0.0
        %6555 = vmatpush1.msra.mxu0 0.0
        %6556 = vmatprep.subr.mxu0 0.0
        %6557 = vmatpush1.msra.mxu0 0.0
        %6558 = vmatprep.subr.mxu0 0.0
        %6559 = vmatpush1.msra.mxu0 0.0
        %6560 = vmatprep.subr.mxu0 0.0
        %6561 = vmatpush1.msra.mxu0 0.0
        %6562 = vmatprep.subr.mxu0 0.0
        %6563 = vmatpush1.msra.mxu0 0.0
        %6564 = vmatprep.subr.mxu0 0.0
        %6565 = vmatpush1.msra.mxu0 0.0
        %6566 = vmatprep.subr.mxu0 0.0
        %6567 = vmatpush1.msra.mxu0 0.0
        %6568 = vmatprep.subr.mxu0 0.0
        %6569 = vmatpush1.msra.mxu0 0.0
        %6570 = vmatprep.subr.mxu0 0.0
        %6571 = vmatpush1.msra.mxu0 0.0
        %6572 = vmatprep.subr.mxu0 0.0
        %6573 = vmatpush1.msra.mxu0 0.0
        %6574 = vmatprep.subr.mxu0 0.0
        %6575 = vmatpush1.msra.mxu0 0.0
        %6576 = vmatprep.subr.mxu0 0.0
        %6577 = vmatpush1.msra.mxu0 0.0
        %6578 = vmatprep.subr.mxu0 0.0
        %6579 = vmatpush1.msra.mxu0 0.0
        %6580 = vmatprep.subr.mxu0 0.0
        %6581 = vmatpush1.msra.mxu0 0.0
        %6582 = vmatprep.subr.mxu0 0.0
        %6583 = vmatpush1.msra.mxu0 0.0
        %6584 = vmatprep.subr.mxu0 0.0
        %6585 = vmatpush1.msra.mxu0 0.0
        %6586 = vmatprep.mubr.f32.mxu0 0.0
        %6587 = vmatmul.mubr.f32.gmra.mrb[0].mxu0 %v6427
        %v6588 = vpop.f32.mrb[0].mxu0
        %v6589 = vadd.f32 0.0, %v6588
        %v6590 = vpop.f32.mrb[0].mxu0
        %6591 = vmatprep.mubr.f32.mxu0 0.0
        %6592 = vmatmul.mubr.f32.gmra.mrb[0].mxu0 %v6430
        %v6593 = vpop.f32.mrb[0].mxu0
        %v6594 = vadd.f32 0.0, %v6593
        %v6595 = vpop.f32.mrb[0].mxu0
        %6596 = vmatprep.mubr.f32.mxu0 0.0
        %6597 = vmatmul.mubr.f32.gmra.mrb[0].mxu0 %v6433
        %v6598 = vpop.f32.mrb[0].mxu0
        %v6599 = vadd.f32 0.0, %v6598
        %v6600 = vpop.f32.mrb[0].mxu0
        %6601 = vmatprep.mubr.f32.mxu0 0.0
        %6602 = vmatmul.mubr.f32.gmra.mrb[0].mxu0 %v6436
        %v6603 = vpop.f32.mrb[0].mxu0
        %v6604 = vadd.f32 0.0, %v6603
        %v6605 = vpop.f32.mrb[0].mxu0
        %6606 = vmatprep.mubr.f32.mxu0 0.0
        %6607 = vmatmul.mubr.f32.gmra.mrb[0].mxu0 %v6439
        %v6608 = vpop.f32.mrb[0].mxu0
        %v6609 = vadd.f32 0.0, %v6608
        %v6610 = vpop.f32.mrb[0].mxu0
        %6611 = vmatprep.mubr.f32.mxu0 0.0
        %6612 = vmatmul.mubr.f32.gmra.mrb[0].mxu0 %v6442
        %v6613 = vpop.f32.mrb[0].mxu0
        %v6614 = vadd.f32 0.0, %v6613
        %v6615 = vpop.f32.mrb[0].mxu0
        %6616 = vmatprep.mubr.f32.mxu0 0.0
        %6617 = vmatmul.mubr.f32.gmra.mrb[0].mxu0 %v6445
        %v6618 = vpop.f32.mrb[0].mxu0
        %v6619 = vadd.f32 0.0, %v6618
        %v6620 = vpop.f32.mrb[0].mxu0
        %6621 = vmatprep.mubr.f32.mxu0 0.0
        %6622 = vmatmul.mubr.f32.gmra.mrb[0].mxu0 %v6448
        %v6623 = vpop.f32.mrb[0].mxu0
        %v6624 = vadd.f32 0.0, %v6623
        %v6625 = vpop.f32.mrb[0].mxu0
        %6626 = vmatprep.mubr.f32.mxu0 0.0
        %6627 = vmatmul.mubr.f32.gmra.mrb[0].mxu0 %v6451
        %v6628 = vpop.f32.mrb[0].mxu0
        %v6629 = vadd.f32 0.0, %v6628
        %v6630 = vpop.f32.mrb[0].mxu0
        %6631 = vmatprep.mubr.f32.mxu0 0.0
        %6632 = vmatmul.mubr.f32.gmra.mrb[0].mxu0 %v6454
        %v6633 = vpop.f32.mrb[0].mxu0
        %v6634 = vadd.f32 0.0, %v6633
        %v6635 = vpop.f32.mrb[0].mxu0
        %6636 = vmatprep.mubr.f32.mxu0 0.0
        %6637 = vmatmul.mubr.f32.gmra.mrb[0].mxu0 %v6457
        %v6638 = vpop.f32.mrb[0].mxu0
        %v6639 = vadd.f32 0.0, %v6638
        %v6640 = vpop.f32.mrb[0].mxu0
        %6641 = vmatprep.mubr.f32.mxu0 0.0
        %6642 = vmatmul.mubr.f32.gmra.mrb[0].mxu0 %v6460
        %v6643 = vpop.f32.mrb[0].mxu0
        %v6644 = vadd.f32 0.0, %v6643
        %v6645 = vpop.f32.mrb[0].mxu0
        %6646 = vmatprep.mubr.f32.mxu0 0.0
        %6647 = vmatmul.mubr.f32.gmra.mrb[0].mxu0 %v6463
        %v6648 = vpop.f32.mrb[0].mxu0
        %v6649 = vadd.f32 0.0, %v6648
        %v6650 = vpop.f32.mrb[0].mxu0
        %6651 = vmatprep.mubr.f32.mxu0 0.0
        %6652 = vmatmul.mubr.f32.gmra.mrb[0].mxu0 %v6466
        %v6653 = vpop.f32.mrb[0].mxu0
        %v6654 = vadd.f32 0.0, %v6653
        %v6655 = vpop.f32.mrb[0].mxu0
        %6656 = vmatprep.mubr.f32.mxu0 0.0
        %6657 = vmatmul.mubr.f32.gmra.mrb[0].mxu0 %v6469
        %v6658 = vpop.f32.mrb[0].mxu0
        %v6659 = vadd.f32 0.0, %v6658
        %v6660 = vpop.f32.mrb[0].mxu0
        %6661 = vmatprep.mubr.f32.mxu0 0.0
        %6662 = vmatmul.mubr.f32.gmra.mrb[0].mxu0 %v6472
        %v6663 = vpop.f32.mrb[0].mxu0
        %v6664 = vadd.f32 0.0, %v6663
        %v6665 = vpop.f32.mrb[0].mxu0
        %6666 = vmatprep.mubr.f32.mxu0 0.0
        %6667 = vmatmul.mubr.f32.gmra.mrb[0].mxu0 %v6475
        %v6668 = vpop.f32.mrb[0].mxu0
        %v6669 = vadd.f32 0.0, %v6668
        %v6670 = vpop.f32.mrb[0].mxu0
        %6671 = vmatprep.mubr.f32.mxu0 0.0
        %6672 = vmatmul.mubr.f32.gmra.mrb[0].mxu0 %v6478
        %v6673 = vpop.f32.mrb[0].mxu0
        %v6674 = vadd.f32 0.0, %v6673
        %v6675 = vpop.f32.mrb[0].mxu0
        %6676 = vmatprep.mubr.f32.mxu0 0.0
        %6677 = vmatmul.mubr.f32.gmra.mrb[0].mxu0 %v6481
        %v6678 = vpop.f32.mrb[0].mxu0
        %v6679 = vadd.f32 0.0, %v6678
        %v6680 = vpop.f32.mrb[0].mxu0
        %6681 = vmatprep.mubr.f32.mxu0 0.0
        %6682 = vmatmul.mubr.f32.gmra.mrb[0].mxu0 %v6484
        %v6683 = vpop.f32.mrb[0].mxu0
        %v6684 = vadd.f32 0.0, %v6683
        %v6685 = vpop.f32.mrb[0].mxu0
        %6686 = vmatprep.mubr.f32.mxu0 0.0
        %6687 = vmatmul.mubr.f32.gmra.mrb[0].mxu0 %v6487
        %v6688 = vpop.f32.mrb[0].mxu0
        %v6689 = vadd.f32 0.0, %v6688
        %v6690 = vpop.f32.mrb[0].mxu0
        %6691 = vmatprep.mubr.f32.mxu0 0.0
        %6692 = vmatmul.mubr.f32.gmra.mrb[0].mxu0 %v6490
        %v6693 = vpop.f32.mrb[0].mxu0
        %v6694 = vadd.f32 0.0, %v6693
        %v6695 = vpop.f32.mrb[0].mxu0
        %6696 = vmatprep.mubr.f32.mxu0 0.0
        %6697 = vmatmul.mubr.f32.gmra.mrb[0].mxu0 %v6493
        %v6698 = vpop.f32.mrb[0].mxu0
        %v6699 = vadd.f32 0.0, %v6698
        %v6700 = vpop.f32.mrb[0].mxu0
        %6701 = vmatprep.mubr.f32.mxu0 0.0
        %6702 = vmatmul.mubr.f32.gmra.mrb[0].mxu0 %v6496
        %v6703 = vpop.f32.mrb[0].mxu0
        %v6704 = vadd.f32 0.0, %v6703
        %v6705 = vpop.f32.mrb[0].mxu0
        %6706 = vmatprep.mubr.f32.mxu0 0.0
        %6707 = vmatmul.mubr.f32.gmra.mrb[0].mxu0 %v6499
        %v6708 = vpop.f32.mrb[0].mxu0
        %v6709 = vadd.f32 0.0, %v6708
        %v6710 = vpop.f32.mrb[0].mxu0
        %6711 = vmatprep.mubr.f32.mxu0 0.0
        %6712 = vmatmul.mubr.f32.gmra.mrb[0].mxu0 %v6502
        %v6713 = vpop.f32.mrb[0].mxu0
        %v6714 = vadd.f32 0.0, %v6713
        %v6715 = vpop.f32.mrb[0].mxu0
        %6716 = vmatprep.mubr.f32.mxu0 0.0
        %6717 = vmatmul.mubr.f32.gmra.mrb[0].mxu0 %v6505
        %v6718 = vpop.f32.mrb[0].mxu0
        %v6719 = vadd.f32 0.0, %v6718
        %v6720 = vpop.f32.mrb[0].mxu0
        %6721 = vmatprep.mubr.f32.mxu0 0.0
        %6722 = vmatmul.mubr.f32.gmra.mrb[0].mxu0 %v6508
        %v6723 = vpop.f32.mrb[0].mxu0
        %v6724 = vadd.f32 0.0, %v6723
        %v6725 = vpop.f32.mrb[0].mxu0
        %6726 = vmatprep.mubr.f32.mxu0 0.0
        %6727 = vmatmul.mubr.f32.gmra.mrb[0].mxu0 %v6511
        %v6728 = vpop.f32.mrb[0].mxu0
        %v6729 = vadd.f32 0.0, %v6728
        %v6730 = vpop.f32.mrb[0].mxu0
        %6731 = vmatprep.mubr.f32.mxu0 0.0
        %6732 = vmatmul.mubr.f32.gmra.mrb[0].mxu0 %v6514
        %v6733 = vpop.f32.mrb[0].mxu0
        %v6734 = vadd.f32 0.0, %v6733
        %v6735 = vpop.f32.mrb[0].mxu0
        %6736 = vmatprep.mubr.f32.mxu0 0.0
        %6737 = vmatmul.mubr.f32.gmra.mrb[0].mxu0 %v6517
        %v6738 = vpop.f32.mrb[0].mxu0
        %v6739 = vadd.f32 0.0, %v6738
        %v6740 = vpop.f32.mrb[0].mxu0
        %6741 = vmatprep.mubr.f32.mxu0 0.0
        %6742 = vmatmul.mubr.f32.gmra.mrb[0].mxu0 %v6520
        %v6743 = vpop.f32.mrb[0].mxu0
        %v6744 = vadd.f32 0.0, %v6743
        %v6745 = vpop.f32.mrb[0].mxu0
        %6746 = vdwg.mxu0
        %v6747 = vadd.f32 %v6359, %v6589
        %v6748 = vadd.f32 %v6360, %v6594
        %v6749 = vadd.f32 %v6361, %v6599
        %v6750 = vadd.f32 %v6362, %v6604
        %v6751 = vadd.f32 %v6363, %v6609
        %v6752 = vadd.f32 %v6364, %v6614
        %v6753 = vadd.f32 %v6365, %v6619
        %v6754 = vadd.f32 %v6366, %v6624
        %v6755 = vadd.f32 %v6367, %v6629
        %v6756 = vadd.f32 %v6368, %v6634
        %v6757 = vadd.f32 %v6369, %v6639
        %v6758 = vadd.f32 %v6370, %v6644
        %v6759 = vadd.f32 %v6371, %v6649
        %v6760 = vadd.f32 %v6372, %v6654
        %v6761 = vadd.f32 %v6373, %v6659
        %v6762 = vadd.f32 %v6374, %v6664
        %v6763 = vadd.f32 %v6375, %v6669
        %v6764 = vadd.f32 %v6376, %v6674
        %v6765 = vadd.f32 %v6377, %v6679
        %v6766 = vadd.f32 %v6378, %v6684
        %v6767 = vadd.f32 %v6379, %v6689
        %v6768 = vadd.f32 %v6380, %v6694
        %v6769 = vadd.f32 %v6381, %v6699
        %v6770 = vadd.f32 %v6382, %v6704
        %v6771 = vadd.f32 %v6383, %v6709
        %v6772 = vadd.f32 %v6384, %v6714
        %v6773 = vadd.f32 %v6385, %v6719
        %v6774 = vadd.f32 %v6386, %v6724
        %v6775 = vadd.f32 %v6387, %v6729
        %v6776 = vadd.f32 %v6388, %v6734
        %v6777 = vadd.f32 %v6389, %v6739
        %v6778 = vadd.f32 %v6390, %v6744
        %v6779 = vld [vmem:[%s6391 + $0x1] sm:$0xff]
        %v6780 = vld [vmem:[%s6391 + $0x9] sm:$0xff]
        %v6781 = vld [vmem:[%s6391 + $0x19] sm:$0xff]
        %v6782 = vld [vmem:[%s6391 + $0x21] sm:$0xff]
        %v6783 = vld [vmem:[%s6391 + $0x31] sm:$0xff]
        %v6784 = vld [vmem:[%s6391 + $0x39] sm:$0xff]
        %v6785 = vld [vmem:[%s6391 + $0x49] sm:$0xff]
        %v6786 = vld [vmem:[%s6391 + $0x51] sm:$0xff]
        %v6787 = vld [vmem:[%s6391 + $0x61] sm:$0xff]
        %v6788 = vld [vmem:[%s6391 + $0x69] sm:$0xff]
        %v6789 = vld [vmem:[%s6391 + $0x79] sm:$0xff]
        %v6790 = vld [vmem:[%s6391 + $0x81] sm:$0xff]
        %v6791 = vld [vmem:[%s6391 + $0x91] sm:$0xff]
        %v6792 = vld [vmem:[%s6391 + $0x99] sm:$0xff]
        %v6793 = vld [vmem:[%s6391 + $0xa9] sm:$0xff]
        %v6794 = vld [vmem:[%s6391 + $0xb1] sm:$0xff]
        %v6795 = vld [vmem:[%s6391 + $0xc1] sm:$0xff]
        %v6796 = vld [vmem:[%s6391 + $0xc9] sm:$0xff]
        %v6797 = vld [vmem:[%s6391 + $0xd9] sm:$0xff]
        %v6798 = vld [vmem:[%s6391 + $0xe1] sm:$0xff]
        %v6799 = vld [vmem:[%s6391 + $0xf1] sm:$0xff]
        %v6800 = vld [vmem:[%s6391 + $0xf9] sm:$0xff]
        %v6801 = vld [vmem:[%s6391 + $0x109] sm:$0xff]
        %v6802 = vld [vmem:[%s6391 + $0x111] sm:$0xff]
        %v6803 = vld [vmem:[%s6391 + $0x121] sm:$0xff]
        %v6804 = vld [vmem:[%s6391 + $0x129] sm:$0xff]
        %v6805 = vld [vmem:[%s6391 + $0x139] sm:$0xff]
        %v6806 = vld [vmem:[%s6391 + $0x141] sm:$0xff]
        %v6807 = vld [vmem:[%s6391 + $0x151] sm:$0xff]
        %v6808 = vld [vmem:[%s6391 + $0x159] sm:$0xff]
        %v6809 = vld [vmem:[%s6391 + $0x169] sm:$0xff]
        %v6810 = vld [vmem:[%s6391 + $0x171] sm:$0xff]
        %s6811 = scalar_lea.vmem %s3, 56
        %v6812 = vld [vmem:[%s6811] sm:$0xff]
        %v6814 = vsel %vm410, %v6779, 0
        %v6817 = vsel %vm410, %v6780, 0
        %v6820 = vsel %vm410, %v6781, 0
        %v6823 = vsel %vm410, %v6782, 0
        %v6826 = vsel %vm410, %v6783, 0
        %v6829 = vsel %vm410, %v6784, 0
        %v6832 = vsel %vm410, %v6785, 0
        %v6835 = vsel %vm410, %v6786, 0
        %v6838 = vsel %vm410, %v6787, 0
        %v6841 = vsel %vm410, %v6788, 0
        %v6844 = vsel %vm410, %v6789, 0
        %v6847 = vsel %vm410, %v6790, 0
        %v6850 = vsel %vm410, %v6791, 0
        %v6853 = vsel %vm410, %v6792, 0
        %v6856 = vsel %vm410, %v6793, 0
        %v6859 = vsel %vm410, %v6794, 0
        %v6862 = vsel %vm410, %v6795, 0
        %v6865 = vsel %vm410, %v6796, 0
        %v6868 = vsel %vm410, %v6797, 0
        %v6871 = vsel %vm410, %v6798, 0
        %v6874 = vsel %vm410, %v6799, 0
        %v6877 = vsel %vm410, %v6800, 0
        %v6880 = vsel %vm410, %v6801, 0
        %v6883 = vsel %vm410, %v6802, 0
        %v6886 = vsel %vm410, %v6803, 0
        %v6889 = vsel %vm410, %v6804, 0
        %v6892 = vsel %vm410, %v6805, 0
        %v6895 = vsel %vm410, %v6806, 0
        %v6898 = vsel %vm410, %v6807, 0
        %v6901 = vsel %vm410, %v6808, 0
        %v6904 = vsel %vm410, %v6809, 0
        %v6907 = vsel %vm410, %v6810, 0
        %6909 = vmatprep.subr.mxu0 0.0
        %6910 = vmatpush1.msra.mxu0 %v6812
        %6911 = vmatprep.subr.mxu0 0.0
        %6912 = vmatpush1.msra.mxu0 0.0
        %6913 = vmatprep.subr.mxu0 0.0
        %6914 = vmatpush1.msra.mxu0 0.0
        %6915 = vmatprep.subr.mxu0 0.0
        %6916 = vmatpush1.msra.mxu0 0.0
        %6917 = vmatprep.subr.mxu0 0.0
        %6918 = vmatpush1.msra.mxu0 0.0
        %6919 = vmatprep.subr.mxu0 0.0
        %6920 = vmatpush1.msra.mxu0 0.0
        %6921 = vmatprep.subr.mxu0 0.0
        %6922 = vmatpush1.msra.mxu0 0.0
        %6923 = vmatprep.subr.mxu0 0.0
        %6924 = vmatpush1.msra.mxu0 0.0
        %6925 = vmatprep.subr.mxu0 0.0
        %6926 = vmatpush1.msra.mxu0 0.0
        %6927 = vmatprep.subr.mxu0 0.0
        %6928 = vmatpush1.msra.mxu0 0.0
        %6929 = vmatprep.subr.mxu0 0.0
        %6930 = vmatpush1.msra.mxu0 0.0
        %6931 = vmatprep.subr.mxu0 0.0
        %6932 = vmatpush1.msra.mxu0 0.0
        %6933 = vmatprep.subr.mxu0 0.0
        %6934 = vmatpush1.msra.mxu0 0.0
        %6935 = vmatprep.subr.mxu0 0.0
        %6936 = vmatpush1.msra.mxu0 0.0
        %6937 = vmatprep.subr.mxu0 0.0
        %6938 = vmatpush1.msra.mxu0 0.0
        %6939 = vmatprep.subr.mxu0 0.0
        %6940 = vmatpush1.msra.mxu0 0.0
        %6941 = vmatprep.subr.mxu0 0.0
        %6942 = vmatpush1.msra.mxu0 0.0
        %6943 = vmatprep.subr.mxu0 0.0
        %6944 = vmatpush1.msra.mxu0 0.0
        %6945 = vmatprep.subr.mxu0 0.0
        %6946 = vmatpush1.msra.mxu0 0.0
        %6947 = vmatprep.subr.mxu0 0.0
        %6948 = vmatpush1.msra.mxu0 0.0
        %6949 = vmatprep.subr.mxu0 0.0
        %6950 = vmatpush1.msra.mxu0 0.0
        %6951 = vmatprep.subr.mxu0 0.0
        %6952 = vmatpush1.msra.mxu0 0.0
        %6953 = vmatprep.subr.mxu0 0.0
        %6954 = vmatpush1.msra.mxu0 0.0
        %6955 = vmatprep.subr.mxu0 0.0
        %6956 = vmatpush1.msra.mxu0 0.0
        %6957 = vmatprep.subr.mxu0 0.0
        %6958 = vmatpush1.msra.mxu0 0.0
        %6959 = vmatprep.subr.mxu0 0.0
        %6960 = vmatpush1.msra.mxu0 0.0
        %6961 = vmatprep.subr.mxu0 0.0
        %6962 = vmatpush1.msra.mxu0 0.0
        %6963 = vmatprep.subr.mxu0 0.0
        %6964 = vmatpush1.msra.mxu0 0.0
        %6965 = vmatprep.subr.mxu0 0.0
        %6966 = vmatpush1.msra.mxu0 0.0
        %6967 = vmatprep.subr.mxu0 0.0
        %6968 = vmatpush1.msra.mxu0 0.0
        %6969 = vmatprep.subr.mxu0 0.0
        %6970 = vmatpush1.msra.mxu0 0.0
        %6971 = vmatprep.subr.mxu0 0.0
        %6972 = vmatpush1.msra.mxu0 0.0
        %6973 = vmatprep.mubr.f32.mxu0 0.0
        %6974 = vmatmul.mubr.f32.gmra.mrb[0].mxu0 %v6814
        %v6975 = vpop.f32.mrb[0].mxu0
        %v6976 = vadd.f32 0.0, %v6975
        %v6977 = vpop.f32.mrb[0].mxu0
        %6978 = vmatprep.mubr.f32.mxu0 0.0
        %6979 = vmatmul.mubr.f32.gmra.mrb[0].mxu0 %v6817
        %v6980 = vpop.f32.mrb[0].mxu0
        %v6981 = vadd.f32 0.0, %v6980
        %v6982 = vpop.f32.mrb[0].mxu0
        %6983 = vmatprep.mubr.f32.mxu0 0.0
        %6984 = vmatmul.mubr.f32.gmra.mrb[0].mxu0 %v6820
        %v6985 = vpop.f32.mrb[0].mxu0
        %v6986 = vadd.f32 0.0, %v6985
        %v6987 = vpop.f32.mrb[0].mxu0
        %6988 = vmatprep.mubr.f32.mxu0 0.0
        %6989 = vmatmul.mubr.f32.gmra.mrb[0].mxu0 %v6823
        %v6990 = vpop.f32.mrb[0].mxu0
        %v6991 = vadd.f32 0.0, %v6990
        %v6992 = vpop.f32.mrb[0].mxu0
        %6993 = vmatprep.mubr.f32.mxu0 0.0
        %6994 = vmatmul.mubr.f32.gmra.mrb[0].mxu0 %v6826
        %v6995 = vpop.f32.mrb[0].mxu0
        %v6996 = vadd.f32 0.0, %v6995
        %v6997 = vpop.f32.mrb[0].mxu0
        %6998 = vmatprep.mubr.f32.mxu0 0.0
        %6999 = vmatmul.mubr.f32.gmra.mrb[0].mxu0 %v6829
        %v7000 = vpop.f32.mrb[0].mxu0
        %v7001 = vadd.f32 0.0, %v7000
        %v7002 = vpop.f32.mrb[0].mxu0
        %7003 = vmatprep.mubr.f32.mxu0 0.0
        %7004 = vmatmul.mubr.f32.gmra.mrb[0].mxu0 %v6832
        %v7005 = vpop.f32.mrb[0].mxu0
        %v7006 = vadd.f32 0.0, %v7005
        %v7007 = vpop.f32.mrb[0].mxu0
        %7008 = vmatprep.mubr.f32.mxu0 0.0
        %7009 = vmatmul.mubr.f32.gmra.mrb[0].mxu0 %v6835
        %v7010 = vpop.f32.mrb[0].mxu0
        %v7011 = vadd.f32 0.0, %v7010
        %v7012 = vpop.f32.mrb[0].mxu0
        %7013 = vmatprep.mubr.f32.mxu0 0.0
        %7014 = vmatmul.mubr.f32.gmra.mrb[0].mxu0 %v6838
        %v7015 = vpop.f32.mrb[0].mxu0
        %v7016 = vadd.f32 0.0, %v7015
        %v7017 = vpop.f32.mrb[0].mxu0
        %7018 = vmatprep.mubr.f32.mxu0 0.0
        %7019 = vmatmul.mubr.f32.gmra.mrb[0].mxu0 %v6841
        %v7020 = vpop.f32.mrb[0].mxu0
        %v7021 = vadd.f32 0.0, %v7020
        %v7022 = vpop.f32.mrb[0].mxu0
        %7023 = vmatprep.mubr.f32.mxu0 0.0
        %7024 = vmatmul.mubr.f32.gmra.mrb[0].mxu0 %v6844
        %v7025 = vpop.f32.mrb[0].mxu0
        %v7026 = vadd.f32 0.0, %v7025
        %v7027 = vpop.f32.mrb[0].mxu0
        %7028 = vmatprep.mubr.f32.mxu0 0.0
        %7029 = vmatmul.mubr.f32.gmra.mrb[0].mxu0 %v6847
        %v7030 = vpop.f32.mrb[0].mxu0
        %v7031 = vadd.f32 0.0, %v7030
        %v7032 = vpop.f32.mrb[0].mxu0
        %7033 = vmatprep.mubr.f32.mxu0 0.0
        %7034 = vmatmul.mubr.f32.gmra.mrb[0].mxu0 %v6850
        %v7035 = vpop.f32.mrb[0].mxu0
        %v7036 = vadd.f32 0.0, %v7035
        %v7037 = vpop.f32.mrb[0].mxu0
        %7038 = vmatprep.mubr.f32.mxu0 0.0
        %7039 = vmatmul.mubr.f32.gmra.mrb[0].mxu0 %v6853
        %v7040 = vpop.f32.mrb[0].mxu0
        %v7041 = vadd.f32 0.0, %v7040
        %v7042 = vpop.f32.mrb[0].mxu0
        %7043 = vmatprep.mubr.f32.mxu0 0.0
        %7044 = vmatmul.mubr.f32.gmra.mrb[0].mxu0 %v6856
        %v7045 = vpop.f32.mrb[0].mxu0
        %v7046 = vadd.f32 0.0, %v7045
        %v7047 = vpop.f32.mrb[0].mxu0
        %7048 = vmatprep.mubr.f32.mxu0 0.0
        %7049 = vmatmul.mubr.f32.gmra.mrb[0].mxu0 %v6859
        %v7050 = vpop.f32.mrb[0].mxu0
        %v7051 = vadd.f32 0.0, %v7050
        %v7052 = vpop.f32.mrb[0].mxu0
        %7053 = vmatprep.mubr.f32.mxu0 0.0
        %7054 = vmatmul.mubr.f32.gmra.mrb[0].mxu0 %v6862
        %v7055 = vpop.f32.mrb[0].mxu0
        %v7056 = vadd.f32 0.0, %v7055
        %v7057 = vpop.f32.mrb[0].mxu0
        %7058 = vmatprep.mubr.f32.mxu0 0.0
        %7059 = vmatmul.mubr.f32.gmra.mrb[0].mxu0 %v6865
        %v7060 = vpop.f32.mrb[0].mxu0
        %v7061 = vadd.f32 0.0, %v7060
        %v7062 = vpop.f32.mrb[0].mxu0
        %7063 = vmatprep.mubr.f32.mxu0 0.0
        %7064 = vmatmul.mubr.f32.gmra.mrb[0].mxu0 %v6868
        %v7065 = vpop.f32.mrb[0].mxu0
        %v7066 = vadd.f32 0.0, %v7065
        %v7067 = vpop.f32.mrb[0].mxu0
        %7068 = vmatprep.mubr.f32.mxu0 0.0
        %7069 = vmatmul.mubr.f32.gmra.mrb[0].mxu0 %v6871
        %v7070 = vpop.f32.mrb[0].mxu0
        %v7071 = vadd.f32 0.0, %v7070
        %v7072 = vpop.f32.mrb[0].mxu0
        %7073 = vmatprep.mubr.f32.mxu0 0.0
        %7074 = vmatmul.mubr.f32.gmra.mrb[0].mxu0 %v6874
        %v7075 = vpop.f32.mrb[0].mxu0
        %v7076 = vadd.f32 0.0, %v7075
        %v7077 = vpop.f32.mrb[0].mxu0
        %7078 = vmatprep.mubr.f32.mxu0 0.0
        %7079 = vmatmul.mubr.f32.gmra.mrb[0].mxu0 %v6877
        %v7080 = vpop.f32.mrb[0].mxu0
        %v7081 = vadd.f32 0.0, %v7080
        %v7082 = vpop.f32.mrb[0].mxu0
        %7083 = vmatprep.mubr.f32.mxu0 0.0
        %7084 = vmatmul.mubr.f32.gmra.mrb[0].mxu0 %v6880
        %v7085 = vpop.f32.mrb[0].mxu0
        %v7086 = vadd.f32 0.0, %v7085
        %v7087 = vpop.f32.mrb[0].mxu0
        %7088 = vmatprep.mubr.f32.mxu0 0.0
        %7089 = vmatmul.mubr.f32.gmra.mrb[0].mxu0 %v6883
        %v7090 = vpop.f32.mrb[0].mxu0
        %v7091 = vadd.f32 0.0, %v7090
        %v7092 = vpop.f32.mrb[0].mxu0
        %7093 = vmatprep.mubr.f32.mxu0 0.0
        %7094 = vmatmul.mubr.f32.gmra.mrb[0].mxu0 %v6886
        %v7095 = vpop.f32.mrb[0].mxu0
        %v7096 = vadd.f32 0.0, %v7095
        %v7097 = vpop.f32.mrb[0].mxu0
        %7098 = vmatprep.mubr.f32.mxu0 0.0
        %7099 = vmatmul.mubr.f32.gmra.mrb[0].mxu0 %v6889
        %v7100 = vpop.f32.mrb[0].mxu0
        %v7101 = vadd.f32 0.0, %v7100
        %v7102 = vpop.f32.mrb[0].mxu0
        %7103 = vmatprep.mubr.f32.mxu0 0.0
        %7104 = vmatmul.mubr.f32.gmra.mrb[0].mxu0 %v6892
        %v7105 = vpop.f32.mrb[0].mxu0
        %v7106 = vadd.f32 0.0, %v7105
        %v7107 = vpop.f32.mrb[0].mxu0
        %7108 = vmatprep.mubr.f32.mxu0 0.0
        %7109 = vmatmul.mubr.f32.gmra.mrb[0].mxu0 %v6895
        %v7110 = vpop.f32.mrb[0].mxu0
        %v7111 = vadd.f32 0.0, %v7110
        %v7112 = vpop.f32.mrb[0].mxu0
        %7113 = vmatprep.mubr.f32.mxu0 0.0
        %7114 = vmatmul.mubr.f32.gmra.mrb[0].mxu0 %v6898
        %v7115 = vpop.f32.mrb[0].mxu0
        %v7116 = vadd.f32 0.0, %v7115
        %v7117 = vpop.f32.mrb[0].mxu0
        %7118 = vmatprep.mubr.f32.mxu0 0.0
        %7119 = vmatmul.mubr.f32.gmra.mrb[0].mxu0 %v6901
        %v7120 = vpop.f32.mrb[0].mxu0
        %v7121 = vadd.f32 0.0, %v7120
        %v7122 = vpop.f32.mrb[0].mxu0
        %7123 = vmatprep.mubr.f32.mxu0 0.0
        %7124 = vmatmul.mubr.f32.gmra.mrb[0].mxu0 %v6904
        %v7125 = vpop.f32.mrb[0].mxu0
        %v7126 = vadd.f32 0.0, %v7125
        %v7127 = vpop.f32.mrb[0].mxu0
        %7128 = vmatprep.mubr.f32.mxu0 0.0
        %7129 = vmatmul.mubr.f32.gmra.mrb[0].mxu0 %v6907
        %v7130 = vpop.f32.mrb[0].mxu0
        %v7131 = vadd.f32 0.0, %v7130
        %v7132 = vpop.f32.mrb[0].mxu0
        %7133 = vdwg.mxu0
        %v7134 = vadd.f32 %v6747, %v6976
        %v7135 = vadd.f32 %v6748, %v6981
        %v7136 = vadd.f32 %v6749, %v6986
        %v7137 = vadd.f32 %v6750, %v6991
        %v7138 = vadd.f32 %v6751, %v6996
        %v7139 = vadd.f32 %v6752, %v7001
        %v7140 = vadd.f32 %v6753, %v7006
        %v7141 = vadd.f32 %v6754, %v7011
        %v7142 = vadd.f32 %v6755, %v7016
        %v7143 = vadd.f32 %v6756, %v7021
        %v7144 = vadd.f32 %v6757, %v7026
        %v7145 = vadd.f32 %v6758, %v7031
        %v7146 = vadd.f32 %v6759, %v7036
        %v7147 = vadd.f32 %v6760, %v7041
        %v7148 = vadd.f32 %v6761, %v7046
        %v7149 = vadd.f32 %v6762, %v7051
        %v7150 = vadd.f32 %v6763, %v7056
        %v7151 = vadd.f32 %v6764, %v7061
        %v7152 = vadd.f32 %v6765, %v7066
        %v7153 = vadd.f32 %v6766, %v7071
        %v7154 = vadd.f32 %v6767, %v7076
        %v7155 = vadd.f32 %v6768, %v7081
        %v7156 = vadd.f32 %v6769, %v7086
        %v7157 = vadd.f32 %v6770, %v7091
        %v7158 = vadd.f32 %v6771, %v7096
        %v7159 = vadd.f32 %v6772, %v7101
        %v7160 = vadd.f32 %v6773, %v7106
        %v7161 = vadd.f32 %v6774, %v7111
        %v7162 = vadd.f32 %v6775, %v7116
        %v7163 = vadd.f32 %v6776, %v7121
        %v7164 = vadd.f32 %v6777, %v7126
        %v7165 = vadd.f32 %v6778, %v7131
        %v7166 = vld [vmem:[%s6391 + $0x2] sm:$0xff]
        %v7167 = vld [vmem:[%s6391 + $0xa] sm:$0xff]
        %v7168 = vld [vmem:[%s6391 + $0x1a] sm:$0xff]
        %v7169 = vld [vmem:[%s6391 + $0x22] sm:$0xff]
        %v7170 = vld [vmem:[%s6391 + $0x32] sm:$0xff]
        %v7171 = vld [vmem:[%s6391 + $0x3a] sm:$0xff]
        %v7172 = vld [vmem:[%s6391 + $0x4a] sm:$0xff]
        %v7173 = vld [vmem:[%s6391 + $0x52] sm:$0xff]
        %v7174 = vld [vmem:[%s6391 + $0x62] sm:$0xff]
        %v7175 = vld [vmem:[%s6391 + $0x6a] sm:$0xff]
        %v7176 = vld [vmem:[%s6391 + $0x7a] sm:$0xff]
        %v7177 = vld [vmem:[%s6391 + $0x82] sm:$0xff]
        %v7178 = vld [vmem:[%s6391 + $0x92] sm:$0xff]
        %v7179 = vld [vmem:[%s6391 + $0x9a] sm:$0xff]
        %v7180 = vld [vmem:[%s6391 + $0xaa] sm:$0xff]
        %v7181 = vld [vmem:[%s6391 + $0xb2] sm:$0xff]
        %v7182 = vld [vmem:[%s6391 + $0xc2] sm:$0xff]
        %v7183 = vld [vmem:[%s6391 + $0xca] sm:$0xff]
        %v7184 = vld [vmem:[%s6391 + $0xda] sm:$0xff]
        %v7185 = vld [vmem:[%s6391 + $0xe2] sm:$0xff]
        %v7186 = vld [vmem:[%s6391 + $0xf2] sm:$0xff]
        %v7187 = vld [vmem:[%s6391 + $0xfa] sm:$0xff]
        %v7188 = vld [vmem:[%s6391 + $0x10a] sm:$0xff]
        %v7189 = vld [vmem:[%s6391 + $0x112] sm:$0xff]
        %v7190 = vld [vmem:[%s6391 + $0x122] sm:$0xff]
        %v7191 = vld [vmem:[%s6391 + $0x12a] sm:$0xff]
        %v7192 = vld [vmem:[%s6391 + $0x13a] sm:$0xff]
        %v7193 = vld [vmem:[%s6391 + $0x142] sm:$0xff]
        %v7194 = vld [vmem:[%s6391 + $0x152] sm:$0xff]
        %v7195 = vld [vmem:[%s6391 + $0x15a] sm:$0xff]
        %v7196 = vld [vmem:[%s6391 + $0x16a] sm:$0xff]
        %v7197 = vld [vmem:[%s6391 + $0x172] sm:$0xff]
        %s7198 = scalar_lea.vmem %s3, 64
        %v7199 = vld [vmem:[%s7198] sm:$0xff]
        %v7201 = vsel %vm410, %v7166, 0
        %v7204 = vsel %vm410, %v7167, 0
        %v7207 = vsel %vm410, %v7168, 0
        %v7210 = vsel %vm410, %v7169, 0
        %v7213 = vsel %vm410, %v7170, 0
        %v7216 = vsel %vm410, %v7171, 0
        %v7219 = vsel %vm410, %v7172, 0
        %v7222 = vsel %vm410, %v7173, 0
        %v7225 = vsel %vm410, %v7174, 0
        %v7228 = vsel %vm410, %v7175, 0
        %v7231 = vsel %vm410, %v7176, 0
        %v7234 = vsel %vm410, %v7177, 0
        %v7237 = vsel %vm410, %v7178, 0
        %v7240 = vsel %vm410, %v7179, 0
        %v7243 = vsel %vm410, %v7180, 0
        %v7246 = vsel %vm410, %v7181, 0
        %v7249 = vsel %vm410, %v7182, 0
        %v7252 = vsel %vm410, %v7183, 0
        %v7255 = vsel %vm410, %v7184, 0
        %v7258 = vsel %vm410, %v7185, 0
        %v7261 = vsel %vm410, %v7186, 0
        %v7264 = vsel %vm410, %v7187, 0
        %v7267 = vsel %vm410, %v7188, 0
        %v7270 = vsel %vm410, %v7189, 0
        %v7273 = vsel %vm410, %v7190, 0
        %v7276 = vsel %vm410, %v7191, 0
        %v7279 = vsel %vm410, %v7192, 0
        %v7282 = vsel %vm410, %v7193, 0
        %v7285 = vsel %vm410, %v7194, 0
        %v7288 = vsel %vm410, %v7195, 0
        %v7291 = vsel %vm410, %v7196, 0
        %v7294 = vsel %vm410, %v7197, 0
        %7296 = vmatprep.subr.mxu0 0.0
        %7297 = vmatpush1.msra.mxu0 %v7199
        %7298 = vmatprep.subr.mxu0 0.0
        %7299 = vmatpush1.msra.mxu0 0.0
        %7300 = vmatprep.subr.mxu0 0.0
        %7301 = vmatpush1.msra.mxu0 0.0
        %7302 = vmatprep.subr.mxu0 0.0
        %7303 = vmatpush1.msra.mxu0 0.0
        %7304 = vmatprep.subr.mxu0 0.0
        %7305 = vmatpush1.msra.mxu0 0.0
        %7306 = vmatprep.subr.mxu0 0.0
        %7307 = vmatpush1.msra.mxu0 0.0
        %7308 = vmatprep.subr.mxu0 0.0
        %7309 = vmatpush1.msra.mxu0 0.0
        %7310 = vmatprep.subr.mxu0 0.0
        %7311 = vmatpush1.msra.mxu0 0.0
        %7312 = vmatprep.subr.mxu0 0.0
        %7313 = vmatpush1.msra.mxu0 0.0
        %7314 = vmatprep.subr.mxu0 0.0
        %7315 = vmatpush1.msra.mxu0 0.0
        %7316 = vmatprep.subr.mxu0 0.0
        %7317 = vmatpush1.msra.mxu0 0.0
        %7318 = vmatprep.subr.mxu0 0.0
        %7319 = vmatpush1.msra.mxu0 0.0
        %7320 = vmatprep.subr.mxu0 0.0
        %7321 = vmatpush1.msra.mxu0 0.0
        %7322 = vmatprep.subr.mxu0 0.0
        %7323 = vmatpush1.msra.mxu0 0.0
        %7324 = vmatprep.subr.mxu0 0.0
        %7325 = vmatpush1.msra.mxu0 0.0
        %7326 = vmatprep.subr.mxu0 0.0
        %7327 = vmatpush1.msra.mxu0 0.0
        %7328 = vmatprep.subr.mxu0 0.0
        %7329 = vmatpush1.msra.mxu0 0.0
        %7330 = vmatprep.subr.mxu0 0.0
        %7331 = vmatpush1.msra.mxu0 0.0
        %7332 = vmatprep.subr.mxu0 0.0
        %7333 = vmatpush1.msra.mxu0 0.0
        %7334 = vmatprep.subr.mxu0 0.0
        %7335 = vmatpush1.msra.mxu0 0.0
        %7336 = vmatprep.subr.mxu0 0.0
        %7337 = vmatpush1.msra.mxu0 0.0
        %7338 = vmatprep.subr.mxu0 0.0
        %7339 = vmatpush1.msra.mxu0 0.0
        %7340 = vmatprep.subr.mxu0 0.0
        %7341 = vmatpush1.msra.mxu0 0.0
        %7342 = vmatprep.subr.mxu0 0.0
        %7343 = vmatpush1.msra.mxu0 0.0
        %7344 = vmatprep.subr.mxu0 0.0
        %7345 = vmatpush1.msra.mxu0 0.0
        %7346 = vmatprep.subr.mxu0 0.0
        %7347 = vmatpush1.msra.mxu0 0.0
        %7348 = vmatprep.subr.mxu0 0.0
        %7349 = vmatpush1.msra.mxu0 0.0
        %7350 = vmatprep.subr.mxu0 0.0
        %7351 = vmatpush1.msra.mxu0 0.0
        %7352 = vmatprep.subr.mxu0 0.0
        %7353 = vmatpush1.msra.mxu0 0.0
        %7354 = vmatprep.subr.mxu0 0.0
        %7355 = vmatpush1.msra.mxu0 0.0
        %7356 = vmatprep.subr.mxu0 0.0
        %7357 = vmatpush1.msra.mxu0 0.0
        %7358 = vmatprep.subr.mxu0 0.0
        %7359 = vmatpush1.msra.mxu0 0.0
        %7360 = vmatprep.mubr.f32.mxu0 0.0
        %7361 = vmatmul.mubr.f32.gmra.mrb[0].mxu0 %v7201
        %v7362 = vpop.f32.mrb[0].mxu0
        %v7363 = vadd.f32 0.0, %v7362
        %v7364 = vpop.f32.mrb[0].mxu0
        %7365 = vmatprep.mubr.f32.mxu0 0.0
        %7366 = vmatmul.mubr.f32.gmra.mrb[0].mxu0 %v7204
        %v7367 = vpop.f32.mrb[0].mxu0
        %v7368 = vadd.f32 0.0, %v7367
        %v7369 = vpop.f32.mrb[0].mxu0
        %7370 = vmatprep.mubr.f32.mxu0 0.0
        %7371 = vmatmul.mubr.f32.gmra.mrb[0].mxu0 %v7207
        %v7372 = vpop.f32.mrb[0].mxu0
        %v7373 = vadd.f32 0.0, %v7372
        %v7374 = vpop.f32.mrb[0].mxu0
        %7375 = vmatprep.mubr.f32.mxu0 0.0
        %7376 = vmatmul.mubr.f32.gmra.mrb[0].mxu0 %v7210
        %v7377 = vpop.f32.mrb[0].mxu0
        %v7378 = vadd.f32 0.0, %v7377
        %v7379 = vpop.f32.mrb[0].mxu0
        %7380 = vmatprep.mubr.f32.mxu0 0.0
        %7381 = vmatmul.mubr.f32.gmra.mrb[0].mxu0 %v7213
        %v7382 = vpop.f32.mrb[0].mxu0
        %v7383 = vadd.f32 0.0, %v7382
        %v7384 = vpop.f32.mrb[0].mxu0
        %7385 = vmatprep.mubr.f32.mxu0 0.0
        %7386 = vmatmul.mubr.f32.gmra.mrb[0].mxu0 %v7216
        %v7387 = vpop.f32.mrb[0].mxu0
        %v7388 = vadd.f32 0.0, %v7387
        %v7389 = vpop.f32.mrb[0].mxu0
        %7390 = vmatprep.mubr.f32.mxu0 0.0
        %7391 = vmatmul.mubr.f32.gmra.mrb[0].mxu0 %v7219
        %v7392 = vpop.f32.mrb[0].mxu0
        %v7393 = vadd.f32 0.0, %v7392
        %v7394 = vpop.f32.mrb[0].mxu0
        %7395 = vmatprep.mubr.f32.mxu0 0.0
        %7396 = vmatmul.mubr.f32.gmra.mrb[0].mxu0 %v7222
        %v7397 = vpop.f32.mrb[0].mxu0
        %v7398 = vadd.f32 0.0, %v7397
        %v7399 = vpop.f32.mrb[0].mxu0
        %7400 = vmatprep.mubr.f32.mxu0 0.0
        %7401 = vmatmul.mubr.f32.gmra.mrb[0].mxu0 %v7225
        %v7402 = vpop.f32.mrb[0].mxu0
        %v7403 = vadd.f32 0.0, %v7402
        %v7404 = vpop.f32.mrb[0].mxu0
        %7405 = vmatprep.mubr.f32.mxu0 0.0
        %7406 = vmatmul.mubr.f32.gmra.mrb[0].mxu0 %v7228
        %v7407 = vpop.f32.mrb[0].mxu0
        %v7408 = vadd.f32 0.0, %v7407
        %v7409 = vpop.f32.mrb[0].mxu0
        %7410 = vmatprep.mubr.f32.mxu0 0.0
        %7411 = vmatmul.mubr.f32.gmra.mrb[0].mxu0 %v7231
        %v7412 = vpop.f32.mrb[0].mxu0
        %v7413 = vadd.f32 0.0, %v7412
        %v7414 = vpop.f32.mrb[0].mxu0
        %7415 = vmatprep.mubr.f32.mxu0 0.0
        %7416 = vmatmul.mubr.f32.gmra.mrb[0].mxu0 %v7234
        %v7417 = vpop.f32.mrb[0].mxu0
        %v7418 = vadd.f32 0.0, %v7417
        %v7419 = vpop.f32.mrb[0].mxu0
        %7420 = vmatprep.mubr.f32.mxu0 0.0
        %7421 = vmatmul.mubr.f32.gmra.mrb[0].mxu0 %v7237
        %v7422 = vpop.f32.mrb[0].mxu0
        %v7423 = vadd.f32 0.0, %v7422
        %v7424 = vpop.f32.mrb[0].mxu0
        %7425 = vmatprep.mubr.f32.mxu0 0.0
        %7426 = vmatmul.mubr.f32.gmra.mrb[0].mxu0 %v7240
        %v7427 = vpop.f32.mrb[0].mxu0
        %v7428 = vadd.f32 0.0, %v7427
        %v7429 = vpop.f32.mrb[0].mxu0
        %7430 = vmatprep.mubr.f32.mxu0 0.0
        %7431 = vmatmul.mubr.f32.gmra.mrb[0].mxu0 %v7243
        %v7432 = vpop.f32.mrb[0].mxu0
        %v7433 = vadd.f32 0.0, %v7432
        %v7434 = vpop.f32.mrb[0].mxu0
        %7435 = vmatprep.mubr.f32.mxu0 0.0
        %7436 = vmatmul.mubr.f32.gmra.mrb[0].mxu0 %v7246
        %v7437 = vpop.f32.mrb[0].mxu0
        %v7438 = vadd.f32 0.0, %v7437
        %v7439 = vpop.f32.mrb[0].mxu0
        %7440 = vmatprep.mubr.f32.mxu0 0.0
        %7441 = vmatmul.mubr.f32.gmra.mrb[0].mxu0 %v7249
        %v7442 = vpop.f32.mrb[0].mxu0
        %v7443 = vadd.f32 0.0, %v7442
        %v7444 = vpop.f32.mrb[0].mxu0
        %7445 = vmatprep.mubr.f32.mxu0 0.0
        %7446 = vmatmul.mubr.f32.gmra.mrb[0].mxu0 %v7252
        %v7447 = vpop.f32.mrb[0].mxu0
        %v7448 = vadd.f32 0.0, %v7447
        %v7449 = vpop.f32.mrb[0].mxu0
        %7450 = vmatprep.mubr.f32.mxu0 0.0
        %7451 = vmatmul.mubr.f32.gmra.mrb[0].mxu0 %v7255
        %v7452 = vpop.f32.mrb[0].mxu0
        %v7453 = vadd.f32 0.0, %v7452
        %v7454 = vpop.f32.mrb[0].mxu0
        %7455 = vmatprep.mubr.f32.mxu0 0.0
        %7456 = vmatmul.mubr.f32.gmra.mrb[0].mxu0 %v7258
        %v7457 = vpop.f32.mrb[0].mxu0
        %v7458 = vadd.f32 0.0, %v7457
        %v7459 = vpop.f32.mrb[0].mxu0
        %7460 = vmatprep.mubr.f32.mxu0 0.0
        %7461 = vmatmul.mubr.f32.gmra.mrb[0].mxu0 %v7261
        %v7462 = vpop.f32.mrb[0].mxu0
        %v7463 = vadd.f32 0.0, %v7462
        %v7464 = vpop.f32.mrb[0].mxu0
        %7465 = vmatprep.mubr.f32.mxu0 0.0
        %7466 = vmatmul.mubr.f32.gmra.mrb[0].mxu0 %v7264
        %v7467 = vpop.f32.mrb[0].mxu0
        %v7468 = vadd.f32 0.0, %v7467
        %v7469 = vpop.f32.mrb[0].mxu0
        %7470 = vmatprep.mubr.f32.mxu0 0.0
        %7471 = vmatmul.mubr.f32.gmra.mrb[0].mxu0 %v7267
        %v7472 = vpop.f32.mrb[0].mxu0
        %v7473 = vadd.f32 0.0, %v7472
        %v7474 = vpop.f32.mrb[0].mxu0
        %7475 = vmatprep.mubr.f32.mxu0 0.0
        %7476 = vmatmul.mubr.f32.gmra.mrb[0].mxu0 %v7270
        %v7477 = vpop.f32.mrb[0].mxu0
        %v7478 = vadd.f32 0.0, %v7477
        %v7479 = vpop.f32.mrb[0].mxu0
        %7480 = vmatprep.mubr.f32.mxu0 0.0
        %7481 = vmatmul.mubr.f32.gmra.mrb[0].mxu0 %v7273
        %v7482 = vpop.f32.mrb[0].mxu0
        %v7483 = vadd.f32 0.0, %v7482
        %v7484 = vpop.f32.mrb[0].mxu0
        %7485 = vmatprep.mubr.f32.mxu0 0.0
        %7486 = vmatmul.mubr.f32.gmra.mrb[0].mxu0 %v7276
        %v7487 = vpop.f32.mrb[0].mxu0
        %v7488 = vadd.f32 0.0, %v7487
        %v7489 = vpop.f32.mrb[0].mxu0
        %7490 = vmatprep.mubr.f32.mxu0 0.0
        %7491 = vmatmul.mubr.f32.gmra.mrb[0].mxu0 %v7279
        %v7492 = vpop.f32.mrb[0].mxu0
        %v7493 = vadd.f32 0.0, %v7492
        %v7494 = vpop.f32.mrb[0].mxu0
        %7495 = vmatprep.mubr.f32.mxu0 0.0
        %7496 = vmatmul.mubr.f32.gmra.mrb[0].mxu0 %v7282
        %v7497 = vpop.f32.mrb[0].mxu0
        %v7498 = vadd.f32 0.0, %v7497
        %v7499 = vpop.f32.mrb[0].mxu0
        %7500 = vmatprep.mubr.f32.mxu0 0.0
        %7501 = vmatmul.mubr.f32.gmra.mrb[0].mxu0 %v7285
        %v7502 = vpop.f32.mrb[0].mxu0
        %v7503 = vadd.f32 0.0, %v7502
        %v7504 = vpop.f32.mrb[0].mxu0
        %7505 = vmatprep.mubr.f32.mxu0 0.0
        %7506 = vmatmul.mubr.f32.gmra.mrb[0].mxu0 %v7288
        %v7507 = vpop.f32.mrb[0].mxu0
        %v7508 = vadd.f32 0.0, %v7507
        %v7509 = vpop.f32.mrb[0].mxu0
        %7510 = vmatprep.mubr.f32.mxu0 0.0
        %7511 = vmatmul.mubr.f32.gmra.mrb[0].mxu0 %v7291
        %v7512 = vpop.f32.mrb[0].mxu0
        %v7513 = vadd.f32 0.0, %v7512
        %v7514 = vpop.f32.mrb[0].mxu0
        %7515 = vmatprep.mubr.f32.mxu0 0.0
        %7516 = vmatmul.mubr.f32.gmra.mrb[0].mxu0 %v7294
        %v7517 = vpop.f32.mrb[0].mxu0
        %v7518 = vadd.f32 0.0, %v7517
        %v7519 = vpop.f32.mrb[0].mxu0
        %7520 = vdwg.mxu0
        %v7521 = vadd.f32 %v7134, %v7363
        %v7522 = vadd.f32 %v7135, %v7368
        %v7523 = vadd.f32 %v7136, %v7373
        %v7524 = vadd.f32 %v7137, %v7378
        %v7525 = vadd.f32 %v7138, %v7383
        %v7526 = vadd.f32 %v7139, %v7388
        %v7527 = vadd.f32 %v7140, %v7393
        %v7528 = vadd.f32 %v7141, %v7398
        %v7529 = vadd.f32 %v7142, %v7403
        %v7530 = vadd.f32 %v7143, %v7408
        %v7531 = vadd.f32 %v7144, %v7413
        %v7532 = vadd.f32 %v7145, %v7418
        %v7533 = vadd.f32 %v7146, %v7423
        %v7534 = vadd.f32 %v7147, %v7428
        %v7535 = vadd.f32 %v7148, %v7433
        %v7536 = vadd.f32 %v7149, %v7438
        %v7537 = vadd.f32 %v7150, %v7443
        %v7538 = vadd.f32 %v7151, %v7448
        %v7539 = vadd.f32 %v7152, %v7453
        %v7540 = vadd.f32 %v7153, %v7458
        %v7541 = vadd.f32 %v7154, %v7463
        %v7542 = vadd.f32 %v7155, %v7468
        %v7543 = vadd.f32 %v7156, %v7473
        %v7544 = vadd.f32 %v7157, %v7478
        %v7545 = vadd.f32 %v7158, %v7483
        %v7546 = vadd.f32 %v7159, %v7488
        %v7547 = vadd.f32 %v7160, %v7493
        %v7548 = vadd.f32 %v7161, %v7498
        %v7549 = vadd.f32 %v7162, %v7503
        %v7550 = vadd.f32 %v7163, %v7508
        %v7551 = vadd.f32 %v7164, %v7513
        %v7552 = vadd.f32 %v7165, %v7518
        %v7553 = vld [vmem:[%s4] sm:$0x1]
        %v7555 = vlaneseq
        %v7556 = vshrl.u32 %v7555, 7
        %v7557 = vsub.s32 0, %v7556
        %v7558 = vrot.slane %v7553, %v7557
        %v7560 = vadd.f32 %v7521, %v7558
        %v7561 = vadd.f32 %v7522, %v7558
        %v7562 = vadd.f32 %v7523, %v7558
        %v7563 = vadd.f32 %v7524, %v7558
        %v7564 = vadd.f32 %v7525, %v7558
        %v7565 = vadd.f32 %v7526, %v7558
        %v7566 = vadd.f32 %v7527, %v7558
        %v7567 = vadd.f32 %v7528, %v7558
        %v7568 = vadd.f32 %v7529, %v7558
        %v7569 = vadd.f32 %v7530, %v7558
        %v7570 = vadd.f32 %v7531, %v7558
        %v7571 = vadd.f32 %v7532, %v7558
        %v7572 = vadd.f32 %v7533, %v7558
        %v7573 = vadd.f32 %v7534, %v7558
        %v7574 = vadd.f32 %v7535, %v7558
        %v7575 = vadd.f32 %v7536, %v7558
        %v7576 = vadd.f32 %v7537, %v7558
        %v7577 = vadd.f32 %v7538, %v7558
        %v7578 = vadd.f32 %v7539, %v7558
        %v7579 = vadd.f32 %v7540, %v7558
        %v7580 = vadd.f32 %v7541, %v7558
        %v7581 = vadd.f32 %v7542, %v7558
        %v7582 = vadd.f32 %v7543, %v7558
        %v7583 = vadd.f32 %v7544, %v7558
        %v7584 = vadd.f32 %v7545, %v7558
        %v7585 = vadd.f32 %v7546, %v7558
        %v7586 = vadd.f32 %v7547, %v7558
        %v7587 = vadd.f32 %v7548, %v7558
        %v7588 = vadd.f32 %v7549, %v7558
        %v7589 = vadd.f32 %v7550, %v7558
        %v7590 = vadd.f32 %v7551, %v7558
        %v7591 = vadd.f32 %v7552, %v7558
        %v7592 = vmax.f32 %v7560, 0.0
        %v7593 = vmax.f32 %v7561, 0.0
        %v7594 = vmax.f32 %v7562, 0.0
        %v7595 = vmax.f32 %v7563, 0.0
        %v7596 = vmax.f32 %v7564, 0.0
        %v7597 = vmax.f32 %v7565, 0.0
        %v7598 = vmax.f32 %v7566, 0.0
        %v7599 = vmax.f32 %v7567, 0.0
        %v7600 = vmax.f32 %v7568, 0.0
        %v7601 = vmax.f32 %v7569, 0.0
        %v7602 = vmax.f32 %v7570, 0.0
        %v7603 = vmax.f32 %v7571, 0.0
        %v7604 = vmax.f32 %v7572, 0.0
        %v7605 = vmax.f32 %v7573, 0.0
        %v7606 = vmax.f32 %v7574, 0.0
        %v7607 = vmax.f32 %v7575, 0.0
        %v7608 = vmax.f32 %v7576, 0.0
        %v7609 = vmax.f32 %v7577, 0.0
        %v7610 = vmax.f32 %v7578, 0.0
        %v7611 = vmax.f32 %v7579, 0.0
        %v7612 = vmax.f32 %v7580, 0.0
        %v7613 = vmax.f32 %v7581, 0.0
        %v7614 = vmax.f32 %v7582, 0.0
        %v7615 = vmax.f32 %v7583, 0.0
        %v7616 = vmax.f32 %v7584, 0.0
        %v7617 = vmax.f32 %v7585, 0.0
        %v7618 = vmax.f32 %v7586, 0.0
        %v7619 = vmax.f32 %v7587, 0.0
        %v7620 = vmax.f32 %v7588, 0.0
        %v7621 = vmax.f32 %v7589, 0.0
        %v7622 = vmax.f32 %v7590, 0.0
        %v7623 = vmax.f32 %v7591, 0.0
        %7624 = vst.msk [vmem:[#allocation5] sm:$0xff] %vm410, %v7592
        %7625 = vst.msk [vmem:[#allocation5 + $0x8] sm:$0xff] %vm410, %v7593
        %7626 = vst.msk [vmem:[#allocation5 + $0x10] sm:$0xff] %vm410, %v7594
        %7627 = vst.msk [vmem:[#allocation5 + $0x18] sm:$0xff] %vm410, %v7595
        %7628 = vst.msk [vmem:[#allocation5 + $0x20] sm:$0xff] %vm410, %v7596
        %7629 = vst.msk [vmem:[#allocation5 + $0x28] sm:$0xff] %vm410, %v7597
        %7630 = vst.msk [vmem:[#allocation5 + $0x30] sm:$0xff] %vm410, %v7598
        %7631 = vst.msk [vmem:[#allocation5 + $0x38] sm:$0xff] %vm410, %v7599
        %7632 = vst.msk [vmem:[#allocation5 + $0x40] sm:$0xff] %vm410, %v7600
        %7633 = vst.msk [vmem:[#allocation5 + $0x48] sm:$0xff] %vm410, %v7601
        %7634 = vst.msk [vmem:[#allocation5 + $0x50] sm:$0xff] %vm410, %v7602
        %7635 = vst.msk [vmem:[#allocation5 + $0x58] sm:$0xff] %vm410, %v7603
        %7636 = vst.msk [vmem:[#allocation5 + $0x60] sm:$0xff] %vm410, %v7604
        %7637 = vst.msk [vmem:[#allocation5 + $0x68] sm:$0xff] %vm410, %v7605
        %7638 = vst.msk [vmem:[#allocation5 + $0x70] sm:$0xff] %vm410, %v7606
        %7639 = vst.msk [vmem:[#allocation5 + $0x78] sm:$0xff] %vm410, %v7607
        %7640 = vst.msk [vmem:[#allocation5 + $0x80] sm:$0xff] %vm410, %v7608
        %7641 = vst.msk [vmem:[#allocation5 + $0x88] sm:$0xff] %vm410, %v7609
        %7642 = vst.msk [vmem:[#allocation5 + $0x90] sm:$0xff] %vm410, %v7610
        %7643 = vst.msk [vmem:[#allocation5 + $0x98] sm:$0xff] %vm410, %v7611
        %7644 = vst.msk [vmem:[#allocation5 + $0xa0] sm:$0xff] %vm410, %v7612
        %7645 = vst.msk [vmem:[#allocation5 + $0xa8] sm:$0xff] %vm410, %v7613
        %7646 = vst.msk [vmem:[#allocation5 + $0xb0] sm:$0xff] %vm410, %v7614
        %7647 = vst.msk [vmem:[#allocation5 + $0xb8] sm:$0xff] %vm410, %v7615
        %7648 = vst.msk [vmem:[#allocation5 + $0xc0] sm:$0xff] %vm410, %v7616
        %7649 = vst.msk [vmem:[#allocation5 + $0xc8] sm:$0xff] %vm410, %v7617
        %7650 = vst.msk [vmem:[#allocation5 + $0xd0] sm:$0xff] %vm410, %v7618
        %7651 = vst.msk [vmem:[#allocation5 + $0xd8] sm:$0xff] %vm410, %v7619
        %7652 = vst.msk [vmem:[#allocation5 + $0xe0] sm:$0xff] %vm410, %v7620
        %7653 = vst.msk [vmem:[#allocation5 + $0xe8] sm:$0xff] %vm410, %v7621
        %7654 = vst.msk [vmem:[#allocation5 + $0xf0] sm:$0xff] %vm410, %v7622
        %7655 = vst.msk [vmem:[#allocation5 + $0xf8] sm:$0xff] %vm410, %v7623
        %v7656 = vld [vmem:[#allocation5] ss:$2 sm:$0xff]
        %s7657 = scalar_lea.vmem [#allocation5], 16
        %v7658 = vld [vmem:[%s7657] ss:$2 sm:$0xff]
        %s7659 = scalar_lea.vmem [#allocation5], 32
        %v7660 = vld [vmem:[%s7659] ss:$2 sm:$0xff]
        %s7661 = scalar_lea.vmem [#allocation5], 48
        %v7662 = vld [vmem:[%s7661] ss:$2 sm:$0xff]
        %s7663 = scalar_lea.vmem [#allocation5], 64
        %v7664 = vld [vmem:[%s7663] ss:$2 sm:$0xff]
        %s7665 = scalar_lea.vmem [#allocation5], 80
        %v7666 = vld [vmem:[%s7665] ss:$2 sm:$0xff]
        %s7667 = scalar_lea.vmem [#allocation5], 96
        %v7668 = vld [vmem:[%s7667] ss:$2 sm:$0xff]
        %s7669 = scalar_lea.vmem [#allocation5], 112
        %v7670 = vld [vmem:[%s7669] ss:$2 sm:$0xff]
        %s7671 = scalar_lea.vmem [#allocation5], 128
        %v7672 = vld [vmem:[%s7671] ss:$2 sm:$0xff]
        %s7673 = scalar_lea.vmem [#allocation5], 144
        %v7674 = vld [vmem:[%s7673] ss:$2 sm:$0xff]
        %s7675 = scalar_lea.vmem [#allocation5], 160
        %v7676 = vld [vmem:[%s7675] ss:$2 sm:$0xff]
        %s7677 = scalar_lea.vmem [#allocation5], 176
        %v7678 = vld [vmem:[%s7677] ss:$2 sm:$0xff]
        %s7679 = scalar_lea.vmem [#allocation5], 192
        %v7680 = vld [vmem:[%s7679] ss:$2 sm:$0xff]
        %s7681 = scalar_lea.vmem [#allocation5], 208
        %v7682 = vld [vmem:[%s7681] ss:$2 sm:$0xff]
        %s7683 = scalar_lea.vmem [#allocation5], 224
        %v7684 = vld [vmem:[%s7683] ss:$2 sm:$0xff]
        %s7685 = scalar_lea.vmem [#allocation5], 240
        %v7686 = vld [vmem:[%s7685] ss:$2 sm:$0xff]
        %s7687 = scalar_lea.vmem [#allocation5], 1
        %v7688 = vld [vmem:[%s7687] ss:$2 sm:$0xff]
        %s7689 = scalar_lea.vmem [#allocation5], 17
        %v7690 = vld [vmem:[%s7689] ss:$2 sm:$0xff]
        %s7691 = scalar_lea.vmem [#allocation5], 33
        %v7692 = vld [vmem:[%s7691] ss:$2 sm:$0xff]
        %s7693 = scalar_lea.vmem [#allocation5], 49
        %v7694 = vld [vmem:[%s7693] ss:$2 sm:$0xff]
        %s7695 = scalar_lea.vmem [#allocation5], 65
        %v7696 = vld [vmem:[%s7695] ss:$2 sm:$0xff]
        %s7697 = scalar_lea.vmem [#allocation5], 81
        %v7698 = vld [vmem:[%s7697] ss:$2 sm:$0xff]
        %s7699 = scalar_lea.vmem [#allocation5], 97
        %v7700 = vld [vmem:[%s7699] ss:$2 sm:$0xff]
        %s7701 = scalar_lea.vmem [#allocation5], 113
        %v7702 = vld [vmem:[%s7701] ss:$2 sm:$0xff]
        %s7703 = scalar_lea.vmem [#allocation5], 129
        %v7704 = vld [vmem:[%s7703] ss:$2 sm:$0xff]
        %s7705 = scalar_lea.vmem [#allocation5], 145
        %v7706 = vld [vmem:[%s7705] ss:$2 sm:$0xff]
        %s7707 = scalar_lea.vmem [#allocation5], 161
        %v7708 = vld [vmem:[%s7707] ss:$2 sm:$0xff]
        %s7709 = scalar_lea.vmem [#allocation5], 177
        %v7710 = vld [vmem:[%s7709] ss:$2 sm:$0xff]
        %s7711 = scalar_lea.vmem [#allocation5], 193
        %v7712 = vld [vmem:[%s7711] ss:$2 sm:$0xff]
        %s7713 = scalar_lea.vmem [#allocation5], 209
        %v7714 = vld [vmem:[%s7713] ss:$2 sm:$0xff]
        %s7715 = scalar_lea.vmem [#allocation5], 225
        %v7716 = vld [vmem:[%s7715] ss:$2 sm:$0xff]
        %s7717 = scalar_lea.vmem [#allocation5], 241
        %v7718 = vld [vmem:[%s7717] ss:$2 sm:$0xff]
        %v7719 = vmax.f32 %v7656, %v7688
        %v7720 = vmax.f32 %v7658, %v7690
        %v7721 = vmax.f32 %v7660, %v7692
        %v7722 = vmax.f32 %v7662, %v7694
        %v7723 = vmax.f32 %v7664, %v7696
        %v7724 = vmax.f32 %v7666, %v7698
        %v7725 = vmax.f32 %v7668, %v7700
        %v7726 = vmax.f32 %v7670, %v7702
        %v7727 = vmax.f32 %v7672, %v7704
        %v7728 = vmax.f32 %v7674, %v7706
        %v7729 = vmax.f32 %v7676, %v7708
        %v7730 = vmax.f32 %v7678, %v7710
        %v7731 = vmax.f32 %v7680, %v7712
        %v7732 = vmax.f32 %v7682, %v7714
        %v7733 = vmax.f32 %v7684, %v7716
        %v7734 = vmax.f32 %v7686, %v7718
        %v7735 = vmax.f32 %v7719, %v7720
        %v7736 = vmax.f32 %v7721, %v7722
        %v7737 = vmax.f32 %v7723, %v7724
        %v7738 = vmax.f32 %v7725, %v7726
        %v7739 = vmax.f32 %v7727, %v7728
        %v7740 = vmax.f32 %v7729, %v7730
        %v7741 = vmax.f32 %v7731, %v7732
        %v7742 = vmax.f32 %v7733, %v7734
        %7743 = vst.msk [vmem:[%s336] sm:$0xff] %vm410, %v7735
        %7744 = vst.msk [vmem:[%s336 + $0x8] sm:$0xff] %vm410, %v7736
        %7745 = vst.msk [vmem:[%s336 + $0x10] sm:$0xff] %vm410, %v7737
        %7746 = vst.msk [vmem:[%s336 + $0x18] sm:$0xff] %vm410, %v7738
        %7747 = vst.msk [vmem:[%s336 + $0x20] sm:$0xff] %vm410, %v7739
        %7748 = vst.msk [vmem:[%s336 + $0x28] sm:$0xff] %vm410, %v7740
        %7749 = vst.msk [vmem:[%s336 + $0x30] sm:$0xff] %vm410, %v7741
        %7750 = vst.msk [vmem:[%s336 + $0x38] sm:$0xff] %vm410, %v7742
        %s7751 = scalar_lea.vmem [#allocation4], 16
        %7752 = vst.msk [vmem:[%s7751 + $0x1] sm:$0xff] %vm410, %v7735
        %7753 = vst.msk [vmem:[%s7751 + $0x11] sm:$0xff] %vm410, %v7736
        %7754 = vst.msk [vmem:[%s7751 + $0x21] sm:$0xff] %vm410, %v7737
        %7755 = vst.msk [vmem:[%s7751 + $0x31] sm:$0xff] %vm410, %v7738
        %7756 = vst.msk [vmem:[%s7751 + $0x41] sm:$0xff] %vm410, %v7739
        %7757 = vst.msk [vmem:[%s7751 + $0x51] sm:$0xff] %vm410, %v7740
        %7758 = vst.msk [vmem:[%s7751 + $0x61] sm:$0xff] %vm410, %v7741
        %7759 = vst.msk [vmem:[%s7751 + $0x71] sm:$0xff] %vm410, %v7742
        %v7760 = vld [vmem:[#allocation4] sm:$0xff]
        %v7761 = vld [vmem:[#allocation4 + $0x10] sm:$0xff]
        %v7762 = vld [vmem:[#allocation4 + $0x20] sm:$0xff]
        %v7763 = vld [vmem:[#allocation4 + $0x30] sm:$0xff]
        %v7764 = vld [vmem:[#allocation4 + $0x40] sm:$0xff]
        %v7765 = vld [vmem:[#allocation4 + $0x50] sm:$0xff]
        %v7766 = vld [vmem:[#allocation4 + $0x60] sm:$0xff]
        %v7767 = vld [vmem:[#allocation4 + $0x70] sm:$0xff]
        %v7768 = vld [vmem:[%s5] sm:$0xff]
        %v7769 = vld [vmem:[#allocation4 + $0x1] sm:$0xff]
        %v7770 = vld [vmem:[#allocation4 + $0x11] sm:$0xff]
        %v7771 = vld [vmem:[#allocation4 + $0x21] sm:$0xff]
        %v7772 = vld [vmem:[#allocation4 + $0x31] sm:$0xff]
        %v7773 = vld [vmem:[#allocation4 + $0x41] sm:$0xff]
        %v7774 = vld [vmem:[#allocation4 + $0x51] sm:$0xff]
        %v7775 = vld [vmem:[#allocation4 + $0x61] sm:$0xff]
        %v7776 = vld [vmem:[#allocation4 + $0x71] sm:$0xff]
        %s7777 = scalar_lea.vmem %s5, 8
        %v7778 = vld [vmem:[%s7777] sm:$0xff]
        %v7780 = vsel %vm410, %v7769, 0
        %v7783 = vsel %vm410, %v7770, 0
        %v7786 = vsel %vm410, %v7771, 0
        %v7789 = vsel %vm410, %v7772, 0
        %v7792 = vsel %vm410, %v7773, 0
        %v7795 = vsel %vm410, %v7774, 0
        %v7798 = vsel %vm410, %v7775, 0
        %v7801 = vsel %vm410, %v7776, 0
        %7803 = vmatprep.subr.mxu0 0.0
        %7804 = vmatpush1.msra.mxu0 %v7778
        %7805 = vmatprep.subr.mxu0 0.0
        %7806 = vmatpush1.msra.mxu0 0.0
        %7807 = vmatprep.subr.mxu0 0.0
        %7808 = vmatpush1.msra.mxu0 0.0
        %7809 = vmatprep.subr.mxu0 0.0
        %7810 = vmatpush1.msra.mxu0 0.0
        %7811 = vmatprep.subr.mxu0 0.0
        %7812 = vmatpush1.msra.mxu0 0.0
        %7813 = vmatprep.subr.mxu0 0.0
        %7814 = vmatpush1.msra.mxu0 0.0
        %7815 = vmatprep.subr.mxu0 0.0
        %7816 = vmatpush1.msra.mxu0 0.0
        %7817 = vmatprep.subr.mxu0 0.0
        %7818 = vmatpush1.msra.mxu0 0.0
        %7819 = vmatprep.subr.mxu0 0.0
        %7820 = vmatpush1.msra.mxu0 0.0
        %7821 = vmatprep.subr.mxu0 0.0
        %7822 = vmatpush1.msra.mxu0 0.0
        %7823 = vmatprep.subr.mxu0 0.0
        %7824 = vmatpush1.msra.mxu0 0.0
        %7825 = vmatprep.subr.mxu0 0.0
        %7826 = vmatpush1.msra.mxu0 0.0
        %7827 = vmatprep.subr.mxu0 0.0
        %7828 = vmatpush1.msra.mxu0 0.0
        %7829 = vmatprep.subr.mxu0 0.0
        %7830 = vmatpush1.msra.mxu0 0.0
        %7831 = vmatprep.subr.mxu0 0.0
        %7832 = vmatpush1.msra.mxu0 0.0
        %7833 = vmatprep.subr.mxu0 0.0
        %7834 = vmatpush1.msra.mxu0 0.0
        %7835 = vmatprep.subr.mxu0 0.0
        %7836 = vmatpush1.msra.mxu0 0.0
        %7837 = vmatprep.subr.mxu0 0.0
        %7838 = vmatpush1.msra.mxu0 0.0
        %7839 = vmatprep.subr.mxu0 0.0
        %7840 = vmatpush1.msra.mxu0 0.0
        %7841 = vmatprep.subr.mxu0 0.0
        %7842 = vmatpush1.msra.mxu0 0.0
        %7843 = vmatprep.subr.mxu0 0.0
        %7844 = vmatpush1.msra.mxu0 0.0
        %7845 = vmatprep.subr.mxu0 0.0
        %7846 = vmatpush1.msra.mxu0 0.0
        %7847 = vmatprep.subr.mxu0 0.0
        %7848 = vmatpush1.msra.mxu0 0.0
        %7849 = vmatprep.subr.mxu0 0.0
        %7850 = vmatpush1.msra.mxu0 0.0
        %7851 = vmatprep.subr.mxu0 0.0
        %7852 = vmatpush1.msra.mxu0 0.0
        %7853 = vmatprep.subr.mxu0 0.0
        %7854 = vmatpush1.msra.mxu0 0.0
        %7855 = vmatprep.subr.mxu0 0.0
        %7856 = vmatpush1.msra.mxu0 0.0
        %7857 = vmatprep.subr.mxu0 0.0
        %7858 = vmatpush1.msra.mxu0 0.0
        %7859 = vmatprep.subr.mxu0 0.0
        %7860 = vmatpush1.msra.mxu0 0.0
        %7861 = vmatprep.subr.mxu0 0.0
        %7862 = vmatpush1.msra.mxu0 0.0
        %7863 = vmatprep.subr.mxu0 0.0
        %7864 = vmatpush1.msra.mxu0 0.0
        %7865 = vmatprep.subr.mxu0 0.0
        %7866 = vmatpush1.msra.mxu0 0.0
        %7867 = vmatprep.mubr.f32.mxu0 0.0
        %7868 = vmatmul.mubr.f32.gmra.mrb[0].mxu0 %v7780
        %v7869 = vpop.f32.mrb[0].mxu0
        %v7870 = vadd.f32 0.0, %v7869
        %v7871 = vpop.f32.mrb[0].mxu0
        %7872 = vmatprep.mubr.f32.mxu0 0.0
        %7873 = vmatmul.mubr.f32.gmra.mrb[0].mxu0 %v7783
        %v7874 = vpop.f32.mrb[0].mxu0
        %v7875 = vadd.f32 0.0, %v7874
        %v7876 = vpop.f32.mrb[0].mxu0
        %7877 = vmatprep.mubr.f32.mxu0 0.0
        %7878 = vmatmul.mubr.f32.gmra.mrb[0].mxu0 %v7786
        %v7879 = vpop.f32.mrb[0].mxu0
        %v7880 = vadd.f32 0.0, %v7879
        %v7881 = vpop.f32.mrb[0].mxu0
        %7882 = vmatprep.mubr.f32.mxu0 0.0
        %7883 = vmatmul.mubr.f32.gmra.mrb[0].mxu0 %v7789
        %v7884 = vpop.f32.mrb[0].mxu0
        %v7885 = vadd.f32 0.0, %v7884
        %v7886 = vpop.f32.mrb[0].mxu0
        %7887 = vmatprep.mubr.f32.mxu0 0.0
        %7888 = vmatmul.mubr.f32.gmra.mrb[0].mxu0 %v7792
        %v7889 = vpop.f32.mrb[0].mxu0
        %v7890 = vadd.f32 0.0, %v7889
        %v7891 = vpop.f32.mrb[0].mxu0
        %7892 = vmatprep.mubr.f32.mxu0 0.0
        %7893 = vmatmul.mubr.f32.gmra.mrb[0].mxu0 %v7795
        %v7894 = vpop.f32.mrb[0].mxu0
        %v7895 = vadd.f32 0.0, %v7894
        %v7896 = vpop.f32.mrb[0].mxu0
        %7897 = vmatprep.mubr.f32.mxu0 0.0
        %7898 = vmatmul.mubr.f32.gmra.mrb[0].mxu0 %v7798
        %v7899 = vpop.f32.mrb[0].mxu0
        %v7900 = vadd.f32 0.0, %v7899
        %v7901 = vpop.f32.mrb[0].mxu0
        %7902 = vmatprep.mubr.f32.mxu0 0.0
        %7903 = vmatmul.mubr.f32.gmra.mrb[0].mxu0 %v7801
        %v7904 = vpop.f32.mrb[0].mxu0
        %v7905 = vadd.f32 0.0, %v7904
        %v7906 = vpop.f32.mrb[0].mxu0
        %7907 = vdwg.mxu0
        %v7909 = vsel %vm410, %v7760, 0
        %v7912 = vsel %vm410, %v7761, 0
        %v7915 = vsel %vm410, %v7762, 0
        %v7918 = vsel %vm410, %v7763, 0
        %v7921 = vsel %vm410, %v7764, 0
        %v7924 = vsel %vm410, %v7765, 0
        %v7927 = vsel %vm410, %v7766, 0
        %v7930 = vsel %vm410, %v7767, 0
        %7932 = vmatprep.subr.mxu0 0.0
        %7933 = vmatpush1.msra.mxu0 %v7768
        %7934 = vmatprep.subr.mxu0 0.0
        %7935 = vmatpush1.msra.mxu0 0.0
        %7936 = vmatprep.subr.mxu0 0.0
        %7937 = vmatpush1.msra.mxu0 0.0
        %7938 = vmatprep.subr.mxu0 0.0
        %7939 = vmatpush1.msra.mxu0 0.0
        %7940 = vmatprep.subr.mxu0 0.0
        %7941 = vmatpush1.msra.mxu0 0.0
        %7942 = vmatprep.subr.mxu0 0.0
        %7943 = vmatpush1.msra.mxu0 0.0
        %7944 = vmatprep.subr.mxu0 0.0
        %7945 = vmatpush1.msra.mxu0 0.0
        %7946 = vmatprep.subr.mxu0 0.0
        %7947 = vmatpush1.msra.mxu0 0.0
        %7948 = vmatprep.subr.mxu0 0.0
        %7949 = vmatpush1.msra.mxu0 0.0
        %7950 = vmatprep.subr.mxu0 0.0
        %7951 = vmatpush1.msra.mxu0 0.0
        %7952 = vmatprep.subr.mxu0 0.0
        %7953 = vmatpush1.msra.mxu0 0.0
        %7954 = vmatprep.subr.mxu0 0.0
        %7955 = vmatpush1.msra.mxu0 0.0
        %7956 = vmatprep.subr.mxu0 0.0
        %7957 = vmatpush1.msra.mxu0 0.0
        %7958 = vmatprep.subr.mxu0 0.0
        %7959 = vmatpush1.msra.mxu0 0.0
        %7960 = vmatprep.subr.mxu0 0.0
        %7961 = vmatpush1.msra.mxu0 0.0
        %7962 = vmatprep.subr.mxu0 0.0
        %7963 = vmatpush1.msra.mxu0 0.0
        %7964 = vmatprep.subr.mxu0 0.0
        %7965 = vmatpush1.msra.mxu0 0.0
        %7966 = vmatprep.subr.mxu0 0.0
        %7967 = vmatpush1.msra.mxu0 0.0
        %7968 = vmatprep.subr.mxu0 0.0
        %7969 = vmatpush1.msra.mxu0 0.0
        %7970 = vmatprep.subr.mxu0 0.0
        %7971 = vmatpush1.msra.mxu0 0.0
        %7972 = vmatprep.subr.mxu0 0.0
        %7973 = vmatpush1.msra.mxu0 0.0
        %7974 = vmatprep.subr.mxu0 0.0
        %7975 = vmatpush1.msra.mxu0 0.0
        %7976 = vmatprep.subr.mxu0 0.0
        %7977 = vmatpush1.msra.mxu0 0.0
        %7978 = vmatprep.subr.mxu0 0.0
        %7979 = vmatpush1.msra.mxu0 0.0
        %7980 = vmatprep.subr.mxu0 0.0
        %7981 = vmatpush1.msra.mxu0 0.0
        %7982 = vmatprep.subr.mxu0 0.0
        %7983 = vmatpush1.msra.mxu0 0.0
        %7984 = vmatprep.subr.mxu0 0.0
        %7985 = vmatpush1.msra.mxu0 0.0
        %7986 = vmatprep.subr.mxu0 0.0
        %7987 = vmatpush1.msra.mxu0 0.0
        %7988 = vmatprep.subr.mxu0 0.0
        %7989 = vmatpush1.msra.mxu0 0.0
        %7990 = vmatprep.subr.mxu0 0.0
        %7991 = vmatpush1.msra.mxu0 0.0
        %7992 = vmatprep.subr.mxu0 0.0
        %7993 = vmatpush1.msra.mxu0 0.0
        %7994 = vmatprep.subr.mxu0 0.0
        %7995 = vmatpush1.msra.mxu0 0.0
        %7996 = vmatprep.mubr.f32.mxu0 0.0
        %7997 = vmatmul.mubr.f32.gmra.mrb[0].mxu0 %v7909
        %v7998 = vpop.f32.mrb[0].mxu0
        %v7999 = vadd.f32 %v7870, %v7998
        %v8000 = vpop.f32.mrb[0].mxu0
        %8001 = vmatprep.mubr.f32.mxu0 0.0
        %8002 = vmatmul.mubr.f32.gmra.mrb[0].mxu0 %v7912
        %v8003 = vpop.f32.mrb[0].mxu0
        %v8004 = vadd.f32 %v7875, %v8003
        %v8005 = vpop.f32.mrb[0].mxu0
        %8006 = vmatprep.mubr.f32.mxu0 0.0
        %8007 = vmatmul.mubr.f32.gmra.mrb[0].mxu0 %v7915
        %v8008 = vpop.f32.mrb[0].mxu0
        %v8009 = vadd.f32 %v7880, %v8008
        %v8010 = vpop.f32.mrb[0].mxu0
        %8011 = vmatprep.mubr.f32.mxu0 0.0
        %8012 = vmatmul.mubr.f32.gmra.mrb[0].mxu0 %v7918
        %v8013 = vpop.f32.mrb[0].mxu0
        %v8014 = vadd.f32 %v7885, %v8013
        %v8015 = vpop.f32.mrb[0].mxu0
        %8016 = vmatprep.mubr.f32.mxu0 0.0
        %8017 = vmatmul.mubr.f32.gmra.mrb[0].mxu0 %v7921
        %v8018 = vpop.f32.mrb[0].mxu0
        %v8019 = vadd.f32 %v7890, %v8018
        %v8020 = vpop.f32.mrb[0].mxu0
        %8021 = vmatprep.mubr.f32.mxu0 0.0
        %8022 = vmatmul.mubr.f32.gmra.mrb[0].mxu0 %v7924
        %v8023 = vpop.f32.mrb[0].mxu0
        %v8024 = vadd.f32 %v7895, %v8023
        %v8025 = vpop.f32.mrb[0].mxu0
        %8026 = vmatprep.mubr.f32.mxu0 0.0
        %8027 = vmatmul.mubr.f32.gmra.mrb[0].mxu0 %v7927
        %v8028 = vpop.f32.mrb[0].mxu0
        %v8029 = vadd.f32 %v7900, %v8028
        %v8030 = vpop.f32.mrb[0].mxu0
        %8031 = vmatprep.mubr.f32.mxu0 0.0
        %8032 = vmatmul.mubr.f32.gmra.mrb[0].mxu0 %v7930
        %v8033 = vpop.f32.mrb[0].mxu0
        %v8034 = vadd.f32 %v7905, %v8033
        %v8035 = vpop.f32.mrb[0].mxu0
        %8036 = vdwg.mxu0
        %v8037 = vld [vmem:[#allocation4 + $0x2] sm:$0xff]
        %v8038 = vld [vmem:[#allocation4 + $0x12] sm:$0xff]
        %v8039 = vld [vmem:[#allocation4 + $0x22] sm:$0xff]
        %v8040 = vld [vmem:[#allocation4 + $0x32] sm:$0xff]
        %v8041 = vld [vmem:[#allocation4 + $0x42] sm:$0xff]
        %v8042 = vld [vmem:[#allocation4 + $0x52] sm:$0xff]
        %v8043 = vld [vmem:[#allocation4 + $0x62] sm:$0xff]
        %v8044 = vld [vmem:[#allocation4 + $0x72] sm:$0xff]
        %s8045 = scalar_lea.vmem %s5, 16
        %v8046 = vld [vmem:[%s8045] sm:$0xff]
        %v8048 = vsel %vm410, %v8037, 0
        %v8051 = vsel %vm410, %v8038, 0
        %v8054 = vsel %vm410, %v8039, 0
        %v8057 = vsel %vm410, %v8040, 0
        %v8060 = vsel %vm410, %v8041, 0
        %v8063 = vsel %vm410, %v8042, 0
        %v8066 = vsel %vm410, %v8043, 0
        %v8069 = vsel %vm410, %v8044, 0
        %8071 = vmatprep.subr.mxu0 0.0
        %8072 = vmatpush1.msra.mxu0 %v8046
        %8073 = vmatprep.subr.mxu0 0.0
        %8074 = vmatpush1.msra.mxu0 0.0
        %8075 = vmatprep.subr.mxu0 0.0
        %8076 = vmatpush1.msra.mxu0 0.0
        %8077 = vmatprep.subr.mxu0 0.0
        %8078 = vmatpush1.msra.mxu0 0.0
        %8079 = vmatprep.subr.mxu0 0.0
        %8080 = vmatpush1.msra.mxu0 0.0
        %8081 = vmatprep.subr.mxu0 0.0
        %8082 = vmatpush1.msra.mxu0 0.0
        %8083 = vmatprep.subr.mxu0 0.0
        %8084 = vmatpush1.msra.mxu0 0.0
        %8085 = vmatprep.subr.mxu0 0.0
        %8086 = vmatpush1.msra.mxu0 0.0
        %8087 = vmatprep.subr.mxu0 0.0
        %8088 = vmatpush1.msra.mxu0 0.0
        %8089 = vmatprep.subr.mxu0 0.0
        %8090 = vmatpush1.msra.mxu0 0.0
        %8091 = vmatprep.subr.mxu0 0.0
        %8092 = vmatpush1.msra.mxu0 0.0
        %8093 = vmatprep.subr.mxu0 0.0
        %8094 = vmatpush1.msra.mxu0 0.0
        %8095 = vmatprep.subr.mxu0 0.0
        %8096 = vmatpush1.msra.mxu0 0.0
        %8097 = vmatprep.subr.mxu0 0.0
        %8098 = vmatpush1.msra.mxu0 0.0
        %8099 = vmatprep.subr.mxu0 0.0
        %8100 = vmatpush1.msra.mxu0 0.0
        %8101 = vmatprep.subr.mxu0 0.0
        %8102 = vmatpush1.msra.mxu0 0.0
        %8103 = vmatprep.subr.mxu0 0.0
        %8104 = vmatpush1.msra.mxu0 0.0
        %8105 = vmatprep.subr.mxu0 0.0
        %8106 = vmatpush1.msra.mxu0 0.0
        %8107 = vmatprep.subr.mxu0 0.0
        %8108 = vmatpush1.msra.mxu0 0.0
        %8109 = vmatprep.subr.mxu0 0.0
        %8110 = vmatpush1.msra.mxu0 0.0
        %8111 = vmatprep.subr.mxu0 0.0
        %8112 = vmatpush1.msra.mxu0 0.0
        %8113 = vmatprep.subr.mxu0 0.0
        %8114 = vmatpush1.msra.mxu0 0.0
        %8115 = vmatprep.subr.mxu0 0.0
        %8116 = vmatpush1.msra.mxu0 0.0
        %8117 = vmatprep.subr.mxu0 0.0
        %8118 = vmatpush1.msra.mxu0 0.0
        %8119 = vmatprep.subr.mxu0 0.0
        %8120 = vmatpush1.msra.mxu0 0.0
        %8121 = vmatprep.subr.mxu0 0.0
        %8122 = vmatpush1.msra.mxu0 0.0
        %8123 = vmatprep.subr.mxu0 0.0
        %8124 = vmatpush1.msra.mxu0 0.0
        %8125 = vmatprep.subr.mxu0 0.0
        %8126 = vmatpush1.msra.mxu0 0.0
        %8127 = vmatprep.subr.mxu0 0.0
        %8128 = vmatpush1.msra.mxu0 0.0
        %8129 = vmatprep.subr.mxu0 0.0
        %8130 = vmatpush1.msra.mxu0 0.0
        %8131 = vmatprep.subr.mxu0 0.0
        %8132 = vmatpush1.msra.mxu0 0.0
        %8133 = vmatprep.subr.mxu0 0.0
        %8134 = vmatpush1.msra.mxu0 0.0
        %8135 = vmatprep.mubr.f32.mxu0 0.0
        %8136 = vmatmul.mubr.f32.gmra.mrb[0].mxu0 %v8048
        %v8137 = vpop.f32.mrb[0].mxu0
        %v8138 = vadd.f32 0.0, %v8137
        %v8139 = vpop.f32.mrb[0].mxu0
        %8140 = vmatprep.mubr.f32.mxu0 0.0
        %8141 = vmatmul.mubr.f32.gmra.mrb[0].mxu0 %v8051
        %v8142 = vpop.f32.mrb[0].mxu0
        %v8143 = vadd.f32 0.0, %v8142
        %v8144 = vpop.f32.mrb[0].mxu0
        %8145 = vmatprep.mubr.f32.mxu0 0.0
        %8146 = vmatmul.mubr.f32.gmra.mrb[0].mxu0 %v8054
        %v8147 = vpop.f32.mrb[0].mxu0
        %v8148 = vadd.f32 0.0, %v8147
        %v8149 = vpop.f32.mrb[0].mxu0
        %8150 = vmatprep.mubr.f32.mxu0 0.0
        %8151 = vmatmul.mubr.f32.gmra.mrb[0].mxu0 %v8057
        %v8152 = vpop.f32.mrb[0].mxu0
        %v8153 = vadd.f32 0.0, %v8152
        %v8154 = vpop.f32.mrb[0].mxu0
        %8155 = vmatprep.mubr.f32.mxu0 0.0
        %8156 = vmatmul.mubr.f32.gmra.mrb[0].mxu0 %v8060
        %v8157 = vpop.f32.mrb[0].mxu0
        %v8158 = vadd.f32 0.0, %v8157
        %v8159 = vpop.f32.mrb[0].mxu0
        %8160 = vmatprep.mubr.f32.mxu0 0.0
        %8161 = vmatmul.mubr.f32.gmra.mrb[0].mxu0 %v8063
        %v8162 = vpop.f32.mrb[0].mxu0
        %v8163 = vadd.f32 0.0, %v8162
        %v8164 = vpop.f32.mrb[0].mxu0
        %8165 = vmatprep.mubr.f32.mxu0 0.0
        %8166 = vmatmul.mubr.f32.gmra.mrb[0].mxu0 %v8066
        %v8167 = vpop.f32.mrb[0].mxu0
        %v8168 = vadd.f32 0.0, %v8167
        %v8169 = vpop.f32.mrb[0].mxu0
        %8170 = vmatprep.mubr.f32.mxu0 0.0
        %8171 = vmatmul.mubr.f32.gmra.mrb[0].mxu0 %v8069
        %v8172 = vpop.f32.mrb[0].mxu0
        %v8173 = vadd.f32 0.0, %v8172
        %v8174 = vpop.f32.mrb[0].mxu0
        %8175 = vdwg.mxu0
        %v8176 = vadd.f32 %v7999, %v8138
        %v8177 = vadd.f32 %v8004, %v8143
        %v8178 = vadd.f32 %v8009, %v8148
        %v8179 = vadd.f32 %v8014, %v8153
        %v8180 = vadd.f32 %v8019, %v8158
        %v8181 = vadd.f32 %v8024, %v8163
        %v8182 = vadd.f32 %v8029, %v8168
        %v8183 = vadd.f32 %v8034, %v8173
        %v8184 = vld [vmem:[%s7751] sm:$0xff]
        %v8185 = vld [vmem:[%s7751 + $0x10] sm:$0xff]
        %v8186 = vld [vmem:[%s7751 + $0x20] sm:$0xff]
        %v8187 = vld [vmem:[%s7751 + $0x30] sm:$0xff]
        %v8188 = vld [vmem:[%s7751 + $0x40] sm:$0xff]
        %v8189 = vld [vmem:[%s7751 + $0x50] sm:$0xff]
        %v8190 = vld [vmem:[%s7751 + $0x60] sm:$0xff]
        %v8191 = vld [vmem:[%s7751 + $0x70] sm:$0xff]
        %s8192 = scalar_lea.vmem %s5, 24
        %v8193 = vld [vmem:[%s8192] sm:$0xff]
        %v8195 = vsel %vm410, %v8184, 0
        %v8198 = vsel %vm410, %v8185, 0
        %v8201 = vsel %vm410, %v8186, 0
        %v8204 = vsel %vm410, %v8187, 0
        %v8207 = vsel %vm410, %v8188, 0
        %v8210 = vsel %vm410, %v8189, 0
        %v8213 = vsel %vm410, %v8190, 0
        %v8216 = vsel %vm410, %v8191, 0
        %8218 = vmatprep.subr.mxu0 0.0
        %8219 = vmatpush1.msra.mxu0 %v8193
        %8220 = vmatprep.subr.mxu0 0.0
        %8221 = vmatpush1.msra.mxu0 0.0
        %8222 = vmatprep.subr.mxu0 0.0
        %8223 = vmatpush1.msra.mxu0 0.0
        %8224 = vmatprep.subr.mxu0 0.0
        %8225 = vmatpush1.msra.mxu0 0.0
        %8226 = vmatprep.subr.mxu0 0.0
        %8227 = vmatpush1.msra.mxu0 0.0
        %8228 = vmatprep.subr.mxu0 0.0
        %8229 = vmatpush1.msra.mxu0 0.0
        %8230 = vmatprep.subr.mxu0 0.0
        %8231 = vmatpush1.msra.mxu0 0.0
        %8232 = vmatprep.subr.mxu0 0.0
        %8233 = vmatpush1.msra.mxu0 0.0
        %8234 = vmatprep.subr.mxu0 0.0
        %8235 = vmatpush1.msra.mxu0 0.0
        %8236 = vmatprep.subr.mxu0 0.0
        %8237 = vmatpush1.msra.mxu0 0.0
        %8238 = vmatprep.subr.mxu0 0.0
        %8239 = vmatpush1.msra.mxu0 0.0
        %8240 = vmatprep.subr.mxu0 0.0
        %8241 = vmatpush1.msra.mxu0 0.0
        %8242 = vmatprep.subr.mxu0 0.0
        %8243 = vmatpush1.msra.mxu0 0.0
        %8244 = vmatprep.subr.mxu0 0.0
        %8245 = vmatpush1.msra.mxu0 0.0
        %8246 = vmatprep.subr.mxu0 0.0
        %8247 = vmatpush1.msra.mxu0 0.0
        %8248 = vmatprep.subr.mxu0 0.0
        %8249 = vmatpush1.msra.mxu0 0.0
        %8250 = vmatprep.subr.mxu0 0.0
        %8251 = vmatpush1.msra.mxu0 0.0
        %8252 = vmatprep.subr.mxu0 0.0
        %8253 = vmatpush1.msra.mxu0 0.0
        %8254 = vmatprep.subr.mxu0 0.0
        %8255 = vmatpush1.msra.mxu0 0.0
        %8256 = vmatprep.subr.mxu0 0.0
        %8257 = vmatpush1.msra.mxu0 0.0
        %8258 = vmatprep.subr.mxu0 0.0
        %8259 = vmatpush1.msra.mxu0 0.0
        %8260 = vmatprep.subr.mxu0 0.0
        %8261 = vmatpush1.msra.mxu0 0.0
        %8262 = vmatprep.subr.mxu0 0.0
        %8263 = vmatpush1.msra.mxu0 0.0
        %8264 = vmatprep.subr.mxu0 0.0
        %8265 = vmatpush1.msra.mxu0 0.0
        %8266 = vmatprep.subr.mxu0 0.0
        %8267 = vmatpush1.msra.mxu0 0.0
        %8268 = vmatprep.subr.mxu0 0.0
        %8269 = vmatpush1.msra.mxu0 0.0
        %8270 = vmatprep.subr.mxu0 0.0
        %8271 = vmatpush1.msra.mxu0 0.0
        %8272 = vmatprep.subr.mxu0 0.0
        %8273 = vmatpush1.msra.mxu0 0.0
        %8274 = vmatprep.subr.mxu0 0.0
        %8275 = vmatpush1.msra.mxu0 0.0
        %8276 = vmatprep.subr.mxu0 0.0
        %8277 = vmatpush1.msra.mxu0 0.0
        %8278 = vmatprep.subr.mxu0 0.0
        %8279 = vmatpush1.msra.mxu0 0.0
        %8280 = vmatprep.subr.mxu0 0.0
        %8281 = vmatpush1.msra.mxu0 0.0
        %8282 = vmatprep.mubr.f32.mxu0 0.0
        %8283 = vmatmul.mubr.f32.gmra.mrb[0].mxu0 %v8195
        %v8284 = vpop.f32.mrb[0].mxu0
        %v8285 = vadd.f32 0.0, %v8284
        %v8286 = vpop.f32.mrb[0].mxu0
        %8287 = vmatprep.mubr.f32.mxu0 0.0
        %8288 = vmatmul.mubr.f32.gmra.mrb[0].mxu0 %v8198
        %v8289 = vpop.f32.mrb[0].mxu0
        %v8290 = vadd.f32 0.0, %v8289
        %v8291 = vpop.f32.mrb[0].mxu0
        %8292 = vmatprep.mubr.f32.mxu0 0.0
        %8293 = vmatmul.mubr.f32.gmra.mrb[0].mxu0 %v8201
        %v8294 = vpop.f32.mrb[0].mxu0
        %v8295 = vadd.f32 0.0, %v8294
        %v8296 = vpop.f32.mrb[0].mxu0
        %8297 = vmatprep.mubr.f32.mxu0 0.0
        %8298 = vmatmul.mubr.f32.gmra.mrb[0].mxu0 %v8204
        %v8299 = vpop.f32.mrb[0].mxu0
        %v8300 = vadd.f32 0.0, %v8299
        %v8301 = vpop.f32.mrb[0].mxu0
        %8302 = vmatprep.mubr.f32.mxu0 0.0
        %8303 = vmatmul.mubr.f32.gmra.mrb[0].mxu0 %v8207
        %v8304 = vpop.f32.mrb[0].mxu0
        %v8305 = vadd.f32 0.0, %v8304
        %v8306 = vpop.f32.mrb[0].mxu0
        %8307 = vmatprep.mubr.f32.mxu0 0.0
        %8308 = vmatmul.mubr.f32.gmra.mrb[0].mxu0 %v8210
        %v8309 = vpop.f32.mrb[0].mxu0
        %v8310 = vadd.f32 0.0, %v8309
        %v8311 = vpop.f32.mrb[0].mxu0
        %8312 = vmatprep.mubr.f32.mxu0 0.0
        %8313 = vmatmul.mubr.f32.gmra.mrb[0].mxu0 %v8213
        %v8314 = vpop.f32.mrb[0].mxu0
        %v8315 = vadd.f32 0.0, %v8314
        %v8316 = vpop.f32.mrb[0].mxu0
        %8317 = vmatprep.mubr.f32.mxu0 0.0
        %8318 = vmatmul.mubr.f32.gmra.mrb[0].mxu0 %v8216
        %v8319 = vpop.f32.mrb[0].mxu0
        %v8320 = vadd.f32 0.0, %v8319
        %v8321 = vpop.f32.mrb[0].mxu0
        %8322 = vdwg.mxu0
        %v8323 = vadd.f32 %v8176, %v8285
        %v8324 = vadd.f32 %v8177, %v8290
        %v8325 = vadd.f32 %v8178, %v8295
        %v8326 = vadd.f32 %v8179, %v8300
        %v8327 = vadd.f32 %v8180, %v8305
        %v8328 = vadd.f32 %v8181, %v8310
        %v8329 = vadd.f32 %v8182, %v8315
        %v8330 = vadd.f32 %v8183, %v8320
        %v8331 = vld [vmem:[%s7751 + $0x1] sm:$0xff]
        %v8332 = vld [vmem:[%s7751 + $0x11] sm:$0xff]
        %v8333 = vld [vmem:[%s7751 + $0x21] sm:$0xff]
        %v8334 = vld [vmem:[%s7751 + $0x31] sm:$0xff]
        %v8335 = vld [vmem:[%s7751 + $0x41] sm:$0xff]
        %v8336 = vld [vmem:[%s7751 + $0x51] sm:$0xff]
        %v8337 = vld [vmem:[%s7751 + $0x61] sm:$0xff]
        %v8338 = vld [vmem:[%s7751 + $0x71] sm:$0xff]
        %s8339 = scalar_lea.vmem %s5, 32
        %v8340 = vld [vmem:[%s8339] sm:$0xff]
        %v8342 = vsel %vm410, %v8331, 0
        %v8345 = vsel %vm410, %v8332, 0
        %v8348 = vsel %vm410, %v8333, 0
        %v8351 = vsel %vm410, %v8334, 0
        %v8354 = vsel %vm410, %v8335, 0
        %v8357 = vsel %vm410, %v8336, 0
        %v8360 = vsel %vm410, %v8337, 0
        %v8363 = vsel %vm410, %v8338, 0
        %8365 = vmatprep.subr.mxu0 0.0
        %8366 = vmatpush1.msra.mxu0 %v8340
        %8367 = vmatprep.subr.mxu0 0.0
        %8368 = vmatpush1.msra.mxu0 0.0
        %8369 = vmatprep.subr.mxu0 0.0
        %8370 = vmatpush1.msra.mxu0 0.0
        %8371 = vmatprep.subr.mxu0 0.0
        %8372 = vmatpush1.msra.mxu0 0.0
        %8373 = vmatprep.subr.mxu0 0.0
        %8374 = vmatpush1.msra.mxu0 0.0
        %8375 = vmatprep.subr.mxu0 0.0
        %8376 = vmatpush1.msra.mxu0 0.0
        %8377 = vmatprep.subr.mxu0 0.0
        %8378 = vmatpush1.msra.mxu0 0.0
        %8379 = vmatprep.subr.mxu0 0.0
        %8380 = vmatpush1.msra.mxu0 0.0
        %8381 = vmatprep.subr.mxu0 0.0
        %8382 = vmatpush1.msra.mxu0 0.0
        %8383 = vmatprep.subr.mxu0 0.0
        %8384 = vmatpush1.msra.mxu0 0.0
        %8385 = vmatprep.subr.mxu0 0.0
        %8386 = vmatpush1.msra.mxu0 0.0
        %8387 = vmatprep.subr.mxu0 0.0
        %8388 = vmatpush1.msra.mxu0 0.0
        %8389 = vmatprep.subr.mxu0 0.0
        %8390 = vmatpush1.msra.mxu0 0.0
        %8391 = vmatprep.subr.mxu0 0.0
        %8392 = vmatpush1.msra.mxu0 0.0
        %8393 = vmatprep.subr.mxu0 0.0
        %8394 = vmatpush1.msra.mxu0 0.0
        %8395 = vmatprep.subr.mxu0 0.0
        %8396 = vmatpush1.msra.mxu0 0.0
        %8397 = vmatprep.subr.mxu0 0.0
        %8398 = vmatpush1.msra.mxu0 0.0
        %8399 = vmatprep.subr.mxu0 0.0
        %8400 = vmatpush1.msra.mxu0 0.0
        %8401 = vmatprep.subr.mxu0 0.0
        %8402 = vmatpush1.msra.mxu0 0.0
        %8403 = vmatprep.subr.mxu0 0.0
        %8404 = vmatpush1.msra.mxu0 0.0
        %8405 = vmatprep.subr.mxu0 0.0
        %8406 = vmatpush1.msra.mxu0 0.0
        %8407 = vmatprep.subr.mxu0 0.0
        %8408 = vmatpush1.msra.mxu0 0.0
        %8409 = vmatprep.subr.mxu0 0.0
        %8410 = vmatpush1.msra.mxu0 0.0
        %8411 = vmatprep.subr.mxu0 0.0
        %8412 = vmatpush1.msra.mxu0 0.0
        %8413 = vmatprep.subr.mxu0 0.0
        %8414 = vmatpush1.msra.mxu0 0.0
        %8415 = vmatprep.subr.mxu0 0.0
        %8416 = vmatpush1.msra.mxu0 0.0
        %8417 = vmatprep.subr.mxu0 0.0
        %8418 = vmatpush1.msra.mxu0 0.0
        %8419 = vmatprep.subr.mxu0 0.0
        %8420 = vmatpush1.msra.mxu0 0.0
        %8421 = vmatprep.subr.mxu0 0.0
        %8422 = vmatpush1.msra.mxu0 0.0
        %8423 = vmatprep.subr.mxu0 0.0
        %8424 = vmatpush1.msra.mxu0 0.0
        %8425 = vmatprep.subr.mxu0 0.0
        %8426 = vmatpush1.msra.mxu0 0.0
        %8427 = vmatprep.subr.mxu0 0.0
        %8428 = vmatpush1.msra.mxu0 0.0
        %8429 = vmatprep.mubr.f32.mxu0 0.0
        %8430 = vmatmul.mubr.f32.gmra.mrb[0].mxu0 %v8342
        %v8431 = vpop.f32.mrb[0].mxu0
        %v8432 = vadd.f32 0.0, %v8431
        %v8433 = vpop.f32.mrb[0].mxu0
        %8434 = vmatprep.mubr.f32.mxu0 0.0
        %8435 = vmatmul.mubr.f32.gmra.mrb[0].mxu0 %v8345
        %v8436 = vpop.f32.mrb[0].mxu0
        %v8437 = vadd.f32 0.0, %v8436
        %v8438 = vpop.f32.mrb[0].mxu0
        %8439 = vmatprep.mubr.f32.mxu0 0.0
        %8440 = vmatmul.mubr.f32.gmra.mrb[0].mxu0 %v8348
        %v8441 = vpop.f32.mrb[0].mxu0
        %v8442 = vadd.f32 0.0, %v8441
        %v8443 = vpop.f32.mrb[0].mxu0
        %8444 = vmatprep.mubr.f32.mxu0 0.0
        %8445 = vmatmul.mubr.f32.gmra.mrb[0].mxu0 %v8351
        %v8446 = vpop.f32.mrb[0].mxu0
        %v8447 = vadd.f32 0.0, %v8446
        %v8448 = vpop.f32.mrb[0].mxu0
        %8449 = vmatprep.mubr.f32.mxu0 0.0
        %8450 = vmatmul.mubr.f32.gmra.mrb[0].mxu0 %v8354
        %v8451 = vpop.f32.mrb[0].mxu0
        %v8452 = vadd.f32 0.0, %v8451
        %v8453 = vpop.f32.mrb[0].mxu0
        %8454 = vmatprep.mubr.f32.mxu0 0.0
        %8455 = vmatmul.mubr.f32.gmra.mrb[0].mxu0 %v8357
        %v8456 = vpop.f32.mrb[0].mxu0
        %v8457 = vadd.f32 0.0, %v8456
        %v8458 = vpop.f32.mrb[0].mxu0
        %8459 = vmatprep.mubr.f32.mxu0 0.0
        %8460 = vmatmul.mubr.f32.gmra.mrb[0].mxu0 %v8360
        %v8461 = vpop.f32.mrb[0].mxu0
        %v8462 = vadd.f32 0.0, %v8461
        %v8463 = vpop.f32.mrb[0].mxu0
        %8464 = vmatprep.mubr.f32.mxu0 0.0
        %8465 = vmatmul.mubr.f32.gmra.mrb[0].mxu0 %v8363
        %v8466 = vpop.f32.mrb[0].mxu0
        %v8467 = vadd.f32 0.0, %v8466
        %v8468 = vpop.f32.mrb[0].mxu0
        %8469 = vdwg.mxu0
        %v8470 = vadd.f32 %v8323, %v8432
        %v8471 = vadd.f32 %v8324, %v8437
        %v8472 = vadd.f32 %v8325, %v8442
        %v8473 = vadd.f32 %v8326, %v8447
        %v8474 = vadd.f32 %v8327, %v8452
        %v8475 = vadd.f32 %v8328, %v8457
        %v8476 = vadd.f32 %v8329, %v8462
        %v8477 = vadd.f32 %v8330, %v8467
        %v8478 = vld [vmem:[%s7751 + $0x2] sm:$0xff]
        %v8479 = vld [vmem:[%s7751 + $0x12] sm:$0xff]
        %v8480 = vld [vmem:[%s7751 + $0x22] sm:$0xff]
        %v8481 = vld [vmem:[%s7751 + $0x32] sm:$0xff]
        %v8482 = vld [vmem:[%s7751 + $0x42] sm:$0xff]
        %v8483 = vld [vmem:[%s7751 + $0x52] sm:$0xff]
        %v8484 = vld [vmem:[%s7751 + $0x62] sm:$0xff]
        %v8485 = vld [vmem:[%s7751 + $0x72] sm:$0xff]
        %s8486 = scalar_lea.vmem %s5, 40
        %v8487 = vld [vmem:[%s8486] sm:$0xff]
        %v8489 = vsel %vm410, %v8478, 0
        %v8492 = vsel %vm410, %v8479, 0
        %v8495 = vsel %vm410, %v8480, 0
        %v8498 = vsel %vm410, %v8481, 0
        %v8501 = vsel %vm410, %v8482, 0
        %v8504 = vsel %vm410, %v8483, 0
        %v8507 = vsel %vm410, %v8484, 0
        %v8510 = vsel %vm410, %v8485, 0
        %8512 = vmatprep.subr.mxu0 0.0
        %8513 = vmatpush1.msra.mxu0 %v8487
        %8514 = vmatprep.subr.mxu0 0.0
        %8515 = vmatpush1.msra.mxu0 0.0
        %8516 = vmatprep.subr.mxu0 0.0
        %8517 = vmatpush1.msra.mxu0 0.0
        %8518 = vmatprep.subr.mxu0 0.0
        %8519 = vmatpush1.msra.mxu0 0.0
        %8520 = vmatprep.subr.mxu0 0.0
        %8521 = vmatpush1.msra.mxu0 0.0
        %8522 = vmatprep.subr.mxu0 0.0
        %8523 = vmatpush1.msra.mxu0 0.0
        %8524 = vmatprep.subr.mxu0 0.0
        %8525 = vmatpush1.msra.mxu0 0.0
        %8526 = vmatprep.subr.mxu0 0.0
        %8527 = vmatpush1.msra.mxu0 0.0
        %8528 = vmatprep.subr.mxu0 0.0
        %8529 = vmatpush1.msra.mxu0 0.0
        %8530 = vmatprep.subr.mxu0 0.0
        %8531 = vmatpush1.msra.mxu0 0.0
        %8532 = vmatprep.subr.mxu0 0.0
        %8533 = vmatpush1.msra.mxu0 0.0
        %8534 = vmatprep.subr.mxu0 0.0
        %8535 = vmatpush1.msra.mxu0 0.0
        %8536 = vmatprep.subr.mxu0 0.0
        %8537 = vmatpush1.msra.mxu0 0.0
        %8538 = vmatprep.subr.mxu0 0.0
        %8539 = vmatpush1.msra.mxu0 0.0
        %8540 = vmatprep.subr.mxu0 0.0
        %8541 = vmatpush1.msra.mxu0 0.0
        %8542 = vmatprep.subr.mxu0 0.0
        %8543 = vmatpush1.msra.mxu0 0.0
        %8544 = vmatprep.subr.mxu0 0.0
        %8545 = vmatpush1.msra.mxu0 0.0
        %8546 = vmatprep.subr.mxu0 0.0
        %8547 = vmatpush1.msra.mxu0 0.0
        %8548 = vmatprep.subr.mxu0 0.0
        %8549 = vmatpush1.msra.mxu0 0.0
        %8550 = vmatprep.subr.mxu0 0.0
        %8551 = vmatpush1.msra.mxu0 0.0
        %8552 = vmatprep.subr.mxu0 0.0
        %8553 = vmatpush1.msra.mxu0 0.0
        %8554 = vmatprep.subr.mxu0 0.0
        %8555 = vmatpush1.msra.mxu0 0.0
        %8556 = vmatprep.subr.mxu0 0.0
        %8557 = vmatpush1.msra.mxu0 0.0
        %8558 = vmatprep.subr.mxu0 0.0
        %8559 = vmatpush1.msra.mxu0 0.0
        %8560 = vmatprep.subr.mxu0 0.0
        %8561 = vmatpush1.msra.mxu0 0.0
        %8562 = vmatprep.subr.mxu0 0.0
        %8563 = vmatpush1.msra.mxu0 0.0
        %8564 = vmatprep.subr.mxu0 0.0
        %8565 = vmatpush1.msra.mxu0 0.0
        %8566 = vmatprep.subr.mxu0 0.0
        %8567 = vmatpush1.msra.mxu0 0.0
        %8568 = vmatprep.subr.mxu0 0.0
        %8569 = vmatpush1.msra.mxu0 0.0
        %8570 = vmatprep.subr.mxu0 0.0
        %8571 = vmatpush1.msra.mxu0 0.0
        %8572 = vmatprep.subr.mxu0 0.0
        %8573 = vmatpush1.msra.mxu0 0.0
        %8574 = vmatprep.subr.mxu0 0.0
        %8575 = vmatpush1.msra.mxu0 0.0
        %8576 = vmatprep.mubr.f32.mxu0 0.0
        %8577 = vmatmul.mubr.f32.gmra.mrb[0].mxu0 %v8489
        %v8578 = vpop.f32.mrb[0].mxu0
        %v8579 = vadd.f32 0.0, %v8578
        %v8580 = vpop.f32.mrb[0].mxu0
        %8581 = vmatprep.mubr.f32.mxu0 0.0
        %8582 = vmatmul.mubr.f32.gmra.mrb[0].mxu0 %v8492
        %v8583 = vpop.f32.mrb[0].mxu0
        %v8584 = vadd.f32 0.0, %v8583
        %v8585 = vpop.f32.mrb[0].mxu0
        %8586 = vmatprep.mubr.f32.mxu0 0.0
        %8587 = vmatmul.mubr.f32.gmra.mrb[0].mxu0 %v8495
        %v8588 = vpop.f32.mrb[0].mxu0
        %v8589 = vadd.f32 0.0, %v8588
        %v8590 = vpop.f32.mrb[0].mxu0
        %8591 = vmatprep.mubr.f32.mxu0 0.0
        %8592 = vmatmul.mubr.f32.gmra.mrb[0].mxu0 %v8498
        %v8593 = vpop.f32.mrb[0].mxu0
        %v8594 = vadd.f32 0.0, %v8593
        %v8595 = vpop.f32.mrb[0].mxu0
        %8596 = vmatprep.mubr.f32.mxu0 0.0
        %8597 = vmatmul.mubr.f32.gmra.mrb[0].mxu0 %v8501
        %v8598 = vpop.f32.mrb[0].mxu0
        %v8599 = vadd.f32 0.0, %v8598
        %v8600 = vpop.f32.mrb[0].mxu0
        %8601 = vmatprep.mubr.f32.mxu0 0.0
        %8602 = vmatmul.mubr.f32.gmra.mrb[0].mxu0 %v8504
        %v8603 = vpop.f32.mrb[0].mxu0
        %v8604 = vadd.f32 0.0, %v8603
        %v8605 = vpop.f32.mrb[0].mxu0
        %8606 = vmatprep.mubr.f32.mxu0 0.0
        %8607 = vmatmul.mubr.f32.gmra.mrb[0].mxu0 %v8507
        %v8608 = vpop.f32.mrb[0].mxu0
        %v8609 = vadd.f32 0.0, %v8608
        %v8610 = vpop.f32.mrb[0].mxu0
        %8611 = vmatprep.mubr.f32.mxu0 0.0
        %8612 = vmatmul.mubr.f32.gmra.mrb[0].mxu0 %v8510
        %v8613 = vpop.f32.mrb[0].mxu0
        %v8614 = vadd.f32 0.0, %v8613
        %v8615 = vpop.f32.mrb[0].mxu0
        %8616 = vdwg.mxu0
        %v8617 = vadd.f32 %v8470, %v8579
        %v8618 = vadd.f32 %v8471, %v8584
        %v8619 = vadd.f32 %v8472, %v8589
        %v8620 = vadd.f32 %v8473, %v8594
        %v8621 = vadd.f32 %v8474, %v8599
        %v8622 = vadd.f32 %v8475, %v8604
        %v8623 = vadd.f32 %v8476, %v8609
        %v8624 = vadd.f32 %v8477, %v8614
        %s8625 = scalar_lea.vmem [#allocation4], 32
        %v8626 = vld [vmem:[%s8625] sm:$0xff]
        %v8627 = vld [vmem:[%s8625 + $0x10] sm:$0xff]
        %v8628 = vld [vmem:[%s8625 + $0x20] sm:$0xff]
        %v8629 = vld [vmem:[%s8625 + $0x30] sm:$0xff]
        %v8630 = vld [vmem:[%s8625 + $0x40] sm:$0xff]
        %v8631 = vld [vmem:[%s8625 + $0x50] sm:$0xff]
        %v8632 = vld [vmem:[%s8625 + $0x60] sm:$0xff]
        %v8633 = vld [vmem:[%s8625 + $0x70] sm:$0xff]
        %s8634 = scalar_lea.vmem %s5, 48
        %v8635 = vld [vmem:[%s8634] sm:$0xff]
        %v8637 = vsel %vm410, %v8626, 0
        %v8640 = vsel %vm410, %v8627, 0
        %v8643 = vsel %vm410, %v8628, 0
        %v8646 = vsel %vm410, %v8629, 0
        %v8649 = vsel %vm410, %v8630, 0
        %v8652 = vsel %vm410, %v8631, 0
        %v8655 = vsel %vm410, %v8632, 0
        %v8658 = vsel %vm410, %v8633, 0
        %8660 = vmatprep.subr.mxu0 0.0
        %8661 = vmatpush1.msra.mxu0 %v8635
        %8662 = vmatprep.subr.mxu0 0.0
        %8663 = vmatpush1.msra.mxu0 0.0
        %8664 = vmatprep.subr.mxu0 0.0
        %8665 = vmatpush1.msra.mxu0 0.0
        %8666 = vmatprep.subr.mxu0 0.0
        %8667 = vmatpush1.msra.mxu0 0.0
        %8668 = vmatprep.subr.mxu0 0.0
        %8669 = vmatpush1.msra.mxu0 0.0
        %8670 = vmatprep.subr.mxu0 0.0
        %8671 = vmatpush1.msra.mxu0 0.0
        %8672 = vmatprep.subr.mxu0 0.0
        %8673 = vmatpush1.msra.mxu0 0.0
        %8674 = vmatprep.subr.mxu0 0.0
        %8675 = vmatpush1.msra.mxu0 0.0
        %8676 = vmatprep.subr.mxu0 0.0
        %8677 = vmatpush1.msra.mxu0 0.0
        %8678 = vmatprep.subr.mxu0 0.0
        %8679 = vmatpush1.msra.mxu0 0.0
        %8680 = vmatprep.subr.mxu0 0.0
        %8681 = vmatpush1.msra.mxu0 0.0
        %8682 = vmatprep.subr.mxu0 0.0
        %8683 = vmatpush1.msra.mxu0 0.0
        %8684 = vmatprep.subr.mxu0 0.0
        %8685 = vmatpush1.msra.mxu0 0.0
        %8686 = vmatprep.subr.mxu0 0.0
        %8687 = vmatpush1.msra.mxu0 0.0
        %8688 = vmatprep.subr.mxu0 0.0
        %8689 = vmatpush1.msra.mxu0 0.0
        %8690 = vmatprep.subr.mxu0 0.0
        %8691 = vmatpush1.msra.mxu0 0.0
        %8692 = vmatprep.subr.mxu0 0.0
        %8693 = vmatpush1.msra.mxu0 0.0
        %8694 = vmatprep.subr.mxu0 0.0
        %8695 = vmatpush1.msra.mxu0 0.0
        %8696 = vmatprep.subr.mxu0 0.0
        %8697 = vmatpush1.msra.mxu0 0.0
        %8698 = vmatprep.subr.mxu0 0.0
        %8699 = vmatpush1.msra.mxu0 0.0
        %8700 = vmatprep.subr.mxu0 0.0
        %8701 = vmatpush1.msra.mxu0 0.0
        %8702 = vmatprep.subr.mxu0 0.0
        %8703 = vmatpush1.msra.mxu0 0.0
        %8704 = vmatprep.subr.mxu0 0.0
        %8705 = vmatpush1.msra.mxu0 0.0
        %8706 = vmatprep.subr.mxu0 0.0
        %8707 = vmatpush1.msra.mxu0 0.0
        %8708 = vmatprep.subr.mxu0 0.0
        %8709 = vmatpush1.msra.mxu0 0.0
        %8710 = vmatprep.subr.mxu0 0.0
        %8711 = vmatpush1.msra.mxu0 0.0
        %8712 = vmatprep.subr.mxu0 0.0
        %8713 = vmatpush1.msra.mxu0 0.0
        %8714 = vmatprep.subr.mxu0 0.0
        %8715 = vmatpush1.msra.mxu0 0.0
        %8716 = vmatprep.subr.mxu0 0.0
        %8717 = vmatpush1.msra.mxu0 0.0
        %8718 = vmatprep.subr.mxu0 0.0
        %8719 = vmatpush1.msra.mxu0 0.0
        %8720 = vmatprep.subr.mxu0 0.0
        %8721 = vmatpush1.msra.mxu0 0.0
        %8722 = vmatprep.subr.mxu0 0.0
        %8723 = vmatpush1.msra.mxu0 0.0
        %8724 = vmatprep.mubr.f32.mxu0 0.0
        %8725 = vmatmul.mubr.f32.gmra.mrb[0].mxu0 %v8637
        %v8726 = vpop.f32.mrb[0].mxu0
        %v8727 = vadd.f32 0.0, %v8726
        %v8728 = vpop.f32.mrb[0].mxu0
        %8729 = vmatprep.mubr.f32.mxu0 0.0
        %8730 = vmatmul.mubr.f32.gmra.mrb[0].mxu0 %v8640
        %v8731 = vpop.f32.mrb[0].mxu0
        %v8732 = vadd.f32 0.0, %v8731
        %v8733 = vpop.f32.mrb[0].mxu0
        %8734 = vmatprep.mubr.f32.mxu0 0.0
        %8735 = vmatmul.mubr.f32.gmra.mrb[0].mxu0 %v8643
        %v8736 = vpop.f32.mrb[0].mxu0
        %v8737 = vadd.f32 0.0, %v8736
        %v8738 = vpop.f32.mrb[0].mxu0
        %8739 = vmatprep.mubr.f32.mxu0 0.0
        %8740 = vmatmul.mubr.f32.gmra.mrb[0].mxu0 %v8646
        %v8741 = vpop.f32.mrb[0].mxu0
        %v8742 = vadd.f32 0.0, %v8741
        %v8743 = vpop.f32.mrb[0].mxu0
        %8744 = vmatprep.mubr.f32.mxu0 0.0
        %8745 = vmatmul.mubr.f32.gmra.mrb[0].mxu0 %v8649
        %v8746 = vpop.f32.mrb[0].mxu0
        %v8747 = vadd.f32 0.0, %v8746
        %v8748 = vpop.f32.mrb[0].mxu0
        %8749 = vmatprep.mubr.f32.mxu0 0.0
        %8750 = vmatmul.mubr.f32.gmra.mrb[0].mxu0 %v8652
        %v8751 = vpop.f32.mrb[0].mxu0
        %v8752 = vadd.f32 0.0, %v8751
        %v8753 = vpop.f32.mrb[0].mxu0
        %8754 = vmatprep.mubr.f32.mxu0 0.0
        %8755 = vmatmul.mubr.f32.gmra.mrb[0].mxu0 %v8655
        %v8756 = vpop.f32.mrb[0].mxu0
        %v8757 = vadd.f32 0.0, %v8756
        %v8758 = vpop.f32.mrb[0].mxu0
        %8759 = vmatprep.mubr.f32.mxu0 0.0
        %8760 = vmatmul.mubr.f32.gmra.mrb[0].mxu0 %v8658
        %v8761 = vpop.f32.mrb[0].mxu0
        %v8762 = vadd.f32 0.0, %v8761
        %v8763 = vpop.f32.mrb[0].mxu0
        %8764 = vdwg.mxu0
        %v8765 = vadd.f32 %v8617, %v8727
        %v8766 = vadd.f32 %v8618, %v8732
        %v8767 = vadd.f32 %v8619, %v8737
        %v8768 = vadd.f32 %v8620, %v8742
        %v8769 = vadd.f32 %v8621, %v8747
        %v8770 = vadd.f32 %v8622, %v8752
        %v8771 = vadd.f32 %v8623, %v8757
        %v8772 = vadd.f32 %v8624, %v8762
        %v8773 = vld [vmem:[%s8625 + $0x1] sm:$0xff]
        %v8774 = vld [vmem:[%s8625 + $0x11] sm:$0xff]
        %v8775 = vld [vmem:[%s8625 + $0x21] sm:$0xff]
        %v8776 = vld [vmem:[%s8625 + $0x31] sm:$0xff]
        %v8777 = vld [vmem:[%s8625 + $0x41] sm:$0xff]
        %v8778 = vld [vmem:[%s8625 + $0x51] sm:$0xff]
        %v8779 = vld [vmem:[%s8625 + $0x61] sm:$0xff]
        %v8780 = vld [vmem:[%s8625 + $0x71] sm:$0xff]
        %s8781 = scalar_lea.vmem %s5, 56
        %v8782 = vld [vmem:[%s8781] sm:$0xff]
        %v8784 = vsel %vm410, %v8773, 0
        %v8787 = vsel %vm410, %v8774, 0
        %v8790 = vsel %vm410, %v8775, 0
        %v8793 = vsel %vm410, %v8776, 0
        %v8796 = vsel %vm410, %v8777, 0
        %v8799 = vsel %vm410, %v8778, 0
        %v8802 = vsel %vm410, %v8779, 0
        %v8805 = vsel %vm410, %v8780, 0
        %8807 = vmatprep.subr.mxu0 0.0
        %8808 = vmatpush1.msra.mxu0 %v8782
        %8809 = vmatprep.subr.mxu0 0.0
        %8810 = vmatpush1.msra.mxu0 0.0
        %8811 = vmatprep.subr.mxu0 0.0
        %8812 = vmatpush1.msra.mxu0 0.0
        %8813 = vmatprep.subr.mxu0 0.0
        %8814 = vmatpush1.msra.mxu0 0.0
        %8815 = vmatprep.subr.mxu0 0.0
        %8816 = vmatpush1.msra.mxu0 0.0
        %8817 = vmatprep.subr.mxu0 0.0
        %8818 = vmatpush1.msra.mxu0 0.0
        %8819 = vmatprep.subr.mxu0 0.0
        %8820 = vmatpush1.msra.mxu0 0.0
        %8821 = vmatprep.subr.mxu0 0.0
        %8822 = vmatpush1.msra.mxu0 0.0
        %8823 = vmatprep.subr.mxu0 0.0
        %8824 = vmatpush1.msra.mxu0 0.0
        %8825 = vmatprep.subr.mxu0 0.0
        %8826 = vmatpush1.msra.mxu0 0.0
        %8827 = vmatprep.subr.mxu0 0.0
        %8828 = vmatpush1.msra.mxu0 0.0
        %8829 = vmatprep.subr.mxu0 0.0
        %8830 = vmatpush1.msra.mxu0 0.0
        %8831 = vmatprep.subr.mxu0 0.0
        %8832 = vmatpush1.msra.mxu0 0.0
        %8833 = vmatprep.subr.mxu0 0.0
        %8834 = vmatpush1.msra.mxu0 0.0
        %8835 = vmatprep.subr.mxu0 0.0
        %8836 = vmatpush1.msra.mxu0 0.0
        %8837 = vmatprep.subr.mxu0 0.0
        %8838 = vmatpush1.msra.mxu0 0.0
        %8839 = vmatprep.subr.mxu0 0.0
        %8840 = vmatpush1.msra.mxu0 0.0
        %8841 = vmatprep.subr.mxu0 0.0
        %8842 = vmatpush1.msra.mxu0 0.0
        %8843 = vmatprep.subr.mxu0 0.0
        %8844 = vmatpush1.msra.mxu0 0.0
        %8845 = vmatprep.subr.mxu0 0.0
        %8846 = vmatpush1.msra.mxu0 0.0
        %8847 = vmatprep.subr.mxu0 0.0
        %8848 = vmatpush1.msra.mxu0 0.0
        %8849 = vmatprep.subr.mxu0 0.0
        %8850 = vmatpush1.msra.mxu0 0.0
        %8851 = vmatprep.subr.mxu0 0.0
        %8852 = vmatpush1.msra.mxu0 0.0
        %8853 = vmatprep.subr.mxu0 0.0
        %8854 = vmatpush1.msra.mxu0 0.0
        %8855 = vmatprep.subr.mxu0 0.0
        %8856 = vmatpush1.msra.mxu0 0.0
        %8857 = vmatprep.subr.mxu0 0.0
        %8858 = vmatpush1.msra.mxu0 0.0
        %8859 = vmatprep.subr.mxu0 0.0
        %8860 = vmatpush1.msra.mxu0 0.0
        %8861 = vmatprep.subr.mxu0 0.0
        %8862 = vmatpush1.msra.mxu0 0.0
        %8863 = vmatprep.subr.mxu0 0.0
        %8864 = vmatpush1.msra.mxu0 0.0
        %8865 = vmatprep.subr.mxu0 0.0
        %8866 = vmatpush1.msra.mxu0 0.0
        %8867 = vmatprep.subr.mxu0 0.0
        %8868 = vmatpush1.msra.mxu0 0.0
        %8869 = vmatprep.subr.mxu0 0.0
        %8870 = vmatpush1.msra.mxu0 0.0
        %8871 = vmatprep.mubr.f32.mxu0 0.0
        %8872 = vmatmul.mubr.f32.gmra.mrb[0].mxu0 %v8784
        %v8873 = vpop.f32.mrb[0].mxu0
        %v8874 = vadd.f32 0.0, %v8873
        %v8875 = vpop.f32.mrb[0].mxu0
        %8876 = vmatprep.mubr.f32.mxu0 0.0
        %8877 = vmatmul.mubr.f32.gmra.mrb[0].mxu0 %v8787
        %v8878 = vpop.f32.mrb[0].mxu0
        %v8879 = vadd.f32 0.0, %v8878
        %v8880 = vpop.f32.mrb[0].mxu0
        %8881 = vmatprep.mubr.f32.mxu0 0.0
        %8882 = vmatmul.mubr.f32.gmra.mrb[0].mxu0 %v8790
        %v8883 = vpop.f32.mrb[0].mxu0
        %v8884 = vadd.f32 0.0, %v8883
        %v8885 = vpop.f32.mrb[0].mxu0
        %8886 = vmatprep.mubr.f32.mxu0 0.0
        %8887 = vmatmul.mubr.f32.gmra.mrb[0].mxu0 %v8793
        %v8888 = vpop.f32.mrb[0].mxu0
        %v8889 = vadd.f32 0.0, %v8888
        %v8890 = vpop.f32.mrb[0].mxu0
        %8891 = vmatprep.mubr.f32.mxu0 0.0
        %8892 = vmatmul.mubr.f32.gmra.mrb[0].mxu0 %v8796
        %v8893 = vpop.f32.mrb[0].mxu0
        %v8894 = vadd.f32 0.0, %v8893
        %v8895 = vpop.f32.mrb[0].mxu0
        %8896 = vmatprep.mubr.f32.mxu0 0.0
        %8897 = vmatmul.mubr.f32.gmra.mrb[0].mxu0 %v8799
        %v8898 = vpop.f32.mrb[0].mxu0
        %v8899 = vadd.f32 0.0, %v8898
        %v8900 = vpop.f32.mrb[0].mxu0
        %8901 = vmatprep.mubr.f32.mxu0 0.0
        %8902 = vmatmul.mubr.f32.gmra.mrb[0].mxu0 %v8802
        %v8903 = vpop.f32.mrb[0].mxu0
        %v8904 = vadd.f32 0.0, %v8903
        %v8905 = vpop.f32.mrb[0].mxu0
        %8906 = vmatprep.mubr.f32.mxu0 0.0
        %8907 = vmatmul.mubr.f32.gmra.mrb[0].mxu0 %v8805
        %v8908 = vpop.f32.mrb[0].mxu0
        %v8909 = vadd.f32 0.0, %v8908
        %v8910 = vpop.f32.mrb[0].mxu0
        %8911 = vdwg.mxu0
        %v8912 = vadd.f32 %v8765, %v8874
        %v8913 = vadd.f32 %v8766, %v8879
        %v8914 = vadd.f32 %v8767, %v8884
        %v8915 = vadd.f32 %v8768, %v8889
        %v8916 = vadd.f32 %v8769, %v8894
        %v8917 = vadd.f32 %v8770, %v8899
        %v8918 = vadd.f32 %v8771, %v8904
        %v8919 = vadd.f32 %v8772, %v8909
        %v8920 = vld [vmem:[%s8625 + $0x2] sm:$0xff]
        %v8921 = vld [vmem:[%s8625 + $0x12] sm:$0xff]
        %v8922 = vld [vmem:[%s8625 + $0x22] sm:$0xff]
        %v8923 = vld [vmem:[%s8625 + $0x32] sm:$0xff]
        %v8924 = vld [vmem:[%s8625 + $0x42] sm:$0xff]
        %v8925 = vld [vmem:[%s8625 + $0x52] sm:$0xff]
        %v8926 = vld [vmem:[%s8625 + $0x62] sm:$0xff]
        %v8927 = vld [vmem:[%s8625 + $0x72] sm:$0xff]
        %s8928 = scalar_lea.vmem %s5, 64
        %v8929 = vld [vmem:[%s8928] sm:$0xff]
        %v8931 = vsel %vm410, %v8920, 0
        %v8934 = vsel %vm410, %v8921, 0
        %v8937 = vsel %vm410, %v8922, 0
        %v8940 = vsel %vm410, %v8923, 0
        %v8943 = vsel %vm410, %v8924, 0
        %v8946 = vsel %vm410, %v8925, 0
        %v8949 = vsel %vm410, %v8926, 0
        %v8952 = vsel %vm410, %v8927, 0
        %8954 = vmatprep.subr.mxu0 0.0
        %8955 = vmatpush1.msra.mxu0 %v8929
        %8956 = vmatprep.subr.mxu0 0.0
        %8957 = vmatpush1.msra.mxu0 0.0
        %8958 = vmatprep.subr.mxu0 0.0
        %8959 = vmatpush1.msra.mxu0 0.0
        %8960 = vmatprep.subr.mxu0 0.0
        %8961 = vmatpush1.msra.mxu0 0.0
        %8962 = vmatprep.subr.mxu0 0.0
        %8963 = vmatpush1.msra.mxu0 0.0
        %8964 = vmatprep.subr.mxu0 0.0
        %8965 = vmatpush1.msra.mxu0 0.0
        %8966 = vmatprep.subr.mxu0 0.0
        %8967 = vmatpush1.msra.mxu0 0.0
        %8968 = vmatprep.subr.mxu0 0.0
        %8969 = vmatpush1.msra.mxu0 0.0
        %8970 = vmatprep.subr.mxu0 0.0
        %8971 = vmatpush1.msra.mxu0 0.0
        %8972 = vmatprep.subr.mxu0 0.0
        %8973 = vmatpush1.msra.mxu0 0.0
        %8974 = vmatprep.subr.mxu0 0.0
        %8975 = vmatpush1.msra.mxu0 0.0
        %8976 = vmatprep.subr.mxu0 0.0
        %8977 = vmatpush1.msra.mxu0 0.0
        %8978 = vmatprep.subr.mxu0 0.0
        %8979 = vmatpush1.msra.mxu0 0.0
        %8980 = vmatprep.subr.mxu0 0.0
        %8981 = vmatpush1.msra.mxu0 0.0
        %8982 = vmatprep.subr.mxu0 0.0
        %8983 = vmatpush1.msra.mxu0 0.0
        %8984 = vmatprep.subr.mxu0 0.0
        %8985 = vmatpush1.msra.mxu0 0.0
        %8986 = vmatprep.subr.mxu0 0.0
        %8987 = vmatpush1.msra.mxu0 0.0
        %8988 = vmatprep.subr.mxu0 0.0
        %8989 = vmatpush1.msra.mxu0 0.0
        %8990 = vmatprep.subr.mxu0 0.0
        %8991 = vmatpush1.msra.mxu0 0.0
        %8992 = vmatprep.subr.mxu0 0.0
        %8993 = vmatpush1.msra.mxu0 0.0
        %8994 = vmatprep.subr.mxu0 0.0
        %8995 = vmatpush1.msra.mxu0 0.0
        %8996 = vmatprep.subr.mxu0 0.0
        %8997 = vmatpush1.msra.mxu0 0.0
        %8998 = vmatprep.subr.mxu0 0.0
        %8999 = vmatpush1.msra.mxu0 0.0
        %9000 = vmatprep.subr.mxu0 0.0
        %9001 = vmatpush1.msra.mxu0 0.0
        %9002 = vmatprep.subr.mxu0 0.0
        %9003 = vmatpush1.msra.mxu0 0.0
        %9004 = vmatprep.subr.mxu0 0.0
        %9005 = vmatpush1.msra.mxu0 0.0
        %9006 = vmatprep.subr.mxu0 0.0
        %9007 = vmatpush1.msra.mxu0 0.0
        %9008 = vmatprep.subr.mxu0 0.0
        %9009 = vmatpush1.msra.mxu0 0.0
        %9010 = vmatprep.subr.mxu0 0.0
        %9011 = vmatpush1.msra.mxu0 0.0
        %9012 = vmatprep.subr.mxu0 0.0
        %9013 = vmatpush1.msra.mxu0 0.0
        %9014 = vmatprep.subr.mxu0 0.0
        %9015 = vmatpush1.msra.mxu0 0.0
        %9016 = vmatprep.subr.mxu0 0.0
        %9017 = vmatpush1.msra.mxu0 0.0
        %9018 = vmatprep.mubr.f32.mxu0 0.0
        %9019 = vmatmul.mubr.f32.gmra.mrb[0].mxu0 %v8931
        %v9020 = vpop.f32.mrb[0].mxu0
        %v9021 = vadd.f32 0.0, %v9020
        %v9022 = vpop.f32.mrb[0].mxu0
        %9023 = vmatprep.mubr.f32.mxu0 0.0
        %9024 = vmatmul.mubr.f32.gmra.mrb[0].mxu0 %v8934
        %v9025 = vpop.f32.mrb[0].mxu0
        %v9026 = vadd.f32 0.0, %v9025
        %v9027 = vpop.f32.mrb[0].mxu0
        %9028 = vmatprep.mubr.f32.mxu0 0.0
        %9029 = vmatmul.mubr.f32.gmra.mrb[0].mxu0 %v8937
        %v9030 = vpop.f32.mrb[0].mxu0
        %v9031 = vadd.f32 0.0, %v9030
        %v9032 = vpop.f32.mrb[0].mxu0
        %9033 = vmatprep.mubr.f32.mxu0 0.0
        %9034 = vmatmul.mubr.f32.gmra.mrb[0].mxu0 %v8940
        %v9035 = vpop.f32.mrb[0].mxu0
        %v9036 = vadd.f32 0.0, %v9035
        %v9037 = vpop.f32.mrb[0].mxu0
        %9038 = vmatprep.mubr.f32.mxu0 0.0
        %9039 = vmatmul.mubr.f32.gmra.mrb[0].mxu0 %v8943
        %v9040 = vpop.f32.mrb[0].mxu0
        %v9041 = vadd.f32 0.0, %v9040
        %v9042 = vpop.f32.mrb[0].mxu0
        %9043 = vmatprep.mubr.f32.mxu0 0.0
        %9044 = vmatmul.mubr.f32.gmra.mrb[0].mxu0 %v8946
        %v9045 = vpop.f32.mrb[0].mxu0
        %v9046 = vadd.f32 0.0, %v9045
        %v9047 = vpop.f32.mrb[0].mxu0
        %9048 = vmatprep.mubr.f32.mxu0 0.0
        %9049 = vmatmul.mubr.f32.gmra.mrb[0].mxu0 %v8949
        %v9050 = vpop.f32.mrb[0].mxu0
        %v9051 = vadd.f32 0.0, %v9050
        %v9052 = vpop.f32.mrb[0].mxu0
        %9053 = vmatprep.mubr.f32.mxu0 0.0
        %9054 = vmatmul.mubr.f32.gmra.mrb[0].mxu0 %v8952
        %v9055 = vpop.f32.mrb[0].mxu0
        %v9056 = vadd.f32 0.0, %v9055
        %v9057 = vpop.f32.mrb[0].mxu0
        %9058 = vdwg.mxu0
        %v9059 = vadd.f32 %v8912, %v9021
        %v9060 = vadd.f32 %v8913, %v9026
        %v9061 = vadd.f32 %v8914, %v9031
        %v9062 = vadd.f32 %v8915, %v9036
        %v9063 = vadd.f32 %v8916, %v9041
        %v9064 = vadd.f32 %v8917, %v9046
        %v9065 = vadd.f32 %v8918, %v9051
        %v9066 = vadd.f32 %v8919, %v9056
        %v9067 = vld [vmem:[%s6] sm:$0x1]
        %v9069 = vlaneseq
        %v9070 = vshrl.u32 %v9069, 7
        %v9071 = vsub.s32 0, %v9070
        %v9072 = vrot.slane %v9067, %v9071
        %v9074 = vadd.f32 %v9059, %v9072
        %v9075 = vadd.f32 %v9060, %v9072
        %v9076 = vadd.f32 %v9061, %v9072
        %v9077 = vadd.f32 %v9062, %v9072
        %v9078 = vadd.f32 %v9063, %v9072
        %v9079 = vadd.f32 %v9064, %v9072
        %v9080 = vadd.f32 %v9065, %v9072
        %v9081 = vadd.f32 %v9066, %v9072
        %v9082 = vmax.f32 %v9074, 0.0
        %v9083 = vmax.f32 %v9075, 0.0
        %v9084 = vmax.f32 %v9076, 0.0
        %v9085 = vmax.f32 %v9077, 0.0
        %v9086 = vmax.f32 %v9078, 0.0
        %v9087 = vmax.f32 %v9079, 0.0
        %v9088 = vmax.f32 %v9080, 0.0
        %v9089 = vmax.f32 %v9081, 0.0
        %vm9090 = vcmask 130048
        %9091 = vst.msk [vmem:[%s343] sm:$0xff] %vm9090, %v9082
        %9092 = vst.msk [vmem:[%s343 + $0x8] sm:$0xff] %vm9090, %v9083
        %9093 = vst.msk [vmem:[%s343 + $0x10] sm:$0xff] %vm9090, %v9084
        %9094 = vst.msk [vmem:[%s343 + $0x18] sm:$0xff] %vm9090, %v9085
        %9095 = vst.msk [vmem:[%s343 + $0x20] sm:$0xff] %vm9090, %v9086
        %9096 = vst.msk [vmem:[%s343 + $0x28] sm:$0xff] %vm9090, %v9087
        %9097 = vst.msk [vmem:[%s343 + $0x30] sm:$0xff] %vm9090, %v9088
        %9098 = vst.msk [vmem:[%s343 + $0x38] sm:$0xff] %vm9090, %v9089
        %p9099 = scmp.lt.s32.totalorder %s27, 1
        %s9100 = scalar_select %p9099, %s27, 1
        %s9101 = smul.addr %s9100, 32
        %s9102 = smul.addr %s9101, 8
        %s9103 = scalar_lea.vmem %s7, %s9102
        %s9104 = sand.u32 %s213, 1
        %s9105 = scalar_lea.sflag [#allocation7], %s9104
        %s9106 = sand.u32 %s213, 1
        %s9107 = smul.addr %s9106, 64
        %s9108 = scalar_lea.vmem [#allocation6], %s9107
        %s9109 = sand.u32 %s239, 1
        %s9110 = scalar_lea.sflag [#allocation9], %s9109
        %s9111 = sand.u32 %s239, 1
        %s9112 = smul.addr %s9111, 64
        %s9113 = scalar_lea.vmem [#allocation8], %s9112
        // Predicated region
        $region49: #{tpu_custom_call.1} parent=47 // pred_check
          %p9114 = pneg %p197
        $region50: #{tpu_custom_call.1} parent=47 // pred_check_branch
          %9116 = sbr.rel (%p9114) target = $region52
        $region51: #{tpu_custom_call.1} parent=47 // pred_region
          _
        $region52: #{tpu_custom_call.1} parent=47 // pred_fallthru
          _
        // Predicated region
        $region53: #{tpu_custom_call.1} parent=47 // pred_check
          %p9117 = pneg %p223
        $region54: #{tpu_custom_call.1} parent=47 // pred_check_branch
          %9119 = sbr.rel (%p9117) target = $region56
        $region55: #{tpu_custom_call.1} parent=47 // pred_region
          %s9121 = ssub.s32 1024, 1024
          %9122 = vsyncadd %s9105, %s9121
          %s9123 = smul.addr %s27, 8
          %s9124 = smul.addr %s9123, 128
          %s9125 = scalar_lea.hbm %s8, %s9124
          %s9126 = sshll.u32 %s9108, 4
          %s9127 = int_to_ptr.vmem [resolvable:$true] %s9126
          %9132 = dma.vmem_to_hbm [thread:$0]  %s9127, 1024, %s9125, %s9105, 128, 128, 8
        $region56: #{tpu_custom_call.1} parent=47 // pred_fallthru
          _
        // Predicated region
        $region57: #{tpu_custom_call.1} parent=47 // pred_check
          %p9133 = pneg %p249
        $region58: #{tpu_custom_call.1} parent=47 // pred_check_branch
          %9135 = sbr.rel (%p9133) target = $region60
        $region59: #{tpu_custom_call.1} parent=47 // pred_region
          %s9137 = ssub.s32 1024, 1024
          %9138 = vsyncadd %s9110, %s9137
          %s9139 = smul.addr %s27, 8
          %s9140 = smul.addr %s9139, 128
          %s9141 = scalar_lea.hbm %s9, %s9140
          %s9142 = sshll.u32 %s9113, 4
          %s9143 = int_to_ptr.vmem [resolvable:$true] %s9142
          %9148 = dma.vmem_to_hbm [thread:$0]  %s9143, 1024, %s9141, %s9110, 128, 128, 8
        $region60: #{tpu_custom_call.1} parent=47 // pred_fallthru
          _
      $region48: #{tpu_custom_call.1} parent=5 // pred_fallthru
        _
      %p9149 = scmp.le.s32.totalorder 2, %s22
      // Predicated region
      $region61: #{tpu_custom_call.1} parent=5 // pred_check
        %p9150 = pneg %p9149
      $region62: #{tpu_custom_call.1} parent=5 // pred_check_branch
        %9152 = sbr.rel (%p9150) target = $region64
      $region63: #{tpu_custom_call.1} parent=5 // pred_region
        %s9153 = ssub.s32 %s22, 2
        // Predicated region
        $region65: #{tpu_custom_call.1} parent=63 // pred_check
          %p9154 = pneg %p203
        $region66: #{tpu_custom_call.1} parent=63 // pred_check_branch
          %9156 = sbr.rel (%p9154) target = $region68
        $region67: #{tpu_custom_call.1} parent=63 // pred_region
          %p9157 = scmp.lt.s32.totalorder %s28, 1
          %s9158 = scalar_select %p9157, %s28, 1
          %s9159 = smul.addr %s9158, 32
          %s9160 = smul.addr %s9159, 8
          %s9161 = scalar_lea.vmem %s7, %s9160
        $region68: #{tpu_custom_call.1} parent=63 // pred_fallthru
          _
        // Predicated region
        $region69: #{tpu_custom_call.1} parent=63 // pred_check
          %p9162 = pneg %p229
        $region70: #{tpu_custom_call.1} parent=63 // pred_check_branch
          %9164 = sbr.rel (%p9162) target = $region72
        $region71: #{tpu_custom_call.1} parent=63 // pred_region
          %s9165 = sand.u32 %s214, 1
          %s9166 = scalar_lea.sflag [#allocation7], %s9165
          %s9167 = sand.u32 %s214, 1
          %s9168 = smul.addr %s9167, 64
          %s9169 = scalar_lea.vmem [#allocation6], %s9168
          %9170 = dma.done %s9166, 1024
        $region72: #{tpu_custom_call.1} parent=63 // pred_fallthru
          _
        // Predicated region
        $region73: #{tpu_custom_call.1} parent=63 // pred_check
          %p9171 = pneg %p255
        $region74: #{tpu_custom_call.1} parent=63 // pred_check_branch
          %9173 = sbr.rel (%p9171) target = $region76
        $region75: #{tpu_custom_call.1} parent=63 // pred_region
          %s9174 = sand.u32 %s240, 1
          %s9175 = scalar_lea.sflag [#allocation9], %s9174
          %s9176 = sand.u32 %s240, 1
          %s9177 = smul.addr %s9176, 64
          %s9178 = scalar_lea.vmem [#allocation8], %s9177
          %9179 = dma.done %s9175, 1024
        $region76: #{tpu_custom_call.1} parent=63 // pred_fallthru
          _
      $region64: #{tpu_custom_call.1} parent=5 // pred_fallthru
        _
    $region6: #{tpu_custom_call.1} parent=1 // loop_footer
      %s26 = sadd.s32 1, %s22
    $region7: #{tpu_custom_call.1} parent=1 // loop_footer_branch
      %21 = sbr.rel target = $region3
    $region8: #{tpu_custom_call.1} parent=1 // loop_exit
      _
    %9180 = vsyncpa [#allocation7], 1
    %s9181 = scalar_lea.sflag [#allocation7], 1
    %9182 = vsyncpa %s9181, 1
    %9183 = vsyncpa [#allocation9], 1
    %s9184 = scalar_lea.sflag [#allocation9], 1
    %9185 = vsyncpa %s9184, 1

</llo_original>
